<compile_context>
chip_gen: v5e
topology: v5e:2x2
jax: 0.10.0
libtpu: 0.0.40
codegen_flags: <defaults>
</compile_context>

<pallas_src>
import functools

import jax
import jax.numpy as jnp
from jax import lax
from jax.experimental import pallas as pl
from jax.experimental.pallas import tpu as pltpu


# ----------------------------------------------------------------------------
# Pallas kernels
# ----------------------------------------------------------------------------
def _linear_kernel(x_ref, w_ref, b_ref, o_ref):
    # y = x @ w + b  (whole tile resident in VMEM; shapes here are tiny)
    o_ref[...] = (
        jnp.dot(x_ref[...], w_ref[...], preferred_element_type=jnp.float32)
        + b_ref[...]
    )


def pallas_linear(x, w, b):
    """x: (M, K) f32, w: (K, N) f32, b: (N,) f32 -> (M, N) f32."""
    M, K = x.shape
    N = w.shape[1]
    return pl.pallas_call(
        _linear_kernel,
        out_shape=jax.ShapeDtypeStruct((M, N), jnp.float32),
        grid=(1,),
        in_specs=[
            pl.BlockSpec((M, K), lambda i: (0, 0)),
            pl.BlockSpec((K, N), lambda i: (0, 0)),
            pl.BlockSpec((1, N), lambda i: (0, 0)),
        ],
        out_specs=pl.BlockSpec((M, N), lambda i: (0, 0)),
        compiler_params=pltpu.CompilerParams(dimension_semantics=("arbitrary",)),
    )(x, w, b.reshape(1, N))


def _sigmoid(x):
    return 1.0 / (1.0 + jnp.exp(-x))


def _lstm_kernel(x_ref, wih_ref, whh_ref, b_ref, o_ref, *, hidden, seq_len):
    """Single-layer LSTM, whole recurrence resident in VMEM.

    x_ref: (S, N, E) time-major token embeddings.
    o_ref: (N, S*H) lane-dense hidden-state history (step t at cols t*H:(t+1)*H).
    PyTorch gate order (i, f, g, o); combined bias b = b_ih + b_hh.
    """
    n_batch = x_ref.shape[1]
    wih = wih_ref[...]
    whh = whh_ref[...]
    b = b_ref[...]
    h = jnp.zeros((n_batch, hidden), jnp.float32)
    c = jnp.zeros((n_batch, hidden), jnp.float32)
    for t in range(seq_len):  # static unroll; seq_len is small
        gates = (
            jnp.dot(x_ref[t], wih, preferred_element_type=jnp.float32)
            + jnp.dot(h, whh, preferred_element_type=jnp.float32)
            + b
        )
        i_g = _sigmoid(gates[:, :hidden])
        f_g = _sigmoid(gates[:, hidden:2 * hidden])
        g_g = jnp.tanh(gates[:, 2 * hidden:3 * hidden])
        o_g = _sigmoid(gates[:, 3 * hidden:])
        c = f_g * c + i_g * g_g
        h = o_g * jnp.tanh(c)
        o_ref[:, t * hidden:(t + 1) * hidden] = h


def pallas_lstm(x, p, hidden):
    """Single-layer batch_first LSTM. x: (N, S, E) -> (N, S, H)."""
    # TODO(synk): lstm_num_layers fixed at 1 for this synthetic kernel.
    N, S, E = x.shape
    xt = jnp.transpose(x, (1, 0, 2))                 # time-major (S, N, E)
    b = (p["b_ih"] + p["b_hh"]).reshape(1, 4 * hidden)
    out = pl.pallas_call(
        functools.partial(_lstm_kernel, hidden=hidden, seq_len=S),
        out_shape=jax.ShapeDtypeStruct((N, S * hidden), jnp.float32),
        grid=(1,),
        in_specs=[
            pl.BlockSpec((S, N, E), lambda i: (0, 0, 0)),
            pl.BlockSpec((E, 4 * hidden), lambda i: (0, 0)),
            pl.BlockSpec((hidden, 4 * hidden), lambda i: (0, 0)),
            pl.BlockSpec((1, 4 * hidden), lambda i: (0, 0)),
        ],
        out_specs=pl.BlockSpec((N, S * hidden), lambda i: (0, 0)),
        compiler_params=pltpu.CompilerParams(dimension_semantics=("arbitrary",)),
    )(xt, p["w_ih"], p["w_hh"], b)
    return out.reshape(N, S, hidden)


def _fused_attflat_norm_kernel(ql_ref, qm_ref, hl_ref, hm_ref, v_ref, vm_ref,
                               w1_ref, b1_ref, w2_ref, b2_ref, wm_ref, bm_ref,
                               gam_ref, bet_ref, o_ref,
                               *, n_samples, seq_len, n_regions, n_glimpse,
                               hidden, eps):
    """Fused q/h AttFlat(lang) + AttFlat(img) + add + LayerNorm for all samples.

    Activations arrive flattened to 2-D (rows, feature) so every matmul is a
    plain 2-D MXU dot with a fat M dimension; the per-sample softmax / glimpse
    pooling / merge / LayerNorm is a short static unroll of 2-D ops.
    Stream order in the stacked weights: 0=q_lang, 1=q_img, 2=h_lang, 3=h_img.
    """
    F = wm_ref.shape[-1]
    S, Nv = seq_len, n_regions

    ql = ql_ref[...]     # (N*S, H)
    hl = hl_ref[...]
    v = v_ref[...]       # (N*Nv, H)
    qm = qm_ref[...]     # (N*S, 1)   1.0 where padded
    hm = hm_ref[...]
    vm = vm_ref[...]

    def mlp_att(x2, k):
        # AttFlat MLP: FC(H->M) + ReLU + FC(M->G); dropout is eval-mode identity.
        mid = jnp.maximum(
            jnp.dot(x2, w1_ref[k], preferred_element_type=jnp.float32) + b1_ref[k],
            0.0,
        )
        return jnp.dot(mid, w2_ref[k], preferred_element_type=jnp.float32) + b2_ref[k]

    # Batched attention-MLP matmuls across all (batch x round) samples.
    att_ql = mlp_att(ql, 0)      # (N*S, G)
    att_qi = mlp_att(v, 1)       # (N*Nv, G)
    att_hl = mlp_att(hl, 2)
    att_hi = mlp_att(v, 3)

    wm_all = [wm_ref[k] for k in range(4)]   # each (G*H, F)
    bm_all = [bm_ref[k] for k in range(4)]   # each (1, F)
    gam = [gam_ref[0], gam_ref[1]]
    bet = [bet_ref[0], bet_ref[1]]

    def pool(att, x_n, m_n, k):
        # att: (T, G) logits; x_n: (T, H); m_n: (T, 1).
        att = att + m_n * (-1000000000.0)           # ~ masked_fill(mask, -1e9)
        att = att - jnp.max(att, axis=0, keepdims=True)
        e = jnp.exp(att)
        att = e / jnp.sum(e, axis=0, keepdims=True)  # softmax over the sequence
        acc = bm_all[k]                              # (1, F)  fused linear_merge bias
        for g in range(n_glimpse):                   # static unroll; G is tiny
            pooled = jnp.sum(att[:, g:g + 1] * x_n, axis=0, keepdims=True)  # (1, H)
            acc = acc + jnp.dot(
                pooled, wm_all[k][g * hidden:(g + 1) * hidden, :],
                preferred_element_type=jnp.float32)
        return acc                                   # (1, F)

    def layer_norm(x, k):
        # TODO(synk): LayerNorm source not provided; nn.LayerNorm form, eps=1e-5.
        mu = jnp.mean(x, axis=-1, keepdims=True)
        xc = x - mu
        var = jnp.mean(xc * xc, axis=-1, keepdims=True)
        return xc * lax.rsqrt(var + eps) * gam[k] + bet[k]

    for n in range(n_samples):                       # static unroll over batch*round
        sl = slice(n * S, (n + 1) * S)
        sv = slice(n * Nv, (n + 1) * Nv)
        q_emb = pool(att_ql[sl], ql[sl], qm[sl], 0) + pool(att_qi[sv], v[sv], vm[sv], 1)
        h_emb = pool(att_hl[sl], hl[sl], hm[sl], 2) + pool(att_hi[sv], v[sv], vm[sv], 3)
        o_ref[n:n + 1, :F] = layer_norm(q_emb, 0)
        o_ref[n:n + 1, F:] = layer_norm(h_emb, 1)


def pallas_fused_attflat_norm(q_lang, q_mask, h_lang, h_mask, img, img_mask,
                              params, C):
    """One kernel launch for the whole per-round attention-pool + norm path.

    q_lang/h_lang: (N, S, H), masks: (N, S, 1); img: (N, Nv, H), img_mask:
    (N, Nv, 1) with N = batch * n_round.  Returns (q_embs, h_embs): (N, F) each.
    """
    N, S, H = q_lang.shape
    Nv = img.shape[1]
    M = C["flat_mlp"]
    G = C["flat_glimpses"]
    F = C["flat_out_size"]

    names = ("q_attflat_lang", "q_attflat_img", "h_attflat_lang", "h_attflat_img")
    w1 = jnp.stack([params[nm]["w1"] for nm in names])                 # (4, H, M)
    b1 = jnp.stack([params[nm]["b1"].reshape(1, M) for nm in names])   # (4, 1, M)
    w2 = jnp.stack([params[nm]["w2"] for nm in names])                 # (4, M, G)
    b2 = jnp.stack([params[nm]["b2"].reshape(1, G) for nm in names])   # (4, 1, G)
    wm = jnp.stack([params[nm]["wm"] for nm in names])                 # (4, G*H, F)
    bm = jnp.stack([params[nm]["bm"].reshape(1, F) for nm in names])   # (4, 1, F)
    gam = jnp.stack([params["q_norm_g"].reshape(1, F),
                     params["h_norm_g"].reshape(1, F)])                # (2, 1, F)
    bet = jnp.stack([params["q_norm_b"].reshape(1, F),
                     params["h_norm_b"].reshape(1, F)])

    kern = functools.partial(
        _fused_attflat_norm_kernel,
        n_samples=N, seq_len=S, n_regions=Nv, n_glimpse=G, hidden=H, eps=1e-5)

    qh = pl.pallas_call(
        kern,
        out_shape=jax.ShapeDtypeStruct((N, 2 * F), jnp.float32),
        grid=(1,),
        in_specs=[
            pl.BlockSpec((N * S, H), lambda i: (0, 0)),
            pl.BlockSpec((N * S, 1), lambda i: (0, 0)),
            pl.BlockSpec((N * S, H), lambda i: (0, 0)),
            pl.BlockSpec((N * S, 1), lambda i: (0, 0)),
            pl.BlockSpec((N * Nv, H), lambda i: (0, 0)),
            pl.BlockSpec((N * Nv, 1), lambda i: (0, 0)),
            pl.BlockSpec((4, H, M), lambda i: (0, 0, 0)),
            pl.BlockSpec((4, 1, M), lambda i: (0, 0, 0)),
            pl.BlockSpec((4, M, G), lambda i: (0, 0, 0)),
            pl.BlockSpec((4, 1, G), lambda i: (0, 0, 0)),
            pl.BlockSpec((4, G * H, F), lambda i: (0, 0, 0)),
            pl.BlockSpec((4, 1, F), lambda i: (0, 0, 0)),
            pl.BlockSpec((2, 1, F), lambda i: (0, 0, 0)),
            pl.BlockSpec((2, 1, F), lambda i: (0, 0, 0)),
        ],
        out_specs=pl.BlockSpec((N, 2 * F), lambda i: (0, 0)),
        compiler_params=pltpu.CompilerParams(dimension_semantics=("arbitrary",)),
    )(q_lang.reshape(N * S, H), q_mask.reshape(N * S, 1),
      h_lang.reshape(N * S, H), h_mask.reshape(N * S, 1),
      img.reshape(N * Nv, H), img_mask.reshape(N * Nv, 1),
      w1, b1, w2, b2, wm, bm, gam, bet)
    return qh[:, :F], qh[:, F:]


# ----------------------------------------------------------------------------
# Plain-JAX glue (embedding lookup + sparse-graph stand-ins)
# ----------------------------------------------------------------------------
def sgm_forward(q_emb, h_embs):
    # TODO(synk): SparseGraphLearningModule source not provided; dot-product
    # attention stand-in with the correct output shapes (B,1,n), (B,1,n).
    F = q_emb.shape[-1]
    scores = jnp.einsum("bif,bjf->bij", q_emb, h_embs) / jnp.sqrt(float(F))
    w_att = jax.nn.softmax(scores, axis=-1)
    n = h_embs.shape[1]
    binary = (w_att >= (1.0 / n)).astype(jnp.float32)
    return binary, w_att


def sgm_update(params, q_emb, h_embs, adj):
    # TODO(synk): SparseGraphLearningModule.update source not provided;
    # graph-aggregation + projection stand-in producing (B, 1, hidden).
    nodes = jnp.concatenate([q_emb, h_embs], axis=1)       # (B, n+1, F)
    agg = jnp.einsum("brc,bcf->brf", adj, nodes)           # (B, n+1, F)
    z = agg[:, -1, :]                                      # (B, F)
    z = jax.nn.relu(z @ params["sgm_w"] + params["sgm_b"])
    return z[:, None, :]


def sgln_forward(params, ques, hist, img, *, C):
    B, n_round, S = ques.shape
    H = C["hidden_size"]
    F = C["flat_out_size"]
    Nv = img.shape[1]
    N = B * n_round

    # ---- image projection (single Pallas linear over every region) ----
    img_feat = pallas_linear(
        img.reshape(B * Nv, C["img_feature_size"]),
        params["v_proj_w"], params["v_proj_b"]).reshape(B, Nv, H)
    # make_mask on the projected features, exactly as in the reference forward.
    img_mask = (jnp.sum(jnp.abs(img_feat), axis=-1) == 0).astype(jnp.float32)[..., None]

    # ---- language path, batched over (batch x round) ----
    ques_flat = ques.reshape(N, S)
    hist_flat = hist.reshape(N, S)
    ques_mask = (ques_flat == 0).astype(jnp.float32)[..., None]     # (N, S, 1)
    hist_mask = (hist_flat == 0).astype(jnp.float32)[..., None]

    q_tok = jnp.take(params["word_embed"], ques_flat, axis=0)       # (N, S, E)
    h_tok = jnp.take(params["word_embed"], hist_flat, axis=0)

    ques_feat = pallas_lstm(q_tok, params["q_rnn"], H)              # (N, S, H)
    hist_feat = pallas_lstm(h_tok, params["h_rnn"], H)

    # TODO(synk): NodeEmbeddingModule source not provided; identity stand-in,
    # so (q_emb, qi_emb) = (ques_feat, img_feat) and (h_emb, hi_emb) likewise.
    img_b = jnp.broadcast_to(img_feat[:, None], (B, n_round, Nv, H)).reshape(N, Nv, H)
    img_mask_b = jnp.broadcast_to(img_mask[:, None], (B, n_round, Nv, 1)).reshape(N, Nv, 1)

    q_embs, h_embs_all = pallas_fused_attflat_norm(
        ques_feat, ques_mask, hist_feat, hist_mask, img_b, img_mask_b, params, C)
    q_embs = q_embs.reshape(B, n_round, F)
    h_embs_all = h_embs_all.reshape(B, n_round, F)

    # ---- inherently sequential sparse-graph part (stand-ins) ----
    weighted_strct = jnp.zeros((B, n_round + 1, n_round + 1), jnp.float32)
    binary_strct = jnp.zeros((B, n_round, n_round), jnp.float32)
    enc_outs = []
    for i in range(n_round):
        q_emb = q_embs[:, i:i + 1, :]                      # (B, 1, F)
        h_embs = h_embs_all[:, :i + 1, :]                  # (B, i+1, F)
        binary, w_att = sgm_forward(q_emb, h_embs)         # (B, 1, i+1)
        binary_strct = binary_strct.at[:, i, :i + 1].set(binary[:, 0, :])
        weighted_strct = weighted_strct.at[:, i + 1, :i + 1].set(w_att[:, 0, :])
        adj = weighted_strct[:, :i + 2, :i + 2]            # (B, i+2, i+2)
        z = sgm_update(params, q_emb, h_embs, adj)         # (B, 1, H)
        enc_outs.append(z)

    enc_out = jnp.concatenate(enc_outs, axis=1)            # (B, R, H)
    enc_out = pallas_linear(
        enc_out.reshape(B * n_round, H), params["j_proj_w"], params["j_proj_b"]
    ).reshape(B, n_round, H)
    enc_out = jnp.tanh(enc_out)
    return enc_out, binary_strct


# ----------------------------------------------------------------------------
# Deterministic parameter init
# ----------------------------------------------------------------------------
def init_params(key, C, vocab_size):
    keys = iter(jax.random.split(key, 64))

    def rnd(shape, scale=0.1):
        return scale * jax.random.normal(next(keys), shape, jnp.float32)

    H, E = C["hidden_size"], C["word_embedding_size"]
    M, G, F = C["flat_mlp"], C["flat_glimpses"], C["flat_out_size"]

    def attflat_params():
        return {
            "w1": rnd((H, M)), "b1": rnd((M,)),
            "w2": rnd((M, G)), "b2": rnd((G,)),
            "wm": rnd((G * H, F)), "bm": rnd((F,)),
        }

    def rnn_params():
        return {
            "w_ih": rnd((E, 4 * H)), "w_hh": rnd((H, 4 * H)),
            "b_ih": rnd((4 * H,)), "b_hh": rnd((4 * H,)),
        }

    emb = rnd((vocab_size, E)).at[0].set(0.0)              # padding_idx = 0
    return {
        "word_embed": emb,
        "q_rnn": rnn_params(),
        "h_rnn": rnn_params(),
        "v_proj_w": rnd((C["img_feature_size"], H)), "v_proj_b": rnd((H,)),
        "j_proj_w": rnd((H, H)), "j_proj_b": rnd((H,)),
        "q_norm_g": jnp.ones((F,), jnp.float32), "q_norm_b": jnp.zeros((F,), jnp.float32),
        "h_norm_g": jnp.ones((F,), jnp.float32), "h_norm_b": jnp.zeros((F,), jnp.float32),
        "q_attflat_lang": attflat_params(), "q_attflat_img": attflat_params(),
        "h_attflat_lang": attflat_params(), "h_attflat_img": attflat_params(),
        "sgm_w": rnd((F, H)), "sgm_b": rnd((H,)),
    }


# ----------------------------------------------------------------------------
if __name__ == "__main__":
    C = {
        "hidden_size": 32,
        "word_embedding_size": 16,
        "flat_mlp": 16,
        "flat_glimpses": 2,
        "flat_out_size": 32,      # == hidden_size (needed for j_proj / norms)
        "img_feature_size": 64,
        "lstm_num_layers": 1,
        "model_dropout": 0.0,     # eval mode -> dropout is identity
    }
    VOCAB = 20
    B, N_ROUND, SEQ, NV = 2, 3, 8, 8

    key = jax.random.PRNGKey(0)
    kp, kq, kh, kv = jax.random.split(key, 4)
    params = init_params(kp, C, VOCAB)

    ques = jax.random.randint(kq, (B, N_ROUND, SEQ), 1, VOCAB, dtype=jnp.int32)
    ques = ques.at[:, :, 6:].set(0)                        # PAD tail
    hist = jax.random.randint(kh, (B, N_ROUND, SEQ), 1, VOCAB, dtype=jnp.int32)
    hist = hist.at[:, :, 5:].set(0)                        # PAD tail
    img = jax.random.normal(kv, (B, NV, C["img_feature_size"]), jnp.float32)

    fwd = jax.jit(functools.partial(sgln_forward, C=C))
    enc_out, binary_strct = fwd(params, ques, hist, img)
    jax.block_until_ready((enc_out, binary_strct))

    assert enc_out.shape == (B, N_ROUND, C["hidden_size"])
    assert binary_strct.shape == (B, N_ROUND, N_ROUND)
    print("KERNEL_OK")
</pallas_src>

<mosaic_0001>
module attributes {stable_mosaic.version = 11 : i64} {
  func.func @_lstm_kernel(%arg0: i32, %arg1: memref<8x6x16xf32, #tpu.memory_space<vmem>>, %arg2: memref<16x128xf32, #tpu.memory_space<vmem>>, %arg3: memref<32x128xf32, #tpu.memory_space<vmem>>, %arg4: memref<1x128xf32, #tpu.memory_space<vmem>>, %arg5: memref<6x256xf32, #tpu.memory_space<vmem>>) attributes {dimension_semantics = [#tpu.dimension_semantics<arbitrary>], iteration_bounds = array<i64: 1>, scalar_prefetch = 0 : i64, scratch_operands = 0 : i64, tpu.core_type = #tpu.core_type<tc>, window_params = [{pipeline_mode = #tpu.pipeline_mode<synchronous>, transform_indices = @transform_0, window_bounds = array<i64: 8, 6, 16>}, {pipeline_mode = #tpu.pipeline_mode<synchronous>, transform_indices = @transform_1, window_bounds = array<i64: 16, 128>}, {pipeline_mode = #tpu.pipeline_mode<synchronous>, transform_indices = @transform_2, window_bounds = array<i64: 32, 128>}, {pipeline_mode = #tpu.pipeline_mode<synchronous>, transform_indices = @transform_3, window_bounds = array<i64: 1, 128>}, {pipeline_mode = #tpu.pipeline_mode<synchronous>, transform_indices = @transform_4, window_bounds = array<i64: 6, 256>}]} {
    %c0 = arith.constant 0 : index
    %c0_0 = arith.constant 0 : index
    %0 = vector.load %arg2[%c0, %c0_0] : memref<16x128xf32, #tpu.memory_space<vmem>>, vector<16x128xf32>
    %c0_1 = arith.constant 0 : index
    %c0_2 = arith.constant 0 : index
    %1 = vector.load %arg3[%c0_1, %c0_2] : memref<32x128xf32, #tpu.memory_space<vmem>>, vector<32x128xf32>
    %c0_3 = arith.constant 0 : index
    %c0_4 = arith.constant 0 : index
    %2 = vector.load %arg4[%c0_3, %c0_4] : memref<1x128xf32, #tpu.memory_space<vmem>>, vector<1x128xf32>
    %cst = arith.constant 0.000000e+00 : f32
    %3 = vector.broadcast %cst : f32 to vector<6x32xf32>
    %cst_5 = arith.constant 0.000000e+00 : f32
    %4 = vector.broadcast %cst_5 : f32 to vector<6x32xf32>
    %c0_6 = arith.constant 0 : index
    %c0_7 = arith.constant 0 : index
    %c0_8 = arith.constant 0 : index
    %5 = vector.load %arg1[%c0_6, %c0_7, %c0_8] : memref<8x6x16xf32, #tpu.memory_space<vmem>>, vector<1x6x16xf32>
    %6 = vector.shape_cast %5 : vector<1x6x16xf32> to vector<6x16xf32>
    %cst_9 = arith.constant dense<0.000000e+00> : vector<6x128xf32>
    %7 = tpu.matmul %6, %0, %cst_9 {dimension_numbers = #tpu.dot_dimension_numbers<[1], [0], [0], [1], [0, 0, 1, 1], [], []>} : vector<6x16xf32>, vector<16x128xf32>, vector<6x128xf32> -> vector<6x128xf32>
    %cst_10 = arith.constant dense<0.000000e+00> : vector<6x128xf32>
    %8 = tpu.matmul %3, %1, %cst_10 {dimension_numbers = #tpu.dot_dimension_numbers<[1], [0], [0], [1], [0, 0, 1, 1], [], []>} : vector<6x32xf32>, vector<32x128xf32>, vector<6x128xf32> -> vector<6x128xf32>
    %9 = arith.addf %7, %8 : vector<6x128xf32>
    %10 = vector.broadcast %2 : vector<1x128xf32> to vector<6x128xf32>
    %11 = arith.addf %9, %10 : vector<6x128xf32>
    %12 = vector.extract_strided_slice %11 {offsets = [0, 0], sizes = [6, 32], strides = [1, 1]} : vector<6x128xf32> to vector<6x32xf32>
    %cst_11 = arith.constant 0.000000e+00 : f32
    %13 = vector.broadcast %cst_11 : f32 to vector<6x32xf32>
    %14 = arith.subf %13, %12 : vector<6x32xf32>
    %15 = math.exp %14 : vector<6x32xf32>
    %cst_12 = arith.constant 1.000000e+00 : f32
    %16 = vector.broadcast %cst_12 : f32 to vector<6x32xf32>
    %17 = arith.addf %16, %15 : vector<6x32xf32>
    %cst_13 = arith.constant 1.000000e+00 : f32
    %18 = vector.broadcast %cst_13 : f32 to vector<6x32xf32>
    %19 = arith.divf %18, %17 : vector<6x32xf32>
    %20 = vector.extract_strided_slice %11 {offsets = [0, 32], sizes = [6, 32], strides = [1, 1]} : vector<6x128xf32> to vector<6x32xf32>
    %cst_14 = arith.constant 0.000000e+00 : f32
    %21 = vector.broadcast %cst_14 : f32 to vector<6x32xf32>
    %22 = arith.subf %21, %20 : vector<6x32xf32>
    %23 = math.exp %22 : vector<6x32xf32>
    %cst_15 = arith.constant 1.000000e+00 : f32
    %24 = vector.broadcast %cst_15 : f32 to vector<6x32xf32>
    %25 = arith.addf %24, %23 : vector<6x32xf32>
    %cst_16 = arith.constant 1.000000e+00 : f32
    %26 = vector.broadcast %cst_16 : f32 to vector<6x32xf32>
    %27 = arith.divf %26, %25 : vector<6x32xf32>
    %28 = vector.extract_strided_slice %11 {offsets = [0, 64], sizes = [6, 32], strides = [1, 1]} : vector<6x128xf32> to vector<6x32xf32>
    %29 = math.tanh %28 : vector<6x32xf32>
    %30 = vector.extract_strided_slice %11 {offsets = [0, 96], sizes = [6, 32], strides = [1, 1]} : vector<6x128xf32> to vector<6x32xf32>
    %cst_17 = arith.constant 0.000000e+00 : f32
    %31 = vector.broadcast %cst_17 : f32 to vector<6x32xf32>
    %32 = arith.subf %31, %30 : vector<6x32xf32>
    %33 = math.exp %32 : vector<6x32xf32>
    %cst_18 = arith.constant 1.000000e+00 : f32
    %34 = vector.broadcast %cst_18 : f32 to vector<6x32xf32>
    %35 = arith.addf %34, %33 : vector<6x32xf32>
    %cst_19 = arith.constant 1.000000e+00 : f32
    %36 = vector.broadcast %cst_19 : f32 to vector<6x32xf32>
    %37 = arith.divf %36, %35 : vector<6x32xf32>
    %38 = arith.mulf %27, %4 : vector<6x32xf32>
    %39 = arith.mulf %19, %29 : vector<6x32xf32>
    %40 = arith.addf %38, %39 : vector<6x32xf32>
    %41 = math.tanh %40 : vector<6x32xf32>
    %42 = arith.mulf %37, %41 : vector<6x32xf32>
    %c0_20 = arith.constant 0 : index
    %c0_21 = arith.constant 0 : index
    %43 = vector.load %arg5[%c0_20, %c0_21] : memref<6x256xf32, #tpu.memory_space<vmem>>, vector<6x32xf32>
    tpu.vector_store %arg5[%c0_20, %c0_21], %42 {strides = array<i32>} : memref<6x256xf32, #tpu.memory_space<vmem>>, vector<6x32xf32>,
    %c1 = arith.constant 1 : index
    %c0_22 = arith.constant 0 : index
    %c0_23 = arith.constant 0 : index
    %44 = vector.load %arg1[%c1, %c0_22, %c0_23] : memref<8x6x16xf32, #tpu.memory_space<vmem>>, vector<1x6x16xf32>
    %45 = vector.shape_cast %44 : vector<1x6x16xf32> to vector<6x16xf32>
    %cst_24 = arith.constant dense<0.000000e+00> : vector<6x128xf32>
    %46 = tpu.matmul %45, %0, %cst_24 {dimension_numbers = #tpu.dot_dimension_numbers<[1], [0], [0], [1], [0, 0, 1, 1], [], []>} : vector<6x16xf32>, vector<16x128xf32>, vector<6x128xf32> -> vector<6x128xf32>
    %cst_25 = arith.constant dense<0.000000e+00> : vector<6x128xf32>
    %47 = tpu.matmul %42, %1, %cst_25 {dimension_numbers = #tpu.dot_dimension_numbers<[1], [0], [0], [1], [0, 0, 1, 1], [], []>} : vector<6x32xf32>, vector<32x128xf32>, vector<6x128xf32> -> vector<6x128xf32>
    %48 = arith.addf %46, %47 : vector<6x128xf32>
    %49 = vector.broadcast %2 : vector<1x128xf32> to vector<6x128xf32>
    %50 = arith.addf %48, %49 : vector<6x128xf32>
    %51 = vector.extract_strided_slice %50 {offsets = [0, 0], sizes = [6, 32], strides = [1, 1]} : vector<6x128xf32> to vector<6x32xf32>
    %cst_26 = arith.constant 0.000000e+00 : f32
    %52 = vector.broadcast %cst_26 : f32 to vector<6x32xf32>
    %53 = arith.subf %52, %51 : vector<6x32xf32>
    %54 = math.exp %53 : vector<6x32xf32>
    %cst_27 = arith.constant 1.000000e+00 : f32
    %55 = vector.broadcast %cst_27 : f32 to vector<6x32xf32>
    %56 = arith.addf %55, %54 : vector<6x32xf32>
    %cst_28 = arith.constant 1.000000e+00 : f32
    %57 = vector.broadcast %cst_28 : f32 to vector<6x32xf32>
    %58 = arith.divf %57, %56 : vector<6x32xf32>
    %59 = vector.extract_strided_slice %50 {offsets = [0, 32], sizes = [6, 32], strides = [1, 1]} : vector<6x128xf32> to vector<6x32xf32>
    %cst_29 = arith.constant 0.000000e+00 : f32
    %60 = vector.broadcast %cst_29 : f32 to vector<6x32xf32>
    %61 = arith.subf %60, %59 : vector<6x32xf32>
    %62 = math.exp %61 : vector<6x32xf32>
    %cst_30 = arith.constant 1.000000e+00 : f32
    %63 = vector.broadcast %cst_30 : f32 to vector<6x32xf32>
    %64 = arith.addf %63, %62 : vector<6x32xf32>
    %cst_31 = arith.constant 1.000000e+00 : f32
    %65 = vector.broadcast %cst_31 : f32 to vector<6x32xf32>
    %66 = arith.divf %65, %64 : vector<6x32xf32>
    %67 = vector.extract_strided_slice %50 {offsets = [0, 64], sizes = [6, 32], strides = [1, 1]} : vector<6x128xf32> to vector<6x32xf32>
    %68 = math.tanh %67 : vector<6x32xf32>
    %69 = vector.extract_strided_slice %50 {offsets = [0, 96], sizes = [6, 32], strides = [1, 1]} : vector<6x128xf32> to vector<6x32xf32>
    %cst_32 = arith.constant 0.000000e+00 : f32
    %70 = vector.broadcast %cst_32 : f32 to vector<6x32xf32>
    %71 = arith.subf %70, %69 : vector<6x32xf32>
    %72 = math.exp %71 : vector<6x32xf32>
    %cst_33 = arith.constant 1.000000e+00 : f32
    %73 = vector.broadcast %cst_33 : f32 to vector<6x32xf32>
    %74 = arith.addf %73, %72 : vector<6x32xf32>
    %cst_34 = arith.constant 1.000000e+00 : f32
    %75 = vector.broadcast %cst_34 : f32 to vector<6x32xf32>
    %76 = arith.divf %75, %74 : vector<6x32xf32>
    %77 = arith.mulf %66, %40 : vector<6x32xf32>
    %78 = arith.mulf %58, %68 : vector<6x32xf32>
    %79 = arith.addf %77, %78 : vector<6x32xf32>
    %80 = math.tanh %79 : vector<6x32xf32>
    %81 = arith.mulf %76, %80 : vector<6x32xf32>
    %c0_35 = arith.constant 0 : index
    %c32 = arith.constant 32 : index
    %82 = vector.load %arg5[%c0_35, %c32] : memref<6x256xf32, #tpu.memory_space<vmem>>, vector<6x32xf32>
    tpu.vector_store %arg5[%c0_35, %c32], %81 {strides = array<i32>} : memref<6x256xf32, #tpu.memory_space<vmem>>, vector<6x32xf32>,
    %c2 = arith.constant 2 : index
    %c0_36 = arith.constant 0 : index
    %c0_37 = arith.constant 0 : index
    %83 = vector.load %arg1[%c2, %c0_36, %c0_37] : memref<8x6x16xf32, #tpu.memory_space<vmem>>, vector<1x6x16xf32>
    %84 = vector.shape_cast %83 : vector<1x6x16xf32> to vector<6x16xf32>
    %cst_38 = arith.constant dense<0.000000e+00> : vector<6x128xf32>
    %85 = tpu.matmul %84, %0, %cst_38 {dimension_numbers = #tpu.dot_dimension_numbers<[1], [0], [0], [1], [0, 0, 1, 1], [], []>} : vector<6x16xf32>, vector<16x128xf32>, vector<6x128xf32> -> vector<6x128xf32>
    %cst_39 = arith.constant dense<0.000000e+00> : vector<6x128xf32>
    %86 = tpu.matmul %81, %1, %cst_39 {dimension_numbers = #tpu.dot_dimension_numbers<[1], [0], [0], [1], [0, 0, 1, 1], [], []>} : vector<6x32xf32>, vector<32x128xf32>, vector<6x128xf32> -> vector<6x128xf32>
    %87 = arith.addf %85, %86 : vector<6x128xf32>
    %88 = vector.broadcast %2 : vector<1x128xf32> to vector<6x128xf32>
    %89 = arith.addf %87, %88 : vector<6x128xf32>
    %90 = vector.extract_strided_slice %89 {offsets = [0, 0], sizes = [6, 32], strides = [1, 1]} : vector<6x128xf32> to vector<6x32xf32>
    %cst_40 = arith.constant 0.000000e+00 : f32
    %91 = vector.broadcast %cst_40 : f32 to vector<6x32xf32>
    %92 = arith.subf %91, %90 : vector<6x32xf32>
    %93 = math.exp %92 : vector<6x32xf32>
    %cst_41 = arith.constant 1.000000e+00 : f32
    %94 = vector.broadcast %cst_41 : f32 to vector<6x32xf32>
    %95 = arith.addf %94, %93 : vector<6x32xf32>
    %cst_42 = arith.constant 1.000000e+00 : f32
    %96 = vector.broadcast %cst_42 : f32 to vector<6x32xf32>
    %97 = arith.divf %96, %95 : vector<6x32xf32>
    %98 = vector.extract_strided_slice %89 {offsets = [0, 32], sizes = [6, 32], strides = [1, 1]} : vector<6x128xf32> to vector<6x32xf32>
    %cst_43 = arith.constant 0.000000e+00 : f32
    %99 = vector.broadcast %cst_43 : f32 to vector<6x32xf32>
    %100 = arith.subf %99, %98 : vector<6x32xf32>
    %101 = math.exp %100 : vector<6x32xf32>
    %cst_44 = arith.constant 1.000000e+00 : f32
    %102 = vector.broadcast %cst_44 : f32 to vector<6x32xf32>
    %103 = arith.addf %102, %101 : vector<6x32xf32>
    %cst_45 = arith.constant 1.000000e+00 : f32
    %104 = vector.broadcast %cst_45 : f32 to vector<6x32xf32>
    %105 = arith.divf %104, %103 : vector<6x32xf32>
    %106 = vector.extract_strided_slice %89 {offsets = [0, 64], sizes = [6, 32], strides = [1, 1]} : vector<6x128xf32> to vector<6x32xf32>
    %107 = math.tanh %106 : vector<6x32xf32>
    %108 = vector.extract_strided_slice %89 {offsets = [0, 96], sizes = [6, 32], strides = [1, 1]} : vector<6x128xf32> to vector<6x32xf32>
    %cst_46 = arith.constant 0.000000e+00 : f32
    %109 = vector.broadcast %cst_46 : f32 to vector<6x32xf32>
    %110 = arith.subf %109, %108 : vector<6x32xf32>
    %111 = math.exp %110 : vector<6x32xf32>
    %cst_47 = arith.constant 1.000000e+00 : f32
    %112 = vector.broadcast %cst_47 : f32 to vector<6x32xf32>
    %113 = arith.addf %112, %111 : vector<6x32xf32>
    %cst_48 = arith.constant 1.000000e+00 : f32
    %114 = vector.broadcast %cst_48 : f32 to vector<6x32xf32>
    %115 = arith.divf %114, %113 : vector<6x32xf32>
    %116 = arith.mulf %105, %79 : vector<6x32xf32>
    %117 = arith.mulf %97, %107 : vector<6x32xf32>
    %118 = arith.addf %116, %117 : vector<6x32xf32>
    %119 = math.tanh %118 : vector<6x32xf32>
    %120 = arith.mulf %115, %119 : vector<6x32xf32>
    %c0_49 = arith.constant 0 : index
    %c64 = arith.constant 64 : index
    %121 = vector.load %arg5[%c0_49, %c64] : memref<6x256xf32, #tpu.memory_space<vmem>>, vector<6x32xf32>
    tpu.vector_store %arg5[%c0_49, %c64], %120 {strides = array<i32>} : memref<6x256xf32, #tpu.memory_space<vmem>>, vector<6x32xf32>,
    %c3 = arith.constant 3 : index
    %c0_50 = arith.constant 0 : index
    %c0_51 = arith.constant 0 : index
    %122 = vector.load %arg1[%c3, %c0_50, %c0_51] : memref<8x6x16xf32, #tpu.memory_space<vmem>>, vector<1x6x16xf32>
    %123 = vector.shape_cast %122 : vector<1x6x16xf32> to vector<6x16xf32>
    %cst_52 = arith.constant dense<0.000000e+00> : vector<6x128xf32>
    %124 = tpu.matmul %123, %0, %cst_52 {dimension_numbers = #tpu.dot_dimension_numbers<[1], [0], [0], [1], [0, 0, 1, 1], [], []>} : vector<6x16xf32>, vector<16x128xf32>, vector<6x128xf32> -> vector<6x128xf32>
    %cst_53 = arith.constant dense<0.000000e+00> : vector<6x128xf32>
    %125 = tpu.matmul %120, %1, %cst_53 {dimension_numbers = #tpu.dot_dimension_numbers<[1], [0], [0], [1], [0, 0, 1, 1], [], []>} : vector<6x32xf32>, vector<32x128xf32>, vector<6x128xf32> -> vector<6x128xf32>
    %126 = arith.addf %124, %125 : vector<6x128xf32>
    %127 = vector.broadcast %2 : vector<1x128xf32> to vector<6x128xf32>
    %128 = arith.addf %126, %127 : vector<6x128xf32>
    %129 = vector.extract_strided_slice %128 {offsets = [0, 0], sizes = [6, 32], strides = [1, 1]} : vector<6x128xf32> to vector<6x32xf32>
    %cst_54 = arith.constant 0.000000e+00 : f32
    %130 = vector.broadcast %cst_54 : f32 to vector<6x32xf32>
    %131 = arith.subf %130, %129 : vector<6x32xf32>
    %132 = math.exp %131 : vector<6x32xf32>
    %cst_55 = arith.constant 1.000000e+00 : f32
    %133 = vector.broadcast %cst_55 : f32 to vector<6x32xf32>
    %134 = arith.addf %133, %132 : vector<6x32xf32>
    %cst_56 = arith.constant 1.000000e+00 : f32
    %135 = vector.broadcast %cst_56 : f32 to vector<6x32xf32>
    %136 = arith.divf %135, %134 : vector<6x32xf32>
    %137 = vector.extract_strided_slice %128 {offsets = [0, 32], sizes = [6, 32], strides = [1, 1]} : vector<6x128xf32> to vector<6x32xf32>
    %cst_57 = arith.constant 0.000000e+00 : f32
    %138 = vector.broadcast %cst_57 : f32 to vector<6x32xf32>
    %139 = arith.subf %138, %137 : vector<6x32xf32>
    %140 = math.exp %139 : vector<6x32xf32>
    %cst_58 = arith.constant 1.000000e+00 : f32
    %141 = vector.broadcast %cst_58 : f32 to vector<6x32xf32>
    %142 = arith.addf %141, %140 : vector<6x32xf32>
    %cst_59 = arith.constant 1.000000e+00 : f32
    %143 = vector.broadcast %cst_59 : f32 to vector<6x32xf32>
    %144 = arith.divf %143, %142 : vector<6x32xf32>
    %145 = vector.extract_strided_slice %128 {offsets = [0, 64], sizes = [6, 32], strides = [1, 1]} : vector<6x128xf32> to vector<6x32xf32>
    %146 = math.tanh %145 : vector<6x32xf32>
    %147 = vector.extract_strided_slice %128 {offsets = [0, 96], sizes = [6, 32], strides = [1, 1]} : vector<6x128xf32> to vector<6x32xf32>
    %cst_60 = arith.constant 0.000000e+00 : f32
    %148 = vector.broadcast %cst_60 : f32 to vector<6x32xf32>
    %149 = arith.subf %148, %147 : vector<6x32xf32>
    %150 = math.exp %149 : vector<6x32xf32>
    %cst_61 = arith.constant 1.000000e+00 : f32
    %151 = vector.broadcast %cst_61 : f32 to vector<6x32xf32>
    %152 = arith.addf %151, %150 : vector<6x32xf32>
    %cst_62 = arith.constant 1.000000e+00 : f32
    %153 = vector.broadcast %cst_62 : f32 to vector<6x32xf32>
    %154 = arith.divf %153, %152 : vector<6x32xf32>
    %155 = arith.mulf %144, %118 : vector<6x32xf32>
    %156 = arith.mulf %136, %146 : vector<6x32xf32>
    %157 = arith.addf %155, %156 : vector<6x32xf32>
    %158 = math.tanh %157 : vector<6x32xf32>
    %159 = arith.mulf %154, %158 : vector<6x32xf32>
    %c0_63 = arith.constant 0 : index
    %c96 = arith.constant 96 : index
    %160 = vector.load %arg5[%c0_63, %c96] : memref<6x256xf32, #tpu.memory_space<vmem>>, vector<6x32xf32>
    tpu.vector_store %arg5[%c0_63, %c96], %159 {strides = array<i32>} : memref<6x256xf32, #tpu.memory_space<vmem>>, vector<6x32xf32>,
    %c4 = arith.constant 4 : index
    %c0_64 = arith.constant 0 : index
    %c0_65 = arith.constant 0 : index
    %161 = vector.load %arg1[%c4, %c0_64, %c0_65] : memref<8x6x16xf32, #tpu.memory_space<vmem>>, vector<1x6x16xf32>
    %162 = vector.shape_cast %161 : vector<1x6x16xf32> to vector<6x16xf32>
    %cst_66 = arith.constant dense<0.000000e+00> : vector<6x128xf32>
    %163 = tpu.matmul %162, %0, %cst_66 {dimension_numbers = #tpu.dot_dimension_numbers<[1], [0], [0], [1], [0, 0, 1, 1], [], []>} : vector<6x16xf32>, vector<16x128xf32>, vector<6x128xf32> -> vector<6x128xf32>
    %cst_67 = arith.constant dense<0.000000e+00> : vector<6x128xf32>
    %164 = tpu.matmul %159, %1, %cst_67 {dimension_numbers = #tpu.dot_dimension_numbers<[1], [0], [0], [1], [0, 0, 1, 1], [], []>} : vector<6x32xf32>, vector<32x128xf32>, vector<6x128xf32> -> vector<6x128xf32>
    %165 = arith.addf %163, %164 : vector<6x128xf32>
    %166 = vector.broadcast %2 : vector<1x128xf32> to vector<6x128xf32>
    %167 = arith.addf %165, %166 : vector<6x128xf32>
    %168 = vector.extract_strided_slice %167 {offsets = [0, 0], sizes = [6, 32], strides = [1, 1]} : vector<6x128xf32> to vector<6x32xf32>
    %cst_68 = arith.constant 0.000000e+00 : f32
    %169 = vector.broadcast %cst_68 : f32 to vector<6x32xf32>
    %170 = arith.subf %169, %168 : vector<6x32xf32>
    %171 = math.exp %170 : vector<6x32xf32>
    %cst_69 = arith.constant 1.000000e+00 : f32
    %172 = vector.broadcast %cst_69 : f32 to vector<6x32xf32>
    %173 = arith.addf %172, %171 : vector<6x32xf32>
    %cst_70 = arith.constant 1.000000e+00 : f32
    %174 = vector.broadcast %cst_70 : f32 to vector<6x32xf32>
    %175 = arith.divf %174, %173 : vector<6x32xf32>
    %176 = vector.extract_strided_slice %167 {offsets = [0, 32], sizes = [6, 32], strides = [1, 1]} : vector<6x128xf32> to vector<6x32xf32>
    %cst_71 = arith.constant 0.000000e+00 : f32
    %177 = vector.broadcast %cst_71 : f32 to vector<6x32xf32>
    %178 = arith.subf %177, %176 : vector<6x32xf32>
    %179 = math.exp %178 : vector<6x32xf32>
    %cst_72 = arith.constant 1.000000e+00 : f32
    %180 = vector.broadcast %cst_72 : f32 to vector<6x32xf32>
    %181 = arith.addf %180, %179 : vector<6x32xf32>
    %cst_73 = arith.constant 1.000000e+00 : f32
    %182 = vector.broadcast %cst_73 : f32 to vector<6x32xf32>
    %183 = arith.divf %182, %181 : vector<6x32xf32>
    %184 = vector.extract_strided_slice %167 {offsets = [0, 64], sizes = [6, 32], strides = [1, 1]} : vector<6x128xf32> to vector<6x32xf32>
    %185 = math.tanh %184 : vector<6x32xf32>
    %186 = vector.extract_strided_slice %167 {offsets = [0, 96], sizes = [6, 32], strides = [1, 1]} : vector<6x128xf32> to vector<6x32xf32>
    %cst_74 = arith.constant 0.000000e+00 : f32
    %187 = vector.broadcast %cst_74 : f32 to vector<6x32xf32>
    %188 = arith.subf %187, %186 : vector<6x32xf32>
    %189 = math.exp %188 : vector<6x32xf32>
    %cst_75 = arith.constant 1.000000e+00 : f32
    %190 = vector.broadcast %cst_75 : f32 to vector<6x32xf32>
    %191 = arith.addf %190, %189 : vector<6x32xf32>
    %cst_76 = arith.constant 1.000000e+00 : f32
    %192 = vector.broadcast %cst_76 : f32 to vector<6x32xf32>
    %193 = arith.divf %192, %191 : vector<6x32xf32>
    %194 = arith.mulf %183, %157 : vector<6x32xf32>
    %195 = arith.mulf %175, %185 : vector<6x32xf32>
    %196 = arith.addf %194, %195 : vector<6x32xf32>
    %197 = math.tanh %196 : vector<6x32xf32>
    %198 = arith.mulf %193, %197 : vector<6x32xf32>
    %c0_77 = arith.constant 0 : index
    %c128 = arith.constant 128 : index
    %199 = vector.load %arg5[%c0_77, %c128] : memref<6x256xf32, #tpu.memory_space<vmem>>, vector<6x32xf32>
    tpu.vector_store %arg5[%c0_77, %c128], %198 {strides = array<i32>} : memref<6x256xf32, #tpu.memory_space<vmem>>, vector<6x32xf32>,
    %c5 = arith.constant 5 : index
    %c0_78 = arith.constant 0 : index
    %c0_79 = arith.constant 0 : index
    %200 = vector.load %arg1[%c5, %c0_78, %c0_79] : memref<8x6x16xf32, #tpu.memory_space<vmem>>, vector<1x6x16xf32>
    %201 = vector.shape_cast %200 : vector<1x6x16xf32> to vector<6x16xf32>
    %cst_80 = arith.constant dense<0.000000e+00> : vector<6x128xf32>
    %202 = tpu.matmul %201, %0, %cst_80 {dimension_numbers = #tpu.dot_dimension_numbers<[1], [0], [0], [1], [0, 0, 1, 1], [], []>} : vector<6x16xf32>, vector<16x128xf32>, vector<6x128xf32> -> vector<6x128xf32>
    %cst_81 = arith.constant dense<0.000000e+00> : vector<6x128xf32>
    %203 = tpu.matmul %198, %1, %cst_81 {dimension_numbers = #tpu.dot_dimension_numbers<[1], [0], [0], [1], [0, 0, 1, 1], [], []>} : vector<6x32xf32>, vector<32x128xf32>, vector<6x128xf32> -> vector<6x128xf32>
    %204 = arith.addf %202, %203 : vector<6x128xf32>
    %205 = vector.broadcast %2 : vector<1x128xf32> to vector<6x128xf32>
    %206 = arith.addf %204, %205 : vector<6x128xf32>
    %207 = vector.extract_strided_slice %206 {offsets = [0, 0], sizes = [6, 32], strides = [1, 1]} : vector<6x128xf32> to vector<6x32xf32>
    %cst_82 = arith.constant 0.000000e+00 : f32
    %208 = vector.broadcast %cst_82 : f32 to vector<6x32xf32>
    %209 = arith.subf %208, %207 : vector<6x32xf32>
    %210 = math.exp %209 : vector<6x32xf32>
    %cst_83 = arith.constant 1.000000e+00 : f32
    %211 = vector.broadcast %cst_83 : f32 to vector<6x32xf32>
    %212 = arith.addf %211, %210 : vector<6x32xf32>
    %cst_84 = arith.constant 1.000000e+00 : f32
    %213 = vector.broadcast %cst_84 : f32 to vector<6x32xf32>
    %214 = arith.divf %213, %212 : vector<6x32xf32>
    %215 = vector.extract_strided_slice %206 {offsets = [0, 32], sizes = [6, 32], strides = [1, 1]} : vector<6x128xf32> to vector<6x32xf32>
    %cst_85 = arith.constant 0.000000e+00 : f32
    %216 = vector.broadcast %cst_85 : f32 to vector<6x32xf32>
    %217 = arith.subf %216, %215 : vector<6x32xf32>
    %218 = math.exp %217 : vector<6x32xf32>
    %cst_86 = arith.constant 1.000000e+00 : f32
    %219 = vector.broadcast %cst_86 : f32 to vector<6x32xf32>
    %220 = arith.addf %219, %218 : vector<6x32xf32>
    %cst_87 = arith.constant 1.000000e+00 : f32
    %221 = vector.broadcast %cst_87 : f32 to vector<6x32xf32>
    %222 = arith.divf %221, %220 : vector<6x32xf32>
    %223 = vector.extract_strided_slice %206 {offsets = [0, 64], sizes = [6, 32], strides = [1, 1]} : vector<6x128xf32> to vector<6x32xf32>
    %224 = math.tanh %223 : vector<6x32xf32>
    %225 = vector.extract_strided_slice %206 {offsets = [0, 96], sizes = [6, 32], strides = [1, 1]} : vector<6x128xf32> to vector<6x32xf32>
    %cst_88 = arith.constant 0.000000e+00 : f32
    %226 = vector.broadcast %cst_88 : f32 to vector<6x32xf32>
    %227 = arith.subf %226, %225 : vector<6x32xf32>
    %228 = math.exp %227 : vector<6x32xf32>
    %cst_89 = arith.constant 1.000000e+00 : f32
    %229 = vector.broadcast %cst_89 : f32 to vector<6x32xf32>
    %230 = arith.addf %229, %228 : vector<6x32xf32>
    %cst_90 = arith.constant 1.000000e+00 : f32
    %231 = vector.broadcast %cst_90 : f32 to vector<6x32xf32>
    %232 = arith.divf %231, %230 : vector<6x32xf32>
    %233 = arith.mulf %222, %196 : vector<6x32xf32>
    %234 = arith.mulf %214, %224 : vector<6x32xf32>
    %235 = arith.addf %233, %234 : vector<6x32xf32>
    %236 = math.tanh %235 : vector<6x32xf32>
    %237 = arith.mulf %232, %236 : vector<6x32xf32>
    %c0_91 = arith.constant 0 : index
    %c160 = arith.constant 160 : index
    %238 = vector.load %arg5[%c0_91, %c160] : memref<6x256xf32, #tpu.memory_space<vmem>>, vector<6x32xf32>
    tpu.vector_store %arg5[%c0_91, %c160], %237 {strides = array<i32>} : memref<6x256xf32, #tpu.memory_space<vmem>>, vector<6x32xf32>,
    %c6 = arith.constant 6 : index
    %c0_92 = arith.constant 0 : index
    %c0_93 = arith.constant 0 : index
    %239 = vector.load %arg1[%c6, %c0_92, %c0_93] : memref<8x6x16xf32, #tpu.memory_space<vmem>>, vector<1x6x16xf32>
    %240 = vector.shape_cast %239 : vector<1x6x16xf32> to vector<6x16xf32>
    %cst_94 = arith.constant dense<0.000000e+00> : vector<6x128xf32>
    %241 = tpu.matmul %240, %0, %cst_94 {dimension_numbers = #tpu.dot_dimension_numbers<[1], [0], [0], [1], [0, 0, 1, 1], [], []>} : vector<6x16xf32>, vector<16x128xf32>, vector<6x128xf32> -> vector<6x128xf32>
    %cst_95 = arith.constant dense<0.000000e+00> : vector<6x128xf32>
    %242 = tpu.matmul %237, %1, %cst_95 {dimension_numbers = #tpu.dot_dimension_numbers<[1], [0], [0], [1], [0, 0, 1, 1], [], []>} : vector<6x32xf32>, vector<32x128xf32>, vector<6x128xf32> -> vector<6x128xf32>
    %243 = arith.addf %241, %242 : vector<6x128xf32>
    %244 = vector.broadcast %2 : vector<1x128xf32> to vector<6x128xf32>
    %245 = arith.addf %243, %244 : vector<6x128xf32>
    %246 = vector.extract_strided_slice %245 {offsets = [0, 0], sizes = [6, 32], strides = [1, 1]} : vector<6x128xf32> to vector<6x32xf32>
    %cst_96 = arith.constant 0.000000e+00 : f32
    %247 = vector.broadcast %cst_96 : f32 to vector<6x32xf32>
    %248 = arith.subf %247, %246 : vector<6x32xf32>
    %249 = math.exp %248 : vector<6x32xf32>
    %cst_97 = arith.constant 1.000000e+00 : f32
    %250 = vector.broadcast %cst_97 : f32 to vector<6x32xf32>
    %251 = arith.addf %250, %249 : vector<6x32xf32>
    %cst_98 = arith.constant 1.000000e+00 : f32
    %252 = vector.broadcast %cst_98 : f32 to vector<6x32xf32>
    %253 = arith.divf %252, %251 : vector<6x32xf32>
    %254 = vector.extract_strided_slice %245 {offsets = [0, 32], sizes = [6, 32], strides = [1, 1]} : vector<6x128xf32> to vector<6x32xf32>
    %cst_99 = arith.constant 0.000000e+00 : f32
    %255 = vector.broadcast %cst_99 : f32 to vector<6x32xf32>
    %256 = arith.subf %255, %254 : vector<6x32xf32>
    %257 = math.exp %256 : vector<6x32xf32>
    %cst_100 = arith.constant 1.000000e+00 : f32
    %258 = vector.broadcast %cst_100 : f32 to vector<6x32xf32>
    %259 = arith.addf %258, %257 : vector<6x32xf32>
    %cst_101 = arith.constant 1.000000e+00 : f32
    %260 = vector.broadcast %cst_101 : f32 to vector<6x32xf32>
    %261 = arith.divf %260, %259 : vector<6x32xf32>
    %262 = vector.extract_strided_slice %245 {offsets = [0, 64], sizes = [6, 32], strides = [1, 1]} : vector<6x128xf32> to vector<6x32xf32>
    %263 = math.tanh %262 : vector<6x32xf32>
    %264 = vector.extract_strided_slice %245 {offsets = [0, 96], sizes = [6, 32], strides = [1, 1]} : vector<6x128xf32> to vector<6x32xf32>
    %cst_102 = arith.constant 0.000000e+00 : f32
    %265 = vector.broadcast %cst_102 : f32 to vector<6x32xf32>
    %266 = arith.subf %265, %264 : vector<6x32xf32>
    %267 = math.exp %266 : vector<6x32xf32>
    %cst_103 = arith.constant 1.000000e+00 : f32
    %268 = vector.broadcast %cst_103 : f32 to vector<6x32xf32>
    %269 = arith.addf %268, %267 : vector<6x32xf32>
    %cst_104 = arith.constant 1.000000e+00 : f32
    %270 = vector.broadcast %cst_104 : f32 to vector<6x32xf32>
    %271 = arith.divf %270, %269 : vector<6x32xf32>
    %272 = arith.mulf %261, %235 : vector<6x32xf32>
    %273 = arith.mulf %253, %263 : vector<6x32xf32>
    %274 = arith.addf %272, %273 : vector<6x32xf32>
    %275 = math.tanh %274 : vector<6x32xf32>
    %276 = arith.mulf %271, %275 : vector<6x32xf32>
    %c0_105 = arith.constant 0 : index
    %c192 = arith.constant 192 : index
    %277 = vector.load %arg5[%c0_105, %c192] : memref<6x256xf32, #tpu.memory_space<vmem>>, vector<6x32xf32>
    tpu.vector_store %arg5[%c0_105, %c192], %276 {strides = array<i32>} : memref<6x256xf32, #tpu.memory_space<vmem>>, vector<6x32xf32>,
    %c7 = arith.constant 7 : index
    %c0_106 = arith.constant 0 : index
    %c0_107 = arith.constant 0 : index
    %278 = vector.load %arg1[%c7, %c0_106, %c0_107] : memref<8x6x16xf32, #tpu.memory_space<vmem>>, vector<1x6x16xf32>
    %279 = vector.shape_cast %278 : vector<1x6x16xf32> to vector<6x16xf32>
    %cst_108 = arith.constant dense<0.000000e+00> : vector<6x128xf32>
    %280 = tpu.matmul %279, %0, %cst_108 {dimension_numbers = #tpu.dot_dimension_numbers<[1], [0], [0], [1], [0, 0, 1, 1], [], []>} : vector<6x16xf32>, vector<16x128xf32>, vector<6x128xf32> -> vector<6x128xf32>
    %cst_109 = arith.constant dense<0.000000e+00> : vector<6x128xf32>
    %281 = tpu.matmul %276, %1, %cst_109 {dimension_numbers = #tpu.dot_dimension_numbers<[1], [0], [0], [1], [0, 0, 1, 1], [], []>} : vector<6x32xf32>, vector<32x128xf32>, vector<6x128xf32> -> vector<6x128xf32>
    %282 = arith.addf %280, %281 : vector<6x128xf32>
    %283 = vector.broadcast %2 : vector<1x128xf32> to vector<6x128xf32>
    %284 = arith.addf %282, %283 : vector<6x128xf32>
    %285 = vector.extract_strided_slice %284 {offsets = [0, 0], sizes = [6, 32], strides = [1, 1]} : vector<6x128xf32> to vector<6x32xf32>
    %cst_110 = arith.constant 0.000000e+00 : f32
    %286 = vector.broadcast %cst_110 : f32 to vector<6x32xf32>
    %287 = arith.subf %286, %285 : vector<6x32xf32>
    %288 = math.exp %287 : vector<6x32xf32>
    %cst_111 = arith.constant 1.000000e+00 : f32
    %289 = vector.broadcast %cst_111 : f32 to vector<6x32xf32>
    %290 = arith.addf %289, %288 : vector<6x32xf32>
    %cst_112 = arith.constant 1.000000e+00 : f32
    %291 = vector.broadcast %cst_112 : f32 to vector<6x32xf32>
    %292 = arith.divf %291, %290 : vector<6x32xf32>
    %293 = vector.extract_strided_slice %284 {offsets = [0, 32], sizes = [6, 32], strides = [1, 1]} : vector<6x128xf32> to vector<6x32xf32>
    %cst_113 = arith.constant 0.000000e+00 : f32
    %294 = vector.broadcast %cst_113 : f32 to vector<6x32xf32>
    %295 = arith.subf %294, %293 : vector<6x32xf32>
    %296 = math.exp %295 : vector<6x32xf32>
    %cst_114 = arith.constant 1.000000e+00 : f32
    %297 = vector.broadcast %cst_114 : f32 to vector<6x32xf32>
    %298 = arith.addf %297, %296 : vector<6x32xf32>
    %cst_115 = arith.constant 1.000000e+00 : f32
    %299 = vector.broadcast %cst_115 : f32 to vector<6x32xf32>
    %300 = arith.divf %299, %298 : vector<6x32xf32>
    %301 = vector.extract_strided_slice %284 {offsets = [0, 64], sizes = [6, 32], strides = [1, 1]} : vector<6x128xf32> to vector<6x32xf32>
    %302 = math.tanh %301 : vector<6x32xf32>
    %303 = vector.extract_strided_slice %284 {offsets = [0, 96], sizes = [6, 32], strides = [1, 1]} : vector<6x128xf32> to vector<6x32xf32>
    %cst_116 = arith.constant 0.000000e+00 : f32
    %304 = vector.broadcast %cst_116 : f32 to vector<6x32xf32>
    %305 = arith.subf %304, %303 : vector<6x32xf32>
    %306 = math.exp %305 : vector<6x32xf32>
    %cst_117 = arith.constant 1.000000e+00 : f32
    %307 = vector.broadcast %cst_117 : f32 to vector<6x32xf32>
    %308 = arith.addf %307, %306 : vector<6x32xf32>
    %cst_118 = arith.constant 1.000000e+00 : f32
    %309 = vector.broadcast %cst_118 : f32 to vector<6x32xf32>
    %310 = arith.divf %309, %308 : vector<6x32xf32>
    %311 = arith.mulf %300, %274 : vector<6x32xf32>
    %312 = arith.mulf %292, %302 : vector<6x32xf32>
    %313 = arith.addf %311, %312 : vector<6x32xf32>
    %314 = math.tanh %313 : vector<6x32xf32>
    %315 = arith.mulf %310, %314 : vector<6x32xf32>
    %c0_119 = arith.constant 0 : index
    %c224 = arith.constant 224 : index
    %316 = vector.load %arg5[%c0_119, %c224] : memref<6x256xf32, #tpu.memory_space<vmem>>, vector<6x32xf32>
    tpu.vector_store %arg5[%c0_119, %c224], %315 {strides = array<i32>} : memref<6x256xf32, #tpu.memory_space<vmem>>, vector<6x32xf32>,
    return
  }
  func.func @transform_0(%arg0: i32) -> (i32, i32, i32) {
    %c0_i32 = arith.constant 0 : i32
    %c0_i32_0 = arith.constant 0 : i32
    %c0_i32_1 = arith.constant 0 : i32
    %c0_i32_2 = arith.constant 0 : i32
    return %c0_i32, %c0_i32_0, %c0_i32_1 : i32, i32, i32
  }
  func.func @transform_1(%arg0: i32) -> (i32, i32) {
    %c0_i32 = arith.constant 0 : i32
    %c0_i32_0 = arith.constant 0 : i32
    %c0_i32_1 = arith.constant 0 : i32
    return %c0_i32, %c0_i32_0 : i32, i32
  }
  func.func @transform_2(%arg0: i32) -> (i32, i32) {
    %c0_i32 = arith.constant 0 : i32
    %c0_i32_0 = arith.constant 0 : i32
    %c0_i32_1 = arith.constant 0 : i32
    return %c0_i32, %c0_i32_0 : i32, i32
  }
  func.func @transform_3(%arg0: i32) -> (i32, i32) {
    %c0_i32 = arith.constant 0 : i32
    %c0_i32_0 = arith.constant 0 : i32
    %c0_i32_1 = arith.constant 0 : i32
    return %c0_i32, %c0_i32_0 : i32, i32
  }
  func.func @transform_4(%arg0: i32) -> (i32, i32) {
    %c0_i32 = arith.constant 0 : i32
    %c0_i32_0 = arith.constant 0 : i32
    %c0_i32_1 = arith.constant 0 : i32
    return %c0_i32, %c0_i32_0 : i32, i32
  }
}

module attributes {stable_mosaic.version = 11 : i64} {
  func.func @_linear_kernel(%arg0: i32, %arg1: memref<16x64xf32, #tpu.memory_space<vmem>>, %arg2: memref<64x32xf32, #tpu.memory_space<vmem>>, %arg3: memref<1x32xf32, #tpu.memory_space<vmem>>, %arg4: memref<16x32xf32, #tpu.memory_space<vmem>>) attributes {dimension_semantics = [#tpu.dimension_semantics<arbitrary>], iteration_bounds = array<i64: 1>, scalar_prefetch = 0 : i64, scratch_operands = 0 : i64, tpu.core_type = #tpu.core_type<tc>, window_params = [{pipeline_mode = #tpu.pipeline_mode<synchronous>, transform_indices = @transform_0, window_bounds = array<i64: 16, 64>}, {pipeline_mode = #tpu.pipeline_mode<synchronous>, transform_indices = @transform_1, window_bounds = array<i64: 64, 32>}, {pipeline_mode = #tpu.pipeline_mode<synchronous>, transform_indices = @transform_2, window_bounds = array<i64: 1, 32>}, {pipeline_mode = #tpu.pipeline_mode<synchronous>, transform_indices = @transform_3, window_bounds = array<i64: 16, 32>}]} {
    %c0 = arith.constant 0 : index
    %c0_0 = arith.constant 0 : index
    %0 = vector.load %arg1[%c0, %c0_0] : memref<16x64xf32, #tpu.memory_space<vmem>>, vector<16x64xf32>
    %c0_1 = arith.constant 0 : index
    %c0_2 = arith.constant 0 : index
    %1 = vector.load %arg2[%c0_1, %c0_2] : memref<64x32xf32, #tpu.memory_space<vmem>>, vector<64x32xf32>
    %cst = arith.constant dense<0.000000e+00> : vector<16x32xf32>
    %2 = tpu.matmul %0, %1, %cst {dimension_numbers = #tpu.dot_dimension_numbers<[1], [0], [0], [1], [0, 0, 1, 1], [], []>} : vector<16x64xf32>, vector<64x32xf32>, vector<16x32xf32> -> vector<16x32xf32>
    %c0_3 = arith.constant 0 : index
    %c0_4 = arith.constant 0 : index
    %3 = vector.load %arg3[%c0_3, %c0_4] : memref<1x32xf32, #tpu.memory_space<vmem>>, vector<1x32xf32>
    %4 = vector.broadcast %3 : vector<1x32xf32> to vector<16x32xf32>
    %5 = arith.addf %2, %4 : vector<16x32xf32>
    %c0_5 = arith.constant 0 : index
    %c0_6 = arith.constant 0 : index
    %6 = vector.load %arg4[%c0_5, %c0_6] : memref<16x32xf32, #tpu.memory_space<vmem>>, vector<16x32xf32>
    tpu.vector_store %arg4[%c0_5, %c0_6], %5 {strides = array<i32>} : memref<16x32xf32, #tpu.memory_space<vmem>>, vector<16x32xf32>,
    return
  }
  func.func @transform_0(%arg0: i32) -> (i32, i32) {
    %c0_i32 = arith.constant 0 : i32
    %c0_i32_0 = arith.constant 0 : i32
    %c0_i32_1 = arith.constant 0 : i32
    return %c0_i32, %c0_i32_0 : i32, i32
  }
  func.func @transform_1(%arg0: i32) -> (i32, i32) {
    %c0_i32 = arith.constant 0 : i32
    %c0_i32_0 = arith.constant 0 : i32
    %c0_i32_1 = arith.constant 0 : i32
    return %c0_i32, %c0_i32_0 : i32, i32
  }
  func.func @transform_2(%arg0: i32) -> (i32, i32) {
    %c0_i32 = arith.constant 0 : i32
    %c0_i32_0 = arith.constant 0 : i32
    %c0_i32_1 = arith.constant 0 : i32
    return %c0_i32, %c0_i32_0 : i32, i32
  }
  func.func @transform_3(%arg0: i32) -> (i32, i32) {
    %c0_i32 = arith.constant 0 : i32
    %c0_i32_0 = arith.constant 0 : i32
    %c0_i32_1 = arith.constant 0 : i32
    return %c0_i32, %c0_i32_0 : i32, i32
  }
}

module attributes {stable_mosaic.version = 11 : i64} {
  func.func @_fused_attflat_norm_kernel(%arg0: i32, %arg1: memref<48x32xf32, #tpu.memory_space<vmem>>, %arg2: memref<48x1xf32, #tpu.memory_space<vmem>>, %arg3: memref<48x32xf32, #tpu.memory_space<vmem>>, %arg4: memref<48x1xf32, #tpu.memory_space<vmem>>, %arg5: memref<48x32xf32, #tpu.memory_space<vmem>>, %arg6: memref<48x1xf32, #tpu.memory_space<vmem>>, %arg7: memref<4x32x16xf32, #tpu.memory_space<vmem>>, %arg8: memref<4x1x16xf32, #tpu.memory_space<vmem>>, %arg9: memref<4x16x2xf32, #tpu.memory_space<vmem>>, %arg10: memref<4x1x2xf32, #tpu.memory_space<vmem>>, %arg11: memref<4x64x32xf32, #tpu.memory_space<vmem>>, %arg12: memref<4x1x32xf32, #tpu.memory_space<vmem>>, %arg13: memref<2x1x32xf32, #tpu.memory_space<vmem>>, %arg14: memref<2x1x32xf32, #tpu.memory_space<vmem>>, %arg15: memref<6x64xf32, #tpu.memory_space<vmem>>) attributes {dimension_semantics = [#tpu.dimension_semantics<arbitrary>], iteration_bounds = array<i64: 1>, scalar_prefetch = 0 : i64, scratch_operands = 0 : i64, tpu.core_type = #tpu.core_type<tc>, window_params = [{pipeline_mode = #tpu.pipeline_mode<synchronous>, transform_indices = @transform_0, window_bounds = array<i64: 48, 32>}, {pipeline_mode = #tpu.pipeline_mode<synchronous>, transform_indices = @transform_1, window_bounds = array<i64: 48, 1>}, {pipeline_mode = #tpu.pipeline_mode<synchronous>, transform_indices = @transform_2, window_bounds = array<i64: 48, 32>}, {pipeline_mode = #tpu.pipeline_mode<synchronous>, transform_indices = @transform_3, window_bounds = array<i64: 48, 1>}, {pipeline_mode = #tpu.pipeline_mode<synchronous>, transform_indices = @transform_4, window_bounds = array<i64: 48, 32>}, {pipeline_mode = #tpu.pipeline_mode<synchronous>, transform_indices = @transform_5, window_bounds = array<i64: 48, 1>}, {pipeline_mode = #tpu.pipeline_mode<synchronous>, transform_indices = @transform_6, window_bounds = array<i64: 4, 32, 16>}, {pipeline_mode = #tpu.pipeline_mode<synchronous>, transform_indices = @transform_7, window_bounds = array<i64: 4, 1, 16>}, {pipeline_mode = #tpu.pipeline_mode<synchronous>, transform_indices = @transform_8, window_bounds = array<i64: 4, 16, 2>}, {pipeline_mode = #tpu.pipeline_mode<synchronous>, transform_indices = @transform_9, window_bounds = array<i64: 4, 1, 2>}, {pipeline_mode = #tpu.pipeline_mode<synchronous>, transform_indices = @transform_10, window_bounds = array<i64: 4, 64, 32>}, {pipeline_mode = #tpu.pipeline_mode<synchronous>, transform_indices = @transform_11, window_bounds = array<i64: 4, 1, 32>}, {pipeline_mode = #tpu.pipeline_mode<synchronous>, transform_indices = @transform_12, window_bounds = array<i64: 2, 1, 32>}, {pipeline_mode = #tpu.pipeline_mode<synchronous>, transform_indices = @transform_13, window_bounds = array<i64: 2, 1, 32>}, {pipeline_mode = #tpu.pipeline_mode<synchronous>, transform_indices = @transform_14, window_bounds = array<i64: 6, 64>}]} {
    %c0 = arith.constant 0 : index
    %c0_0 = arith.constant 0 : index
    %0 = vector.load %arg1[%c0, %c0_0] : memref<48x32xf32, #tpu.memory_space<vmem>>, vector<48x32xf32>
    %c0_1 = arith.constant 0 : index
    %c0_2 = arith.constant 0 : index
    %1 = vector.load %arg3[%c0_1, %c0_2] : memref<48x32xf32, #tpu.memory_space<vmem>>, vector<48x32xf32>
    %c0_3 = arith.constant 0 : index
    %c0_4 = arith.constant 0 : index
    %2 = vector.load %arg5[%c0_3, %c0_4] : memref<48x32xf32, #tpu.memory_space<vmem>>, vector<48x32xf32>
    %c0_5 = arith.constant 0 : index
    %c0_6 = arith.constant 0 : index
    %3 = vector.load %arg2[%c0_5, %c0_6] : memref<48x1xf32, #tpu.memory_space<vmem>>, vector<48x1xf32>
    %c0_7 = arith.constant 0 : index
    %c0_8 = arith.constant 0 : index
    %4 = vector.load %arg4[%c0_7, %c0_8] : memref<48x1xf32, #tpu.memory_space<vmem>>, vector<48x1xf32>
    %c0_9 = arith.constant 0 : index
    %c0_10 = arith.constant 0 : index
    %5 = vector.load %arg6[%c0_9, %c0_10] : memref<48x1xf32, #tpu.memory_space<vmem>>, vector<48x1xf32>
    %c0_11 = arith.constant 0 : index
    %c0_12 = arith.constant 0 : index
    %c0_13 = arith.constant 0 : index
    %6 = vector.load %arg7[%c0_11, %c0_12, %c0_13] : memref<4x32x16xf32, #tpu.memory_space<vmem>>, vector<1x32x16xf32>
    %7 = vector.shape_cast %6 : vector<1x32x16xf32> to vector<32x16xf32>
    %cst = arith.constant dense<0.000000e+00> : vector<48x16xf32>
    %8 = tpu.matmul %0, %7, %cst {dimension_numbers = #tpu.dot_dimension_numbers<[1], [0], [0], [1], [0, 0, 1, 1], [], []>} : vector<48x32xf32>, vector<32x16xf32>, vector<48x16xf32> -> vector<48x16xf32>
    %c0_14 = arith.constant 0 : index
    %c0_15 = arith.constant 0 : index
    %c0_16 = arith.constant 0 : index
    %9 = vector.load %arg8[%c0_14, %c0_15, %c0_16] : memref<4x1x16xf32, #tpu.memory_space<vmem>>, vector<1x1x16xf32>
    %10 = vector.shape_cast %9 : vector<1x1x16xf32> to vector<1x16xf32>
    %11 = vector.broadcast %10 : vector<1x16xf32> to vector<48x16xf32>
    %12 = arith.addf %8, %11 : vector<48x16xf32>
    %cst_17 = arith.constant 0.000000e+00 : f32
    %13 = vector.broadcast %cst_17 : f32 to vector<48x16xf32>
    %14 = arith.maximumf %12, %13 : vector<48x16xf32>
    %c0_18 = arith.constant 0 : index
    %c0_19 = arith.constant 0 : index
    %c0_20 = arith.constant 0 : index
    %15 = vector.load %arg9[%c0_18, %c0_19, %c0_20] : memref<4x16x2xf32, #tpu.memory_space<vmem>>, vector<1x16x2xf32>
    %16 = vector.shape_cast %15 : vector<1x16x2xf32> to vector<16x2xf32>
    %cst_21 = arith.constant dense<0.000000e+00> : vector<48x2xf32>
    %17 = tpu.matmul %14, %16, %cst_21 {dimension_numbers = #tpu.dot_dimension_numbers<[1], [0], [0], [1], [0, 0, 1, 1], [], []>} : vector<48x16xf32>, vector<16x2xf32>, vector<48x2xf32> -> vector<48x2xf32>
    %c0_22 = arith.constant 0 : index
    %c0_23 = arith.constant 0 : index
    %c0_24 = arith.constant 0 : index
    %18 = vector.load %arg10[%c0_22, %c0_23, %c0_24] : memref<4x1x2xf32, #tpu.memory_space<vmem>>, vector<1x1x2xf32>
    %19 = vector.shape_cast %18 : vector<1x1x2xf32> to vector<1x2xf32>
    %20 = vector.broadcast %19 : vector<1x2xf32> to vector<48x2xf32>
    %21 = arith.addf %17, %20 : vector<48x2xf32>
    %c1 = arith.constant 1 : index
    %c0_25 = arith.constant 0 : index
    %c0_26 = arith.constant 0 : index
    %22 = vector.load %arg7[%c1, %c0_25, %c0_26] : memref<4x32x16xf32, #tpu.memory_space<vmem>>, vector<1x32x16xf32>
    %23 = vector.shape_cast %22 : vector<1x32x16xf32> to vector<32x16xf32>
    %cst_27 = arith.constant dense<0.000000e+00> : vector<48x16xf32>
    %24 = tpu.matmul %2, %23, %cst_27 {dimension_numbers = #tpu.dot_dimension_numbers<[1], [0], [0], [1], [0, 0, 1, 1], [], []>} : vector<48x32xf32>, vector<32x16xf32>, vector<48x16xf32> -> vector<48x16xf32>
    %c1_28 = arith.constant 1 : index
    %c0_29 = arith.constant 0 : index
    %c0_30 = arith.constant 0 : index
    %25 = vector.load %arg8[%c1_28, %c0_29, %c0_30] : memref<4x1x16xf32, #tpu.memory_space<vmem>>, vector<1x1x16xf32>
    %26 = vector.shape_cast %25 : vector<1x1x16xf32> to vector<1x16xf32>
    %27 = vector.broadcast %26 : vector<1x16xf32> to vector<48x16xf32>
    %28 = arith.addf %24, %27 : vector<48x16xf32>
    %cst_31 = arith.constant 0.000000e+00 : f32
    %29 = vector.broadcast %cst_31 : f32 to vector<48x16xf32>
    %30 = arith.maximumf %28, %29 : vector<48x16xf32>
    %c1_32 = arith.constant 1 : index
    %c0_33 = arith.constant 0 : index
    %c0_34 = arith.constant 0 : index
    %31 = vector.load %arg9[%c1_32, %c0_33, %c0_34] : memref<4x16x2xf32, #tpu.memory_space<vmem>>, vector<1x16x2xf32>
    %32 = vector.shape_cast %31 : vector<1x16x2xf32> to vector<16x2xf32>
    %cst_35 = arith.constant dense<0.000000e+00> : vector<48x2xf32>
    %33 = tpu.matmul %30, %32, %cst_35 {dimension_numbers = #tpu.dot_dimension_numbers<[1], [0], [0], [1], [0, 0, 1, 1], [], []>} : vector<48x16xf32>, vector<16x2xf32>, vector<48x2xf32> -> vector<48x2xf32>
    %c1_36 = arith.constant 1 : index
    %c0_37 = arith.constant 0 : index
    %c0_38 = arith.constant 0 : index
    %34 = vector.load %arg10[%c1_36, %c0_37, %c0_38] : memref<4x1x2xf32, #tpu.memory_space<vmem>>, vector<1x1x2xf32>
    %35 = vector.shape_cast %34 : vector<1x1x2xf32> to vector<1x2xf32>
    %36 = vector.broadcast %35 : vector<1x2xf32> to vector<48x2xf32>
    %37 = arith.addf %33, %36 : vector<48x2xf32>
    %c2 = arith.constant 2 : index
    %c0_39 = arith.constant 0 : index
    %c0_40 = arith.constant 0 : index
    %38 = vector.load %arg7[%c2, %c0_39, %c0_40] : memref<4x32x16xf32, #tpu.memory_space<vmem>>, vector<1x32x16xf32>
    %39 = vector.shape_cast %38 : vector<1x32x16xf32> to vector<32x16xf32>
    %cst_41 = arith.constant dense<0.000000e+00> : vector<48x16xf32>
    %40 = tpu.matmul %1, %39, %cst_41 {dimension_numbers = #tpu.dot_dimension_numbers<[1], [0], [0], [1], [0, 0, 1, 1], [], []>} : vector<48x32xf32>, vector<32x16xf32>, vector<48x16xf32> -> vector<48x16xf32>
    %c2_42 = arith.constant 2 : index
    %c0_43 = arith.constant 0 : index
    %c0_44 = arith.constant 0 : index
    %41 = vector.load %arg8[%c2_42, %c0_43, %c0_44] : memref<4x1x16xf32, #tpu.memory_space<vmem>>, vector<1x1x16xf32>
    %42 = vector.shape_cast %41 : vector<1x1x16xf32> to vector<1x16xf32>
    %43 = vector.broadcast %42 : vector<1x16xf32> to vector<48x16xf32>
    %44 = arith.addf %40, %43 : vector<48x16xf32>
    %cst_45 = arith.constant 0.000000e+00 : f32
    %45 = vector.broadcast %cst_45 : f32 to vector<48x16xf32>
    %46 = arith.maximumf %44, %45 : vector<48x16xf32>
    %c2_46 = arith.constant 2 : index
    %c0_47 = arith.constant 0 : index
    %c0_48 = arith.constant 0 : index
    %47 = vector.load %arg9[%c2_46, %c0_47, %c0_48] : memref<4x16x2xf32, #tpu.memory_space<vmem>>, vector<1x16x2xf32>
    %48 = vector.shape_cast %47 : vector<1x16x2xf32> to vector<16x2xf32>
    %cst_49 = arith.constant dense<0.000000e+00> : vector<48x2xf32>
    %49 = tpu.matmul %46, %48, %cst_49 {dimension_numbers = #tpu.dot_dimension_numbers<[1], [0], [0], [1], [0, 0, 1, 1], [], []>} : vector<48x16xf32>, vector<16x2xf32>, vector<48x2xf32> -> vector<48x2xf32>
    %c2_50 = arith.constant 2 : index
    %c0_51 = arith.constant 0 : index
    %c0_52 = arith.constant 0 : index
    %50 = vector.load %arg10[%c2_50, %c0_51, %c0_52] : memref<4x1x2xf32, #tpu.memory_space<vmem>>, vector<1x1x2xf32>
    %51 = vector.shape_cast %50 : vector<1x1x2xf32> to vector<1x2xf32>
    %52 = vector.broadcast %51 : vector<1x2xf32> to vector<48x2xf32>
    %53 = arith.addf %49, %52 : vector<48x2xf32>
    %c3 = arith.constant 3 : index
    %c0_53 = arith.constant 0 : index
    %c0_54 = arith.constant 0 : index
    %54 = vector.load %arg7[%c3, %c0_53, %c0_54] : memref<4x32x16xf32, #tpu.memory_space<vmem>>, vector<1x32x16xf32>
    %55 = vector.shape_cast %54 : vector<1x32x16xf32> to vector<32x16xf32>
    %cst_55 = arith.constant dense<0.000000e+00> : vector<48x16xf32>
    %56 = tpu.matmul %2, %55, %cst_55 {dimension_numbers = #tpu.dot_dimension_numbers<[1], [0], [0], [1], [0, 0, 1, 1], [], []>} : vector<48x32xf32>, vector<32x16xf32>, vector<48x16xf32> -> vector<48x16xf32>
    %c3_56 = arith.constant 3 : index
    %c0_57 = arith.constant 0 : index
    %c0_58 = arith.constant 0 : index
    %57 = vector.load %arg8[%c3_56, %c0_57, %c0_58] : memref<4x1x16xf32, #tpu.memory_space<vmem>>, vector<1x1x16xf32>
    %58 = vector.shape_cast %57 : vector<1x1x16xf32> to vector<1x16xf32>
    %59 = vector.broadcast %58 : vector<1x16xf32> to vector<48x16xf32>
    %60 = arith.addf %56, %59 : vector<48x16xf32>
    %cst_59 = arith.constant 0.000000e+00 : f32
    %61 = vector.broadcast %cst_59 : f32 to vector<48x16xf32>
    %62 = arith.maximumf %60, %61 : vector<48x16xf32>
    %c3_60 = arith.constant 3 : index
    %c0_61 = arith.constant 0 : index
    %c0_62 = arith.constant 0 : index
    %63 = vector.load %arg9[%c3_60, %c0_61, %c0_62] : memref<4x16x2xf32, #tpu.memory_space<vmem>>, vector<1x16x2xf32>
    %64 = vector.shape_cast %63 : vector<1x16x2xf32> to vector<16x2xf32>
    %cst_63 = arith.constant dense<0.000000e+00> : vector<48x2xf32>
    %65 = tpu.matmul %62, %64, %cst_63 {dimension_numbers = #tpu.dot_dimension_numbers<[1], [0], [0], [1], [0, 0, 1, 1], [], []>} : vector<48x16xf32>, vector<16x2xf32>, vector<48x2xf32> -> vector<48x2xf32>
    %c3_64 = arith.constant 3 : index
    %c0_65 = arith.constant 0 : index
    %c0_66 = arith.constant 0 : index
    %66 = vector.load %arg10[%c3_64, %c0_65, %c0_66] : memref<4x1x2xf32, #tpu.memory_space<vmem>>, vector<1x1x2xf32>
    %67 = vector.shape_cast %66 : vector<1x1x2xf32> to vector<1x2xf32>
    %68 = vector.broadcast %67 : vector<1x2xf32> to vector<48x2xf32>
    %69 = arith.addf %65, %68 : vector<48x2xf32>
    %c0_67 = arith.constant 0 : index
    %c0_68 = arith.constant 0 : index
    %c0_69 = arith.constant 0 : index
    %70 = vector.load %arg11[%c0_67, %c0_68, %c0_69] : memref<4x64x32xf32, #tpu.memory_space<vmem>>, vector<1x64x32xf32>
    %71 = vector.shape_cast %70 : vector<1x64x32xf32> to vector<64x32xf32>
    %c1_70 = arith.constant 1 : index
    %c0_71 = arith.constant 0 : index
    %c0_72 = arith.constant 0 : index
    %72 = vector.load %arg11[%c1_70, %c0_71, %c0_72] : memref<4x64x32xf32, #tpu.memory_space<vmem>>, vector<1x64x32xf32>
    %73 = vector.shape_cast %72 : vector<1x64x32xf32> to vector<64x32xf32>
    %c2_73 = arith.constant 2 : index
    %c0_74 = arith.constant 0 : index
    %c0_75 = arith.constant 0 : index
    %74 = vector.load %arg11[%c2_73, %c0_74, %c0_75] : memref<4x64x32xf32, #tpu.memory_space<vmem>>, vector<1x64x32xf32>
    %75 = vector.shape_cast %74 : vector<1x64x32xf32> to vector<64x32xf32>
    %c3_76 = arith.constant 3 : index
    %c0_77 = arith.constant 0 : index
    %c0_78 = arith.constant 0 : index
    %76 = vector.load %arg11[%c3_76, %c0_77, %c0_78] : memref<4x64x32xf32, #tpu.memory_space<vmem>>, vector<1x64x32xf32>
    %77 = vector.shape_cast %76 : vector<1x64x32xf32> to vector<64x32xf32>
    %c0_79 = arith.constant 0 : index
    %c0_80 = arith.constant 0 : index
    %c0_81 = arith.constant 0 : index
    %78 = vector.load %arg12[%c0_79, %c0_80, %c0_81] : memref<4x1x32xf32, #tpu.memory_space<vmem>>, vector<1x1x32xf32>
    %79 = vector.shape_cast %78 : vector<1x1x32xf32> to vector<1x32xf32>
    %c1_82 = arith.constant 1 : index
    %c0_83 = arith.constant 0 : index
    %c0_84 = arith.constant 0 : index
    %80 = vector.load %arg12[%c1_82, %c0_83, %c0_84] : memref<4x1x32xf32, #tpu.memory_space<vmem>>, vector<1x1x32xf32>
    %81 = vector.shape_cast %80 : vector<1x1x32xf32> to vector<1x32xf32>
    %c2_85 = arith.constant 2 : index
    %c0_86 = arith.constant 0 : index
    %c0_87 = arith.constant 0 : index
    %82 = vector.load %arg12[%c2_85, %c0_86, %c0_87] : memref<4x1x32xf32, #tpu.memory_space<vmem>>, vector<1x1x32xf32>
    %83 = vector.shape_cast %82 : vector<1x1x32xf32> to vector<1x32xf32>
    %c3_88 = arith.constant 3 : index
    %c0_89 = arith.constant 0 : index
    %c0_90 = arith.constant 0 : index
    %84 = vector.load %arg12[%c3_88, %c0_89, %c0_90] : memref<4x1x32xf32, #tpu.memory_space<vmem>>, vector<1x1x32xf32>
    %85 = vector.shape_cast %84 : vector<1x1x32xf32> to vector<1x32xf32>
    %c0_91 = arith.constant 0 : index
    %c0_92 = arith.constant 0 : index
    %c0_93 = arith.constant 0 : index
    %86 = vector.load %arg13[%c0_91, %c0_92, %c0_93] : memref<2x1x32xf32, #tpu.memory_space<vmem>>, vector<1x1x32xf32>
    %87 = vector.shape_cast %86 : vector<1x1x32xf32> to vector<1x32xf32>
    %c1_94 = arith.constant 1 : index
    %c0_95 = arith.constant 0 : index
    %c0_96 = arith.constant 0 : index
    %88 = vector.load %arg13[%c1_94, %c0_95, %c0_96] : memref<2x1x32xf32, #tpu.memory_space<vmem>>, vector<1x1x32xf32>
    %89 = vector.shape_cast %88 : vector<1x1x32xf32> to vector<1x32xf32>
    %c0_97 = arith.constant 0 : index
    %c0_98 = arith.constant 0 : index
    %c0_99 = arith.constant 0 : index
    %90 = vector.load %arg14[%c0_97, %c0_98, %c0_99] : memref<2x1x32xf32, #tpu.memory_space<vmem>>, vector<1x1x32xf32>
    %91 = vector.shape_cast %90 : vector<1x1x32xf32> to vector<1x32xf32>
    %c1_100 = arith.constant 1 : index
    %c0_101 = arith.constant 0 : index
    %c0_102 = arith.constant 0 : index
    %92 = vector.load %arg14[%c1_100, %c0_101, %c0_102] : memref<2x1x32xf32, #tpu.memory_space<vmem>>, vector<1x1x32xf32>
    %93 = vector.shape_cast %92 : vector<1x1x32xf32> to vector<1x32xf32>
    %94 = vector.extract_strided_slice %21 {offsets = [0, 0], sizes = [8, 2], strides = [1, 1]} : vector<48x2xf32> to vector<8x2xf32>
    %95 = vector.extract_strided_slice %0 {offsets = [0, 0], sizes = [8, 32], strides = [1, 1]} : vector<48x32xf32> to vector<8x32xf32>
    %96 = vector.extract_strided_slice %3 {offsets = [0, 0], sizes = [8, 1], strides = [1, 1]} : vector<48x1xf32> to vector<8x1xf32>
    %cst_103 = arith.constant -1.000000e+09 : f32
    %97 = vector.broadcast %cst_103 : f32 to vector<8x1xf32>
    %98 = arith.mulf %96, %97 : vector<8x1xf32>
    %99 = vector.broadcast %98 : vector<8x1xf32> to vector<8x2xf32>
    %100 = arith.addf %94, %99 : vector<8x2xf32>
    %cst_104 = arith.constant dense<0xFF800000> : vector<2xf32>
    %101 = vector.multi_reduction <maximumf>, %100, %cst_104 [0] : vector<8x2xf32> to vector<2xf32>
    %102 = vector.shape_cast %101 : vector<2xf32> to vector<1x2xf32>
    %103 = vector.broadcast %102 : vector<1x2xf32> to vector<8x2xf32>
    %104 = arith.subf %100, %103 : vector<8x2xf32>
    %105 = math.exp %104 : vector<8x2xf32>
    %cst_105 = arith.constant dense<0.000000e+00> : vector<2xf32>
    %106 = vector.multi_reduction <add>, %105, %cst_105 [0] : vector<8x2xf32> to vector<2xf32>
    %107 = vector.shape_cast %106 : vector<2xf32> to vector<1x2xf32>
    %108 = vector.broadcast %107 : vector<1x2xf32> to vector<8x2xf32>
    %109 = arith.divf %105, %108 : vector<8x2xf32>
    %110 = vector.extract_strided_slice %109 {offsets = [0, 0], sizes = [8, 1], strides = [1, 1]} : vector<8x2xf32> to vector<8x1xf32>
    %111 = vector.broadcast %110 : vector<8x1xf32> to vector<8x32xf32>
    %112 = arith.mulf %111, %95 : vector<8x32xf32>
    %cst_106 = arith.constant dense<0.000000e+00> : vector<32xf32>
    %113 = vector.multi_reduction <add>, %112, %cst_106 [0] : vector<8x32xf32> to vector<32xf32>
    %114 = vector.shape_cast %113 : vector<32xf32> to vector<1x32xf32>
    %115 = vector.extract_strided_slice %71 {offsets = [0, 0], sizes = [32, 32], strides = [1, 1]} : vector<64x32xf32> to vector<32x32xf32>
    %cst_107 = arith.constant dense<0.000000e+00> : vector<1x32xf32>
    %116 = tpu.matmul %114, %115, %cst_107 {dimension_numbers = #tpu.dot_dimension_numbers<[1], [0], [0], [1], [0, 0, 1, 1], [], []>} : vector<1x32xf32>, vector<32x32xf32>, vector<1x32xf32> -> vector<1x32xf32>
    %117 = arith.addf %79, %116 : vector<1x32xf32>
    %118 = vector.extract_strided_slice %109 {offsets = [0, 1], sizes = [8, 1], strides = [1, 1]} : vector<8x2xf32> to vector<8x1xf32>
    %119 = vector.broadcast %118 : vector<8x1xf32> to vector<8x32xf32>
    %120 = arith.mulf %119, %95 : vector<8x32xf32>
    %cst_108 = arith.constant dense<0.000000e+00> : vector<32xf32>
    %121 = vector.multi_reduction <add>, %120, %cst_108 [0] : vector<8x32xf32> to vector<32xf32>
    %122 = vector.shape_cast %121 : vector<32xf32> to vector<1x32xf32>
    %123 = vector.extract_strided_slice %71 {offsets = [32, 0], sizes = [32, 32], strides = [1, 1]} : vector<64x32xf32> to vector<32x32xf32>
    %cst_109 = arith.constant dense<0.000000e+00> : vector<1x32xf32>
    %124 = tpu.matmul %122, %123, %cst_109 {dimension_numbers = #tpu.dot_dimension_numbers<[1], [0], [0], [1], [0, 0, 1, 1], [], []>} : vector<1x32xf32>, vector<32x32xf32>, vector<1x32xf32> -> vector<1x32xf32>
    %125 = arith.addf %117, %124 : vector<1x32xf32>
    %126 = vector.extract_strided_slice %37 {offsets = [0, 0], sizes = [8, 2], strides = [1, 1]} : vector<48x2xf32> to vector<8x2xf32>
    %127 = vector.extract_strided_slice %2 {offsets = [0, 0], sizes = [8, 32], strides = [1, 1]} : vector<48x32xf32> to vector<8x32xf32>
    %128 = vector.extract_strided_slice %5 {offsets = [0, 0], sizes = [8, 1], strides = [1, 1]} : vector<48x1xf32> to vector<8x1xf32>
    %cst_110 = arith.constant -1.000000e+09 : f32
    %129 = vector.broadcast %cst_110 : f32 to vector<8x1xf32>
    %130 = arith.mulf %128, %129 : vector<8x1xf32>
    %131 = vector.broadcast %130 : vector<8x1xf32> to vector<8x2xf32>
    %132 = arith.addf %126, %131 : vector<8x2xf32>
    %cst_111 = arith.constant dense<0xFF800000> : vector<2xf32>
    %133 = vector.multi_reduction <maximumf>, %132, %cst_111 [0] : vector<8x2xf32> to vector<2xf32>
    %134 = vector.shape_cast %133 : vector<2xf32> to vector<1x2xf32>
    %135 = vector.broadcast %134 : vector<1x2xf32> to vector<8x2xf32>
    %136 = arith.subf %132, %135 : vector<8x2xf32>
    %137 = math.exp %136 : vector<8x2xf32>
    %cst_112 = arith.constant dense<0.000000e+00> : vector<2xf32>
    %138 = vector.multi_reduction <add>, %137, %cst_112 [0] : vector<8x2xf32> to vector<2xf32>
    %139 = vector.shape_cast %138 : vector<2xf32> to vector<1x2xf32>
    %140 = vector.broadcast %139 : vector<1x2xf32> to vector<8x2xf32>
    %141 = arith.divf %137, %140 : vector<8x2xf32>
    %142 = vector.extract_strided_slice %141 {offsets = [0, 0], sizes = [8, 1], strides = [1, 1]} : vector<8x2xf32> to vector<8x1xf32>
    %143 = vector.broadcast %142 : vector<8x1xf32> to vector<8x32xf32>
    %144 = arith.mulf %143, %127 : vector<8x32xf32>
    %cst_113 = arith.constant dense<0.000000e+00> : vector<32xf32>
    %145 = vector.multi_reduction <add>, %144, %cst_113 [0] : vector<8x32xf32> to vector<32xf32>
    %146 = vector.shape_cast %145 : vector<32xf32> to vector<1x32xf32>
    %147 = vector.extract_strided_slice %73 {offsets = [0, 0], sizes = [32, 32], strides = [1, 1]} : vector<64x32xf32> to vector<32x32xf32>
    %cst_114 = arith.constant dense<0.000000e+00> : vector<1x32xf32>
    %148 = tpu.matmul %146, %147, %cst_114 {dimension_numbers = #tpu.dot_dimension_numbers<[1], [0], [0], [1], [0, 0, 1, 1], [], []>} : vector<1x32xf32>, vector<32x32xf32>, vector<1x32xf32> -> vector<1x32xf32>
    %149 = arith.addf %81, %148 : vector<1x32xf32>
    %150 = vector.extract_strided_slice %141 {offsets = [0, 1], sizes = [8, 1], strides = [1, 1]} : vector<8x2xf32> to vector<8x1xf32>
    %151 = vector.broadcast %150 : vector<8x1xf32> to vector<8x32xf32>
    %152 = arith.mulf %151, %127 : vector<8x32xf32>
    %cst_115 = arith.constant dense<0.000000e+00> : vector<32xf32>
    %153 = vector.multi_reduction <add>, %152, %cst_115 [0] : vector<8x32xf32> to vector<32xf32>
    %154 = vector.shape_cast %153 : vector<32xf32> to vector<1x32xf32>
    %155 = vector.extract_strided_slice %73 {offsets = [32, 0], sizes = [32, 32], strides = [1, 1]} : vector<64x32xf32> to vector<32x32xf32>
    %cst_116 = arith.constant dense<0.000000e+00> : vector<1x32xf32>
    %156 = tpu.matmul %154, %155, %cst_116 {dimension_numbers = #tpu.dot_dimension_numbers<[1], [0], [0], [1], [0, 0, 1, 1], [], []>} : vector<1x32xf32>, vector<32x32xf32>, vector<1x32xf32> -> vector<1x32xf32>
    %157 = arith.addf %149, %156 : vector<1x32xf32>
    %158 = arith.addf %125, %157 : vector<1x32xf32>
    %159 = vector.extract_strided_slice %53 {offsets = [0, 0], sizes = [8, 2], strides = [1, 1]} : vector<48x2xf32> to vector<8x2xf32>
    %160 = vector.extract_strided_slice %1 {offsets = [0, 0], sizes = [8, 32], strides = [1, 1]} : vector<48x32xf32> to vector<8x32xf32>
    %161 = vector.extract_strided_slice %4 {offsets = [0, 0], sizes = [8, 1], strides = [1, 1]} : vector<48x1xf32> to vector<8x1xf32>
    %cst_117 = arith.constant -1.000000e+09 : f32
    %162 = vector.broadcast %cst_117 : f32 to vector<8x1xf32>
    %163 = arith.mulf %161, %162 : vector<8x1xf32>
    %164 = vector.broadcast %163 : vector<8x1xf32> to vector<8x2xf32>
    %165 = arith.addf %159, %164 : vector<8x2xf32>
    %cst_118 = arith.constant dense<0xFF800000> : vector<2xf32>
    %166 = vector.multi_reduction <maximumf>, %165, %cst_118 [0] : vector<8x2xf32> to vector<2xf32>
    %167 = vector.shape_cast %166 : vector<2xf32> to vector<1x2xf32>
    %168 = vector.broadcast %167 : vector<1x2xf32> to vector<8x2xf32>
    %169 = arith.subf %165, %168 : vector<8x2xf32>
    %170 = math.exp %169 : vector<8x2xf32>
    %cst_119 = arith.constant dense<0.000000e+00> : vector<2xf32>
    %171 = vector.multi_reduction <add>, %170, %cst_119 [0] : vector<8x2xf32> to vector<2xf32>
    %172 = vector.shape_cast %171 : vector<2xf32> to vector<1x2xf32>
    %173 = vector.broadcast %172 : vector<1x2xf32> to vector<8x2xf32>
    %174 = arith.divf %170, %173 : vector<8x2xf32>
    %175 = vector.extract_strided_slice %174 {offsets = [0, 0], sizes = [8, 1], strides = [1, 1]} : vector<8x2xf32> to vector<8x1xf32>
    %176 = vector.broadcast %175 : vector<8x1xf32> to vector<8x32xf32>
    %177 = arith.mulf %176, %160 : vector<8x32xf32>
    %cst_120 = arith.constant dense<0.000000e+00> : vector<32xf32>
    %178 = vector.multi_reduction <add>, %177, %cst_120 [0] : vector<8x32xf32> to vector<32xf32>
    %179 = vector.shape_cast %178 : vector<32xf32> to vector<1x32xf32>
    %180 = vector.extract_strided_slice %75 {offsets = [0, 0], sizes = [32, 32], strides = [1, 1]} : vector<64x32xf32> to vector<32x32xf32>
    %cst_121 = arith.constant dense<0.000000e+00> : vector<1x32xf32>
    %181 = tpu.matmul %179, %180, %cst_121 {dimension_numbers = #tpu.dot_dimension_numbers<[1], [0], [0], [1], [0, 0, 1, 1], [], []>} : vector<1x32xf32>, vector<32x32xf32>, vector<1x32xf32> -> vector<1x32xf32>
    %182 = arith.addf %83, %181 : vector<1x32xf32>
    %183 = vector.extract_strided_slice %174 {offsets = [0, 1], sizes = [8, 1], strides = [1, 1]} : vector<8x2xf32> to vector<8x1xf32>
    %184 = vector.broadcast %183 : vector<8x1xf32> to vector<8x32xf32>
    %185 = arith.mulf %184, %160 : vector<8x32xf32>
    %cst_122 = arith.constant dense<0.000000e+00> : vector<32xf32>
    %186 = vector.multi_reduction <add>, %185, %cst_122 [0] : vector<8x32xf32> to vector<32xf32>
    %187 = vector.shape_cast %186 : vector<32xf32> to vector<1x32xf32>
    %188 = vector.extract_strided_slice %75 {offsets = [32, 0], sizes = [32, 32], strides = [1, 1]} : vector<64x32xf32> to vector<32x32xf32>
    %cst_123 = arith.constant dense<0.000000e+00> : vector<1x32xf32>
    %189 = tpu.matmul %187, %188, %cst_123 {dimension_numbers = #tpu.dot_dimension_numbers<[1], [0], [0], [1], [0, 0, 1, 1], [], []>} : vector<1x32xf32>, vector<32x32xf32>, vector<1x32xf32> -> vector<1x32xf32>
    %190 = arith.addf %182, %189 : vector<1x32xf32>
    %191 = vector.extract_strided_slice %69 {offsets = [0, 0], sizes = [8, 2], strides = [1, 1]} : vector<48x2xf32> to vector<8x2xf32>
    %192 = vector.extract_strided_slice %2 {offsets = [0, 0], sizes = [8, 32], strides = [1, 1]} : vector<48x32xf32> to vector<8x32xf32>
    %193 = vector.extract_strided_slice %5 {offsets = [0, 0], sizes = [8, 1], strides = [1, 1]} : vector<48x1xf32> to vector<8x1xf32>
    %cst_124 = arith.constant -1.000000e+09 : f32
    %194 = vector.broadcast %cst_124 : f32 to vector<8x1xf32>
    %195 = arith.mulf %193, %194 : vector<8x1xf32>
    %196 = vector.broadcast %195 : vector<8x1xf32> to vector<8x2xf32>
    %197 = arith.addf %191, %196 : vector<8x2xf32>
    %cst_125 = arith.constant dense<0xFF800000> : vector<2xf32>
    %198 = vector.multi_reduction <maximumf>, %197, %cst_125 [0] : vector<8x2xf32> to vector<2xf32>
    %199 = vector.shape_cast %198 : vector<2xf32> to vector<1x2xf32>
    %200 = vector.broadcast %199 : vector<1x2xf32> to vector<8x2xf32>
    %201 = arith.subf %197, %200 : vector<8x2xf32>
    %202 = math.exp %201 : vector<8x2xf32>
    %cst_126 = arith.constant dense<0.000000e+00> : vector<2xf32>
    %203 = vector.multi_reduction <add>, %202, %cst_126 [0] : vector<8x2xf32> to vector<2xf32>
    %204 = vector.shape_cast %203 : vector<2xf32> to vector<1x2xf32>
    %205 = vector.broadcast %204 : vector<1x2xf32> to vector<8x2xf32>
    %206 = arith.divf %202, %205 : vector<8x2xf32>
    %207 = vector.extract_strided_slice %206 {offsets = [0, 0], sizes = [8, 1], strides = [1, 1]} : vector<8x2xf32> to vector<8x1xf32>
    %208 = vector.broadcast %207 : vector<8x1xf32> to vector<8x32xf32>
    %209 = arith.mulf %208, %192 : vector<8x32xf32>
    %cst_127 = arith.constant dense<0.000000e+00> : vector<32xf32>
    %210 = vector.multi_reduction <add>, %209, %cst_127 [0] : vector<8x32xf32> to vector<32xf32>
    %211 = vector.shape_cast %210 : vector<32xf32> to vector<1x32xf32>
    %212 = vector.extract_strided_slice %77 {offsets = [0, 0], sizes = [32, 32], strides = [1, 1]} : vector<64x32xf32> to vector<32x32xf32>
    %cst_128 = arith.constant dense<0.000000e+00> : vector<1x32xf32>
    %213 = tpu.matmul %211, %212, %cst_128 {dimension_numbers = #tpu.dot_dimension_numbers<[1], [0], [0], [1], [0, 0, 1, 1], [], []>} : vector<1x32xf32>, vector<32x32xf32>, vector<1x32xf32> -> vector<1x32xf32>
    %214 = arith.addf %85, %213 : vector<1x32xf32>
    %215 = vector.extract_strided_slice %206 {offsets = [0, 1], sizes = [8, 1], strides = [1, 1]} : vector<8x2xf32> to vector<8x1xf32>
    %216 = vector.broadcast %215 : vector<8x1xf32> to vector<8x32xf32>
    %217 = arith.mulf %216, %192 : vector<8x32xf32>
    %cst_129 = arith.constant dense<0.000000e+00> : vector<32xf32>
    %218 = vector.multi_reduction <add>, %217, %cst_129 [0] : vector<8x32xf32> to vector<32xf32>
    %219 = vector.shape_cast %218 : vector<32xf32> to vector<1x32xf32>
    %220 = vector.extract_strided_slice %77 {offsets = [32, 0], sizes = [32, 32], strides = [1, 1]} : vector<64x32xf32> to vector<32x32xf32>
    %cst_130 = arith.constant dense<0.000000e+00> : vector<1x32xf32>
    %221 = tpu.matmul %219, %220, %cst_130 {dimension_numbers = #tpu.dot_dimension_numbers<[1], [0], [0], [1], [0, 0, 1, 1], [], []>} : vector<1x32xf32>, vector<32x32xf32>, vector<1x32xf32> -> vector<1x32xf32>
    %222 = arith.addf %214, %221 : vector<1x32xf32>
    %223 = arith.addf %190, %222 : vector<1x32xf32>
    %cst_131 = arith.constant dense<0.000000e+00> : vector<1xf32>
    %224 = vector.multi_reduction <add>, %158, %cst_131 [1] : vector<1x32xf32> to vector<1xf32>
    %225 = vector.shape_cast %224 : vector<1xf32> to vector<1x1xf32>
    %cst_132 = arith.constant 3.200000e+01 : f32
    %226 = vector.broadcast %cst_132 : f32 to vector<1x1xf32>
    %227 = arith.divf %225, %226 : vector<1x1xf32>
    %228 = vector.broadcast %227 : vector<1x1xf32> to vector<1x32xf32>
    %229 = arith.subf %158, %228 : vector<1x32xf32>
    %230 = arith.mulf %229, %229 : vector<1x32xf32>
    %cst_133 = arith.constant dense<0.000000e+00> : vector<1xf32>
    %231 = vector.multi_reduction <add>, %230, %cst_133 [1] : vector<1x32xf32> to vector<1xf32>
    %232 = vector.shape_cast %231 : vector<1xf32> to vector<1x1xf32>
    %cst_134 = arith.constant 3.200000e+01 : f32
    %233 = vector.broadcast %cst_134 : f32 to vector<1x1xf32>
    %234 = arith.divf %232, %233 : vector<1x1xf32>
    %cst_135 = arith.constant 9.99999974E-6 : f32
    %235 = vector.broadcast %cst_135 : f32 to vector<1x1xf32>
    %236 = arith.addf %234, %235 : vector<1x1xf32>
    %237 = math.rsqrt %236 : vector<1x1xf32>
    %238 = vector.broadcast %237 : vector<1x1xf32> to vector<1x32xf32>
    %239 = arith.mulf %229, %238 : vector<1x32xf32>
    %240 = arith.mulf %239, %87 : vector<1x32xf32>
    %241 = arith.addf %240, %91 : vector<1x32xf32>
    %c0_136 = arith.constant 0 : index
    %c0_137 = arith.constant 0 : index
    %242 = vector.load %arg15[%c0_136, %c0_137] : memref<6x64xf32, #tpu.memory_space<vmem>>, vector<1x32xf32>
    tpu.vector_store %arg15[%c0_136, %c0_137], %241 {strides = array<i32>} : memref<6x64xf32, #tpu.memory_space<vmem>>, vector<1x32xf32>,
    %cst_138 = arith.constant dense<0.000000e+00> : vector<1xf32>
    %243 = vector.multi_reduction <add>, %223, %cst_138 [1] : vector<1x32xf32> to vector<1xf32>
    %244 = vector.shape_cast %243 : vector<1xf32> to vector<1x1xf32>
    %cst_139 = arith.constant 3.200000e+01 : f32
    %245 = vector.broadcast %cst_139 : f32 to vector<1x1xf32>
    %246 = arith.divf %244, %245 : vector<1x1xf32>
    %247 = vector.broadcast %246 : vector<1x1xf32> to vector<1x32xf32>
    %248 = arith.subf %223, %247 : vector<1x32xf32>
    %249 = arith.mulf %248, %248 : vector<1x32xf32>
    %cst_140 = arith.constant dense<0.000000e+00> : vector<1xf32>
    %250 = vector.multi_reduction <add>, %249, %cst_140 [1] : vector<1x32xf32> to vector<1xf32>
    %251 = vector.shape_cast %250 : vector<1xf32> to vector<1x1xf32>
    %cst_141 = arith.constant 3.200000e+01 : f32
    %252 = vector.broadcast %cst_141 : f32 to vector<1x1xf32>
    %253 = arith.divf %251, %252 : vector<1x1xf32>
    %cst_142 = arith.constant 9.99999974E-6 : f32
    %254 = vector.broadcast %cst_142 : f32 to vector<1x1xf32>
    %255 = arith.addf %253, %254 : vector<1x1xf32>
    %256 = math.rsqrt %255 : vector<1x1xf32>
    %257 = vector.broadcast %256 : vector<1x1xf32> to vector<1x32xf32>
    %258 = arith.mulf %248, %257 : vector<1x32xf32>
    %259 = arith.mulf %258, %89 : vector<1x32xf32>
    %260 = arith.addf %259, %93 : vector<1x32xf32>
    %c0_143 = arith.constant 0 : index
    %c32 = arith.constant 32 : index
    %261 = vector.load %arg15[%c0_143, %c32] : memref<6x64xf32, #tpu.memory_space<vmem>>, vector<1x32xf32>
    tpu.vector_store %arg15[%c0_143, %c32], %260 {strides = array<i32>} : memref<6x64xf32, #tpu.memory_space<vmem>>, vector<1x32xf32>,
    %262 = vector.extract_strided_slice %21 {offsets = [8, 0], sizes = [8, 2], strides = [1, 1]} : vector<48x2xf32> to vector<8x2xf32>
    %263 = vector.extract_strided_slice %0 {offsets = [8, 0], sizes = [8, 32], strides = [1, 1]} : vector<48x32xf32> to vector<8x32xf32>
    %264 = vector.extract_strided_slice %3 {offsets = [8, 0], sizes = [8, 1], strides = [1, 1]} : vector<48x1xf32> to vector<8x1xf32>
    %cst_144 = arith.constant -1.000000e+09 : f32
    %265 = vector.broadcast %cst_144 : f32 to vector<8x1xf32>
    %266 = arith.mulf %264, %265 : vector<8x1xf32>
    %267 = vector.broadcast %266 : vector<8x1xf32> to vector<8x2xf32>
    %268 = arith.addf %262, %267 : vector<8x2xf32>
    %cst_145 = arith.constant dense<0xFF800000> : vector<2xf32>
    %269 = vector.multi_reduction <maximumf>, %268, %cst_145 [0] : vector<8x2xf32> to vector<2xf32>
    %270 = vector.shape_cast %269 : vector<2xf32> to vector<1x2xf32>
    %271 = vector.broadcast %270 : vector<1x2xf32> to vector<8x2xf32>
    %272 = arith.subf %268, %271 : vector<8x2xf32>
    %273 = math.exp %272 : vector<8x2xf32>
    %cst_146 = arith.constant dense<0.000000e+00> : vector<2xf32>
    %274 = vector.multi_reduction <add>, %273, %cst_146 [0] : vector<8x2xf32> to vector<2xf32>
    %275 = vector.shape_cast %274 : vector<2xf32> to vector<1x2xf32>
    %276 = vector.broadcast %275 : vector<1x2xf32> to vector<8x2xf32>
    %277 = arith.divf %273, %276 : vector<8x2xf32>
    %278 = vector.extract_strided_slice %277 {offsets = [0, 0], sizes = [8, 1], strides = [1, 1]} : vector<8x2xf32> to vector<8x1xf32>
    %279 = vector.broadcast %278 : vector<8x1xf32> to vector<8x32xf32>
    %280 = arith.mulf %279, %263 : vector<8x32xf32>
    %cst_147 = arith.constant dense<0.000000e+00> : vector<32xf32>
    %281 = vector.multi_reduction <add>, %280, %cst_147 [0] : vector<8x32xf32> to vector<32xf32>
    %282 = vector.shape_cast %281 : vector<32xf32> to vector<1x32xf32>
    %283 = vector.extract_strided_slice %71 {offsets = [0, 0], sizes = [32, 32], strides = [1, 1]} : vector<64x32xf32> to vector<32x32xf32>
    %cst_148 = arith.constant dense<0.000000e+00> : vector<1x32xf32>
    %284 = tpu.matmul %282, %283, %cst_148 {dimension_numbers = #tpu.dot_dimension_numbers<[1], [0], [0], [1], [0, 0, 1, 1], [], []>} : vector<1x32xf32>, vector<32x32xf32>, vector<1x32xf32> -> vector<1x32xf32>
    %285 = arith.addf %79, %284 : vector<1x32xf32>
    %286 = vector.extract_strided_slice %277 {offsets = [0, 1], sizes = [8, 1], strides = [1, 1]} : vector<8x2xf32> to vector<8x1xf32>
    %287 = vector.broadcast %286 : vector<8x1xf32> to vector<8x32xf32>
    %288 = arith.mulf %287, %263 : vector<8x32xf32>
    %cst_149 = arith.constant dense<0.000000e+00> : vector<32xf32>
    %289 = vector.multi_reduction <add>, %288, %cst_149 [0] : vector<8x32xf32> to vector<32xf32>
    %290 = vector.shape_cast %289 : vector<32xf32> to vector<1x32xf32>
    %291 = vector.extract_strided_slice %71 {offsets = [32, 0], sizes = [32, 32], strides = [1, 1]} : vector<64x32xf32> to vector<32x32xf32>
    %cst_150 = arith.constant dense<0.000000e+00> : vector<1x32xf32>
    %292 = tpu.matmul %290, %291, %cst_150 {dimension_numbers = #tpu.dot_dimension_numbers<[1], [0], [0], [1], [0, 0, 1, 1], [], []>} : vector<1x32xf32>, vector<32x32xf32>, vector<1x32xf32> -> vector<1x32xf32>
    %293 = arith.addf %285, %292 : vector<1x32xf32>
    %294 = vector.extract_strided_slice %37 {offsets = [8, 0], sizes = [8, 2], strides = [1, 1]} : vector<48x2xf32> to vector<8x2xf32>
    %295 = vector.extract_strided_slice %2 {offsets = [8, 0], sizes = [8, 32], strides = [1, 1]} : vector<48x32xf32> to vector<8x32xf32>
    %296 = vector.extract_strided_slice %5 {offsets = [8, 0], sizes = [8, 1], strides = [1, 1]} : vector<48x1xf32> to vector<8x1xf32>
    %cst_151 = arith.constant -1.000000e+09 : f32
    %297 = vector.broadcast %cst_151 : f32 to vector<8x1xf32>
    %298 = arith.mulf %296, %297 : vector<8x1xf32>
    %299 = vector.broadcast %298 : vector<8x1xf32> to vector<8x2xf32>
    %300 = arith.addf %294, %299 : vector<8x2xf32>
    %cst_152 = arith.constant dense<0xFF800000> : vector<2xf32>
    %301 = vector.multi_reduction <maximumf>, %300, %cst_152 [0] : vector<8x2xf32> to vector<2xf32>
    %302 = vector.shape_cast %301 : vector<2xf32> to vector<1x2xf32>
    %303 = vector.broadcast %302 : vector<1x2xf32> to vector<8x2xf32>
    %304 = arith.subf %300, %303 : vector<8x2xf32>
    %305 = math.exp %304 : vector<8x2xf32>
    %cst_153 = arith.constant dense<0.000000e+00> : vector<2xf32>
    %306 = vector.multi_reduction <add>, %305, %cst_153 [0] : vector<8x2xf32> to vector<2xf32>
    %307 = vector.shape_cast %306 : vector<2xf32> to vector<1x2xf32>
    %308 = vector.broadcast %307 : vector<1x2xf32> to vector<8x2xf32>
    %309 = arith.divf %305, %308 : vector<8x2xf32>
    %310 = vector.extract_strided_slice %309 {offsets = [0, 0], sizes = [8, 1], strides = [1, 1]} : vector<8x2xf32> to vector<8x1xf32>
    %311 = vector.broadcast %310 : vector<8x1xf32> to vector<8x32xf32>
    %312 = arith.mulf %311, %295 : vector<8x32xf32>
    %cst_154 = arith.constant dense<0.000000e+00> : vector<32xf32>
    %313 = vector.multi_reduction <add>, %312, %cst_154 [0] : vector<8x32xf32> to vector<32xf32>
    %314 = vector.shape_cast %313 : vector<32xf32> to vector<1x32xf32>
    %315 = vector.extract_strided_slice %73 {offsets = [0, 0], sizes = [32, 32], strides = [1, 1]} : vector<64x32xf32> to vector<32x32xf32>
    %cst_155 = arith.constant dense<0.000000e+00> : vector<1x32xf32>
    %316 = tpu.matmul %314, %315, %cst_155 {dimension_numbers = #tpu.dot_dimension_numbers<[1], [0], [0], [1], [0, 0, 1, 1], [], []>} : vector<1x32xf32>, vector<32x32xf32>, vector<1x32xf32> -> vector<1x32xf32>
    %317 = arith.addf %81, %316 : vector<1x32xf32>
    %318 = vector.extract_strided_slice %309 {offsets = [0, 1], sizes = [8, 1], strides = [1, 1]} : vector<8x2xf32> to vector<8x1xf32>
    %319 = vector.broadcast %318 : vector<8x1xf32> to vector<8x32xf32>
    %320 = arith.mulf %319, %295 : vector<8x32xf32>
    %cst_156 = arith.constant dense<0.000000e+00> : vector<32xf32>
    %321 = vector.multi_reduction <add>, %320, %cst_156 [0] : vector<8x32xf32> to vector<32xf32>
    %322 = vector.shape_cast %321 : vector<32xf32> to vector<1x32xf32>
    %323 = vector.extract_strided_slice %73 {offsets = [32, 0], sizes = [32, 32], strides = [1, 1]} : vector<64x32xf32> to vector<32x32xf32>
    %cst_157 = arith.constant dense<0.000000e+00> : vector<1x32xf32>
    %324 = tpu.matmul %322, %323, %cst_157 {dimension_numbers = #tpu.dot_dimension_numbers<[1], [0], [0], [1], [0, 0, 1, 1], [], []>} : vector<1x32xf32>, vector<32x32xf32>, vector<1x32xf32> -> vector<1x32xf32>
    %325 = arith.addf %317, %324 : vector<1x32xf32>
    %326 = arith.addf %293, %325 : vector<1x32xf32>
    %327 = vector.extract_strided_slice %53 {offsets = [8, 0], sizes = [8, 2], strides = [1, 1]} : vector<48x2xf32> to vector<8x2xf32>
    %328 = vector.extract_strided_slice %1 {offsets = [8, 0], sizes = [8, 32], strides = [1, 1]} : vector<48x32xf32> to vector<8x32xf32>
    %329 = vector.extract_strided_slice %4 {offsets = [8, 0], sizes = [8, 1], strides = [1, 1]} : vector<48x1xf32> to vector<8x1xf32>
    %cst_158 = arith.constant -1.000000e+09 : f32
    %330 = vector.broadcast %cst_158 : f32 to vector<8x1xf32>
    %331 = arith.mulf %329, %330 : vector<8x1xf32>
    %332 = vector.broadcast %331 : vector<8x1xf32> to vector<8x2xf32>
    %333 = arith.addf %327, %332 : vector<8x2xf32>
    %cst_159 = arith.constant dense<0xFF800000> : vector<2xf32>
    %334 = vector.multi_reduction <maximumf>, %333, %cst_159 [0] : vector<8x2xf32> to vector<2xf32>
    %335 = vector.shape_cast %334 : vector<2xf32> to vector<1x2xf32>
    %336 = vector.broadcast %335 : vector<1x2xf32> to vector<8x2xf32>
    %337 = arith.subf %333, %336 : vector<8x2xf32>
    %338 = math.exp %337 : vector<8x2xf32>
    %cst_160 = arith.constant dense<0.000000e+00> : vector<2xf32>
    %339 = vector.multi_reduction <add>, %338, %cst_160 [0] : vector<8x2xf32> to vector<2xf32>
    %340 = vector.shape_cast %339 : vector<2xf32> to vector<1x2xf32>
    %341 = vector.broadcast %340 : vector<1x2xf32> to vector<8x2xf32>
    %342 = arith.divf %338, %341 : vector<8x2xf32>
    %343 = vector.extract_strided_slice %342 {offsets = [0, 0], sizes = [8, 1], strides = [1, 1]} : vector<8x2xf32> to vector<8x1xf32>
    %344 = vector.broadcast %343 : vector<8x1xf32> to vector<8x32xf32>
    %345 = arith.mulf %344, %328 : vector<8x32xf32>
    %cst_161 = arith.constant dense<0.000000e+00> : vector<32xf32>
    %346 = vector.multi_reduction <add>, %345, %cst_161 [0] : vector<8x32xf32> to vector<32xf32>
    %347 = vector.shape_cast %346 : vector<32xf32> to vector<1x32xf32>
    %348 = vector.extract_strided_slice %75 {offsets = [0, 0], sizes = [32, 32], strides = [1, 1]} : vector<64x32xf32> to vector<32x32xf32>
    %cst_162 = arith.constant dense<0.000000e+00> : vector<1x32xf32>
    %349 = tpu.matmul %347, %348, %cst_162 {dimension_numbers = #tpu.dot_dimension_numbers<[1], [0], [0], [1], [0, 0, 1, 1], [], []>} : vector<1x32xf32>, vector<32x32xf32>, vector<1x32xf32> -> vector<1x32xf32>
    %350 = arith.addf %83, %349 : vector<1x32xf32>
    %351 = vector.extract_strided_slice %342 {offsets = [0, 1], sizes = [8, 1], strides = [1, 1]} : vector<8x2xf32> to vector<8x1xf32>
    %352 = vector.broadcast %351 : vector<8x1xf32> to vector<8x32xf32>
    %353 = arith.mulf %352, %328 : vector<8x32xf32>
    %cst_163 = arith.constant dense<0.000000e+00> : vector<32xf32>
    %354 = vector.multi_reduction <add>, %353, %cst_163 [0] : vector<8x32xf32> to vector<32xf32>
    %355 = vector.shape_cast %354 : vector<32xf32> to vector<1x32xf32>
    %356 = vector.extract_strided_slice %75 {offsets = [32, 0], sizes = [32, 32], strides = [1, 1]} : vector<64x32xf32> to vector<32x32xf32>
    %cst_164 = arith.constant dense<0.000000e+00> : vector<1x32xf32>
    %357 = tpu.matmul %355, %356, %cst_164 {dimension_numbers = #tpu.dot_dimension_numbers<[1], [0], [0], [1], [0, 0, 1, 1], [], []>} : vector<1x32xf32>, vector<32x32xf32>, vector<1x32xf32> -> vector<1x32xf32>
    %358 = arith.addf %350, %357 : vector<1x32xf32>
    %359 = vector.extract_strided_slice %69 {offsets = [8, 0], sizes = [8, 2], strides = [1, 1]} : vector<48x2xf32> to vector<8x2xf32>
    %360 = vector.extract_strided_slice %2 {offsets = [8, 0], sizes = [8, 32], strides = [1, 1]} : vector<48x32xf32> to vector<8x32xf32>
    %361 = vector.extract_strided_slice %5 {offsets = [8, 0], sizes = [8, 1], strides = [1, 1]} : vector<48x1xf32> to vector<8x1xf32>
    %cst_165 = arith.constant -1.000000e+09 : f32
    %362 = vector.broadcast %cst_165 : f32 to vector<8x1xf32>
    %363 = arith.mulf %361, %362 : vector<8x1xf32>
    %364 = vector.broadcast %363 : vector<8x1xf32> to vector<8x2xf32>
    %365 = arith.addf %359, %364 : vector<8x2xf32>
    %cst_166 = arith.constant dense<0xFF800000> : vector<2xf32>
    %366 = vector.multi_reduction <maximumf>, %365, %cst_166 [0] : vector<8x2xf32> to vector<2xf32>
    %367 = vector.shape_cast %366 : vector<2xf32> to vector<1x2xf32>
    %368 = vector.broadcast %367 : vector<1x2xf32> to vector<8x2xf32>
    %369 = arith.subf %365, %368 : vector<8x2xf32>
    %370 = math.exp %369 : vector<8x2xf32>
    %cst_167 = arith.constant dense<0.000000e+00> : vector<2xf32>
    %371 = vector.multi_reduction <add>, %370, %cst_167 [0] : vector<8x2xf32> to vector<2xf32>
    %372 = vector.shape_cast %371 : vector<2xf32> to vector<1x2xf32>
    %373 = vector.broadcast %372 : vector<1x2xf32> to vector<8x2xf32>
    %374 = arith.divf %370, %373 : vector<8x2xf32>
    %375 = vector.extract_strided_slice %374 {offsets = [0, 0], sizes = [8, 1], strides = [1, 1]} : vector<8x2xf32> to vector<8x1xf32>
    %376 = vector.broadcast %375 : vector<8x1xf32> to vector<8x32xf32>
    %377 = arith.mulf %376, %360 : vector<8x32xf32>
    %cst_168 = arith.constant dense<0.000000e+00> : vector<32xf32>
    %378 = vector.multi_reduction <add>, %377, %cst_168 [0] : vector<8x32xf32> to vector<32xf32>
    %379 = vector.shape_cast %378 : vector<32xf32> to vector<1x32xf32>
    %380 = vector.extract_strided_slice %77 {offsets = [0, 0], sizes = [32, 32], strides = [1, 1]} : vector<64x32xf32> to vector<32x32xf32>
    %cst_169 = arith.constant dense<0.000000e+00> : vector<1x32xf32>
    %381 = tpu.matmul %379, %380, %cst_169 {dimension_numbers = #tpu.dot_dimension_numbers<[1], [0], [0], [1], [0, 0, 1, 1], [], []>} : vector<1x32xf32>, vector<32x32xf32>, vector<1x32xf32> -> vector<1x32xf32>
    %382 = arith.addf %85, %381 : vector<1x32xf32>
    %383 = vector.extract_strided_slice %374 {offsets = [0, 1], sizes = [8, 1], strides = [1, 1]} : vector<8x2xf32> to vector<8x1xf32>
    %384 = vector.broadcast %383 : vector<8x1xf32> to vector<8x32xf32>
    %385 = arith.mulf %384, %360 : vector<8x32xf32>
    %cst_170 = arith.constant dense<0.000000e+00> : vector<32xf32>
    %386 = vector.multi_reduction <add>, %385, %cst_170 [0] : vector<8x32xf32> to vector<32xf32>
    %387 = vector.shape_cast %386 : vector<32xf32> to vector<1x32xf32>
    %388 = vector.extract_strided_slice %77 {offsets = [32, 0], sizes = [32, 32], strides = [1, 1]} : vector<64x32xf32> to vector<32x32xf32>
    %cst_171 = arith.constant dense<0.000000e+00> : vector<1x32xf32>
    %389 = tpu.matmul %387, %388, %cst_171 {dimension_numbers = #tpu.dot_dimension_numbers<[1], [0], [0], [1], [0, 0, 1, 1], [], []>} : vector<1x32xf32>, vector<32x32xf32>, vector<1x32xf32> -> vector<1x32xf32>
    %390 = arith.addf %382, %389 : vector<1x32xf32>
    %391 = arith.addf %358, %390 : vector<1x32xf32>
    %cst_172 = arith.constant dense<0.000000e+00> : vector<1xf32>
    %392 = vector.multi_reduction <add>, %326, %cst_172 [1] : vector<1x32xf32> to vector<1xf32>
    %393 = vector.shape_cast %392 : vector<1xf32> to vector<1x1xf32>
    %cst_173 = arith.constant 3.200000e+01 : f32
    %394 = vector.broadcast %cst_173 : f32 to vector<1x1xf32>
    %395 = arith.divf %393, %394 : vector<1x1xf32>
    %396 = vector.broadcast %395 : vector<1x1xf32> to vector<1x32xf32>
    %397 = arith.subf %326, %396 : vector<1x32xf32>
    %398 = arith.mulf %397, %397 : vector<1x32xf32>
    %cst_174 = arith.constant dense<0.000000e+00> : vector<1xf32>
    %399 = vector.multi_reduction <add>, %398, %cst_174 [1] : vector<1x32xf32> to vector<1xf32>
    %400 = vector.shape_cast %399 : vector<1xf32> to vector<1x1xf32>
    %cst_175 = arith.constant 3.200000e+01 : f32
    %401 = vector.broadcast %cst_175 : f32 to vector<1x1xf32>
    %402 = arith.divf %400, %401 : vector<1x1xf32>
    %cst_176 = arith.constant 9.99999974E-6 : f32
    %403 = vector.broadcast %cst_176 : f32 to vector<1x1xf32>
    %404 = arith.addf %402, %403 : vector<1x1xf32>
    %405 = math.rsqrt %404 : vector<1x1xf32>
    %406 = vector.broadcast %405 : vector<1x1xf32> to vector<1x32xf32>
    %407 = arith.mulf %397, %406 : vector<1x32xf32>
    %408 = arith.mulf %407, %87 : vector<1x32xf32>
    %409 = arith.addf %408, %91 : vector<1x32xf32>
    %c1_177 = arith.constant 1 : index
    %c0_178 = arith.constant 0 : index
    %410 = vector.load %arg15[%c1_177, %c0_178] : memref<6x64xf32, #tpu.memory_space<vmem>>, vector<1x32xf32>
    tpu.vector_store %arg15[%c1_177, %c0_178], %409 {strides = array<i32>} : memref<6x64xf32, #tpu.memory_space<vmem>>, vector<1x32xf32>,
    %cst_179 = arith.constant dense<0.000000e+00> : vector<1xf32>
    %411 = vector.multi_reduction <add>, %391, %cst_179 [1] : vector<1x32xf32> to vector<1xf32>
    %412 = vector.shape_cast %411 : vector<1xf32> to vector<1x1xf32>
    %cst_180 = arith.constant 3.200000e+01 : f32
    %413 = vector.broadcast %cst_180 : f32 to vector<1x1xf32>
    %414 = arith.divf %412, %413 : vector<1x1xf32>
    %415 = vector.broadcast %414 : vector<1x1xf32> to vector<1x32xf32>
    %416 = arith.subf %391, %415 : vector<1x32xf32>
    %417 = arith.mulf %416, %416 : vector<1x32xf32>
    %cst_181 = arith.constant dense<0.000000e+00> : vector<1xf32>
    %418 = vector.multi_reduction <add>, %417, %cst_181 [1] : vector<1x32xf32> to vector<1xf32>
    %419 = vector.shape_cast %418 : vector<1xf32> to vector<1x1xf32>
    %cst_182 = arith.constant 3.200000e+01 : f32
    %420 = vector.broadcast %cst_182 : f32 to vector<1x1xf32>
    %421 = arith.divf %419, %420 : vector<1x1xf32>
    %cst_183 = arith.constant 9.99999974E-6 : f32
    %422 = vector.broadcast %cst_183 : f32 to vector<1x1xf32>
    %423 = arith.addf %421, %422 : vector<1x1xf32>
    %424 = math.rsqrt %423 : vector<1x1xf32>
    %425 = vector.broadcast %424 : vector<1x1xf32> to vector<1x32xf32>
    %426 = arith.mulf %416, %425 : vector<1x32xf32>
    %427 = arith.mulf %426, %89 : vector<1x32xf32>
    %428 = arith.addf %427, %93 : vector<1x32xf32>
    %c1_184 = arith.constant 1 : index
    %c32_185 = arith.constant 32 : index
    %429 = vector.load %arg15[%c1_184, %c32_185] : memref<6x64xf32, #tpu.memory_space<vmem>>, vector<1x32xf32>
    tpu.vector_store %arg15[%c1_184, %c32_185], %428 {strides = array<i32>} : memref<6x64xf32, #tpu.memory_space<vmem>>, vector<1x32xf32>,
    %430 = vector.extract_strided_slice %21 {offsets = [16, 0], sizes = [8, 2], strides = [1, 1]} : vector<48x2xf32> to vector<8x2xf32>
    %431 = vector.extract_strided_slice %0 {offsets = [16, 0], sizes = [8, 32], strides = [1, 1]} : vector<48x32xf32> to vector<8x32xf32>
    %432 = vector.extract_strided_slice %3 {offsets = [16, 0], sizes = [8, 1], strides = [1, 1]} : vector<48x1xf32> to vector<8x1xf32>
    %cst_186 = arith.constant -1.000000e+09 : f32
    %433 = vector.broadcast %cst_186 : f32 to vector<8x1xf32>
    %434 = arith.mulf %432, %433 : vector<8x1xf32>
    %435 = vector.broadcast %434 : vector<8x1xf32> to vector<8x2xf32>
    %436 = arith.addf %430, %435 : vector<8x2xf32>
    %cst_187 = arith.constant dense<0xFF800000> : vector<2xf32>
    %437 = vector.multi_reduction <maximumf>, %436, %cst_187 [0] : vector<8x2xf32> to vector<2xf32>
    %438 = vector.shape_cast %437 : vector<2xf32> to vector<1x2xf32>
    %439 = vector.broadcast %438 : vector<1x2xf32> to vector<8x2xf32>
    %440 = arith.subf %436, %439 : vector<8x2xf32>
    %441 = math.exp %440 : vector<8x2xf32>
    %cst_188 = arith.constant dense<0.000000e+00> : vector<2xf32>
    %442 = vector.multi_reduction <add>, %441, %cst_188 [0] : vector<8x2xf32> to vector<2xf32>
    %443 = vector.shape_cast %442 : vector<2xf32> to vector<1x2xf32>
    %444 = vector.broadcast %443 : vector<1x2xf32> to vector<8x2xf32>
    %445 = arith.divf %441, %444 : vector<8x2xf32>
    %446 = vector.extract_strided_slice %445 {offsets = [0, 0], sizes = [8, 1], strides = [1, 1]} : vector<8x2xf32> to vector<8x1xf32>
    %447 = vector.broadcast %446 : vector<8x1xf32> to vector<8x32xf32>
    %448 = arith.mulf %447, %431 : vector<8x32xf32>
    %cst_189 = arith.constant dense<0.000000e+00> : vector<32xf32>
    %449 = vector.multi_reduction <add>, %448, %cst_189 [0] : vector<8x32xf32> to vector<32xf32>
    %450 = vector.shape_cast %449 : vector<32xf32> to vector<1x32xf32>
    %451 = vector.extract_strided_slice %71 {offsets = [0, 0], sizes = [32, 32], strides = [1, 1]} : vector<64x32xf32> to vector<32x32xf32>
    %cst_190 = arith.constant dense<0.000000e+00> : vector<1x32xf32>
    %452 = tpu.matmul %450, %451, %cst_190 {dimension_numbers = #tpu.dot_dimension_numbers<[1], [0], [0], [1], [0, 0, 1, 1], [], []>} : vector<1x32xf32>, vector<32x32xf32>, vector<1x32xf32> -> vector<1x32xf32>
    %453 = arith.addf %79, %452 : vector<1x32xf32>
    %454 = vector.extract_strided_slice %445 {offsets = [0, 1], sizes = [8, 1], strides = [1, 1]} : vector<8x2xf32> to vector<8x1xf32>
    %455 = vector.broadcast %454 : vector<8x1xf32> to vector<8x32xf32>
    %456 = arith.mulf %455, %431 : vector<8x32xf32>
    %cst_191 = arith.constant dense<0.000000e+00> : vector<32xf32>
    %457 = vector.multi_reduction <add>, %456, %cst_191 [0] : vector<8x32xf32> to vector<32xf32>
    %458 = vector.shape_cast %457 : vector<32xf32> to vector<1x32xf32>
    %459 = vector.extract_strided_slice %71 {offsets = [32, 0], sizes = [32, 32], strides = [1, 1]} : vector<64x32xf32> to vector<32x32xf32>
    %cst_192 = arith.constant dense<0.000000e+00> : vector<1x32xf32>
    %460 = tpu.matmul %458, %459, %cst_192 {dimension_numbers = #tpu.dot_dimension_numbers<[1], [0], [0], [1], [0, 0, 1, 1], [], []>} : vector<1x32xf32>, vector<32x32xf32>, vector<1x32xf32> -> vector<1x32xf32>
    %461 = arith.addf %453, %460 : vector<1x32xf32>
    %462 = vector.extract_strided_slice %37 {offsets = [16, 0], sizes = [8, 2], strides = [1, 1]} : vector<48x2xf32> to vector<8x2xf32>
    %463 = vector.extract_strided_slice %2 {offsets = [16, 0], sizes = [8, 32], strides = [1, 1]} : vector<48x32xf32> to vector<8x32xf32>
    %464 = vector.extract_strided_slice %5 {offsets = [16, 0], sizes = [8, 1], strides = [1, 1]} : vector<48x1xf32> to vector<8x1xf32>
    %cst_193 = arith.constant -1.000000e+09 : f32
    %465 = vector.broadcast %cst_193 : f32 to vector<8x1xf32>
    %466 = arith.mulf %464, %465 : vector<8x1xf32>
    %467 = vector.broadcast %466 : vector<8x1xf32> to vector<8x2xf32>
    %468 = arith.addf %462, %467 : vector<8x2xf32>
    %cst_194 = arith.constant dense<0xFF800000> : vector<2xf32>
    %469 = vector.multi_reduction <maximumf>, %468, %cst_194 [0] : vector<8x2xf32> to vector<2xf32>
    %470 = vector.shape_cast %469 : vector<2xf32> to vector<1x2xf32>
    %471 = vector.broadcast %470 : vector<1x2xf32> to vector<8x2xf32>
    %472 = arith.subf %468, %471 : vector<8x2xf32>
    %473 = math.exp %472 : vector<8x2xf32>
    %cst_195 = arith.constant dense<0.000000e+00> : vector<2xf32>
    %474 = vector.multi_reduction <add>, %473, %cst_195 [0] : vector<8x2xf32> to vector<2xf32>
    %475 = vector.shape_cast %474 : vector<2xf32> to vector<1x2xf32>
    %476 = vector.broadcast %475 : vector<1x2xf32> to vector<8x2xf32>
    %477 = arith.divf %473, %476 : vector<8x2xf32>
    %478 = vector.extract_strided_slice %477 {offsets = [0, 0], sizes = [8, 1], strides = [1, 1]} : vector<8x2xf32> to vector<8x1xf32>
    %479 = vector.broadcast %478 : vector<8x1xf32> to vector<8x32xf32>
    %480 = arith.mulf %479, %463 : vector<8x32xf32>
    %cst_196 = arith.constant dense<0.000000e+00> : vector<32xf32>
    %481 = vector.multi_reduction <add>, %480, %cst_196 [0] : vector<8x32xf32> to vector<32xf32>
    %482 = vector.shape_cast %481 : vector<32xf32> to vector<1x32xf32>
    %483 = vector.extract_strided_slice %73 {offsets = [0, 0], sizes = [32, 32], strides = [1, 1]} : vector<64x32xf32> to vector<32x32xf32>
    %cst_197 = arith.constant dense<0.000000e+00> : vector<1x32xf32>
    %484 = tpu.matmul %482, %483, %cst_197 {dimension_numbers = #tpu.dot_dimension_numbers<[1], [0], [0], [1], [0, 0, 1, 1], [], []>} : vector<1x32xf32>, vector<32x32xf32>, vector<1x32xf32> -> vector<1x32xf32>
    %485 = arith.addf %81, %484 : vector<1x32xf32>
    %486 = vector.extract_strided_slice %477 {offsets = [0, 1], sizes = [8, 1], strides = [1, 1]} : vector<8x2xf32> to vector<8x1xf32>
    %487 = vector.broadcast %486 : vector<8x1xf32> to vector<8x32xf32>
    %488 = arith.mulf %487, %463 : vector<8x32xf32>
    %cst_198 = arith.constant dense<0.000000e+00> : vector<32xf32>
    %489 = vector.multi_reduction <add>, %488, %cst_198 [0] : vector<8x32xf32> to vector<32xf32>
    %490 = vector.shape_cast %489 : vector<32xf32> to vector<1x32xf32>
    %491 = vector.extract_strided_slice %73 {offsets = [32, 0], sizes = [32, 32], strides = [1, 1]} : vector<64x32xf32> to vector<32x32xf32>
    %cst_199 = arith.constant dense<0.000000e+00> : vector<1x32xf32>
    %492 = tpu.matmul %490, %491, %cst_199 {dimension_numbers = #tpu.dot_dimension_numbers<[1], [0], [0], [1], [0, 0, 1, 1], [], []>} : vector<1x32xf32>, vector<32x32xf32>, vector<1x32xf32> -> vector<1x32xf32>
    %493 = arith.addf %485, %492 : vector<1x32xf32>
    %494 = arith.addf %461, %493 : vector<1x32xf32>
    %495 = vector.extract_strided_slice %53 {offsets = [16, 0], sizes = [8, 2], strides = [1, 1]} : vector<48x2xf32> to vector<8x2xf32>
    %496 = vector.extract_strided_slice %1 {offsets = [16, 0], sizes = [8, 32], strides = [1, 1]} : vector<48x32xf32> to vector<8x32xf32>
    %497 = vector.extract_strided_slice %4 {offsets = [16, 0], sizes = [8, 1], strides = [1, 1]} : vector<48x1xf32> to vector<8x1xf32>
    %cst_200 = arith.constant -1.000000e+09 : f32
    %498 = vector.broadcast %cst_200 : f32 to vector<8x1xf32>
    %499 = arith.mulf %497, %498 : vector<8x1xf32>
    %500 = vector.broadcast %499 : vector<8x1xf32> to vector<8x2xf32>
    %501 = arith.addf %495, %500 : vector<8x2xf32>
    %cst_201 = arith.constant dense<0xFF800000> : vector<2xf32>
    %502 = vector.multi_reduction <maximumf>, %501, %cst_201 [0] : vector<8x2xf32> to vector<2xf32>
    %503 = vector.shape_cast %502 : vector<2xf32> to vector<1x2xf32>
    %504 = vector.broadcast %503 : vector<1x2xf32> to vector<8x2xf32>
    %505 = arith.subf %501, %504 : vector<8x2xf32>
    %506 = math.exp %505 : vector<8x2xf32>
    %cst_202 = arith.constant dense<0.000000e+00> : vector<2xf32>
    %507 = vector.multi_reduction <add>, %506, %cst_202 [0] : vector<8x2xf32> to vector<2xf32>
    %508 = vector.shape_cast %507 : vector<2xf32> to vector<1x2xf32>
    %509 = vector.broadcast %508 : vector<1x2xf32> to vector<8x2xf32>
    %510 = arith.divf %506, %509 : vector<8x2xf32>
    %511 = vector.extract_strided_slice %510 {offsets = [0, 0], sizes = [8, 1], strides = [1, 1]} : vector<8x2xf32> to vector<8x1xf32>
    %512 = vector.broadcast %511 : vector<8x1xf32> to vector<8x32xf32>
    %513 = arith.mulf %512, %496 : vector<8x32xf32>
    %cst_203 = arith.constant dense<0.000000e+00> : vector<32xf32>
    %514 = vector.multi_reduction <add>, %513, %cst_203 [0] : vector<8x32xf32> to vector<32xf32>
    %515 = vector.shape_cast %514 : vector<32xf32> to vector<1x32xf32>
    %516 = vector.extract_strided_slice %75 {offsets = [0, 0], sizes = [32, 32], strides = [1, 1]} : vector<64x32xf32> to vector<32x32xf32>
    %cst_204 = arith.constant dense<0.000000e+00> : vector<1x32xf32>
    %517 = tpu.matmul %515, %516, %cst_204 {dimension_numbers = #tpu.dot_dimension_numbers<[1], [0], [0], [1], [0, 0, 1, 1], [], []>} : vector<1x32xf32>, vector<32x32xf32>, vector<1x32xf32> -> vector<1x32xf32>
    %518 = arith.addf %83, %517 : vector<1x32xf32>
    %519 = vector.extract_strided_slice %510 {offsets = [0, 1], sizes = [8, 1], strides = [1, 1]} : vector<8x2xf32> to vector<8x1xf32>
    %520 = vector.broadcast %519 : vector<8x1xf32> to vector<8x32xf32>
    %521 = arith.mulf %520, %496 : vector<8x32xf32>
    %cst_205 = arith.constant dense<0.000000e+00> : vector<32xf32>
    %522 = vector.multi_reduction <add>, %521, %cst_205 [0] : vector<8x32xf32> to vector<32xf32>
    %523 = vector.shape_cast %522 : vector<32xf32> to vector<1x32xf32>
    %524 = vector.extract_strided_slice %75 {offsets = [32, 0], sizes = [32, 32], strides = [1, 1]} : vector<64x32xf32> to vector<32x32xf32>
    %cst_206 = arith.constant dense<0.000000e+00> : vector<1x32xf32>
    %525 = tpu.matmul %523, %524, %cst_206 {dimension_numbers = #tpu.dot_dimension_numbers<[1], [0], [0], [1], [0, 0, 1, 1], [], []>} : vector<1x32xf32>, vector<32x32xf32>, vector<1x32xf32> -> vector<1x32xf32>
    %526 = arith.addf %518, %525 : vector<1x32xf32>
    %527 = vector.extract_strided_slice %69 {offsets = [16, 0], sizes = [8, 2], strides = [1, 1]} : vector<48x2xf32> to vector<8x2xf32>
    %528 = vector.extract_strided_slice %2 {offsets = [16, 0], sizes = [8, 32], strides = [1, 1]} : vector<48x32xf32> to vector<8x32xf32>
    %529 = vector.extract_strided_slice %5 {offsets = [16, 0], sizes = [8, 1], strides = [1, 1]} : vector<48x1xf32> to vector<8x1xf32>
    %cst_207 = arith.constant -1.000000e+09 : f32
    %530 = vector.broadcast %cst_207 : f32 to vector<8x1xf32>
    %531 = arith.mulf %529, %530 : vector<8x1xf32>
    %532 = vector.broadcast %531 : vector<8x1xf32> to vector<8x2xf32>
    %533 = arith.addf %527, %532 : vector<8x2xf32>
    %cst_208 = arith.constant dense<0xFF800000> : vector<2xf32>
    %534 = vector.multi_reduction <maximumf>, %533, %cst_208 [0] : vector<8x2xf32> to vector<2xf32>
    %535 = vector.shape_cast %534 : vector<2xf32> to vector<1x2xf32>
    %536 = vector.broadcast %535 : vector<1x2xf32> to vector<8x2xf32>
    %537 = arith.subf %533, %536 : vector<8x2xf32>
    %538 = math.exp %537 : vector<8x2xf32>
    %cst_209 = arith.constant dense<0.000000e+00> : vector<2xf32>
    %539 = vector.multi_reduction <add>, %538, %cst_209 [0] : vector<8x2xf32> to vector<2xf32>
    %540 = vector.shape_cast %539 : vector<2xf32> to vector<1x2xf32>
    %541 = vector.broadcast %540 : vector<1x2xf32> to vector<8x2xf32>
    %542 = arith.divf %538, %541 : vector<8x2xf32>
    %543 = vector.extract_strided_slice %542 {offsets = [0, 0], sizes = [8, 1], strides = [1, 1]} : vector<8x2xf32> to vector<8x1xf32>
    %544 = vector.broadcast %543 : vector<8x1xf32> to vector<8x32xf32>
    %545 = arith.mulf %544, %528 : vector<8x32xf32>
    %cst_210 = arith.constant dense<0.000000e+00> : vector<32xf32>
    %546 = vector.multi_reduction <add>, %545, %cst_210 [0] : vector<8x32xf32> to vector<32xf32>
    %547 = vector.shape_cast %546 : vector<32xf32> to vector<1x32xf32>
    %548 = vector.extract_strided_slice %77 {offsets = [0, 0], sizes = [32, 32], strides = [1, 1]} : vector<64x32xf32> to vector<32x32xf32>
    %cst_211 = arith.constant dense<0.000000e+00> : vector<1x32xf32>
    %549 = tpu.matmul %547, %548, %cst_211 {dimension_numbers = #tpu.dot_dimension_numbers<[1], [0], [0], [1], [0, 0, 1, 1], [], []>} : vector<1x32xf32>, vector<32x32xf32>, vector<1x32xf32> -> vector<1x32xf32>
    %550 = arith.addf %85, %549 : vector<1x32xf32>
    %551 = vector.extract_strided_slice %542 {offsets = [0, 1], sizes = [8, 1], strides = [1, 1]} : vector<8x2xf32> to vector<8x1xf32>
    %552 = vector.broadcast %551 : vector<8x1xf32> to vector<8x32xf32>
    %553 = arith.mulf %552, %528 : vector<8x32xf32>
    %cst_212 = arith.constant dense<0.000000e+00> : vector<32xf32>
    %554 = vector.multi_reduction <add>, %553, %cst_212 [0] : vector<8x32xf32> to vector<32xf32>
    %555 = vector.shape_cast %554 : vector<32xf32> to vector<1x32xf32>
    %556 = vector.extract_strided_slice %77 {offsets = [32, 0], sizes = [32, 32], strides = [1, 1]} : vector<64x32xf32> to vector<32x32xf32>
    %cst_213 = arith.constant dense<0.000000e+00> : vector<1x32xf32>
    %557 = tpu.matmul %555, %556, %cst_213 {dimension_numbers = #tpu.dot_dimension_numbers<[1], [0], [0], [1], [0, 0, 1, 1], [], []>} : vector<1x32xf32>, vector<32x32xf32>, vector<1x32xf32> -> vector<1x32xf32>
    %558 = arith.addf %550, %557 : vector<1x32xf32>
    %559 = arith.addf %526, %558 : vector<1x32xf32>
    %cst_214 = arith.constant dense<0.000000e+00> : vector<1xf32>
    %560 = vector.multi_reduction <add>, %494, %cst_214 [1] : vector<1x32xf32> to vector<1xf32>
    %561 = vector.shape_cast %560 : vector<1xf32> to vector<1x1xf32>
    %cst_215 = arith.constant 3.200000e+01 : f32
    %562 = vector.broadcast %cst_215 : f32 to vector<1x1xf32>
    %563 = arith.divf %561, %562 : vector<1x1xf32>
    %564 = vector.broadcast %563 : vector<1x1xf32> to vector<1x32xf32>
    %565 = arith.subf %494, %564 : vector<1x32xf32>
    %566 = arith.mulf %565, %565 : vector<1x32xf32>
    %cst_216 = arith.constant dense<0.000000e+00> : vector<1xf32>
    %567 = vector.multi_reduction <add>, %566, %cst_216 [1] : vector<1x32xf32> to vector<1xf32>
    %568 = vector.shape_cast %567 : vector<1xf32> to vector<1x1xf32>
    %cst_217 = arith.constant 3.200000e+01 : f32
    %569 = vector.broadcast %cst_217 : f32 to vector<1x1xf32>
    %570 = arith.divf %568, %569 : vector<1x1xf32>
    %cst_218 = arith.constant 9.99999974E-6 : f32
    %571 = vector.broadcast %cst_218 : f32 to vector<1x1xf32>
    %572 = arith.addf %570, %571 : vector<1x1xf32>
    %573 = math.rsqrt %572 : vector<1x1xf32>
    %574 = vector.broadcast %573 : vector<1x1xf32> to vector<1x32xf32>
    %575 = arith.mulf %565, %574 : vector<1x32xf32>
    %576 = arith.mulf %575, %87 : vector<1x32xf32>
    %577 = arith.addf %576, %91 : vector<1x32xf32>
    %c2_219 = arith.constant 2 : index
    %c0_220 = arith.constant 0 : index
    %578 = vector.load %arg15[%c2_219, %c0_220] : memref<6x64xf32, #tpu.memory_space<vmem>>, vector<1x32xf32>
    tpu.vector_store %arg15[%c2_219, %c0_220], %577 {strides = array<i32>} : memref<6x64xf32, #tpu.memory_space<vmem>>, vector<1x32xf32>,
    %cst_221 = arith.constant dense<0.000000e+00> : vector<1xf32>
    %579 = vector.multi_reduction <add>, %559, %cst_221 [1] : vector<1x32xf32> to vector<1xf32>
    %580 = vector.shape_cast %579 : vector<1xf32> to vector<1x1xf32>
    %cst_222 = arith.constant 3.200000e+01 : f32
    %581 = vector.broadcast %cst_222 : f32 to vector<1x1xf32>
    %582 = arith.divf %580, %581 : vector<1x1xf32>
    %583 = vector.broadcast %582 : vector<1x1xf32> to vector<1x32xf32>
    %584 = arith.subf %559, %583 : vector<1x32xf32>
    %585 = arith.mulf %584, %584 : vector<1x32xf32>
    %cst_223 = arith.constant dense<0.000000e+00> : vector<1xf32>
    %586 = vector.multi_reduction <add>, %585, %cst_223 [1] : vector<1x32xf32> to vector<1xf32>
    %587 = vector.shape_cast %586 : vector<1xf32> to vector<1x1xf32>
    %cst_224 = arith.constant 3.200000e+01 : f32
    %588 = vector.broadcast %cst_224 : f32 to vector<1x1xf32>
    %589 = arith.divf %587, %588 : vector<1x1xf32>
    %cst_225 = arith.constant 9.99999974E-6 : f32
    %590 = vector.broadcast %cst_225 : f32 to vector<1x1xf32>
    %591 = arith.addf %589, %590 : vector<1x1xf32>
    %592 = math.rsqrt %591 : vector<1x1xf32>
    %593 = vector.broadcast %592 : vector<1x1xf32> to vector<1x32xf32>
    %594 = arith.mulf %584, %593 : vector<1x32xf32>
    %595 = arith.mulf %594, %89 : vector<1x32xf32>
    %596 = arith.addf %595, %93 : vector<1x32xf32>
    %c2_226 = arith.constant 2 : index
    %c32_227 = arith.constant 32 : index
    %597 = vector.load %arg15[%c2_226, %c32_227] : memref<6x64xf32, #tpu.memory_space<vmem>>, vector<1x32xf32>
    tpu.vector_store %arg15[%c2_226, %c32_227], %596 {strides = array<i32>} : memref<6x64xf32, #tpu.memory_space<vmem>>, vector<1x32xf32>,
    %598 = vector.extract_strided_slice %21 {offsets = [24, 0], sizes = [8, 2], strides = [1, 1]} : vector<48x2xf32> to vector<8x2xf32>
    %599 = vector.extract_strided_slice %0 {offsets = [24, 0], sizes = [8, 32], strides = [1, 1]} : vector<48x32xf32> to vector<8x32xf32>
    %600 = vector.extract_strided_slice %3 {offsets = [24, 0], sizes = [8, 1], strides = [1, 1]} : vector<48x1xf32> to vector<8x1xf32>
    %cst_228 = arith.constant -1.000000e+09 : f32
    %601 = vector.broadcast %cst_228 : f32 to vector<8x1xf32>
    %602 = arith.mulf %600, %601 : vector<8x1xf32>
    %603 = vector.broadcast %602 : vector<8x1xf32> to vector<8x2xf32>
    %604 = arith.addf %598, %603 : vector<8x2xf32>
    %cst_229 = arith.constant dense<0xFF800000> : vector<2xf32>
    %605 = vector.multi_reduction <maximumf>, %604, %cst_229 [0] : vector<8x2xf32> to vector<2xf32>
    %606 = vector.shape_cast %605 : vector<2xf32> to vector<1x2xf32>
    %607 = vector.broadcast %606 : vector<1x2xf32> to vector<8x2xf32>
    %608 = arith.subf %604, %607 : vector<8x2xf32>
    %609 = math.exp %608 : vector<8x2xf32>
    %cst_230 = arith.constant dense<0.000000e+00> : vector<2xf32>
    %610 = vector.multi_reduction <add>, %609, %cst_230 [0] : vector<8x2xf32> to vector<2xf32>
    %611 = vector.shape_cast %610 : vector<2xf32> to vector<1x2xf32>
    %612 = vector.broadcast %611 : vector<1x2xf32> to vector<8x2xf32>
    %613 = arith.divf %609, %612 : vector<8x2xf32>
    %614 = vector.extract_strided_slice %613 {offsets = [0, 0], sizes = [8, 1], strides = [1, 1]} : vector<8x2xf32> to vector<8x1xf32>
    %615 = vector.broadcast %614 : vector<8x1xf32> to vector<8x32xf32>
    %616 = arith.mulf %615, %599 : vector<8x32xf32>
    %cst_231 = arith.constant dense<0.000000e+00> : vector<32xf32>
    %617 = vector.multi_reduction <add>, %616, %cst_231 [0] : vector<8x32xf32> to vector<32xf32>
    %618 = vector.shape_cast %617 : vector<32xf32> to vector<1x32xf32>
    %619 = vector.extract_strided_slice %71 {offsets = [0, 0], sizes = [32, 32], strides = [1, 1]} : vector<64x32xf32> to vector<32x32xf32>
    %cst_232 = arith.constant dense<0.000000e+00> : vector<1x32xf32>
    %620 = tpu.matmul %618, %619, %cst_232 {dimension_numbers = #tpu.dot_dimension_numbers<[1], [0], [0], [1], [0, 0, 1, 1], [], []>} : vector<1x32xf32>, vector<32x32xf32>, vector<1x32xf32> -> vector<1x32xf32>
    %621 = arith.addf %79, %620 : vector<1x32xf32>
    %622 = vector.extract_strided_slice %613 {offsets = [0, 1], sizes = [8, 1], strides = [1, 1]} : vector<8x2xf32> to vector<8x1xf32>
    %623 = vector.broadcast %622 : vector<8x1xf32> to vector<8x32xf32>
    %624 = arith.mulf %623, %599 : vector<8x32xf32>
    %cst_233 = arith.constant dense<0.000000e+00> : vector<32xf32>
    %625 = vector.multi_reduction <add>, %624, %cst_233 [0] : vector<8x32xf32> to vector<32xf32>
    %626 = vector.shape_cast %625 : vector<32xf32> to vector<1x32xf32>
    %627 = vector.extract_strided_slice %71 {offsets = [32, 0], sizes = [32, 32], strides = [1, 1]} : vector<64x32xf32> to vector<32x32xf32>
    %cst_234 = arith.constant dense<0.000000e+00> : vector<1x32xf32>
    %628 = tpu.matmul %626, %627, %cst_234 {dimension_numbers = #tpu.dot_dimension_numbers<[1], [0], [0], [1], [0, 0, 1, 1], [], []>} : vector<1x32xf32>, vector<32x32xf32>, vector<1x32xf32> -> vector<1x32xf32>
    %629 = arith.addf %621, %628 : vector<1x32xf32>
    %630 = vector.extract_strided_slice %37 {offsets = [24, 0], sizes = [8, 2], strides = [1, 1]} : vector<48x2xf32> to vector<8x2xf32>
    %631 = vector.extract_strided_slice %2 {offsets = [24, 0], sizes = [8, 32], strides = [1, 1]} : vector<48x32xf32> to vector<8x32xf32>
    %632 = vector.extract_strided_slice %5 {offsets = [24, 0], sizes = [8, 1], strides = [1, 1]} : vector<48x1xf32> to vector<8x1xf32>
    %cst_235 = arith.constant -1.000000e+09 : f32
    %633 = vector.broadcast %cst_235 : f32 to vector<8x1xf32>
    %634 = arith.mulf %632, %633 : vector<8x1xf32>
    %635 = vector.broadcast %634 : vector<8x1xf32> to vector<8x2xf32>
    %636 = arith.addf %630, %635 : vector<8x2xf32>
    %cst_236 = arith.constant dense<0xFF800000> : vector<2xf32>
    %637 = vector.multi_reduction <maximumf>, %636, %cst_236 [0] : vector<8x2xf32> to vector<2xf32>
    %638 = vector.shape_cast %637 : vector<2xf32> to vector<1x2xf32>
    %639 = vector.broadcast %638 : vector<1x2xf32> to vector<8x2xf32>
    %640 = arith.subf %636, %639 : vector<8x2xf32>
    %641 = math.exp %640 : vector<8x2xf32>
    %cst_237 = arith.constant dense<0.000000e+00> : vector<2xf32>
    %642 = vector.multi_reduction <add>, %641, %cst_237 [0] : vector<8x2xf32> to vector<2xf32>
    %643 = vector.shape_cast %642 : vector<2xf32> to vector<1x2xf32>
    %644 = vector.broadcast %643 : vector<1x2xf32> to vector<8x2xf32>
    %645 = arith.divf %641, %644 : vector<8x2xf32>
    %646 = vector.extract_strided_slice %645 {offsets = [0, 0], sizes = [8, 1], strides = [1, 1]} : vector<8x2xf32> to vector<8x1xf32>
    %647 = vector.broadcast %646 : vector<8x1xf32> to vector<8x32xf32>
    %648 = arith.mulf %647, %631 : vector<8x32xf32>
    %cst_238 = arith.constant dense<0.000000e+00> : vector<32xf32>
    %649 = vector.multi_reduction <add>, %648, %cst_238 [0] : vector<8x32xf32> to vector<32xf32>
    %650 = vector.shape_cast %649 : vector<32xf32> to vector<1x32xf32>
    %651 = vector.extract_strided_slice %73 {offsets = [0, 0], sizes = [32, 32], strides = [1, 1]} : vector<64x32xf32> to vector<32x32xf32>
    %cst_239 = arith.constant dense<0.000000e+00> : vector<1x32xf32>
    %652 = tpu.matmul %650, %651, %cst_239 {dimension_numbers = #tpu.dot_dimension_numbers<[1], [0], [0], [1], [0, 0, 1, 1], [], []>} : vector<1x32xf32>, vector<32x32xf32>, vector<1x32xf32> -> vector<1x32xf32>
    %653 = arith.addf %81, %652 : vector<1x32xf32>
    %654 = vector.extract_strided_slice %645 {offsets = [0, 1], sizes = [8, 1], strides = [1, 1]} : vector<8x2xf32> to vector<8x1xf32>
    %655 = vector.broadcast %654 : vector<8x1xf32> to vector<8x32xf32>
    %656 = arith.mulf %655, %631 : vector<8x32xf32>
    %cst_240 = arith.constant dense<0.000000e+00> : vector<32xf32>
    %657 = vector.multi_reduction <add>, %656, %cst_240 [0] : vector<8x32xf32> to vector<32xf32>
    %658 = vector.shape_cast %657 : vector<32xf32> to vector<1x32xf32>
    %659 = vector.extract_strided_slice %73 {offsets = [32, 0], sizes = [32, 32], strides = [1, 1]} : vector<64x32xf32> to vector<32x32xf32>
    %cst_241 = arith.constant dense<0.000000e+00> : vector<1x32xf32>
    %660 = tpu.matmul %658, %659, %cst_241 {dimension_numbers = #tpu.dot_dimension_numbers<[1], [0], [0], [1], [0, 0, 1, 1], [], []>} : vector<1x32xf32>, vector<32x32xf32>, vector<1x32xf32> -> vector<1x32xf32>
    %661 = arith.addf %653, %660 : vector<1x32xf32>
    %662 = arith.addf %629, %661 : vector<1x32xf32>
    %663 = vector.extract_strided_slice %53 {offsets = [24, 0], sizes = [8, 2], strides = [1, 1]} : vector<48x2xf32> to vector<8x2xf32>
    %664 = vector.extract_strided_slice %1 {offsets = [24, 0], sizes = [8, 32], strides = [1, 1]} : vector<48x32xf32> to vector<8x32xf32>
    %665 = vector.extract_strided_slice %4 {offsets = [24, 0], sizes = [8, 1], strides = [1, 1]} : vector<48x1xf32> to vector<8x1xf32>
    %cst_242 = arith.constant -1.000000e+09 : f32
    %666 = vector.broadcast %cst_242 : f32 to vector<8x1xf32>
    %667 = arith.mulf %665, %666 : vector<8x1xf32>
    %668 = vector.broadcast %667 : vector<8x1xf32> to vector<8x2xf32>
    %669 = arith.addf %663, %668 : vector<8x2xf32>
    %cst_243 = arith.constant dense<0xFF800000> : vector<2xf32>
    %670 = vector.multi_reduction <maximumf>, %669, %cst_243 [0] : vector<8x2xf32> to vector<2xf32>
    %671 = vector.shape_cast %670 : vector<2xf32> to vector<1x2xf32>
    %672 = vector.broadcast %671 : vector<1x2xf32> to vector<8x2xf32>
    %673 = arith.subf %669, %672 : vector<8x2xf32>
    %674 = math.exp %673 : vector<8x2xf32>
    %cst_244 = arith.constant dense<0.000000e+00> : vector<2xf32>
    %675 = vector.multi_reduction <add>, %674, %cst_244 [0] : vector<8x2xf32> to vector<2xf32>
    %676 = vector.shape_cast %675 : vector<2xf32> to vector<1x2xf32>
    %677 = vector.broadcast %676 : vector<1x2xf32> to vector<8x2xf32>
    %678 = arith.divf %674, %677 : vector<8x2xf32>
    %679 = vector.extract_strided_slice %678 {offsets = [0, 0], sizes = [8, 1], strides = [1, 1]} : vector<8x2xf32> to vector<8x1xf32>
    %680 = vector.broadcast %679 : vector<8x1xf32> to vector<8x32xf32>
    %681 = arith.mulf %680, %664 : vector<8x32xf32>
    %cst_245 = arith.constant dense<0.000000e+00> : vector<32xf32>
    %682 = vector.multi_reduction <add>, %681, %cst_245 [0] : vector<8x32xf32> to vector<32xf32>
    %683 = vector.shape_cast %682 : vector<32xf32> to vector<1x32xf32>
    %684 = vector.extract_strided_slice %75 {offsets = [0, 0], sizes = [32, 32], strides = [1, 1]} : vector<64x32xf32> to vector<32x32xf32>
    %cst_246 = arith.constant dense<0.000000e+00> : vector<1x32xf32>
    %685 = tpu.matmul %683, %684, %cst_246 {dimension_numbers = #tpu.dot_dimension_numbers<[1], [0], [0], [1], [0, 0, 1, 1], [], []>} : vector<1x32xf32>, vector<32x32xf32>, vector<1x32xf32> -> vector<1x32xf32>
    %686 = arith.addf %83, %685 : vector<1x32xf32>
    %687 = vector.extract_strided_slice %678 {offsets = [0, 1], sizes = [8, 1], strides = [1, 1]} : vector<8x2xf32> to vector<8x1xf32>
    %688 = vector.broadcast %687 : vector<8x1xf32> to vector<8x32xf32>
    %689 = arith.mulf %688, %664 : vector<8x32xf32>
    %cst_247 = arith.constant dense<0.000000e+00> : vector<32xf32>
    %690 = vector.multi_reduction <add>, %689, %cst_247 [0] : vector<8x32xf32> to vector<32xf32>
    %691 = vector.shape_cast %690 : vector<32xf32> to vector<1x32xf32>
    %692 = vector.extract_strided_slice %75 {offsets = [32, 0], sizes = [32, 32], strides = [1, 1]} : vector<64x32xf32> to vector<32x32xf32>
    %cst_248 = arith.constant dense<0.000000e+00> : vector<1x32xf32>
    %693 = tpu.matmul %691, %692, %cst_248 {dimension_numbers = #tpu.dot_dimension_numbers<[1], [0], [0], [1], [0, 0, 1, 1], [], []>} : vector<1x32xf32>, vector<32x32xf32>, vector<1x32xf32> -> vector<1x32xf32>
    %694 = arith.addf %686, %693 : vector<1x32xf32>
    %695 = vector.extract_strided_slice %69 {offsets = [24, 0], sizes = [8, 2], strides = [1, 1]} : vector<48x2xf32> to vector<8x2xf32>
    %696 = vector.extract_strided_slice %2 {offsets = [24, 0], sizes = [8, 32], strides = [1, 1]} : vector<48x32xf32> to vector<8x32xf32>
    %697 = vector.extract_strided_slice %5 {offsets = [24, 0], sizes = [8, 1], strides = [1, 1]} : vector<48x1xf32> to vector<8x1xf32>
    %cst_249 = arith.constant -1.000000e+09 : f32
    %698 = vector.broadcast %cst_249 : f32 to vector<8x1xf32>
    %699 = arith.mulf %697, %698 : vector<8x1xf32>
    %700 = vector.broadcast %699 : vector<8x1xf32> to vector<8x2xf32>
    %701 = arith.addf %695, %700 : vector<8x2xf32>
    %cst_250 = arith.constant dense<0xFF800000> : vector<2xf32>
    %702 = vector.multi_reduction <maximumf>, %701, %cst_250 [0] : vector<8x2xf32> to vector<2xf32>
    %703 = vector.shape_cast %702 : vector<2xf32> to vector<1x2xf32>
    %704 = vector.broadcast %703 : vector<1x2xf32> to vector<8x2xf32>
    %705 = arith.subf %701, %704 : vector<8x2xf32>
    %706 = math.exp %705 : vector<8x2xf32>
    %cst_251 = arith.constant dense<0.000000e+00> : vector<2xf32>
    %707 = vector.multi_reduction <add>, %706, %cst_251 [0] : vector<8x2xf32> to vector<2xf32>
    %708 = vector.shape_cast %707 : vector<2xf32> to vector<1x2xf32>
    %709 = vector.broadcast %708 : vector<1x2xf32> to vector<8x2xf32>
    %710 = arith.divf %706, %709 : vector<8x2xf32>
    %711 = vector.extract_strided_slice %710 {offsets = [0, 0], sizes = [8, 1], strides = [1, 1]} : vector<8x2xf32> to vector<8x1xf32>
    %712 = vector.broadcast %711 : vector<8x1xf32> to vector<8x32xf32>
    %713 = arith.mulf %712, %696 : vector<8x32xf32>
    %cst_252 = arith.constant dense<0.000000e+00> : vector<32xf32>
    %714 = vector.multi_reduction <add>, %713, %cst_252 [0] : vector<8x32xf32> to vector<32xf32>
    %715 = vector.shape_cast %714 : vector<32xf32> to vector<1x32xf32>
    %716 = vector.extract_strided_slice %77 {offsets = [0, 0], sizes = [32, 32], strides = [1, 1]} : vector<64x32xf32> to vector<32x32xf32>
    %cst_253 = arith.constant dense<0.000000e+00> : vector<1x32xf32>
    %717 = tpu.matmul %715, %716, %cst_253 {dimension_numbers = #tpu.dot_dimension_numbers<[1], [0], [0], [1], [0, 0, 1, 1], [], []>} : vector<1x32xf32>, vector<32x32xf32>, vector<1x32xf32> -> vector<1x32xf32>
    %718 = arith.addf %85, %717 : vector<1x32xf32>
    %719 = vector.extract_strided_slice %710 {offsets = [0, 1], sizes = [8, 1], strides = [1, 1]} : vector<8x2xf32> to vector<8x1xf32>
    %720 = vector.broadcast %719 : vector<8x1xf32> to vector<8x32xf32>
    %721 = arith.mulf %720, %696 : vector<8x32xf32>
    %cst_254 = arith.constant dense<0.000000e+00> : vector<32xf32>
    %722 = vector.multi_reduction <add>, %721, %cst_254 [0] : vector<8x32xf32> to vector<32xf32>
    %723 = vector.shape_cast %722 : vector<32xf32> to vector<1x32xf32>
    %724 = vector.extract_strided_slice %77 {offsets = [32, 0], sizes = [32, 32], strides = [1, 1]} : vector<64x32xf32> to vector<32x32xf32>
    %cst_255 = arith.constant dense<0.000000e+00> : vector<1x32xf32>
    %725 = tpu.matmul %723, %724, %cst_255 {dimension_numbers = #tpu.dot_dimension_numbers<[1], [0], [0], [1], [0, 0, 1, 1], [], []>} : vector<1x32xf32>, vector<32x32xf32>, vector<1x32xf32> -> vector<1x32xf32>
    %726 = arith.addf %718, %725 : vector<1x32xf32>
    %727 = arith.addf %694, %726 : vector<1x32xf32>
    %cst_256 = arith.constant dense<0.000000e+00> : vector<1xf32>
    %728 = vector.multi_reduction <add>, %662, %cst_256 [1] : vector<1x32xf32> to vector<1xf32>
    %729 = vector.shape_cast %728 : vector<1xf32> to vector<1x1xf32>
    %cst_257 = arith.constant 3.200000e+01 : f32
    %730 = vector.broadcast %cst_257 : f32 to vector<1x1xf32>
    %731 = arith.divf %729, %730 : vector<1x1xf32>
    %732 = vector.broadcast %731 : vector<1x1xf32> to vector<1x32xf32>
    %733 = arith.subf %662, %732 : vector<1x32xf32>
    %734 = arith.mulf %733, %733 : vector<1x32xf32>
    %cst_258 = arith.constant dense<0.000000e+00> : vector<1xf32>
    %735 = vector.multi_reduction <add>, %734, %cst_258 [1] : vector<1x32xf32> to vector<1xf32>
    %736 = vector.shape_cast %735 : vector<1xf32> to vector<1x1xf32>
    %cst_259 = arith.constant 3.200000e+01 : f32
    %737 = vector.broadcast %cst_259 : f32 to vector<1x1xf32>
    %738 = arith.divf %736, %737 : vector<1x1xf32>
    %cst_260 = arith.constant 9.99999974E-6 : f32
    %739 = vector.broadcast %cst_260 : f32 to vector<1x1xf32>
    %740 = arith.addf %738, %739 : vector<1x1xf32>
    %741 = math.rsqrt %740 : vector<1x1xf32>
    %742 = vector.broadcast %741 : vector<1x1xf32> to vector<1x32xf32>
    %743 = arith.mulf %733, %742 : vector<1x32xf32>
    %744 = arith.mulf %743, %87 : vector<1x32xf32>
    %745 = arith.addf %744, %91 : vector<1x32xf32>
    %c3_261 = arith.constant 3 : index
    %c0_262 = arith.constant 0 : index
    %746 = vector.load %arg15[%c3_261, %c0_262] : memref<6x64xf32, #tpu.memory_space<vmem>>, vector<1x32xf32>
    tpu.vector_store %arg15[%c3_261, %c0_262], %745 {strides = array<i32>} : memref<6x64xf32, #tpu.memory_space<vmem>>, vector<1x32xf32>,
    %cst_263 = arith.constant dense<0.000000e+00> : vector<1xf32>
    %747 = vector.multi_reduction <add>, %727, %cst_263 [1] : vector<1x32xf32> to vector<1xf32>
    %748 = vector.shape_cast %747 : vector<1xf32> to vector<1x1xf32>
    %cst_264 = arith.constant 3.200000e+01 : f32
    %749 = vector.broadcast %cst_264 : f32 to vector<1x1xf32>
    %750 = arith.divf %748, %749 : vector<1x1xf32>
    %751 = vector.broadcast %750 : vector<1x1xf32> to vector<1x32xf32>
    %752 = arith.subf %727, %751 : vector<1x32xf32>
    %753 = arith.mulf %752, %752 : vector<1x32xf32>
    %cst_265 = arith.constant dense<0.000000e+00> : vector<1xf32>
    %754 = vector.multi_reduction <add>, %753, %cst_265 [1] : vector<1x32xf32> to vector<1xf32>
    %755 = vector.shape_cast %754 : vector<1xf32> to vector<1x1xf32>
    %cst_266 = arith.constant 3.200000e+01 : f32
    %756 = vector.broadcast %cst_266 : f32 to vector<1x1xf32>
    %757 = arith.divf %755, %756 : vector<1x1xf32>
    %cst_267 = arith.constant 9.99999974E-6 : f32
    %758 = vector.broadcast %cst_267 : f32 to vector<1x1xf32>
    %759 = arith.addf %757, %758 : vector<1x1xf32>
    %760 = math.rsqrt %759 : vector<1x1xf32>
    %761 = vector.broadcast %760 : vector<1x1xf32> to vector<1x32xf32>
    %762 = arith.mulf %752, %761 : vector<1x32xf32>
    %763 = arith.mulf %762, %89 : vector<1x32xf32>
    %764 = arith.addf %763, %93 : vector<1x32xf32>
    %c3_268 = arith.constant 3 : index
    %c32_269 = arith.constant 32 : index
    %765 = vector.load %arg15[%c3_268, %c32_269] : memref<6x64xf32, #tpu.memory_space<vmem>>, vector<1x32xf32>
    tpu.vector_store %arg15[%c3_268, %c32_269], %764 {strides = array<i32>} : memref<6x64xf32, #tpu.memory_space<vmem>>, vector<1x32xf32>,
    %766 = vector.extract_strided_slice %21 {offsets = [32, 0], sizes = [8, 2], strides = [1, 1]} : vector<48x2xf32> to vector<8x2xf32>
    %767 = vector.extract_strided_slice %0 {offsets = [32, 0], sizes = [8, 32], strides = [1, 1]} : vector<48x32xf32> to vector<8x32xf32>
    %768 = vector.extract_strided_slice %3 {offsets = [32, 0], sizes = [8, 1], strides = [1, 1]} : vector<48x1xf32> to vector<8x1xf32>
    %cst_270 = arith.constant -1.000000e+09 : f32
    %769 = vector.broadcast %cst_270 : f32 to vector<8x1xf32>
    %770 = arith.mulf %768, %769 : vector<8x1xf32>
    %771 = vector.broadcast %770 : vector<8x1xf32> to vector<8x2xf32>
    %772 = arith.addf %766, %771 : vector<8x2xf32>
    %cst_271 = arith.constant dense<0xFF800000> : vector<2xf32>
    %773 = vector.multi_reduction <maximumf>, %772, %cst_271 [0] : vector<8x2xf32> to vector<2xf32>
    %774 = vector.shape_cast %773 : vector<2xf32> to vector<1x2xf32>
    %775 = vector.broadcast %774 : vector<1x2xf32> to vector<8x2xf32>
    %776 = arith.subf %772, %775 : vector<8x2xf32>
    %777 = math.exp %776 : vector<8x2xf32>
    %cst_272 = arith.constant dense<0.000000e+00> : vector<2xf32>
    %778 = vector.multi_reduction <add>, %777, %cst_272 [0] : vector<8x2xf32> to vector<2xf32>
    %779 = vector.shape_cast %778 : vector<2xf32> to vector<1x2xf32>
    %780 = vector.broadcast %779 : vector<1x2xf32> to vector<8x2xf32>
    %781 = arith.divf %777, %780 : vector<8x2xf32>
    %782 = vector.extract_strided_slice %781 {offsets = [0, 0], sizes = [8, 1], strides = [1, 1]} : vector<8x2xf32> to vector<8x1xf32>
    %783 = vector.broadcast %782 : vector<8x1xf32> to vector<8x32xf32>
    %784 = arith.mulf %783, %767 : vector<8x32xf32>
    %cst_273 = arith.constant dense<0.000000e+00> : vector<32xf32>
    %785 = vector.multi_reduction <add>, %784, %cst_273 [0] : vector<8x32xf32> to vector<32xf32>
    %786 = vector.shape_cast %785 : vector<32xf32> to vector<1x32xf32>
    %787 = vector.extract_strided_slice %71 {offsets = [0, 0], sizes = [32, 32], strides = [1, 1]} : vector<64x32xf32> to vector<32x32xf32>
    %cst_274 = arith.constant dense<0.000000e+00> : vector<1x32xf32>
    %788 = tpu.matmul %786, %787, %cst_274 {dimension_numbers = #tpu.dot_dimension_numbers<[1], [0], [0], [1], [0, 0, 1, 1], [], []>} : vector<1x32xf32>, vector<32x32xf32>, vector<1x32xf32> -> vector<1x32xf32>
    %789 = arith.addf %79, %788 : vector<1x32xf32>
    %790 = vector.extract_strided_slice %781 {offsets = [0, 1], sizes = [8, 1], strides = [1, 1]} : vector<8x2xf32> to vector<8x1xf32>
    %791 = vector.broadcast %790 : vector<8x1xf32> to vector<8x32xf32>
    %792 = arith.mulf %791, %767 : vector<8x32xf32>
    %cst_275 = arith.constant dense<0.000000e+00> : vector<32xf32>
    %793 = vector.multi_reduction <add>, %792, %cst_275 [0] : vector<8x32xf32> to vector<32xf32>
    %794 = vector.shape_cast %793 : vector<32xf32> to vector<1x32xf32>
    %795 = vector.extract_strided_slice %71 {offsets = [32, 0], sizes = [32, 32], strides = [1, 1]} : vector<64x32xf32> to vector<32x32xf32>
    %cst_276 = arith.constant dense<0.000000e+00> : vector<1x32xf32>
    %796 = tpu.matmul %794, %795, %cst_276 {dimension_numbers = #tpu.dot_dimension_numbers<[1], [0], [0], [1], [0, 0, 1, 1], [], []>} : vector<1x32xf32>, vector<32x32xf32>, vector<1x32xf32> -> vector<1x32xf32>
    %797 = arith.addf %789, %796 : vector<1x32xf32>
    %798 = vector.extract_strided_slice %37 {offsets = [32, 0], sizes = [8, 2], strides = [1, 1]} : vector<48x2xf32> to vector<8x2xf32>
    %799 = vector.extract_strided_slice %2 {offsets = [32, 0], sizes = [8, 32], strides = [1, 1]} : vector<48x32xf32> to vector<8x32xf32>
    %800 = vector.extract_strided_slice %5 {offsets = [32, 0], sizes = [8, 1], strides = [1, 1]} : vector<48x1xf32> to vector<8x1xf32>
    %cst_277 = arith.constant -1.000000e+09 : f32
    %801 = vector.broadcast %cst_277 : f32 to vector<8x1xf32>
    %802 = arith.mulf %800, %801 : vector<8x1xf32>
    %803 = vector.broadcast %802 : vector<8x1xf32> to vector<8x2xf32>
    %804 = arith.addf %798, %803 : vector<8x2xf32>
    %cst_278 = arith.constant dense<0xFF800000> : vector<2xf32>
    %805 = vector.multi_reduction <maximumf>, %804, %cst_278 [0] : vector<8x2xf32> to vector<2xf32>
    %806 = vector.shape_cast %805 : vector<2xf32> to vector<1x2xf32>
    %807 = vector.broadcast %806 : vector<1x2xf32> to vector<8x2xf32>
    %808 = arith.subf %804, %807 : vector<8x2xf32>
    %809 = math.exp %808 : vector<8x2xf32>
    %cst_279 = arith.constant dense<0.000000e+00> : vector<2xf32>
    %810 = vector.multi_reduction <add>, %809, %cst_279 [0] : vector<8x2xf32> to vector<2xf32>
    %811 = vector.shape_cast %810 : vector<2xf32> to vector<1x2xf32>
    %812 = vector.broadcast %811 : vector<1x2xf32> to vector<8x2xf32>
    %813 = arith.divf %809, %812 : vector<8x2xf32>
    %814 = vector.extract_strided_slice %813 {offsets = [0, 0], sizes = [8, 1], strides = [1, 1]} : vector<8x2xf32> to vector<8x1xf32>
    %815 = vector.broadcast %814 : vector<8x1xf32> to vector<8x32xf32>
    %816 = arith.mulf %815, %799 : vector<8x32xf32>
    %cst_280 = arith.constant dense<0.000000e+00> : vector<32xf32>
    %817 = vector.multi_reduction <add>, %816, %cst_280 [0] : vector<8x32xf32> to vector<32xf32>
    %818 = vector.shape_cast %817 : vector<32xf32> to vector<1x32xf32>
    %819 = vector.extract_strided_slice %73 {offsets = [0, 0], sizes = [32, 32], strides = [1, 1]} : vector<64x32xf32> to vector<32x32xf32>
    %cst_281 = arith.constant dense<0.000000e+00> : vector<1x32xf32>
    %820 = tpu.matmul %818, %819, %cst_281 {dimension_numbers = #tpu.dot_dimension_numbers<[1], [0], [0], [1], [0, 0, 1, 1], [], []>} : vector<1x32xf32>, vector<32x32xf32>, vector<1x32xf32> -> vector<1x32xf32>
    %821 = arith.addf %81, %820 : vector<1x32xf32>
    %822 = vector.extract_strided_slice %813 {offsets = [0, 1], sizes = [8, 1], strides = [1, 1]} : vector<8x2xf32> to vector<8x1xf32>
    %823 = vector.broadcast %822 : vector<8x1xf32> to vector<8x32xf32>
    %824 = arith.mulf %823, %799 : vector<8x32xf32>
    %cst_282 = arith.constant dense<0.000000e+00> : vector<32xf32>
    %825 = vector.multi_reduction <add>, %824, %cst_282 [0] : vector<8x32xf32> to vector<32xf32>
    %826 = vector.shape_cast %825 : vector<32xf32> to vector<1x32xf32>
    %827 = vector.extract_strided_slice %73 {offsets = [32, 0], sizes = [32, 32], strides = [1, 1]} : vector<64x32xf32> to vector<32x32xf32>
    %cst_283 = arith.constant dense<0.000000e+00> : vector<1x32xf32>
    %828 = tpu.matmul %826, %827, %cst_283 {dimension_numbers = #tpu.dot_dimension_numbers<[1], [0], [0], [1], [0, 0, 1, 1], [], []>} : vector<1x32xf32>, vector<32x32xf32>, vector<1x32xf32> -> vector<1x32xf32>
    %829 = arith.addf %821, %828 : vector<1x32xf32>
    %830 = arith.addf %797, %829 : vector<1x32xf32>
    %831 = vector.extract_strided_slice %53 {offsets = [32, 0], sizes = [8, 2], strides = [1, 1]} : vector<48x2xf32> to vector<8x2xf32>
    %832 = vector.extract_strided_slice %1 {offsets = [32, 0], sizes = [8, 32], strides = [1, 1]} : vector<48x32xf32> to vector<8x32xf32>
    %833 = vector.extract_strided_slice %4 {offsets = [32, 0], sizes = [8, 1], strides = [1, 1]} : vector<48x1xf32> to vector<8x1xf32>
    %cst_284 = arith.constant -1.000000e+09 : f32
    %834 = vector.broadcast %cst_284 : f32 to vector<8x1xf32>
    %835 = arith.mulf %833, %834 : vector<8x1xf32>
    %836 = vector.broadcast %835 : vector<8x1xf32> to vector<8x2xf32>
    %837 = arith.addf %831, %836 : vector<8x2xf32>
    %cst_285 = arith.constant dense<0xFF800000> : vector<2xf32>
    %838 = vector.multi_reduction <maximumf>, %837, %cst_285 [0] : vector<8x2xf32> to vector<2xf32>
    %839 = vector.shape_cast %838 : vector<2xf32> to vector<1x2xf32>
    %840 = vector.broadcast %839 : vector<1x2xf32> to vector<8x2xf32>
    %841 = arith.subf %837, %840 : vector<8x2xf32>
    %842 = math.exp %841 : vector<8x2xf32>
    %cst_286 = arith.constant dense<0.000000e+00> : vector<2xf32>
    %843 = vector.multi_reduction <add>, %842, %cst_286 [0] : vector<8x2xf32> to vector<2xf32>
    %844 = vector.shape_cast %843 : vector<2xf32> to vector<1x2xf32>
    %845 = vector.broadcast %844 : vector<1x2xf32> to vector<8x2xf32>
    %846 = arith.divf %842, %845 : vector<8x2xf32>
    %847 = vector.extract_strided_slice %846 {offsets = [0, 0], sizes = [8, 1], strides = [1, 1]} : vector<8x2xf32> to vector<8x1xf32>
    %848 = vector.broadcast %847 : vector<8x1xf32> to vector<8x32xf32>
    %849 = arith.mulf %848, %832 : vector<8x32xf32>
    %cst_287 = arith.constant dense<0.000000e+00> : vector<32xf32>
    %850 = vector.multi_reduction <add>, %849, %cst_287 [0] : vector<8x32xf32> to vector<32xf32>
    %851 = vector.shape_cast %850 : vector<32xf32> to vector<1x32xf32>
    %852 = vector.extract_strided_slice %75 {offsets = [0, 0], sizes = [32, 32], strides = [1, 1]} : vector<64x32xf32> to vector<32x32xf32>
    %cst_288 = arith.constant dense<0.000000e+00> : vector<1x32xf32>
    %853 = tpu.matmul %851, %852, %cst_288 {dimension_numbers = #tpu.dot_dimension_numbers<[1], [0], [0], [1], [0, 0, 1, 1], [], []>} : vector<1x32xf32>, vector<32x32xf32>, vector<1x32xf32> -> vector<1x32xf32>
    %854 = arith.addf %83, %853 : vector<1x32xf32>
    %855 = vector.extract_strided_slice %846 {offsets = [0, 1], sizes = [8, 1], strides = [1, 1]} : vector<8x2xf32> to vector<8x1xf32>
    %856 = vector.broadcast %855 : vector<8x1xf32> to vector<8x32xf32>
    %857 = arith.mulf %856, %832 : vector<8x32xf32>
    %cst_289 = arith.constant dense<0.000000e+00> : vector<32xf32>
    %858 = vector.multi_reduction <add>, %857, %cst_289 [0] : vector<8x32xf32> to vector<32xf32>
    %859 = vector.shape_cast %858 : vector<32xf32> to vector<1x32xf32>
    %860 = vector.extract_strided_slice %75 {offsets = [32, 0], sizes = [32, 32], strides = [1, 1]} : vector<64x32xf32> to vector<32x32xf32>
    %cst_290 = arith.constant dense<0.000000e+00> : vector<1x32xf32>
    %861 = tpu.matmul %859, %860, %cst_290 {dimension_numbers = #tpu.dot_dimension_numbers<[1], [0], [0], [1], [0, 0, 1, 1], [], []>} : vector<1x32xf32>, vector<32x32xf32>, vector<1x32xf32> -> vector<1x32xf32>
    %862 = arith.addf %854, %861 : vector<1x32xf32>
    %863 = vector.extract_strided_slice %69 {offsets = [32, 0], sizes = [8, 2], strides = [1, 1]} : vector<48x2xf32> to vector<8x2xf32>
    %864 = vector.extract_strided_slice %2 {offsets = [32, 0], sizes = [8, 32], strides = [1, 1]} : vector<48x32xf32> to vector<8x32xf32>
    %865 = vector.extract_strided_slice %5 {offsets = [32, 0], sizes = [8, 1], strides = [1, 1]} : vector<48x1xf32> to vector<8x1xf32>
    %cst_291 = arith.constant -1.000000e+09 : f32
    %866 = vector.broadcast %cst_291 : f32 to vector<8x1xf32>
    %867 = arith.mulf %865, %866 : vector<8x1xf32>
    %868 = vector.broadcast %867 : vector<8x1xf32> to vector<8x2xf32>
    %869 = arith.addf %863, %868 : vector<8x2xf32>
    %cst_292 = arith.constant dense<0xFF800000> : vector<2xf32>
    %870 = vector.multi_reduction <maximumf>, %869, %cst_292 [0] : vector<8x2xf32> to vector<2xf32>
    %871 = vector.shape_cast %870 : vector<2xf32> to vector<1x2xf32>
    %872 = vector.broadcast %871 : vector<1x2xf32> to vector<8x2xf32>
    %873 = arith.subf %869, %872 : vector<8x2xf32>
    %874 = math.exp %873 : vector<8x2xf32>
    %cst_293 = arith.constant dense<0.000000e+00> : vector<2xf32>
    %875 = vector.multi_reduction <add>, %874, %cst_293 [0] : vector<8x2xf32> to vector<2xf32>
    %876 = vector.shape_cast %875 : vector<2xf32> to vector<1x2xf32>
    %877 = vector.broadcast %876 : vector<1x2xf32> to vector<8x2xf32>
    %878 = arith.divf %874, %877 : vector<8x2xf32>
    %879 = vector.extract_strided_slice %878 {offsets = [0, 0], sizes = [8, 1], strides = [1, 1]} : vector<8x2xf32> to vector<8x1xf32>
    %880 = vector.broadcast %879 : vector<8x1xf32> to vector<8x32xf32>
    %881 = arith.mulf %880, %864 : vector<8x32xf32>
    %cst_294 = arith.constant dense<0.000000e+00> : vector<32xf32>
    %882 = vector.multi_reduction <add>, %881, %cst_294 [0] : vector<8x32xf32> to vector<32xf32>
    %883 = vector.shape_cast %882 : vector<32xf32> to vector<1x32xf32>
    %884 = vector.extract_strided_slice %77 {offsets = [0, 0], sizes = [32, 32], strides = [1, 1]} : vector<64x32xf32> to vector<32x32xf32>
    %cst_295 = arith.constant dense<0.000000e+00> : vector<1x32xf32>
    %885 = tpu.matmul %883, %884, %cst_295 {dimension_numbers = #tpu.dot_dimension_numbers<[1], [0], [0], [1], [0, 0, 1, 1], [], []>} : vector<1x32xf32>, vector<32x32xf32>, vector<1x32xf32> -> vector<1x32xf32>
    %886 = arith.addf %85, %885 : vector<1x32xf32>
    %887 = vector.extract_strided_slice %878 {offsets = [0, 1], sizes = [8, 1], strides = [1, 1]} : vector<8x2xf32> to vector<8x1xf32>
    %888 = vector.broadcast %887 : vector<8x1xf32> to vector<8x32xf32>
    %889 = arith.mulf %888, %864 : vector<8x32xf32>
    %cst_296 = arith.constant dense<0.000000e+00> : vector<32xf32>
    %890 = vector.multi_reduction <add>, %889, %cst_296 [0] : vector<8x32xf32> to vector<32xf32>
    %891 = vector.shape_cast %890 : vector<32xf32> to vector<1x32xf32>
    %892 = vector.extract_strided_slice %77 {offsets = [32, 0], sizes = [32, 32], strides = [1, 1]} : vector<64x32xf32> to vector<32x32xf32>
    %cst_297 = arith.constant dense<0.000000e+00> : vector<1x32xf32>
    %893 = tpu.matmul %891, %892, %cst_297 {dimension_numbers = #tpu.dot_dimension_numbers<[1], [0], [0], [1], [0, 0, 1, 1], [], []>} : vector<1x32xf32>, vector<32x32xf32>, vector<1x32xf32> -> vector<1x32xf32>
    %894 = arith.addf %886, %893 : vector<1x32xf32>
    %895 = arith.addf %862, %894 : vector<1x32xf32>
    %cst_298 = arith.constant dense<0.000000e+00> : vector<1xf32>
    %896 = vector.multi_reduction <add>, %830, %cst_298 [1] : vector<1x32xf32> to vector<1xf32>
    %897 = vector.shape_cast %896 : vector<1xf32> to vector<1x1xf32>
    %cst_299 = arith.constant 3.200000e+01 : f32
    %898 = vector.broadcast %cst_299 : f32 to vector<1x1xf32>
    %899 = arith.divf %897, %898 : vector<1x1xf32>
    %900 = vector.broadcast %899 : vector<1x1xf32> to vector<1x32xf32>
    %901 = arith.subf %830, %900 : vector<1x32xf32>
    %902 = arith.mulf %901, %901 : vector<1x32xf32>
    %cst_300 = arith.constant dense<0.000000e+00> : vector<1xf32>
    %903 = vector.multi_reduction <add>, %902, %cst_300 [1] : vector<1x32xf32> to vector<1xf32>
    %904 = vector.shape_cast %903 : vector<1xf32> to vector<1x1xf32>
    %cst_301 = arith.constant 3.200000e+01 : f32
    %905 = vector.broadcast %cst_301 : f32 to vector<1x1xf32>
    %906 = arith.divf %904, %905 : vector<1x1xf32>
    %cst_302 = arith.constant 9.99999974E-6 : f32
    %907 = vector.broadcast %cst_302 : f32 to vector<1x1xf32>
    %908 = arith.addf %906, %907 : vector<1x1xf32>
    %909 = math.rsqrt %908 : vector<1x1xf32>
    %910 = vector.broadcast %909 : vector<1x1xf32> to vector<1x32xf32>
    %911 = arith.mulf %901, %910 : vector<1x32xf32>
    %912 = arith.mulf %911, %87 : vector<1x32xf32>
    %913 = arith.addf %912, %91 : vector<1x32xf32>
    %c4 = arith.constant 4 : index
    %c0_303 = arith.constant 0 : index
    %914 = vector.load %arg15[%c4, %c0_303] : memref<6x64xf32, #tpu.memory_space<vmem>>, vector<1x32xf32>
    tpu.vector_store %arg15[%c4, %c0_303], %913 {strides = array<i32>} : memref<6x64xf32, #tpu.memory_space<vmem>>, vector<1x32xf32>,
    %cst_304 = arith.constant dense<0.000000e+00> : vector<1xf32>
    %915 = vector.multi_reduction <add>, %895, %cst_304 [1] : vector<1x32xf32> to vector<1xf32>
    %916 = vector.shape_cast %915 : vector<1xf32> to vector<1x1xf32>
    %cst_305 = arith.constant 3.200000e+01 : f32
    %917 = vector.broadcast %cst_305 : f32 to vector<1x1xf32>
    %918 = arith.divf %916, %917 : vector<1x1xf32>
    %919 = vector.broadcast %918 : vector<1x1xf32> to vector<1x32xf32>
    %920 = arith.subf %895, %919 : vector<1x32xf32>
    %921 = arith.mulf %920, %920 : vector<1x32xf32>
    %cst_306 = arith.constant dense<0.000000e+00> : vector<1xf32>
    %922 = vector.multi_reduction <add>, %921, %cst_306 [1] : vector<1x32xf32> to vector<1xf32>
    %923 = vector.shape_cast %922 : vector<1xf32> to vector<1x1xf32>
    %cst_307 = arith.constant 3.200000e+01 : f32
    %924 = vector.broadcast %cst_307 : f32 to vector<1x1xf32>
    %925 = arith.divf %923, %924 : vector<1x1xf32>
    %cst_308 = arith.constant 9.99999974E-6 : f32
    %926 = vector.broadcast %cst_308 : f32 to vector<1x1xf32>
    %927 = arith.addf %925, %926 : vector<1x1xf32>
    %928 = math.rsqrt %927 : vector<1x1xf32>
    %929 = vector.broadcast %928 : vector<1x1xf32> to vector<1x32xf32>
    %930 = arith.mulf %920, %929 : vector<1x32xf32>
    %931 = arith.mulf %930, %89 : vector<1x32xf32>
    %932 = arith.addf %931, %93 : vector<1x32xf32>
    %c4_309 = arith.constant 4 : index
    %c32_310 = arith.constant 32 : index
    %933 = vector.load %arg15[%c4_309, %c32_310] : memref<6x64xf32, #tpu.memory_space<vmem>>, vector<1x32xf32>
    tpu.vector_store %arg15[%c4_309, %c32_310], %932 {strides = array<i32>} : memref<6x64xf32, #tpu.memory_space<vmem>>, vector<1x32xf32>,
    %934 = vector.extract_strided_slice %21 {offsets = [40, 0], sizes = [8, 2], strides = [1, 1]} : vector<48x2xf32> to vector<8x2xf32>
    %935 = vector.extract_strided_slice %0 {offsets = [40, 0], sizes = [8, 32], strides = [1, 1]} : vector<48x32xf32> to vector<8x32xf32>
    %936 = vector.extract_strided_slice %3 {offsets = [40, 0], sizes = [8, 1], strides = [1, 1]} : vector<48x1xf32> to vector<8x1xf32>
    %cst_311 = arith.constant -1.000000e+09 : f32
    %937 = vector.broadcast %cst_311 : f32 to vector<8x1xf32>
    %938 = arith.mulf %936, %937 : vector<8x1xf32>
    %939 = vector.broadcast %938 : vector<8x1xf32> to vector<8x2xf32>
    %940 = arith.addf %934, %939 : vector<8x2xf32>
    %cst_312 = arith.constant dense<0xFF800000> : vector<2xf32>
    %941 = vector.multi_reduction <maximumf>, %940, %cst_312 [0] : vector<8x2xf32> to vector<2xf32>
    %942 = vector.shape_cast %941 : vector<2xf32> to vector<1x2xf32>
    %943 = vector.broadcast %942 : vector<1x2xf32> to vector<8x2xf32>
    %944 = arith.subf %940, %943 : vector<8x2xf32>
    %945 = math.exp %944 : vector<8x2xf32>
    %cst_313 = arith.constant dense<0.000000e+00> : vector<2xf32>
    %946 = vector.multi_reduction <add>, %945, %cst_313 [0] : vector<8x2xf32> to vector<2xf32>
    %947 = vector.shape_cast %946 : vector<2xf32> to vector<1x2xf32>
    %948 = vector.broadcast %947 : vector<1x2xf32> to vector<8x2xf32>
    %949 = arith.divf %945, %948 : vector<8x2xf32>
    %950 = vector.extract_strided_slice %949 {offsets = [0, 0], sizes = [8, 1], strides = [1, 1]} : vector<8x2xf32> to vector<8x1xf32>
    %951 = vector.broadcast %950 : vector<8x1xf32> to vector<8x32xf32>
    %952 = arith.mulf %951, %935 : vector<8x32xf32>
    %cst_314 = arith.constant dense<0.000000e+00> : vector<32xf32>
    %953 = vector.multi_reduction <add>, %952, %cst_314 [0] : vector<8x32xf32> to vector<32xf32>
    %954 = vector.shape_cast %953 : vector<32xf32> to vector<1x32xf32>
    %955 = vector.extract_strided_slice %71 {offsets = [0, 0], sizes = [32, 32], strides = [1, 1]} : vector<64x32xf32> to vector<32x32xf32>
    %cst_315 = arith.constant dense<0.000000e+00> : vector<1x32xf32>
    %956 = tpu.matmul %954, %955, %cst_315 {dimension_numbers = #tpu.dot_dimension_numbers<[1], [0], [0], [1], [0, 0, 1, 1], [], []>} : vector<1x32xf32>, vector<32x32xf32>, vector<1x32xf32> -> vector<1x32xf32>
    %957 = arith.addf %79, %956 : vector<1x32xf32>
    %958 = vector.extract_strided_slice %949 {offsets = [0, 1], sizes = [8, 1], strides = [1, 1]} : vector<8x2xf32> to vector<8x1xf32>
    %959 = vector.broadcast %958 : vector<8x1xf32> to vector<8x32xf32>
    %960 = arith.mulf %959, %935 : vector<8x32xf32>
    %cst_316 = arith.constant dense<0.000000e+00> : vector<32xf32>
    %961 = vector.multi_reduction <add>, %960, %cst_316 [0] : vector<8x32xf32> to vector<32xf32>
    %962 = vector.shape_cast %961 : vector<32xf32> to vector<1x32xf32>
    %963 = vector.extract_strided_slice %71 {offsets = [32, 0], sizes = [32, 32], strides = [1, 1]} : vector<64x32xf32> to vector<32x32xf32>
    %cst_317 = arith.constant dense<0.000000e+00> : vector<1x32xf32>
    %964 = tpu.matmul %962, %963, %cst_317 {dimension_numbers = #tpu.dot_dimension_numbers<[1], [0], [0], [1], [0, 0, 1, 1], [], []>} : vector<1x32xf32>, vector<32x32xf32>, vector<1x32xf32> -> vector<1x32xf32>
    %965 = arith.addf %957, %964 : vector<1x32xf32>
    %966 = vector.extract_strided_slice %37 {offsets = [40, 0], sizes = [8, 2], strides = [1, 1]} : vector<48x2xf32> to vector<8x2xf32>
    %967 = vector.extract_strided_slice %2 {offsets = [40, 0], sizes = [8, 32], strides = [1, 1]} : vector<48x32xf32> to vector<8x32xf32>
    %968 = vector.extract_strided_slice %5 {offsets = [40, 0], sizes = [8, 1], strides = [1, 1]} : vector<48x1xf32> to vector<8x1xf32>
    %cst_318 = arith.constant -1.000000e+09 : f32
    %969 = vector.broadcast %cst_318 : f32 to vector<8x1xf32>
    %970 = arith.mulf %968, %969 : vector<8x1xf32>
    %971 = vector.broadcast %970 : vector<8x1xf32> to vector<8x2xf32>
    %972 = arith.addf %966, %971 : vector<8x2xf32>
    %cst_319 = arith.constant dense<0xFF800000> : vector<2xf32>
    %973 = vector.multi_reduction <maximumf>, %972, %cst_319 [0] : vector<8x2xf32> to vector<2xf32>
    %974 = vector.shape_cast %973 : vector<2xf32> to vector<1x2xf32>
    %975 = vector.broadcast %974 : vector<1x2xf32> to vector<8x2xf32>
    %976 = arith.subf %972, %975 : vector<8x2xf32>
    %977 = math.exp %976 : vector<8x2xf32>
    %cst_320 = arith.constant dense<0.000000e+00> : vector<2xf32>
    %978 = vector.multi_reduction <add>, %977, %cst_320 [0] : vector<8x2xf32> to vector<2xf32>
    %979 = vector.shape_cast %978 : vector<2xf32> to vector<1x2xf32>
    %980 = vector.broadcast %979 : vector<1x2xf32> to vector<8x2xf32>
    %981 = arith.divf %977, %980 : vector<8x2xf32>
    %982 = vector.extract_strided_slice %981 {offsets = [0, 0], sizes = [8, 1], strides = [1, 1]} : vector<8x2xf32> to vector<8x1xf32>
    %983 = vector.broadcast %982 : vector<8x1xf32> to vector<8x32xf32>
    %984 = arith.mulf %983, %967 : vector<8x32xf32>
    %cst_321 = arith.constant dense<0.000000e+00> : vector<32xf32>
    %985 = vector.multi_reduction <add>, %984, %cst_321 [0] : vector<8x32xf32> to vector<32xf32>
    %986 = vector.shape_cast %985 : vector<32xf32> to vector<1x32xf32>
    %987 = vector.extract_strided_slice %73 {offsets = [0, 0], sizes = [32, 32], strides = [1, 1]} : vector<64x32xf32> to vector<32x32xf32>
    %cst_322 = arith.constant dense<0.000000e+00> : vector<1x32xf32>
    %988 = tpu.matmul %986, %987, %cst_322 {dimension_numbers = #tpu.dot_dimension_numbers<[1], [0], [0], [1], [0, 0, 1, 1], [], []>} : vector<1x32xf32>, vector<32x32xf32>, vector<1x32xf32> -> vector<1x32xf32>
    %989 = arith.addf %81, %988 : vector<1x32xf32>
    %990 = vector.extract_strided_slice %981 {offsets = [0, 1], sizes = [8, 1], strides = [1, 1]} : vector<8x2xf32> to vector<8x1xf32>
    %991 = vector.broadcast %990 : vector<8x1xf32> to vector<8x32xf32>
    %992 = arith.mulf %991, %967 : vector<8x32xf32>
    %cst_323 = arith.constant dense<0.000000e+00> : vector<32xf32>
    %993 = vector.multi_reduction <add>, %992, %cst_323 [0] : vector<8x32xf32> to vector<32xf32>
    %994 = vector.shape_cast %993 : vector<32xf32> to vector<1x32xf32>
    %995 = vector.extract_strided_slice %73 {offsets = [32, 0], sizes = [32, 32], strides = [1, 1]} : vector<64x32xf32> to vector<32x32xf32>
    %cst_324 = arith.constant dense<0.000000e+00> : vector<1x32xf32>
    %996 = tpu.matmul %994, %995, %cst_324 {dimension_numbers = #tpu.dot_dimension_numbers<[1], [0], [0], [1], [0, 0, 1, 1], [], []>} : vector<1x32xf32>, vector<32x32xf32>, vector<1x32xf32> -> vector<1x32xf32>
    %997 = arith.addf %989, %996 : vector<1x32xf32>
    %998 = arith.addf %965, %997 : vector<1x32xf32>
    %999 = vector.extract_strided_slice %53 {offsets = [40, 0], sizes = [8, 2], strides = [1, 1]} : vector<48x2xf32> to vector<8x2xf32>
    %1000 = vector.extract_strided_slice %1 {offsets = [40, 0], sizes = [8, 32], strides = [1, 1]} : vector<48x32xf32> to vector<8x32xf32>
    %1001 = vector.extract_strided_slice %4 {offsets = [40, 0], sizes = [8, 1], strides = [1, 1]} : vector<48x1xf32> to vector<8x1xf32>
    %cst_325 = arith.constant -1.000000e+09 : f32
    %1002 = vector.broadcast %cst_325 : f32 to vector<8x1xf32>
    %1003 = arith.mulf %1001, %1002 : vector<8x1xf32>
    %1004 = vector.broadcast %1003 : vector<8x1xf32> to vector<8x2xf32>
    %1005 = arith.addf %999, %1004 : vector<8x2xf32>
    %cst_326 = arith.constant dense<0xFF800000> : vector<2xf32>
    %1006 = vector.multi_reduction <maximumf>, %1005, %cst_326 [0] : vector<8x2xf32> to vector<2xf32>
    %1007 = vector.shape_cast %1006 : vector<2xf32> to vector<1x2xf32>
    %1008 = vector.broadcast %1007 : vector<1x2xf32> to vector<8x2xf32>
    %1009 = arith.subf %1005, %1008 : vector<8x2xf32>
    %1010 = math.exp %1009 : vector<8x2xf32>
    %cst_327 = arith.constant dense<0.000000e+00> : vector<2xf32>
    %1011 = vector.multi_reduction <add>, %1010, %cst_327 [0] : vector<8x2xf32> to vector<2xf32>
    %1012 = vector.shape_cast %1011 : vector<2xf32> to vector<1x2xf32>
    %1013 = vector.broadcast %1012 : vector<1x2xf32> to vector<8x2xf32>
    %1014 = arith.divf %1010, %1013 : vector<8x2xf32>
    %1015 = vector.extract_strided_slice %1014 {offsets = [0, 0], sizes = [8, 1], strides = [1, 1]} : vector<8x2xf32> to vector<8x1xf32>
    %1016 = vector.broadcast %1015 : vector<8x1xf32> to vector<8x32xf32>
    %1017 = arith.mulf %1016, %1000 : vector<8x32xf32>
    %cst_328 = arith.constant dense<0.000000e+00> : vector<32xf32>
    %1018 = vector.multi_reduction <add>, %1017, %cst_328 [0] : vector<8x32xf32> to vector<32xf32>
    %1019 = vector.shape_cast %1018 : vector<32xf32> to vector<1x32xf32>
    %1020 = vector.extract_strided_slice %75 {offsets = [0, 0], sizes = [32, 32], strides = [1, 1]} : vector<64x32xf32> to vector<32x32xf32>
    %cst_329 = arith.constant dense<0.000000e+00> : vector<1x32xf32>
    %1021 = tpu.matmul %1019, %1020, %cst_329 {dimension_numbers = #tpu.dot_dimension_numbers<[1], [0], [0], [1], [0, 0, 1, 1], [], []>} : vector<1x32xf32>, vector<32x32xf32>, vector<1x32xf32> -> vector<1x32xf32>
    %1022 = arith.addf %83, %1021 : vector<1x32xf32>
    %1023 = vector.extract_strided_slice %1014 {offsets = [0, 1], sizes = [8, 1], strides = [1, 1]} : vector<8x2xf32> to vector<8x1xf32>
    %1024 = vector.broadcast %1023 : vector<8x1xf32> to vector<8x32xf32>
    %1025 = arith.mulf %1024, %1000 : vector<8x32xf32>
    %cst_330 = arith.constant dense<0.000000e+00> : vector<32xf32>
    %1026 = vector.multi_reduction <add>, %1025, %cst_330 [0] : vector<8x32xf32> to vector<32xf32>
    %1027 = vector.shape_cast %1026 : vector<32xf32> to vector<1x32xf32>
    %1028 = vector.extract_strided_slice %75 {offsets = [32, 0], sizes = [32, 32], strides = [1, 1]} : vector<64x32xf32> to vector<32x32xf32>
    %cst_331 = arith.constant dense<0.000000e+00> : vector<1x32xf32>
    %1029 = tpu.matmul %1027, %1028, %cst_331 {dimension_numbers = #tpu.dot_dimension_numbers<[1], [0], [0], [1], [0, 0, 1, 1], [], []>} : vector<1x32xf32>, vector<32x32xf32>, vector<1x32xf32> -> vector<1x32xf32>
    %1030 = arith.addf %1022, %1029 : vector<1x32xf32>
    %1031 = vector.extract_strided_slice %69 {offsets = [40, 0], sizes = [8, 2], strides = [1, 1]} : vector<48x2xf32> to vector<8x2xf32>
    %1032 = vector.extract_strided_slice %2 {offsets = [40, 0], sizes = [8, 32], strides = [1, 1]} : vector<48x32xf32> to vector<8x32xf32>
    %1033 = vector.extract_strided_slice %5 {offsets = [40, 0], sizes = [8, 1], strides = [1, 1]} : vector<48x1xf32> to vector<8x1xf32>
    %cst_332 = arith.constant -1.000000e+09 : f32
    %1034 = vector.broadcast %cst_332 : f32 to vector<8x1xf32>
    %1035 = arith.mulf %1033, %1034 : vector<8x1xf32>
    %1036 = vector.broadcast %1035 : vector<8x1xf32> to vector<8x2xf32>
    %1037 = arith.addf %1031, %1036 : vector<8x2xf32>
    %cst_333 = arith.constant dense<0xFF800000> : vector<2xf32>
    %1038 = vector.multi_reduction <maximumf>, %1037, %cst_333 [0] : vector<8x2xf32> to vector<2xf32>
    %1039 = vector.shape_cast %1038 : vector<2xf32> to vector<1x2xf32>
    %1040 = vector.broadcast %1039 : vector<1x2xf32> to vector<8x2xf32>
    %1041 = arith.subf %1037, %1040 : vector<8x2xf32>
    %1042 = math.exp %1041 : vector<8x2xf32>
    %cst_334 = arith.constant dense<0.000000e+00> : vector<2xf32>
    %1043 = vector.multi_reduction <add>, %1042, %cst_334 [0] : vector<8x2xf32> to vector<2xf32>
    %1044 = vector.shape_cast %1043 : vector<2xf32> to vector<1x2xf32>
    %1045 = vector.broadcast %1044 : vector<1x2xf32> to vector<8x2xf32>
    %1046 = arith.divf %1042, %1045 : vector<8x2xf32>
    %1047 = vector.extract_strided_slice %1046 {offsets = [0, 0], sizes = [8, 1], strides = [1, 1]} : vector<8x2xf32> to vector<8x1xf32>
    %1048 = vector.broadcast %1047 : vector<8x1xf32> to vector<8x32xf32>
    %1049 = arith.mulf %1048, %1032 : vector<8x32xf32>
    %cst_335 = arith.constant dense<0.000000e+00> : vector<32xf32>
    %1050 = vector.multi_reduction <add>, %1049, %cst_335 [0] : vector<8x32xf32> to vector<32xf32>
    %1051 = vector.shape_cast %1050 : vector<32xf32> to vector<1x32xf32>
    %1052 = vector.extract_strided_slice %77 {offsets = [0, 0], sizes = [32, 32], strides = [1, 1]} : vector<64x32xf32> to vector<32x32xf32>
    %cst_336 = arith.constant dense<0.000000e+00> : vector<1x32xf32>
    %1053 = tpu.matmul %1051, %1052, %cst_336 {dimension_numbers = #tpu.dot_dimension_numbers<[1], [0], [0], [1], [0, 0, 1, 1], [], []>} : vector<1x32xf32>, vector<32x32xf32>, vector<1x32xf32> -> vector<1x32xf32>
    %1054 = arith.addf %85, %1053 : vector<1x32xf32>
    %1055 = vector.extract_strided_slice %1046 {offsets = [0, 1], sizes = [8, 1], strides = [1, 1]} : vector<8x2xf32> to vector<8x1xf32>
    %1056 = vector.broadcast %1055 : vector<8x1xf32> to vector<8x32xf32>
    %1057 = arith.mulf %1056, %1032 : vector<8x32xf32>
    %cst_337 = arith.constant dense<0.000000e+00> : vector<32xf32>
    %1058 = vector.multi_reduction <add>, %1057, %cst_337 [0] : vector<8x32xf32> to vector<32xf32>
    %1059 = vector.shape_cast %1058 : vector<32xf32> to vector<1x32xf32>
    %1060 = vector.extract_strided_slice %77 {offsets = [32, 0], sizes = [32, 32], strides = [1, 1]} : vector<64x32xf32> to vector<32x32xf32>
    %cst_338 = arith.constant dense<0.000000e+00> : vector<1x32xf32>
    %1061 = tpu.matmul %1059, %1060, %cst_338 {dimension_numbers = #tpu.dot_dimension_numbers<[1], [0], [0], [1], [0, 0, 1, 1], [], []>} : vector<1x32xf32>, vector<32x32xf32>, vector<1x32xf32> -> vector<1x32xf32>
    %1062 = arith.addf %1054, %1061 : vector<1x32xf32>
    %1063 = arith.addf %1030, %1062 : vector<1x32xf32>
    %cst_339 = arith.constant dense<0.000000e+00> : vector<1xf32>
    %1064 = vector.multi_reduction <add>, %998, %cst_339 [1] : vector<1x32xf32> to vector<1xf32>
    %1065 = vector.shape_cast %1064 : vector<1xf32> to vector<1x1xf32>
    %cst_340 = arith.constant 3.200000e+01 : f32
    %1066 = vector.broadcast %cst_340 : f32 to vector<1x1xf32>
    %1067 = arith.divf %1065, %1066 : vector<1x1xf32>
    %1068 = vector.broadcast %1067 : vector<1x1xf32> to vector<1x32xf32>
    %1069 = arith.subf %998, %1068 : vector<1x32xf32>
    %1070 = arith.mulf %1069, %1069 : vector<1x32xf32>
    %cst_341 = arith.constant dense<0.000000e+00> : vector<1xf32>
    %1071 = vector.multi_reduction <add>, %1070, %cst_341 [1] : vector<1x32xf32> to vector<1xf32>
    %1072 = vector.shape_cast %1071 : vector<1xf32> to vector<1x1xf32>
    %cst_342 = arith.constant 3.200000e+01 : f32
    %1073 = vector.broadcast %cst_342 : f32 to vector<1x1xf32>
    %1074 = arith.divf %1072, %1073 : vector<1x1xf32>
    %cst_343 = arith.constant 9.99999974E-6 : f32
    %1075 = vector.broadcast %cst_343 : f32 to vector<1x1xf32>
    %1076 = arith.addf %1074, %1075 : vector<1x1xf32>
    %1077 = math.rsqrt %1076 : vector<1x1xf32>
    %1078 = vector.broadcast %1077 : vector<1x1xf32> to vector<1x32xf32>
    %1079 = arith.mulf %1069, %1078 : vector<1x32xf32>
    %1080 = arith.mulf %1079, %87 : vector<1x32xf32>
    %1081 = arith.addf %1080, %91 : vector<1x32xf32>
    %c5 = arith.constant 5 : index
    %c0_344 = arith.constant 0 : index
    %1082 = vector.load %arg15[%c5, %c0_344] : memref<6x64xf32, #tpu.memory_space<vmem>>, vector<1x32xf32>
    tpu.vector_store %arg15[%c5, %c0_344], %1081 {strides = array<i32>} : memref<6x64xf32, #tpu.memory_space<vmem>>, vector<1x32xf32>,
    %cst_345 = arith.constant dense<0.000000e+00> : vector<1xf32>
    %1083 = vector.multi_reduction <add>, %1063, %cst_345 [1] : vector<1x32xf32> to vector<1xf32>
    %1084 = vector.shape_cast %1083 : vector<1xf32> to vector<1x1xf32>
    %cst_346 = arith.constant 3.200000e+01 : f32
    %1085 = vector.broadcast %cst_346 : f32 to vector<1x1xf32>
    %1086 = arith.divf %1084, %1085 : vector<1x1xf32>
    %1087 = vector.broadcast %1086 : vector<1x1xf32> to vector<1x32xf32>
    %1088 = arith.subf %1063, %1087 : vector<1x32xf32>
    %1089 = arith.mulf %1088, %1088 : vector<1x32xf32>
    %cst_347 = arith.constant dense<0.000000e+00> : vector<1xf32>
    %1090 = vector.multi_reduction <add>, %1089, %cst_347 [1] : vector<1x32xf32> to vector<1xf32>
    %1091 = vector.shape_cast %1090 : vector<1xf32> to vector<1x1xf32>
    %cst_348 = arith.constant 3.200000e+01 : f32
    %1092 = vector.broadcast %cst_348 : f32 to vector<1x1xf32>
    %1093 = arith.divf %1091, %1092 : vector<1x1xf32>
    %cst_349 = arith.constant 9.99999974E-6 : f32
    %1094 = vector.broadcast %cst_349 : f32 to vector<1x1xf32>
    %1095 = arith.addf %1093, %1094 : vector<1x1xf32>
    %1096 = math.rsqrt %1095 : vector<1x1xf32>
    %1097 = vector.broadcast %1096 : vector<1x1xf32> to vector<1x32xf32>
    %1098 = arith.mulf %1088, %1097 : vector<1x32xf32>
    %1099 = arith.mulf %1098, %89 : vector<1x32xf32>
    %1100 = arith.addf %1099, %93 : vector<1x32xf32>
    %c5_350 = arith.constant 5 : index
    %c32_351 = arith.constant 32 : index
    %1101 = vector.load %arg15[%c5_350, %c32_351] : memref<6x64xf32, #tpu.memory_space<vmem>>, vector<1x32xf32>
    tpu.vector_store %arg15[%c5_350, %c32_351], %1100 {strides = array<i32>} : memref<6x64xf32, #tpu.memory_space<vmem>>, vector<1x32xf32>,
    return
  }
  func.func @transform_0(%arg0: i32) -> (i32, i32) {
    %c0_i32 = arith.constant 0 : i32
    %c0_i32_0 = arith.constant 0 : i32
    %c0_i32_1 = arith.constant 0 : i32
    return %c0_i32, %c0_i32_0 : i32, i32
  }
  func.func @transform_1(%arg0: i32) -> (i32, i32) {
    %c0_i32 = arith.constant 0 : i32
    %c0_i32_0 = arith.constant 0 : i32
    %c0_i32_1 = arith.constant 0 : i32
    return %c0_i32, %c0_i32_0 : i32, i32
  }
  func.func @transform_2(%arg0: i32) -> (i32, i32) {
    %c0_i32 = arith.constant 0 : i32
    %c0_i32_0 = arith.constant 0 : i32
    %c0_i32_1 = arith.constant 0 : i32
    return %c0_i32, %c0_i32_0 : i32, i32
  }
  func.func @transform_3(%arg0: i32) -> (i32, i32) {
    %c0_i32 = arith.constant 0 : i32
    %c0_i32_0 = arith.constant 0 : i32
    %c0_i32_1 = arith.constant 0 : i32
    return %c0_i32, %c0_i32_0 : i32, i32
  }
  func.func @transform_4(%arg0: i32) -> (i32, i32) {
    %c0_i32 = arith.constant 0 : i32
    %c0_i32_0 = arith.constant 0 : i32
    %c0_i32_1 = arith.constant 0 : i32
    return %c0_i32, %c0_i32_0 : i32, i32
  }
  func.func @transform_5(%arg0: i32) -> (i32, i32) {
    %c0_i32 = arith.constant 0 : i32
    %c0_i32_0 = arith.constant 0 : i32
    %c0_i32_1 = arith.constant 0 : i32
    return %c0_i32, %c0_i32_0 : i32, i32
  }
  func.func @transform_6(%arg0: i32) -> (i32, i32, i32) {
    %c0_i32 = arith.constant 0 : i32
    %c0_i32_0 = arith.constant 0 : i32
    %c0_i32_1 = arith.constant 0 : i32
    %c0_i32_2 = arith.constant 0 : i32
    return %c0_i32, %c0_i32_0, %c0_i32_1 : i32, i32, i32
  }
  func.func @transform_7(%arg0: i32) -> (i32, i32, i32) {
    %c0_i32 = arith.constant 0 : i32
    %c0_i32_0 = arith.constant 0 : i32
    %c0_i32_1 = arith.constant 0 : i32
    %c0_i32_2 = arith.constant 0 : i32
    return %c0_i32, %c0_i32_0, %c0_i32_1 : i32, i32, i32
  }
  func.func @transform_8(%arg0: i32) -> (i32, i32, i32) {
    %c0_i32 = arith.constant 0 : i32
    %c0_i32_0 = arith.constant 0 : i32
    %c0_i32_1 = arith.constant 0 : i32
    %c0_i32_2 = arith.constant 0 : i32
    return %c0_i32, %c0_i32_0, %c0_i32_1 : i32, i32, i32
  }
  func.func @transform_9(%arg0: i32) -> (i32, i32, i32) {
    %c0_i32 = arith.constant 0 : i32
    %c0_i32_0 = arith.constant 0 : i32
    %c0_i32_1 = arith.constant 0 : i32
    %c0_i32_2 = arith.constant 0 : i32
    return %c0_i32, %c0_i32_0, %c0_i32_1 : i32, i32, i32
  }
  func.func @transform_10(%arg0: i32) -> (i32, i32, i32) {
    %c0_i32 = arith.constant 0 : i32
    %c0_i32_0 = arith.constant 0 : i32
    %c0_i32_1 = arith.constant 0 : i32
    %c0_i32_2 = arith.constant 0 : i32
    return %c0_i32, %c0_i32_0, %c0_i32_1 : i32, i32, i32
  }
  func.func @transform_11(%arg0: i32) -> (i32, i32, i32) {
    %c0_i32 = arith.constant 0 : i32
    %c0_i32_0 = arith.constant 0 : i32
    %c0_i32_1 = arith.constant 0 : i32
    %c0_i32_2 = arith.constant 0 : i32
    return %c0_i32, %c0_i32_0, %c0_i32_1 : i32, i32, i32
  }
  func.func @transform_12(%arg0: i32) -> (i32, i32, i32) {
    %c0_i32 = arith.constant 0 : i32
    %c0_i32_0 = arith.constant 0 : i32
    %c0_i32_1 = arith.constant 0 : i32
    %c0_i32_2 = arith.constant 0 : i32
    return %c0_i32, %c0_i32_0, %c0_i32_1 : i32, i32, i32
  }
  func.func @transform_13(%arg0: i32) -> (i32, i32, i32) {
    %c0_i32 = arith.constant 0 : i32
    %c0_i32_0 = arith.constant 0 : i32
    %c0_i32_1 = arith.constant 0 : i32
    %c0_i32_2 = arith.constant 0 : i32
    return %c0_i32, %c0_i32_0, %c0_i32_1 : i32, i32, i32
  }
  func.func @transform_14(%arg0: i32) -> (i32, i32) {
    %c0_i32 = arith.constant 0 : i32
    %c0_i32_0 = arith.constant 0 : i32
    %c0_i32_1 = arith.constant 0 : i32
    return %c0_i32, %c0_i32_0 : i32, i32
  }
}

module attributes {stable_mosaic.version = 11 : i64} {
  func.func @_linear_kernel(%arg0: i32, %arg1: memref<6x32xf32, #tpu.memory_space<vmem>>, %arg2: memref<32x32xf32, #tpu.memory_space<vmem>>, %arg3: memref<1x32xf32, #tpu.memory_space<vmem>>, %arg4: memref<6x32xf32, #tpu.memory_space<vmem>>) attributes {dimension_semantics = [#tpu.dimension_semantics<arbitrary>], iteration_bounds = array<i64: 1>, scalar_prefetch = 0 : i64, scratch_operands = 0 : i64, tpu.core_type = #tpu.core_type<tc>, window_params = [{pipeline_mode = #tpu.pipeline_mode<synchronous>, transform_indices = @transform_0, window_bounds = array<i64: 6, 32>}, {pipeline_mode = #tpu.pipeline_mode<synchronous>, transform_indices = @transform_1, window_bounds = array<i64: 32, 32>}, {pipeline_mode = #tpu.pipeline_mode<synchronous>, transform_indices = @transform_2, window_bounds = array<i64: 1, 32>}, {pipeline_mode = #tpu.pipeline_mode<synchronous>, transform_indices = @transform_3, window_bounds = array<i64: 6, 32>}]} {
    %c0 = arith.constant 0 : index
    %c0_0 = arith.constant 0 : index
    %0 = vector.load %arg1[%c0, %c0_0] : memref<6x32xf32, #tpu.memory_space<vmem>>, vector<6x32xf32>
    %c0_1 = arith.constant 0 : index
    %c0_2 = arith.constant 0 : index
    %1 = vector.load %arg2[%c0_1, %c0_2] : memref<32x32xf32, #tpu.memory_space<vmem>>, vector<32x32xf32>
    %cst = arith.constant dense<0.000000e+00> : vector<6x32xf32>
    %2 = tpu.matmul %0, %1, %cst {dimension_numbers = #tpu.dot_dimension_numbers<[1], [0], [0], [1], [0, 0, 1, 1], [], []>} : vector<6x32xf32>, vector<32x32xf32>, vector<6x32xf32> -> vector<6x32xf32>
    %c0_3 = arith.constant 0 : index
    %c0_4 = arith.constant 0 : index
    %3 = vector.load %arg3[%c0_3, %c0_4] : memref<1x32xf32, #tpu.memory_space<vmem>>, vector<1x32xf32>
    %4 = vector.broadcast %3 : vector<1x32xf32> to vector<6x32xf32>
    %5 = arith.addf %2, %4 : vector<6x32xf32>
    %c0_5 = arith.constant 0 : index
    %c0_6 = arith.constant 0 : index
    %6 = vector.load %arg4[%c0_5, %c0_6] : memref<6x32xf32, #tpu.memory_space<vmem>>, vector<6x32xf32>
    tpu.vector_store %arg4[%c0_5, %c0_6], %5 {strides = array<i32>} : memref<6x32xf32, #tpu.memory_space<vmem>>, vector<6x32xf32>,
    return
  }
  func.func @transform_0(%arg0: i32) -> (i32, i32) {
    %c0_i32 = arith.constant 0 : i32
    %c0_i32_0 = arith.constant 0 : i32
    %c0_i32_1 = arith.constant 0 : i32
    return %c0_i32, %c0_i32_0 : i32, i32
  }
  func.func @transform_1(%arg0: i32) -> (i32, i32) {
    %c0_i32 = arith.constant 0 : i32
    %c0_i32_0 = arith.constant 0 : i32
    %c0_i32_1 = arith.constant 0 : i32
    return %c0_i32, %c0_i32_0 : i32, i32
  }
  func.func @transform_2(%arg0: i32) -> (i32, i32) {
    %c0_i32 = arith.constant 0 : i32
    %c0_i32_0 = arith.constant 0 : i32
    %c0_i32_1 = arith.constant 0 : i32
    return %c0_i32, %c0_i32_0 : i32, i32
  }
  func.func @transform_3(%arg0: i32) -> (i32, i32) {
    %c0_i32 = arith.constant 0 : i32
    %c0_i32_0 = arith.constant 0 : i32
    %c0_i32_1 = arith.constant 0 : i32
    return %c0_i32, %c0_i32_0 : i32, i32
  }
}

</mosaic_0001>

<llo_original>
// kernel: sgln_forward.5
$region0: #{sgln_forward.5}
  #allocation0 [shape = 'u32[]', space=smem, size = 0x4, offset = 0x4, fixed_abs, tag = 'smem constant byte address 0x4 - core index']
  #allocation1 [shape = 'u32[72,128]{1,0:T(1,128)}', space=vmem, size = 0x9000, scoped, tag = 'internal scratch']
  %s0 = inlined_call_operand.vmem [shape: f32[16,64], index: 0, kind: input, shape index: {}]
  %s1 = inlined_call_operand.vmem [shape: f32[64,32], index: 1, kind: input, shape index: {}]
  %s2 = inlined_call_operand.vmem [shape: f32[1,32], index: 2, kind: input, shape index: {}]
  %s3 = inlined_call_operand.vmem [shape: f32[16,32], index: 3, kind: output, shape index: {}]
  %s4 = sld [smem:[#allocation0]]
  $region22: #{sgln_forward.5} parent=0
    _
  %s6 = ssub.s32 1, %s4
  %s7 = scalar_select 0, %s6, %s4
  // Predicated region
  $region2: #{sgln_forward.5} parent=0 // pred_check
    _
  $region3: #{sgln_forward.5} parent=0 // pred_check_branch
    %9 = sbr.rel (0) target = $region5
  $region4: #{sgln_forward.5} parent=0 // pred_region
    _
  $region5: #{sgln_forward.5} parent=0 // pred_fallthru
    _
  // Predicated region
  $region6: #{sgln_forward.5} parent=0 // pred_check
    _
  $region7: #{sgln_forward.5} parent=0 // pred_check_branch
    %11 = sbr.rel (0) target = $region9
  $region8: #{sgln_forward.5} parent=0 // pred_region
    _
  $region9: #{sgln_forward.5} parent=0 // pred_fallthru
    _
  // Predicated region
  $region10: #{sgln_forward.5} parent=0 // pred_check
    _
  $region11: #{sgln_forward.5} parent=0 // pred_check_branch
    %13 = sbr.rel (0) target = $region13
  $region12: #{sgln_forward.5} parent=0 // pred_region
    _
  $region13: #{sgln_forward.5} parent=0 // pred_fallthru
    _
  %v14 = vld [vmem:[%s0] sm:$0xff]
  %v15 = vld [vmem:[%s0 + $0x8] sm:$0xff]
  %v16 = vld [vmem:[%s1] sm:$0xff]
  %v17 = vld [vmem:[%s1 + $0x8] sm:$0xff]
  %v18 = vld [vmem:[%s1 + $0x10] sm:$0xff]
  %v19 = vld [vmem:[%s1 + $0x18] sm:$0xff]
  %v20 = vld [vmem:[%s1 + $0x20] sm:$0xff]
  %v21 = vld [vmem:[%s1 + $0x28] sm:$0xff]
  %v22 = vld [vmem:[%s1 + $0x30] sm:$0xff]
  %v23 = vld [vmem:[%s1 + $0x38] sm:$0xff]
  %v24 = vld [vmem:[%s2] sm:$0x1]
  %v26 = vperm.slane %v24, 0
  %vm28 = vcmask 523264
  %v30 = vsel %vm28, %v14, 0
  %v33 = vsel %vm28, %v15, 0
  %35 = vmatpush.msra.mxu0 0.0
  %36 = vmatpush.msra.mxu0 0.0
  %37 = vmatpush.msra.mxu0 0.0
  %38 = vmatpush.msra.mxu0 0.0
  %39 = vmatpush.msra.mxu0 0.0
  %40 = vmatpush.msra.mxu0 0.0
  %41 = vmatpush.msra.mxu0 0.0
  %42 = vmatpush.msra.mxu0 0.0
  %43 = vmatpush.msra.mxu0 %v23
  %44 = vmatpush.msra.mxu0 %v22
  %45 = vmatpush.msra.mxu0 %v21
  %46 = vmatpush.msra.mxu0 %v20
  %47 = vmatpush.msra.mxu0 %v19
  %48 = vmatpush.msra.mxu0 %v18
  %49 = vmatpush.msra.mxu0 %v17
  %50 = vmatpush.msra.mxu0 %v16
  %51 = vmatmul.f32.gmra.mxu0 %v30
  %v52 = vpop.f32.mrf.mxu0
  %v53 = vadd.f32 %v26, %v52
  %54 = vmatmul.f32.gmra.mxu0 %v33
  %v55 = vpop.f32.mrf.mxu0
  %v56 = vadd.f32 %v26, %v55
  %57 = vdwg.mxu0
  %vm58 = vcmask 261120
  %59 = vst.msk [vmem:[%s3] sm:$0xff] %vm58, %v53
  %60 = vst.msk [vmem:[%s3 + $0x8] sm:$0xff] %vm58, %v56
  // Predicated region
  $region14: #{sgln_forward.5} parent=0 // pred_check
    _
  $region15: #{sgln_forward.5} parent=0 // pred_check_branch
    %62 = sbr.rel (0) target = $region17
  $region16: #{sgln_forward.5} parent=0 // pred_region
    _
  $region17: #{sgln_forward.5} parent=0 // pred_fallthru
    _
  // Predicated region
  $region18: #{sgln_forward.5} parent=0 // pred_check
    _
  $region19: #{sgln_forward.5} parent=0 // pred_check_branch
    %64 = sbr.rel (0) target = $region21
  $region20: #{sgln_forward.5} parent=0 // pred_region
    _
  $region21: #{sgln_forward.5} parent=0 // pred_fallthru
    _

// kernel: sgln_forward.7
$region0: #{sgln_forward.7}
  #allocation0 [shape = 'u32[]', space=smem, size = 0x4, offset = 0x4, fixed_abs, tag = 'smem constant byte address 0x4 - core index']
  #allocation1 [shape = 'u32[72,128]{1,0:T(1,128)}', space=vmem, size = 0x9000, scoped, tag = 'internal scratch']
  %s0 = inlined_call_operand.vmem [shape: f32[8,6,16], index: 0, kind: input, shape index: {}]
  %s1 = inlined_call_operand.vmem [shape: f32[16,128], index: 1, kind: input, shape index: {}]
  %s2 = inlined_call_operand.vmem [shape: f32[32,128], index: 2, kind: input, shape index: {}]
  %s3 = inlined_call_operand.vmem [shape: f32[1,128], index: 3, kind: input, shape index: {}]
  %s4 = inlined_call_operand.vmem [shape: f32[6,256], index: 4, kind: output, shape index: {}]
  %s5 = sld [smem:[#allocation0]]
  $region26: #{sgln_forward.7} parent=0
    _
  %s7 = ssub.s32 1, %s5
  %s8 = scalar_select 0, %s7, %s5
  // Predicated region
  $region2: #{sgln_forward.7} parent=0 // pred_check
    _
  $region3: #{sgln_forward.7} parent=0 // pred_check_branch
    %10 = sbr.rel (0) target = $region5
  $region4: #{sgln_forward.7} parent=0 // pred_region
    _
  $region5: #{sgln_forward.7} parent=0 // pred_fallthru
    _
  // Predicated region
  $region6: #{sgln_forward.7} parent=0 // pred_check
    _
  $region7: #{sgln_forward.7} parent=0 // pred_check_branch
    %12 = sbr.rel (0) target = $region9
  $region8: #{sgln_forward.7} parent=0 // pred_region
    _
  $region9: #{sgln_forward.7} parent=0 // pred_fallthru
    _
  // Predicated region
  $region10: #{sgln_forward.7} parent=0 // pred_check
    _
  $region11: #{sgln_forward.7} parent=0 // pred_check_branch
    %14 = sbr.rel (0) target = $region13
  $region12: #{sgln_forward.7} parent=0 // pred_region
    _
  $region13: #{sgln_forward.7} parent=0 // pred_fallthru
    _
  // Predicated region
  $region14: #{sgln_forward.7} parent=0 // pred_check
    _
  $region15: #{sgln_forward.7} parent=0 // pred_check_branch
    %16 = sbr.rel (0) target = $region17
  $region16: #{sgln_forward.7} parent=0 // pred_region
    _
  $region17: #{sgln_forward.7} parent=0 // pred_fallthru
    _
  %v17 = vld [vmem:[%s1] sm:$0xff]
  %v18 = vld [vmem:[%s1 + $0x8] sm:$0xff]
  %v19 = vld [vmem:[%s2] sm:$0xff]
  %v20 = vld [vmem:[%s2 + $0x8] sm:$0xff]
  %v21 = vld [vmem:[%s2 + $0x10] sm:$0xff]
  %v22 = vld [vmem:[%s2 + $0x18] sm:$0xff]
  %v23 = vld [vmem:[%s3] sm:$0x1]
  %v24 = vld [vmem:[%s0] sm:$0x3f]
  %vm25 = vcmask 261120
  %v27 = vsel %vm25, 0.0, 0
  %29 = vmatpush.msra.mxu0 0.0
  %30 = vmatpush.msra.mxu0 0.0
  %31 = vmatpush.msra.mxu0 0.0
  %32 = vmatpush.msra.mxu0 0.0
  %33 = vmatpush.msra.mxu0 0.0
  %34 = vmatpush.msra.mxu0 0.0
  %35 = vmatpush.msra.mxu0 0.0
  %36 = vmatpush.msra.mxu0 0.0
  %37 = vmatpush.msra.mxu0 0.0
  %38 = vmatpush.msra.mxu0 0.0
  %39 = vmatpush.msra.mxu0 0.0
  %40 = vmatpush.msra.mxu0 0.0
  %41 = vmatpush.msra.mxu0 %v22
  %42 = vmatpush.msra.mxu0 %v21
  %43 = vmatpush.msra.mxu0 %v20
  %44 = vmatpush.msra.mxu0 %v19
  %45 = vmatmul.f32.gmra.mxu0 %v27
  %v46 = vpop.f32.mrf.mxu0
  %v47 = vadd.f32 0.0, %v46
  %48 = vdwg.mxu0
  %vm49 = vcmask 130048
  %v51 = vsel %vm49, %v24, 0
  %53 = vmatpush.msra.mxu0 0.0
  %54 = vmatpush.msra.mxu0 0.0
  %55 = vmatpush.msra.mxu0 0.0
  %56 = vmatpush.msra.mxu0 0.0
  %57 = vmatpush.msra.mxu0 0.0
  %58 = vmatpush.msra.mxu0 0.0
  %59 = vmatpush.msra.mxu0 0.0
  %60 = vmatpush.msra.mxu0 0.0
  %61 = vmatpush.msra.mxu0 0.0
  %62 = vmatpush.msra.mxu0 0.0
  %63 = vmatpush.msra.mxu0 0.0
  %64 = vmatpush.msra.mxu0 0.0
  %65 = vmatpush.msra.mxu0 0.0
  %66 = vmatpush.msra.mxu0 0.0
  %67 = vmatpush.msra.mxu0 %v18
  %68 = vmatpush.msra.mxu0 %v17
  %69 = vmatmul.f32.gmra.mxu0 %v51
  %v70 = vpop.f32.mrf.mxu0
  %v71 = vadd.f32 %v47, %v70
  %72 = vdwg.mxu0
  %v74 = vperm.slane %v23, 0
  %v76 = vadd.f32 %v71, %v74
  %v77 = vsub.f32 0.0, %v76
  %v78 = vmul.f32 %v77, 1.442695
  %v79 = vpow.pop %v78
  %v80 = vadd.f32 %v79, 1.0
  %v81 = vrcp.pop %v80
  %v82 = vmul.f32 %v80, %v81
  %v83 = vsub.f32 1.0, %v82
  %v84 = vmul.f32 %v81, %v83
  %v85 = vadd.f32 %v81, %v84
  %vm86 = vweird.f32 %v80
  %vm87 = vweird.f32 %v81
  %vm88 = vmor %vm86, %vm87
  %v89 = vsel %vm88, %v81, %v85
  %v90 = vand.u32 2147483647, %v80
  %vm91 = vcmp.eq.f32.partialorder %v90, 8.507059e+37
  %v92 = vand.u32 %v80, 2147483648
  %v93 = vor.u32 1.1754944e-38, %v92
  %v94 = vsel %vm91, %v93, %v89
  %v95 = vmul.f32 1.0, %v94
  %v96 = vtanh.pop %v76
  %v97 = vmul.f32 %v95, 0.0
  %99 = vrot.lane.b32.xlu0 %v96, 64
  %v100 = vpop.permute.xlu0 %99
  %v102 = vmul.f32 %v95, %v100
  %104 = vrot.lane.b32.xlu0 %v102, 32
  %v105 = vpop.permute.xlu0 %104
  %v107 = vadd.f32 %v97, %v105
  %v108 = vtanh.pop %v107
  %110 = vrot.lane.b32.xlu0 %v108, 64
  %v111 = vpop.permute.xlu0 %110
  %v113 = vmul.f32 %v95, %v111
  %115 = vrot.lane.b32.xlu0 %v113, 32
  %v116 = vpop.permute.xlu0 %115
  %vm118 = vcmask 259072
  %119 = vst.msk [vmem:[%s4] sm:$0x3f] %vm118, %v116
  %s120 = scalar_lea.vmem %s0, 8
  %v121 = vld [vmem:[%s120] sm:$0x3f]
  %v122 = vsel %vm25, %v116, 0
  %124 = vmatpush.msra.mxu0 0.0
  %125 = vmatpush.msra.mxu0 0.0
  %126 = vmatpush.msra.mxu0 0.0
  %127 = vmatpush.msra.mxu0 0.0
  %128 = vmatpush.msra.mxu0 0.0
  %129 = vmatpush.msra.mxu0 0.0
  %130 = vmatpush.msra.mxu0 0.0
  %131 = vmatpush.msra.mxu0 0.0
  %132 = vmatpush.msra.mxu0 0.0
  %133 = vmatpush.msra.mxu0 0.0
  %134 = vmatpush.msra.mxu0 0.0
  %135 = vmatpush.msra.mxu0 0.0
  %136 = vmatpush.msra.mxu0 %v22
  %137 = vmatpush.msra.mxu0 %v21
  %138 = vmatpush.msra.mxu0 %v20
  %139 = vmatpush.msra.mxu0 %v19
  %140 = vmatmul.f32.gmra.mxu0 %v122
  %v141 = vpop.f32.mrf.mxu0
  %v142 = vadd.f32 0.0, %v141
  %143 = vdwg.mxu0
  %v145 = vsel %vm49, %v121, 0
  %147 = vmatpush.msra.mxu0 0.0
  %148 = vmatpush.msra.mxu0 0.0
  %149 = vmatpush.msra.mxu0 0.0
  %150 = vmatpush.msra.mxu0 0.0
  %151 = vmatpush.msra.mxu0 0.0
  %152 = vmatpush.msra.mxu0 0.0
  %153 = vmatpush.msra.mxu0 0.0
  %154 = vmatpush.msra.mxu0 0.0
  %155 = vmatpush.msra.mxu0 0.0
  %156 = vmatpush.msra.mxu0 0.0
  %157 = vmatpush.msra.mxu0 0.0
  %158 = vmatpush.msra.mxu0 0.0
  %159 = vmatpush.msra.mxu0 0.0
  %160 = vmatpush.msra.mxu0 0.0
  %161 = vmatpush.msra.mxu0 %v18
  %162 = vmatpush.msra.mxu0 %v17
  %163 = vmatmul.f32.gmra.mxu0 %v145
  %v164 = vpop.f32.mrf.mxu0
  %v165 = vadd.f32 %v142, %v164
  %166 = vdwg.mxu0
  %v167 = vadd.f32 %v165, %v74
  %v168 = vsub.f32 0.0, %v167
  %v169 = vmul.f32 %v168, 1.442695
  %v170 = vpow.pop %v169
  %v171 = vadd.f32 %v170, 1.0
  %v172 = vrcp.pop %v171
  %v173 = vmul.f32 %v171, %v172
  %v174 = vsub.f32 1.0, %v173
  %v175 = vmul.f32 %v172, %v174
  %v176 = vadd.f32 %v172, %v175
  %vm177 = vweird.f32 %v171
  %vm178 = vweird.f32 %v172
  %vm179 = vmor %vm177, %vm178
  %v180 = vsel %vm179, %v172, %v176
  %v181 = vand.u32 2147483647, %v171
  %vm182 = vcmp.eq.f32.partialorder %v181, 8.507059e+37
  %v183 = vand.u32 %v171, 2147483648
  %v184 = vor.u32 1.1754944e-38, %v183
  %v185 = vsel %vm182, %v184, %v180
  %v186 = vmul.f32 1.0, %v185
  %v187 = vtanh.pop %v167
  %v188 = vmul.f32 %v186, %v107
  %190 = vrot.lane.b32.xlu0 %v187, 64
  %v191 = vpop.permute.xlu0 %190
  %v193 = vmul.f32 %v186, %v191
  %195 = vrot.lane.b32.xlu0 %v193, 32
  %v196 = vpop.permute.xlu0 %195
  %v198 = vadd.f32 %v188, %v196
  %v199 = vtanh.pop %v198
  %201 = vrot.lane.b32.xlu0 %v199, 64
  %v202 = vpop.permute.xlu0 %201
  %v204 = vmul.f32 %v186, %v202
  %206 = vrot.lane.b32.xlu0 %v204, 64
  %v207 = vpop.permute.xlu0 %206
  %vm209 = vcmask 521472
  %210 = vst.msk [vmem:[%s4] sm:$0x3f] %vm209, %v207
  %s211 = scalar_lea.vmem %s0, 16
  %v212 = vld [vmem:[%s211] sm:$0x3f]
  %213 = vrot.lane.b32.xlu0 %v204, 32
  %v214 = vpop.permute.xlu0 %213
  %v215 = vsel %vm25, %v214, 0
  %217 = vmatpush.msra.mxu0 0.0
  %218 = vmatpush.msra.mxu0 0.0
  %219 = vmatpush.msra.mxu0 0.0
  %220 = vmatpush.msra.mxu0 0.0
  %221 = vmatpush.msra.mxu0 0.0
  %222 = vmatpush.msra.mxu0 0.0
  %223 = vmatpush.msra.mxu0 0.0
  %224 = vmatpush.msra.mxu0 0.0
  %225 = vmatpush.msra.mxu0 0.0
  %226 = vmatpush.msra.mxu0 0.0
  %227 = vmatpush.msra.mxu0 0.0
  %228 = vmatpush.msra.mxu0 0.0
  %229 = vmatpush.msra.mxu0 %v22
  %230 = vmatpush.msra.mxu0 %v21
  %231 = vmatpush.msra.mxu0 %v20
  %232 = vmatpush.msra.mxu0 %v19
  %233 = vmatmul.f32.gmra.mxu0 %v215
  %v234 = vpop.f32.mrf.mxu0
  %v235 = vadd.f32 0.0, %v234
  %236 = vdwg.mxu0
  %v238 = vsel %vm49, %v212, 0
  %240 = vmatpush.msra.mxu0 0.0
  %241 = vmatpush.msra.mxu0 0.0
  %242 = vmatpush.msra.mxu0 0.0
  %243 = vmatpush.msra.mxu0 0.0
  %244 = vmatpush.msra.mxu0 0.0
  %245 = vmatpush.msra.mxu0 0.0
  %246 = vmatpush.msra.mxu0 0.0
  %247 = vmatpush.msra.mxu0 0.0
  %248 = vmatpush.msra.mxu0 0.0
  %249 = vmatpush.msra.mxu0 0.0
  %250 = vmatpush.msra.mxu0 0.0
  %251 = vmatpush.msra.mxu0 0.0
  %252 = vmatpush.msra.mxu0 0.0
  %253 = vmatpush.msra.mxu0 0.0
  %254 = vmatpush.msra.mxu0 %v18
  %255 = vmatpush.msra.mxu0 %v17
  %256 = vmatmul.f32.gmra.mxu0 %v238
  %v257 = vpop.f32.mrf.mxu0
  %v258 = vadd.f32 %v235, %v257
  %259 = vdwg.mxu0
  %v260 = vadd.f32 %v258, %v74
  %v261 = vsub.f32 0.0, %v260
  %v262 = vmul.f32 %v261, 1.442695
  %v263 = vpow.pop %v262
  %v264 = vadd.f32 %v263, 1.0
  %v265 = vrcp.pop %v264
  %v266 = vmul.f32 %v264, %v265
  %v267 = vsub.f32 1.0, %v266
  %v268 = vmul.f32 %v265, %v267
  %v269 = vadd.f32 %v265, %v268
  %vm270 = vweird.f32 %v264
  %vm271 = vweird.f32 %v265
  %vm272 = vmor %vm270, %vm271
  %v273 = vsel %vm272, %v265, %v269
  %v274 = vand.u32 2147483647, %v264
  %vm275 = vcmp.eq.f32.partialorder %v274, 8.507059e+37
  %v276 = vand.u32 %v264, 2147483648
  %v277 = vor.u32 1.1754944e-38, %v276
  %v278 = vsel %vm275, %v277, %v273
  %v279 = vmul.f32 1.0, %v278
  %v280 = vtanh.pop %v260
  %v281 = vmul.f32 %v279, %v198
  %283 = vrot.lane.b32.xlu0 %v280, 64
  %v284 = vpop.permute.xlu0 %283
  %v286 = vmul.f32 %v279, %v284
  %288 = vrot.lane.b32.xlu0 %v286, 32
  %v289 = vpop.permute.xlu0 %288
  %v291 = vadd.f32 %v281, %v289
  %v292 = vtanh.pop %v291
  %294 = vrot.lane.b32.xlu0 %v292, 64
  %v295 = vpop.permute.xlu0 %294
  %v297 = vmul.f32 %v279, %v295
  %299 = vrot.lane.b32.xlu0 %v297, 96
  %v300 = vpop.permute.xlu0 %299
  %vm302 = vcmask 783872
  %303 = vst.msk [vmem:[%s4] sm:$0x3f] %vm302, %v300
  %s304 = scalar_lea.vmem %s0, 24
  %v305 = vld [vmem:[%s304] sm:$0x3f]
  %306 = vrot.lane.b32.xlu0 %v297, 32
  %v307 = vpop.permute.xlu0 %306
  %v308 = vsel %vm25, %v307, 0
  %310 = vmatpush.msra.mxu0 0.0
  %311 = vmatpush.msra.mxu0 0.0
  %312 = vmatpush.msra.mxu0 0.0
  %313 = vmatpush.msra.mxu0 0.0
  %314 = vmatpush.msra.mxu0 0.0
  %315 = vmatpush.msra.mxu0 0.0
  %316 = vmatpush.msra.mxu0 0.0
  %317 = vmatpush.msra.mxu0 0.0
  %318 = vmatpush.msra.mxu0 0.0
  %319 = vmatpush.msra.mxu0 0.0
  %320 = vmatpush.msra.mxu0 0.0
  %321 = vmatpush.msra.mxu0 0.0
  %322 = vmatpush.msra.mxu0 %v22
  %323 = vmatpush.msra.mxu0 %v21
  %324 = vmatpush.msra.mxu0 %v20
  %325 = vmatpush.msra.mxu0 %v19
  %326 = vmatmul.f32.gmra.mxu0 %v308
  %v327 = vpop.f32.mrf.mxu0
  %v328 = vadd.f32 0.0, %v327
  %329 = vdwg.mxu0
  %v331 = vsel %vm49, %v305, 0
  %333 = vmatpush.msra.mxu0 0.0
  %334 = vmatpush.msra.mxu0 0.0
  %335 = vmatpush.msra.mxu0 0.0
  %336 = vmatpush.msra.mxu0 0.0
  %337 = vmatpush.msra.mxu0 0.0
  %338 = vmatpush.msra.mxu0 0.0
  %339 = vmatpush.msra.mxu0 0.0
  %340 = vmatpush.msra.mxu0 0.0
  %341 = vmatpush.msra.mxu0 0.0
  %342 = vmatpush.msra.mxu0 0.0
  %343 = vmatpush.msra.mxu0 0.0
  %344 = vmatpush.msra.mxu0 0.0
  %345 = vmatpush.msra.mxu0 0.0
  %346 = vmatpush.msra.mxu0 0.0
  %347 = vmatpush.msra.mxu0 %v18
  %348 = vmatpush.msra.mxu0 %v17
  %349 = vmatmul.f32.gmra.mxu0 %v331
  %v350 = vpop.f32.mrf.mxu0
  %v351 = vadd.f32 %v328, %v350
  %352 = vdwg.mxu0
  %v353 = vadd.f32 %v351, %v74
  %v354 = vsub.f32 0.0, %v353
  %v355 = vmul.f32 %v354, 1.442695
  %v356 = vpow.pop %v355
  %v357 = vadd.f32 %v356, 1.0
  %v358 = vrcp.pop %v357
  %v359 = vmul.f32 %v357, %v358
  %v360 = vsub.f32 1.0, %v359
  %v361 = vmul.f32 %v358, %v360
  %v362 = vadd.f32 %v358, %v361
  %vm363 = vweird.f32 %v357
  %vm364 = vweird.f32 %v358
  %vm365 = vmor %vm363, %vm364
  %v366 = vsel %vm365, %v358, %v362
  %v367 = vand.u32 2147483647, %v357
  %vm368 = vcmp.eq.f32.partialorder %v367, 8.507059e+37
  %v369 = vand.u32 %v357, 2147483648
  %v370 = vor.u32 1.1754944e-38, %v369
  %v371 = vsel %vm368, %v370, %v366
  %v372 = vmul.f32 1.0, %v371
  %v373 = vtanh.pop %v353
  %v374 = vmul.f32 %v372, %v291
  %376 = vrot.lane.b32.xlu0 %v373, 64
  %v377 = vpop.permute.xlu0 %376
  %v379 = vmul.f32 %v372, %v377
  %381 = vrot.lane.b32.xlu0 %v379, 32
  %v382 = vpop.permute.xlu0 %381
  %v384 = vadd.f32 %v374, %v382
  %v385 = vtanh.pop %v384
  %387 = vrot.lane.b32.xlu0 %v385, 64
  %v388 = vpop.permute.xlu0 %387
  %v390 = vmul.f32 %v372, %v388
  %vm391 = vcmask 1046272
  %392 = vst.msk [vmem:[%s4] sm:$0x3f] %vm391, %v390
  %s393 = scalar_lea.vmem %s0, 32
  %v394 = vld [vmem:[%s393] sm:$0x3f]
  %396 = vrot.lane.b32.xlu0 %v390, 32
  %v397 = vpop.permute.xlu0 %396
  %v398 = vsel %vm25, %v397, 0
  %400 = vmatpush.msra.mxu0 0.0
  %401 = vmatpush.msra.mxu0 0.0
  %402 = vmatpush.msra.mxu0 0.0
  %403 = vmatpush.msra.mxu0 0.0
  %404 = vmatpush.msra.mxu0 0.0
  %405 = vmatpush.msra.mxu0 0.0
  %406 = vmatpush.msra.mxu0 0.0
  %407 = vmatpush.msra.mxu0 0.0
  %408 = vmatpush.msra.mxu0 0.0
  %409 = vmatpush.msra.mxu0 0.0
  %410 = vmatpush.msra.mxu0 0.0
  %411 = vmatpush.msra.mxu0 0.0
  %412 = vmatpush.msra.mxu0 %v22
  %413 = vmatpush.msra.mxu0 %v21
  %414 = vmatpush.msra.mxu0 %v20
  %415 = vmatpush.msra.mxu0 %v19
  %416 = vmatmul.f32.gmra.mxu0 %v398
  %v417 = vpop.f32.mrf.mxu0
  %v418 = vadd.f32 0.0, %v417
  %419 = vdwg.mxu0
  %v421 = vsel %vm49, %v394, 0
  %423 = vmatpush.msra.mxu0 0.0
  %424 = vmatpush.msra.mxu0 0.0
  %425 = vmatpush.msra.mxu0 0.0
  %426 = vmatpush.msra.mxu0 0.0
  %427 = vmatpush.msra.mxu0 0.0
  %428 = vmatpush.msra.mxu0 0.0
  %429 = vmatpush.msra.mxu0 0.0
  %430 = vmatpush.msra.mxu0 0.0
  %431 = vmatpush.msra.mxu0 0.0
  %432 = vmatpush.msra.mxu0 0.0
  %433 = vmatpush.msra.mxu0 0.0
  %434 = vmatpush.msra.mxu0 0.0
  %435 = vmatpush.msra.mxu0 0.0
  %436 = vmatpush.msra.mxu0 0.0
  %437 = vmatpush.msra.mxu0 %v18
  %438 = vmatpush.msra.mxu0 %v17
  %439 = vmatmul.f32.gmra.mxu0 %v421
  %v440 = vpop.f32.mrf.mxu0
  %v441 = vadd.f32 %v418, %v440
  %442 = vdwg.mxu0
  %v443 = vadd.f32 %v441, %v74
  %v444 = vsub.f32 0.0, %v443
  %v445 = vmul.f32 %v444, 1.442695
  %v446 = vpow.pop %v445
  %v447 = vadd.f32 %v446, 1.0
  %v448 = vrcp.pop %v447
  %v449 = vmul.f32 %v447, %v448
  %v450 = vsub.f32 1.0, %v449
  %v451 = vmul.f32 %v448, %v450
  %v452 = vadd.f32 %v448, %v451
  %vm453 = vweird.f32 %v447
  %vm454 = vweird.f32 %v448
  %vm455 = vmor %vm453, %vm454
  %v456 = vsel %vm455, %v448, %v452
  %v457 = vand.u32 2147483647, %v447
  %vm458 = vcmp.eq.f32.partialorder %v457, 8.507059e+37
  %v459 = vand.u32 %v447, 2147483648
  %v460 = vor.u32 1.1754944e-38, %v459
  %v461 = vsel %vm458, %v460, %v456
  %v462 = vmul.f32 1.0, %v461
  %v463 = vtanh.pop %v443
  %v464 = vmul.f32 %v462, %v384
  %466 = vrot.lane.b32.xlu0 %v463, 64
  %v467 = vpop.permute.xlu0 %466
  %v469 = vmul.f32 %v462, %v467
  %471 = vrot.lane.b32.xlu0 %v469, 32
  %v472 = vpop.permute.xlu0 %471
  %v474 = vadd.f32 %v464, %v472
  %v475 = vtanh.pop %v474
  %477 = vrot.lane.b32.xlu0 %v475, 64
  %v478 = vpop.permute.xlu0 %477
  %v480 = vmul.f32 %v462, %v478
  %482 = vrot.lane.b32.xlu0 %v480, 32
  %v483 = vpop.permute.xlu0 %482
  %485 = vst.msk [vmem:[%s4 + $0x8] sm:$0x3f] %vm118, %v483
  %s486 = scalar_lea.vmem %s0, 40
  %v487 = vld [vmem:[%s486] sm:$0x3f]
  %v488 = vsel %vm25, %v483, 0
  %490 = vmatpush.msra.mxu0 0.0
  %491 = vmatpush.msra.mxu0 0.0
  %492 = vmatpush.msra.mxu0 0.0
  %493 = vmatpush.msra.mxu0 0.0
  %494 = vmatpush.msra.mxu0 0.0
  %495 = vmatpush.msra.mxu0 0.0
  %496 = vmatpush.msra.mxu0 0.0
  %497 = vmatpush.msra.mxu0 0.0
  %498 = vmatpush.msra.mxu0 0.0
  %499 = vmatpush.msra.mxu0 0.0
  %500 = vmatpush.msra.mxu0 0.0
  %501 = vmatpush.msra.mxu0 0.0
  %502 = vmatpush.msra.mxu0 %v22
  %503 = vmatpush.msra.mxu0 %v21
  %504 = vmatpush.msra.mxu0 %v20
  %505 = vmatpush.msra.mxu0 %v19
  %506 = vmatmul.f32.gmra.mxu0 %v488
  %v507 = vpop.f32.mrf.mxu0
  %v508 = vadd.f32 0.0, %v507
  %509 = vdwg.mxu0
  %v511 = vsel %vm49, %v487, 0
  %513 = vmatpush.msra.mxu0 0.0
  %514 = vmatpush.msra.mxu0 0.0
  %515 = vmatpush.msra.mxu0 0.0
  %516 = vmatpush.msra.mxu0 0.0
  %517 = vmatpush.msra.mxu0 0.0
  %518 = vmatpush.msra.mxu0 0.0
  %519 = vmatpush.msra.mxu0 0.0
  %520 = vmatpush.msra.mxu0 0.0
  %521 = vmatpush.msra.mxu0 0.0
  %522 = vmatpush.msra.mxu0 0.0
  %523 = vmatpush.msra.mxu0 0.0
  %524 = vmatpush.msra.mxu0 0.0
  %525 = vmatpush.msra.mxu0 0.0
  %526 = vmatpush.msra.mxu0 0.0
  %527 = vmatpush.msra.mxu0 %v18
  %528 = vmatpush.msra.mxu0 %v17
  %529 = vmatmul.f32.gmra.mxu0 %v511
  %v530 = vpop.f32.mrf.mxu0
  %v531 = vadd.f32 %v508, %v530
  %532 = vdwg.mxu0
  %v533 = vadd.f32 %v531, %v74
  %v534 = vsub.f32 0.0, %v533
  %v535 = vmul.f32 %v534, 1.442695
  %v536 = vpow.pop %v535
  %v537 = vadd.f32 %v536, 1.0
  %v538 = vrcp.pop %v537
  %v539 = vmul.f32 %v537, %v538
  %v540 = vsub.f32 1.0, %v539
  %v541 = vmul.f32 %v538, %v540
  %v542 = vadd.f32 %v538, %v541
  %vm543 = vweird.f32 %v537
  %vm544 = vweird.f32 %v538
  %vm545 = vmor %vm543, %vm544
  %v546 = vsel %vm545, %v538, %v542
  %v547 = vand.u32 2147483647, %v537
  %vm548 = vcmp.eq.f32.partialorder %v547, 8.507059e+37
  %v549 = vand.u32 %v537, 2147483648
  %v550 = vor.u32 1.1754944e-38, %v549
  %v551 = vsel %vm548, %v550, %v546
  %v552 = vmul.f32 1.0, %v551
  %v553 = vtanh.pop %v533
  %v554 = vmul.f32 %v552, %v474
  %556 = vrot.lane.b32.xlu0 %v553, 64
  %v557 = vpop.permute.xlu0 %556
  %v559 = vmul.f32 %v552, %v557
  %561 = vrot.lane.b32.xlu0 %v559, 32
  %v562 = vpop.permute.xlu0 %561
  %v564 = vadd.f32 %v554, %v562
  %v565 = vtanh.pop %v564
  %567 = vrot.lane.b32.xlu0 %v565, 64
  %v568 = vpop.permute.xlu0 %567
  %v570 = vmul.f32 %v552, %v568
  %572 = vrot.lane.b32.xlu0 %v570, 64
  %v573 = vpop.permute.xlu0 %572
  %575 = vst.msk [vmem:[%s4 + $0x8] sm:$0x3f] %vm209, %v573
  %s576 = scalar_lea.vmem %s0, 48
  %v577 = vld [vmem:[%s576] sm:$0x3f]
  %578 = vrot.lane.b32.xlu0 %v570, 32
  %v579 = vpop.permute.xlu0 %578
  %v580 = vsel %vm25, %v579, 0
  %582 = vmatpush.msra.mxu0 0.0
  %583 = vmatpush.msra.mxu0 0.0
  %584 = vmatpush.msra.mxu0 0.0
  %585 = vmatpush.msra.mxu0 0.0
  %586 = vmatpush.msra.mxu0 0.0
  %587 = vmatpush.msra.mxu0 0.0
  %588 = vmatpush.msra.mxu0 0.0
  %589 = vmatpush.msra.mxu0 0.0
  %590 = vmatpush.msra.mxu0 0.0
  %591 = vmatpush.msra.mxu0 0.0
  %592 = vmatpush.msra.mxu0 0.0
  %593 = vmatpush.msra.mxu0 0.0
  %594 = vmatpush.msra.mxu0 %v22
  %595 = vmatpush.msra.mxu0 %v21
  %596 = vmatpush.msra.mxu0 %v20
  %597 = vmatpush.msra.mxu0 %v19
  %598 = vmatmul.f32.gmra.mxu0 %v580
  %v599 = vpop.f32.mrf.mxu0
  %v600 = vadd.f32 0.0, %v599
  %601 = vdwg.mxu0
  %v603 = vsel %vm49, %v577, 0
  %605 = vmatpush.msra.mxu0 0.0
  %606 = vmatpush.msra.mxu0 0.0
  %607 = vmatpush.msra.mxu0 0.0
  %608 = vmatpush.msra.mxu0 0.0
  %609 = vmatpush.msra.mxu0 0.0
  %610 = vmatpush.msra.mxu0 0.0
  %611 = vmatpush.msra.mxu0 0.0
  %612 = vmatpush.msra.mxu0 0.0
  %613 = vmatpush.msra.mxu0 0.0
  %614 = vmatpush.msra.mxu0 0.0
  %615 = vmatpush.msra.mxu0 0.0
  %616 = vmatpush.msra.mxu0 0.0
  %617 = vmatpush.msra.mxu0 0.0
  %618 = vmatpush.msra.mxu0 0.0
  %619 = vmatpush.msra.mxu0 %v18
  %620 = vmatpush.msra.mxu0 %v17
  %621 = vmatmul.f32.gmra.mxu0 %v603
  %v622 = vpop.f32.mrf.mxu0
  %v623 = vadd.f32 %v600, %v622
  %624 = vdwg.mxu0
  %v625 = vadd.f32 %v623, %v74
  %v626 = vsub.f32 0.0, %v625
  %v627 = vmul.f32 %v626, 1.442695
  %v628 = vpow.pop %v627
  %v629 = vadd.f32 %v628, 1.0
  %v630 = vrcp.pop %v629
  %v631 = vmul.f32 %v629, %v630
  %v632 = vsub.f32 1.0, %v631
  %v633 = vmul.f32 %v630, %v632
  %v634 = vadd.f32 %v630, %v633
  %vm635 = vweird.f32 %v629
  %vm636 = vweird.f32 %v630
  %vm637 = vmor %vm635, %vm636
  %v638 = vsel %vm637, %v630, %v634
  %v639 = vand.u32 2147483647, %v629
  %vm640 = vcmp.eq.f32.partialorder %v639, 8.507059e+37
  %v641 = vand.u32 %v629, 2147483648
  %v642 = vor.u32 1.1754944e-38, %v641
  %v643 = vsel %vm640, %v642, %v638
  %v644 = vmul.f32 1.0, %v643
  %v645 = vtanh.pop %v625
  %v646 = vmul.f32 %v644, %v564
  %648 = vrot.lane.b32.xlu0 %v645, 64
  %v649 = vpop.permute.xlu0 %648
  %v651 = vmul.f32 %v644, %v649
  %653 = vrot.lane.b32.xlu0 %v651, 32
  %v654 = vpop.permute.xlu0 %653
  %v656 = vadd.f32 %v646, %v654
  %v657 = vtanh.pop %v656
  %659 = vrot.lane.b32.xlu0 %v657, 64
  %v660 = vpop.permute.xlu0 %659
  %v662 = vmul.f32 %v644, %v660
  %664 = vrot.lane.b32.xlu0 %v662, 96
  %v665 = vpop.permute.xlu0 %664
  %667 = vst.msk [vmem:[%s4 + $0x8] sm:$0x3f] %vm302, %v665
  %s668 = scalar_lea.vmem %s0, 56
  %v669 = vld [vmem:[%s668] sm:$0x3f]
  %670 = vrot.lane.b32.xlu0 %v662, 32
  %v671 = vpop.permute.xlu0 %670
  %v672 = vsel %vm25, %v671, 0
  %674 = vmatpush.msra.mxu0 0.0
  %675 = vmatpush.msra.mxu0 0.0
  %676 = vmatpush.msra.mxu0 0.0
  %677 = vmatpush.msra.mxu0 0.0
  %678 = vmatpush.msra.mxu0 0.0
  %679 = vmatpush.msra.mxu0 0.0
  %680 = vmatpush.msra.mxu0 0.0
  %681 = vmatpush.msra.mxu0 0.0
  %682 = vmatpush.msra.mxu0 0.0
  %683 = vmatpush.msra.mxu0 0.0
  %684 = vmatpush.msra.mxu0 0.0
  %685 = vmatpush.msra.mxu0 0.0
  %686 = vmatpush.msra.mxu0 %v22
  %687 = vmatpush.msra.mxu0 %v21
  %688 = vmatpush.msra.mxu0 %v20
  %689 = vmatpush.msra.mxu0 %v19
  %690 = vmatmul.f32.gmra.mxu0 %v672
  %v691 = vpop.f32.mrf.mxu0
  %v692 = vadd.f32 0.0, %v691
  %693 = vdwg.mxu0
  %v695 = vsel %vm49, %v669, 0
  %697 = vmatpush.msra.mxu0 0.0
  %698 = vmatpush.msra.mxu0 0.0
  %699 = vmatpush.msra.mxu0 0.0
  %700 = vmatpush.msra.mxu0 0.0
  %701 = vmatpush.msra.mxu0 0.0
  %702 = vmatpush.msra.mxu0 0.0
  %703 = vmatpush.msra.mxu0 0.0
  %704 = vmatpush.msra.mxu0 0.0
  %705 = vmatpush.msra.mxu0 0.0
  %706 = vmatpush.msra.mxu0 0.0
  %707 = vmatpush.msra.mxu0 0.0
  %708 = vmatpush.msra.mxu0 0.0
  %709 = vmatpush.msra.mxu0 0.0
  %710 = vmatpush.msra.mxu0 0.0
  %711 = vmatpush.msra.mxu0 %v18
  %712 = vmatpush.msra.mxu0 %v17
  %713 = vmatmul.f32.gmra.mxu0 %v695
  %v714 = vpop.f32.mrf.mxu0
  %v715 = vadd.f32 %v692, %v714
  %716 = vdwg.mxu0
  %v717 = vadd.f32 %v715, %v74
  %v718 = vsub.f32 0.0, %v717
  %v719 = vmul.f32 %v718, 1.442695
  %v720 = vpow.pop %v719
  %v721 = vadd.f32 %v720, 1.0
  %v722 = vrcp.pop %v721
  %v723 = vmul.f32 %v721, %v722
  %v724 = vsub.f32 1.0, %v723
  %v725 = vmul.f32 %v722, %v724
  %v726 = vadd.f32 %v722, %v725
  %vm727 = vweird.f32 %v721
  %vm728 = vweird.f32 %v722
  %vm729 = vmor %vm727, %vm728
  %v730 = vsel %vm729, %v722, %v726
  %v731 = vand.u32 2147483647, %v721
  %vm732 = vcmp.eq.f32.partialorder %v731, 8.507059e+37
  %v733 = vand.u32 %v721, 2147483648
  %v734 = vor.u32 1.1754944e-38, %v733
  %v735 = vsel %vm732, %v734, %v730
  %v736 = vmul.f32 1.0, %v735
  %v737 = vtanh.pop %v717
  %v738 = vmul.f32 %v736, %v656
  %740 = vrot.lane.b32.xlu0 %v737, 64
  %v741 = vpop.permute.xlu0 %740
  %v743 = vmul.f32 %v736, %v741
  %745 = vrot.lane.b32.xlu0 %v743, 32
  %v746 = vpop.permute.xlu0 %745
  %v748 = vadd.f32 %v738, %v746
  %v749 = vtanh.pop %v748
  %751 = vrot.lane.b32.xlu0 %v749, 64
  %v752 = vpop.permute.xlu0 %751
  %v754 = vmul.f32 %v736, %v752
  %755 = vst.msk [vmem:[%s4 + $0x8] sm:$0x3f] %vm391, %v754
  // Predicated region
  $region18: #{sgln_forward.7} parent=0 // pred_check
    _
  $region19: #{sgln_forward.7} parent=0 // pred_check_branch
    %757 = sbr.rel (0) target = $region21
  $region20: #{sgln_forward.7} parent=0 // pred_region
    _
  $region21: #{sgln_forward.7} parent=0 // pred_fallthru
    _
  // Predicated region
  $region22: #{sgln_forward.7} parent=0 // pred_check
    _
  $region23: #{sgln_forward.7} parent=0 // pred_check_branch
    %759 = sbr.rel (0) target = $region25
  $region24: #{sgln_forward.7} parent=0 // pred_region
    _
  $region25: #{sgln_forward.7} parent=0 // pred_fallthru
    _

// kernel: sgln_forward.9
$region0: #{sgln_forward.9}
  #allocation0 [shape = 'u32[]', space=smem, size = 0x4, offset = 0x4, fixed_abs, tag = 'smem constant byte address 0x4 - core index']
  #allocation1 [shape = 'u32[72,128]{1,0:T(1,128)}', space=vmem, size = 0x9000, scoped, tag = 'internal scratch']
  %s0 = inlined_call_operand.vmem [shape: f32[6,32], index: 0, kind: input, shape index: {}]
  %s1 = inlined_call_operand.vmem [shape: f32[32,32], index: 1, kind: input, shape index: {}]
  %s2 = inlined_call_operand.vmem [shape: f32[1,32], index: 2, kind: input, shape index: {}]
  %s3 = inlined_call_operand.vmem [shape: f32[6,32], index: 3, kind: output, shape index: {}]
  %s4 = sld [smem:[#allocation0]]
  $region22: #{sgln_forward.9} parent=0
    _
  %s6 = ssub.s32 1, %s4
  %s7 = scalar_select 0, %s6, %s4
  // Predicated region
  $region2: #{sgln_forward.9} parent=0 // pred_check
    _
  $region3: #{sgln_forward.9} parent=0 // pred_check_branch
    %9 = sbr.rel (0) target = $region5
  $region4: #{sgln_forward.9} parent=0 // pred_region
    _
  $region5: #{sgln_forward.9} parent=0 // pred_fallthru
    _
  // Predicated region
  $region6: #{sgln_forward.9} parent=0 // pred_check
    _
  $region7: #{sgln_forward.9} parent=0 // pred_check_branch
    %11 = sbr.rel (0) target = $region9
  $region8: #{sgln_forward.9} parent=0 // pred_region
    _
  $region9: #{sgln_forward.9} parent=0 // pred_fallthru
    _
  // Predicated region
  $region10: #{sgln_forward.9} parent=0 // pred_check
    _
  $region11: #{sgln_forward.9} parent=0 // pred_check_branch
    %13 = sbr.rel (0) target = $region13
  $region12: #{sgln_forward.9} parent=0 // pred_region
    _
  $region13: #{sgln_forward.9} parent=0 // pred_fallthru
    _
  %v14 = vld [vmem:[%s0] sm:$0x3f]
  %v15 = vld [vmem:[%s1] sm:$0xff]
  %v16 = vld [vmem:[%s1 + $0x8] sm:$0xff]
  %v17 = vld [vmem:[%s1 + $0x10] sm:$0xff]
  %v18 = vld [vmem:[%s1 + $0x18] sm:$0xff]
  %v19 = vld [vmem:[%s2] sm:$0x1]
  %v21 = vperm.slane %v19, 0
  %vm23 = vcmask 261120
  %v25 = vsel %vm23, %v14, 0
  %27 = vmatpush.msra.mxu0 0.0
  %28 = vmatpush.msra.mxu0 0.0
  %29 = vmatpush.msra.mxu0 0.0
  %30 = vmatpush.msra.mxu0 0.0
  %31 = vmatpush.msra.mxu0 0.0
  %32 = vmatpush.msra.mxu0 0.0
  %33 = vmatpush.msra.mxu0 0.0
  %34 = vmatpush.msra.mxu0 0.0
  %35 = vmatpush.msra.mxu0 0.0
  %36 = vmatpush.msra.mxu0 0.0
  %37 = vmatpush.msra.mxu0 0.0
  %38 = vmatpush.msra.mxu0 0.0
  %39 = vmatpush.msra.mxu0 %v18
  %40 = vmatpush.msra.mxu0 %v17
  %41 = vmatpush.msra.mxu0 %v16
  %42 = vmatpush.msra.mxu0 %v15
  %43 = vmatmul.f32.gmra.mxu0 %v25
  %v44 = vpop.f32.mrf.mxu0
  %v45 = vadd.f32 %v21, %v44
  %46 = vdwg.mxu0
  %vm47 = vcmask 259072
  %48 = vst.msk [vmem:[%s3] sm:$0x3f] %vm47, %v45
  // Predicated region
  $region14: #{sgln_forward.9} parent=0 // pred_check
    _
  $region15: #{sgln_forward.9} parent=0 // pred_check_branch
    %50 = sbr.rel (0) target = $region17
  $region16: #{sgln_forward.9} parent=0 // pred_region
    _
  $region17: #{sgln_forward.9} parent=0 // pred_fallthru
    _
  // Predicated region
  $region18: #{sgln_forward.9} parent=0 // pred_check
    _
  $region19: #{sgln_forward.9} parent=0 // pred_check_branch
    %52 = sbr.rel (0) target = $region21
  $region20: #{sgln_forward.9} parent=0 // pred_region
    _
  $region21: #{sgln_forward.9} parent=0 // pred_fallthru
    _

// kernel: sgln_forward.8
$region0: #{sgln_forward.8}
  #allocation0 [shape = 'u32[]', space=smem, size = 0x4, offset = 0x4, fixed_abs, tag = 'smem constant byte address 0x4 - core index']
  #allocation1 [shape = 'u32[72,128]{1,0:T(1,128)}', space=vmem, size = 0x9000, scoped, tag = 'internal scratch']
  %s0 = inlined_call_operand.vmem [shape: f32[48,32], index: 0, kind: input, shape index: {}]
  %s1 = inlined_call_operand.vmem [shape: f32[48,1], index: 1, kind: input, shape index: {}]
  %s2 = inlined_call_operand.vmem [shape: f32[48,32], index: 2, kind: input, shape index: {}]
  %s3 = inlined_call_operand.vmem [shape: f32[48,1], index: 3, kind: input, shape index: {}]
  %s4 = inlined_call_operand.vmem [shape: f32[48,32], index: 4, kind: input, shape index: {}]
  %s5 = inlined_call_operand.vmem [shape: f32[48,1], index: 5, kind: input, shape index: {}]
  %s6 = inlined_call_operand.vmem [shape: f32[4,32,16], index: 6, kind: input, shape index: {}]
  %s7 = inlined_call_operand.vmem [shape: f32[4,1,16], index: 7, kind: input, shape index: {}]
  %s8 = inlined_call_operand.vmem [shape: f32[4,16,2], index: 8, kind: input, shape index: {}]
  %s9 = inlined_call_operand.vmem [shape: f32[4,1,2], index: 9, kind: input, shape index: {}]
  %s10 = inlined_call_operand.vmem [shape: f32[4,64,32], index: 10, kind: input, shape index: {}]
  %s11 = inlined_call_operand.vmem [shape: f32[4,1,32], index: 11, kind: input, shape index: {}]
  %s12 = inlined_call_operand.vmem [shape: f32[2,1,32], index: 12, kind: input, shape index: {}]
  %s13 = inlined_call_operand.vmem [shape: f32[2,1,32], index: 13, kind: input, shape index: {}]
  %s14 = inlined_call_operand.vmem [shape: f32[6,64], index: 14, kind: output, shape index: {}]
  %s15 = sld [smem:[#allocation0]]
  $region66: #{sgln_forward.8} parent=0
    _
  %s17 = ssub.s32 1, %s15
  %s18 = scalar_select 0, %s17, %s15
  // Predicated region
  $region2: #{sgln_forward.8} parent=0 // pred_check
    _
  $region3: #{sgln_forward.8} parent=0 // pred_check_branch
    %20 = sbr.rel (0) target = $region5
  $region4: #{sgln_forward.8} parent=0 // pred_region
    _
  $region5: #{sgln_forward.8} parent=0 // pred_fallthru
    _
  // Predicated region
  $region6: #{sgln_forward.8} parent=0 // pred_check
    _
  $region7: #{sgln_forward.8} parent=0 // pred_check_branch
    %22 = sbr.rel (0) target = $region9
  $region8: #{sgln_forward.8} parent=0 // pred_region
    _
  $region9: #{sgln_forward.8} parent=0 // pred_fallthru
    _
  // Predicated region
  $region10: #{sgln_forward.8} parent=0 // pred_check
    _
  $region11: #{sgln_forward.8} parent=0 // pred_check_branch
    %24 = sbr.rel (0) target = $region13
  $region12: #{sgln_forward.8} parent=0 // pred_region
    _
  $region13: #{sgln_forward.8} parent=0 // pred_fallthru
    _
  // Predicated region
  $region14: #{sgln_forward.8} parent=0 // pred_check
    _
  $region15: #{sgln_forward.8} parent=0 // pred_check_branch
    %26 = sbr.rel (0) target = $region17
  $region16: #{sgln_forward.8} parent=0 // pred_region
    _
  $region17: #{sgln_forward.8} parent=0 // pred_fallthru
    _
  // Predicated region
  $region18: #{sgln_forward.8} parent=0 // pred_check
    _
  $region19: #{sgln_forward.8} parent=0 // pred_check_branch
    %28 = sbr.rel (0) target = $region21
  $region20: #{sgln_forward.8} parent=0 // pred_region
    _
  $region21: #{sgln_forward.8} parent=0 // pred_fallthru
    _
  // Predicated region
  $region22: #{sgln_forward.8} parent=0 // pred_check
    _
  $region23: #{sgln_forward.8} parent=0 // pred_check_branch
    %30 = sbr.rel (0) target = $region25
  $region24: #{sgln_forward.8} parent=0 // pred_region
    _
  $region25: #{sgln_forward.8} parent=0 // pred_fallthru
    _
  // Predicated region
  $region26: #{sgln_forward.8} parent=0 // pred_check
    _
  $region27: #{sgln_forward.8} parent=0 // pred_check_branch
    %32 = sbr.rel (0) target = $region29
  $region28: #{sgln_forward.8} parent=0 // pred_region
    _
  $region29: #{sgln_forward.8} parent=0 // pred_fallthru
    _
  // Predicated region
  $region30: #{sgln_forward.8} parent=0 // pred_check
    _
  $region31: #{sgln_forward.8} parent=0 // pred_check_branch
    %34 = sbr.rel (0) target = $region33
  $region32: #{sgln_forward.8} parent=0 // pred_region
    _
  $region33: #{sgln_forward.8} parent=0 // pred_fallthru
    _
  // Predicated region
  $region34: #{sgln_forward.8} parent=0 // pred_check
    _
  $region35: #{sgln_forward.8} parent=0 // pred_check_branch
    %36 = sbr.rel (0) target = $region37
  $region36: #{sgln_forward.8} parent=0 // pred_region
    _
  $region37: #{sgln_forward.8} parent=0 // pred_fallthru
    _
  // Predicated region
  $region38: #{sgln_forward.8} parent=0 // pred_check
    _
  $region39: #{sgln_forward.8} parent=0 // pred_check_branch
    %38 = sbr.rel (0) target = $region41
  $region40: #{sgln_forward.8} parent=0 // pred_region
    _
  $region41: #{sgln_forward.8} parent=0 // pred_fallthru
    _
  // Predicated region
  $region42: #{sgln_forward.8} parent=0 // pred_check
    _
  $region43: #{sgln_forward.8} parent=0 // pred_check_branch
    %40 = sbr.rel (0) target = $region45
  $region44: #{sgln_forward.8} parent=0 // pred_region
    _
  $region45: #{sgln_forward.8} parent=0 // pred_fallthru
    _
  // Predicated region
  $region46: #{sgln_forward.8} parent=0 // pred_check
    _
  $region47: #{sgln_forward.8} parent=0 // pred_check_branch
    %42 = sbr.rel (0) target = $region49
  $region48: #{sgln_forward.8} parent=0 // pred_region
    _
  $region49: #{sgln_forward.8} parent=0 // pred_fallthru
    _
  // Predicated region
  $region50: #{sgln_forward.8} parent=0 // pred_check
    _
  $region51: #{sgln_forward.8} parent=0 // pred_check_branch
    %44 = sbr.rel (0) target = $region53
  $region52: #{sgln_forward.8} parent=0 // pred_region
    _
  $region53: #{sgln_forward.8} parent=0 // pred_fallthru
    _
  // Predicated region
  $region54: #{sgln_forward.8} parent=0 // pred_check
    _
  $region55: #{sgln_forward.8} parent=0 // pred_check_branch
    %46 = sbr.rel (0) target = $region57
  $region56: #{sgln_forward.8} parent=0 // pred_region
    _
  $region57: #{sgln_forward.8} parent=0 // pred_fallthru
    _
  %v47 = vld [vmem:[%s0] sm:$0xff]
  %v48 = vld [vmem:[%s0 + $0x8] sm:$0xff]
  %v49 = vld [vmem:[%s0 + $0x10] sm:$0xff]
  %v50 = vld [vmem:[%s0 + $0x18] sm:$0xff]
  %v51 = vld [vmem:[%s0 + $0x20] sm:$0xff]
  %v52 = vld [vmem:[%s0 + $0x28] sm:$0xff]
  %v53 = vld [vmem:[%s2] sm:$0xff]
  %v54 = vld [vmem:[%s2 + $0x8] sm:$0xff]
  %v55 = vld [vmem:[%s2 + $0x10] sm:$0xff]
  %v56 = vld [vmem:[%s2 + $0x18] sm:$0xff]
  %v57 = vld [vmem:[%s2 + $0x20] sm:$0xff]
  %v58 = vld [vmem:[%s2 + $0x28] sm:$0xff]
  %v59 = vld [vmem:[%s4] sm:$0xff]
  %v60 = vld [vmem:[%s4 + $0x8] sm:$0xff]
  %v61 = vld [vmem:[%s4 + $0x10] sm:$0xff]
  %v62 = vld [vmem:[%s4 + $0x18] sm:$0xff]
  %v63 = vld [vmem:[%s4 + $0x20] sm:$0xff]
  %v64 = vld [vmem:[%s4 + $0x28] sm:$0xff]
  %v65 = vld [vmem:[%s1] sm:$0xff]
  %v66 = vld [vmem:[%s1 + $0x8] sm:$0xff]
  %v67 = vld [vmem:[%s1 + $0x10] sm:$0xff]
  %v68 = vld [vmem:[%s1 + $0x18] sm:$0xff]
  %v69 = vld [vmem:[%s1 + $0x20] sm:$0xff]
  %v70 = vld [vmem:[%s1 + $0x28] sm:$0xff]
  %v71 = vld [vmem:[%s3] sm:$0xff]
  %v72 = vld [vmem:[%s3 + $0x8] sm:$0xff]
  %v73 = vld [vmem:[%s3 + $0x10] sm:$0xff]
  %v74 = vld [vmem:[%s3 + $0x18] sm:$0xff]
  %v75 = vld [vmem:[%s3 + $0x20] sm:$0xff]
  %v76 = vld [vmem:[%s3 + $0x28] sm:$0xff]
  %v77 = vld [vmem:[%s5] sm:$0xff]
  %v78 = vld [vmem:[%s5 + $0x8] sm:$0xff]
  %v79 = vld [vmem:[%s5 + $0x10] sm:$0xff]
  %v80 = vld [vmem:[%s5 + $0x18] sm:$0xff]
  %v81 = vld [vmem:[%s5 + $0x20] sm:$0xff]
  %v82 = vld [vmem:[%s5 + $0x28] sm:$0xff]
  %v83 = vld [vmem:[%s6] sm:$0xff]
  %v84 = vld [vmem:[%s6 + $0x8] sm:$0xff]
  %v85 = vld [vmem:[%s6 + $0x10] sm:$0xff]
  %v86 = vld [vmem:[%s6 + $0x18] sm:$0xff]
  %v87 = vld [vmem:[%s7] sm:$0x1]
  %v89 = vperm.slane %v87, 0
  %vm91 = vcmask 261120
  %v93 = vsel %vm91, %v47, 0
  %v96 = vsel %vm91, %v48, 0
  %v99 = vsel %vm91, %v49, 0
  %v102 = vsel %vm91, %v50, 0
  %v105 = vsel %vm91, %v51, 0
  %v108 = vsel %vm91, %v52, 0
  %110 = vmatpush.msra.mxu0 0.0
  %111 = vmatpush.msra.mxu0 0.0
  %112 = vmatpush.msra.mxu0 0.0
  %113 = vmatpush.msra.mxu0 0.0
  %114 = vmatpush.msra.mxu0 0.0
  %115 = vmatpush.msra.mxu0 0.0
  %116 = vmatpush.msra.mxu0 0.0
  %117 = vmatpush.msra.mxu0 0.0
  %118 = vmatpush.msra.mxu0 0.0
  %119 = vmatpush.msra.mxu0 0.0
  %120 = vmatpush.msra.mxu0 0.0
  %121 = vmatpush.msra.mxu0 0.0
  %122 = vmatpush.msra.mxu0 %v86
  %123 = vmatpush.msra.mxu0 %v85
  %124 = vmatpush.msra.mxu0 %v84
  %125 = vmatpush.msra.mxu0 %v83
  %126 = vmatmul.f32.gmra.mxu0 %v93
  %v127 = vpop.f32.mrf.mxu0
  %v128 = vadd.f32 %v89, %v127
  %129 = vmatmul.f32.gmra.mxu0 %v96
  %v130 = vpop.f32.mrf.mxu0
  %v131 = vadd.f32 %v89, %v130
  %132 = vmatmul.f32.gmra.mxu0 %v99
  %v133 = vpop.f32.mrf.mxu0
  %v134 = vadd.f32 %v89, %v133
  %135 = vmatmul.f32.gmra.mxu0 %v102
  %v136 = vpop.f32.mrf.mxu0
  %v137 = vadd.f32 %v89, %v136
  %138 = vmatmul.f32.gmra.mxu0 %v105
  %v139 = vpop.f32.mrf.mxu0
  %v140 = vadd.f32 %v89, %v139
  %141 = vmatmul.f32.gmra.mxu0 %v108
  %v142 = vpop.f32.mrf.mxu0
  %v143 = vadd.f32 %v89, %v142
  %144 = vdwg.mxu0
  %v145 = vmax.f32 %v128, 0.0
  %v146 = vmax.f32 %v131, 0.0
  %v147 = vmax.f32 %v134, 0.0
  %v148 = vmax.f32 %v137, 0.0
  %v149 = vmax.f32 %v140, 0.0
  %v150 = vmax.f32 %v143, 0.0
  %v151 = vld [vmem:[%s8] sm:$0xff]
  %v152 = vld [vmem:[%s8 + $0x8] sm:$0xff]
  %v153 = vld [vmem:[%s9] sm:$0x1]
  %v155 = vperm.slane %v153, 0
  %vm157 = vcmask 130048
  %v159 = vsel %vm157, %v145, 0
  %v162 = vsel %vm157, %v146, 0
  %v165 = vsel %vm157, %v147, 0
  %v168 = vsel %vm157, %v148, 0
  %v171 = vsel %vm157, %v149, 0
  %v174 = vsel %vm157, %v150, 0
  %176 = vmatpush.msra.mxu0 0.0
  %177 = vmatpush.msra.mxu0 0.0
  %178 = vmatpush.msra.mxu0 0.0
  %179 = vmatpush.msra.mxu0 0.0
  %180 = vmatpush.msra.mxu0 0.0
  %181 = vmatpush.msra.mxu0 0.0
  %182 = vmatpush.msra.mxu0 0.0
  %183 = vmatpush.msra.mxu0 0.0
  %184 = vmatpush.msra.mxu0 0.0
  %185 = vmatpush.msra.mxu0 0.0
  %186 = vmatpush.msra.mxu0 0.0
  %187 = vmatpush.msra.mxu0 0.0
  %188 = vmatpush.msra.mxu0 0.0
  %189 = vmatpush.msra.mxu0 0.0
  %190 = vmatpush.msra.mxu0 %v152
  %191 = vmatpush.msra.mxu0 %v151
  %192 = vmatmul.f32.gmra.mxu0 %v159
  %v193 = vpop.f32.mrf.mxu0
  %v194 = vadd.f32 %v155, %v193
  %195 = vmatmul.f32.gmra.mxu0 %v162
  %v196 = vpop.f32.mrf.mxu0
  %v197 = vadd.f32 %v155, %v196
  %198 = vmatmul.f32.gmra.mxu0 %v165
  %v199 = vpop.f32.mrf.mxu0
  %v200 = vadd.f32 %v155, %v199
  %201 = vmatmul.f32.gmra.mxu0 %v168
  %v202 = vpop.f32.mrf.mxu0
  %v203 = vadd.f32 %v155, %v202
  %204 = vmatmul.f32.gmra.mxu0 %v171
  %v205 = vpop.f32.mrf.mxu0
  %v206 = vadd.f32 %v155, %v205
  %207 = vmatmul.f32.gmra.mxu0 %v174
  %v208 = vpop.f32.mrf.mxu0
  %v209 = vadd.f32 %v155, %v208
  %210 = vdwg.mxu0
  %s211 = scalar_lea.vmem %s6, 32
  %v212 = vld [vmem:[%s211] sm:$0xff]
  %v213 = vld [vmem:[%s211 + $0x8] sm:$0xff]
  %v214 = vld [vmem:[%s211 + $0x10] sm:$0xff]
  %v215 = vld [vmem:[%s211 + $0x18] sm:$0xff]
  %s216 = scalar_lea.vmem %s7, 1
  %v217 = vld [vmem:[%s216] sm:$0x1]
  %v219 = vperm.slane %v217, 0
  %v222 = vsel %vm91, %v59, 0
  %v225 = vsel %vm91, %v60, 0
  %v228 = vsel %vm91, %v61, 0
  %v231 = vsel %vm91, %v62, 0
  %v234 = vsel %vm91, %v63, 0
  %v237 = vsel %vm91, %v64, 0
  %239 = vmatpush.msra.mxu0 0.0
  %240 = vmatpush.msra.mxu0 0.0
  %241 = vmatpush.msra.mxu0 0.0
  %242 = vmatpush.msra.mxu0 0.0
  %243 = vmatpush.msra.mxu0 0.0
  %244 = vmatpush.msra.mxu0 0.0
  %245 = vmatpush.msra.mxu0 0.0
  %246 = vmatpush.msra.mxu0 0.0
  %247 = vmatpush.msra.mxu0 0.0
  %248 = vmatpush.msra.mxu0 0.0
  %249 = vmatpush.msra.mxu0 0.0
  %250 = vmatpush.msra.mxu0 0.0
  %251 = vmatpush.msra.mxu0 %v215
  %252 = vmatpush.msra.mxu0 %v214
  %253 = vmatpush.msra.mxu0 %v213
  %254 = vmatpush.msra.mxu0 %v212
  %255 = vmatmul.f32.gmra.mxu0 %v222
  %v256 = vpop.f32.mrf.mxu0
  %v257 = vadd.f32 %v219, %v256
  %258 = vmatmul.f32.gmra.mxu0 %v225
  %v259 = vpop.f32.mrf.mxu0
  %v260 = vadd.f32 %v219, %v259
  %261 = vmatmul.f32.gmra.mxu0 %v228
  %v262 = vpop.f32.mrf.mxu0
  %v263 = vadd.f32 %v219, %v262
  %264 = vmatmul.f32.gmra.mxu0 %v231
  %v265 = vpop.f32.mrf.mxu0
  %v266 = vadd.f32 %v219, %v265
  %267 = vmatmul.f32.gmra.mxu0 %v234
  %v268 = vpop.f32.mrf.mxu0
  %v269 = vadd.f32 %v219, %v268
  %270 = vmatmul.f32.gmra.mxu0 %v237
  %v271 = vpop.f32.mrf.mxu0
  %v272 = vadd.f32 %v219, %v271
  %273 = vdwg.mxu0
  %v274 = vmax.f32 %v257, 0.0
  %v275 = vmax.f32 %v260, 0.0
  %v276 = vmax.f32 %v263, 0.0
  %v277 = vmax.f32 %v266, 0.0
  %v278 = vmax.f32 %v269, 0.0
  %v279 = vmax.f32 %v272, 0.0
  %s280 = scalar_lea.vmem %s8, 16
  %v281 = vld [vmem:[%s280] sm:$0xff]
  %v282 = vld [vmem:[%s280 + $0x8] sm:$0xff]
  %s283 = scalar_lea.vmem %s9, 1
  %v284 = vld [vmem:[%s283] sm:$0x1]
  %v286 = vperm.slane %v284, 0
  %v289 = vsel %vm157, %v274, 0
  %v292 = vsel %vm157, %v275, 0
  %v295 = vsel %vm157, %v276, 0
  %v298 = vsel %vm157, %v277, 0
  %v301 = vsel %vm157, %v278, 0
  %v304 = vsel %vm157, %v279, 0
  %306 = vmatpush.msra.mxu0 0.0
  %307 = vmatpush.msra.mxu0 0.0
  %308 = vmatpush.msra.mxu0 0.0
  %309 = vmatpush.msra.mxu0 0.0
  %310 = vmatpush.msra.mxu0 0.0
  %311 = vmatpush.msra.mxu0 0.0
  %312 = vmatpush.msra.mxu0 0.0
  %313 = vmatpush.msra.mxu0 0.0
  %314 = vmatpush.msra.mxu0 0.0
  %315 = vmatpush.msra.mxu0 0.0
  %316 = vmatpush.msra.mxu0 0.0
  %317 = vmatpush.msra.mxu0 0.0
  %318 = vmatpush.msra.mxu0 0.0
  %319 = vmatpush.msra.mxu0 0.0
  %320 = vmatpush.msra.mxu0 %v282
  %321 = vmatpush.msra.mxu0 %v281
  %322 = vmatmul.f32.gmra.mxu0 %v289
  %v323 = vpop.f32.mrf.mxu0
  %v324 = vadd.f32 %v286, %v323
  %325 = vmatmul.f32.gmra.mxu0 %v292
  %v326 = vpop.f32.mrf.mxu0
  %v327 = vadd.f32 %v286, %v326
  %328 = vmatmul.f32.gmra.mxu0 %v295
  %v329 = vpop.f32.mrf.mxu0
  %v330 = vadd.f32 %v286, %v329
  %331 = vmatmul.f32.gmra.mxu0 %v298
  %v332 = vpop.f32.mrf.mxu0
  %v333 = vadd.f32 %v286, %v332
  %334 = vmatmul.f32.gmra.mxu0 %v301
  %v335 = vpop.f32.mrf.mxu0
  %v336 = vadd.f32 %v286, %v335
  %337 = vmatmul.f32.gmra.mxu0 %v304
  %v338 = vpop.f32.mrf.mxu0
  %v339 = vadd.f32 %v286, %v338
  %340 = vdwg.mxu0
  %s341 = scalar_lea.vmem %s6, 64
  %v342 = vld [vmem:[%s341] sm:$0xff]
  %v343 = vld [vmem:[%s341 + $0x8] sm:$0xff]
  %v344 = vld [vmem:[%s341 + $0x10] sm:$0xff]
  %v345 = vld [vmem:[%s341 + $0x18] sm:$0xff]
  %s346 = scalar_lea.vmem %s7, 2
  %v347 = vld [vmem:[%s346] sm:$0x1]
  %v349 = vperm.slane %v347, 0
  %v352 = vsel %vm91, %v53, 0
  %v355 = vsel %vm91, %v54, 0
  %v358 = vsel %vm91, %v55, 0
  %v361 = vsel %vm91, %v56, 0
  %v364 = vsel %vm91, %v57, 0
  %v367 = vsel %vm91, %v58, 0
  %369 = vmatpush.msra.mxu0 0.0
  %370 = vmatpush.msra.mxu0 0.0
  %371 = vmatpush.msra.mxu0 0.0
  %372 = vmatpush.msra.mxu0 0.0
  %373 = vmatpush.msra.mxu0 0.0
  %374 = vmatpush.msra.mxu0 0.0
  %375 = vmatpush.msra.mxu0 0.0
  %376 = vmatpush.msra.mxu0 0.0
  %377 = vmatpush.msra.mxu0 0.0
  %378 = vmatpush.msra.mxu0 0.0
  %379 = vmatpush.msra.mxu0 0.0
  %380 = vmatpush.msra.mxu0 0.0
  %381 = vmatpush.msra.mxu0 %v345
  %382 = vmatpush.msra.mxu0 %v344
  %383 = vmatpush.msra.mxu0 %v343
  %384 = vmatpush.msra.mxu0 %v342
  %385 = vmatmul.f32.gmra.mxu0 %v352
  %v386 = vpop.f32.mrf.mxu0
  %v387 = vadd.f32 %v349, %v386
  %388 = vmatmul.f32.gmra.mxu0 %v355
  %v389 = vpop.f32.mrf.mxu0
  %v390 = vadd.f32 %v349, %v389
  %391 = vmatmul.f32.gmra.mxu0 %v358
  %v392 = vpop.f32.mrf.mxu0
  %v393 = vadd.f32 %v349, %v392
  %394 = vmatmul.f32.gmra.mxu0 %v361
  %v395 = vpop.f32.mrf.mxu0
  %v396 = vadd.f32 %v349, %v395
  %397 = vmatmul.f32.gmra.mxu0 %v364
  %v398 = vpop.f32.mrf.mxu0
  %v399 = vadd.f32 %v349, %v398
  %400 = vmatmul.f32.gmra.mxu0 %v367
  %v401 = vpop.f32.mrf.mxu0
  %v402 = vadd.f32 %v349, %v401
  %403 = vdwg.mxu0
  %v404 = vmax.f32 %v387, 0.0
  %v405 = vmax.f32 %v390, 0.0
  %v406 = vmax.f32 %v393, 0.0
  %v407 = vmax.f32 %v396, 0.0
  %v408 = vmax.f32 %v399, 0.0
  %v409 = vmax.f32 %v402, 0.0
  %s410 = scalar_lea.vmem %s8, 32
  %v411 = vld [vmem:[%s410] sm:$0xff]
  %v412 = vld [vmem:[%s410 + $0x8] sm:$0xff]
  %s413 = scalar_lea.vmem %s9, 2
  %v414 = vld [vmem:[%s413] sm:$0x1]
  %v416 = vperm.slane %v414, 0
  %v419 = vsel %vm157, %v404, 0
  %v422 = vsel %vm157, %v405, 0
  %v425 = vsel %vm157, %v406, 0
  %v428 = vsel %vm157, %v407, 0
  %v431 = vsel %vm157, %v408, 0
  %v434 = vsel %vm157, %v409, 0
  %436 = vmatpush.msra.mxu0 0.0
  %437 = vmatpush.msra.mxu0 0.0
  %438 = vmatpush.msra.mxu0 0.0
  %439 = vmatpush.msra.mxu0 0.0
  %440 = vmatpush.msra.mxu0 0.0
  %441 = vmatpush.msra.mxu0 0.0
  %442 = vmatpush.msra.mxu0 0.0
  %443 = vmatpush.msra.mxu0 0.0
  %444 = vmatpush.msra.mxu0 0.0
  %445 = vmatpush.msra.mxu0 0.0
  %446 = vmatpush.msra.mxu0 0.0
  %447 = vmatpush.msra.mxu0 0.0
  %448 = vmatpush.msra.mxu0 0.0
  %449 = vmatpush.msra.mxu0 0.0
  %450 = vmatpush.msra.mxu0 %v412
  %451 = vmatpush.msra.mxu0 %v411
  %452 = vmatmul.f32.gmra.mxu0 %v419
  %v453 = vpop.f32.mrf.mxu0
  %v454 = vadd.f32 %v416, %v453
  %455 = vmatmul.f32.gmra.mxu0 %v422
  %v456 = vpop.f32.mrf.mxu0
  %v457 = vadd.f32 %v416, %v456
  %458 = vmatmul.f32.gmra.mxu0 %v425
  %v459 = vpop.f32.mrf.mxu0
  %v460 = vadd.f32 %v416, %v459
  %461 = vmatmul.f32.gmra.mxu0 %v428
  %v462 = vpop.f32.mrf.mxu0
  %v463 = vadd.f32 %v416, %v462
  %464 = vmatmul.f32.gmra.mxu0 %v431
  %v465 = vpop.f32.mrf.mxu0
  %v466 = vadd.f32 %v416, %v465
  %467 = vmatmul.f32.gmra.mxu0 %v434
  %v468 = vpop.f32.mrf.mxu0
  %v469 = vadd.f32 %v416, %v468
  %470 = vdwg.mxu0
  %s471 = scalar_lea.vmem %s6, 96
  %v472 = vld [vmem:[%s471] sm:$0xff]
  %v473 = vld [vmem:[%s471 + $0x8] sm:$0xff]
  %v474 = vld [vmem:[%s471 + $0x10] sm:$0xff]
  %v475 = vld [vmem:[%s471 + $0x18] sm:$0xff]
  %s476 = scalar_lea.vmem %s7, 3
  %v477 = vld [vmem:[%s476] sm:$0x1]
  %v479 = vperm.slane %v477, 0
  %481 = vmatpush.msra.mxu0 0.0
  %482 = vmatpush.msra.mxu0 0.0
  %483 = vmatpush.msra.mxu0 0.0
  %484 = vmatpush.msra.mxu0 0.0
  %485 = vmatpush.msra.mxu0 0.0
  %486 = vmatpush.msra.mxu0 0.0
  %487 = vmatpush.msra.mxu0 0.0
  %488 = vmatpush.msra.mxu0 0.0
  %489 = vmatpush.msra.mxu0 0.0
  %490 = vmatpush.msra.mxu0 0.0
  %491 = vmatpush.msra.mxu0 0.0
  %492 = vmatpush.msra.mxu0 0.0
  %493 = vmatpush.msra.mxu0 %v475
  %494 = vmatpush.msra.mxu0 %v474
  %495 = vmatpush.msra.mxu0 %v473
  %496 = vmatpush.msra.mxu0 %v472
  %497 = vmatmul.f32.gmra.mxu0 %v222
  %v498 = vpop.f32.mrf.mxu0
  %v499 = vadd.f32 %v479, %v498
  %500 = vmatmul.f32.gmra.mxu0 %v225
  %v501 = vpop.f32.mrf.mxu0
  %v502 = vadd.f32 %v479, %v501
  %503 = vmatmul.f32.gmra.mxu0 %v228
  %v504 = vpop.f32.mrf.mxu0
  %v505 = vadd.f32 %v479, %v504
  %506 = vmatmul.f32.gmra.mxu0 %v231
  %v507 = vpop.f32.mrf.mxu0
  %v508 = vadd.f32 %v479, %v507
  %509 = vmatmul.f32.gmra.mxu0 %v234
  %v510 = vpop.f32.mrf.mxu0
  %v511 = vadd.f32 %v479, %v510
  %512 = vmatmul.f32.gmra.mxu0 %v237
  %v513 = vpop.f32.mrf.mxu0
  %v514 = vadd.f32 %v479, %v513
  %515 = vdwg.mxu0
  %v516 = vmax.f32 %v499, 0.0
  %v517 = vmax.f32 %v502, 0.0
  %v518 = vmax.f32 %v505, 0.0
  %v519 = vmax.f32 %v508, 0.0
  %v520 = vmax.f32 %v511, 0.0
  %v521 = vmax.f32 %v514, 0.0
  %s522 = scalar_lea.vmem %s8, 48
  %v523 = vld [vmem:[%s522] sm:$0xff]
  %v524 = vld [vmem:[%s522 + $0x8] sm:$0xff]
  %s525 = scalar_lea.vmem %s9, 3
  %v526 = vld [vmem:[%s525] sm:$0x1]
  %v528 = vperm.slane %v526, 0
  %v531 = vsel %vm157, %v516, 0
  %v534 = vsel %vm157, %v517, 0
  %v537 = vsel %vm157, %v518, 0
  %v540 = vsel %vm157, %v519, 0
  %v543 = vsel %vm157, %v520, 0
  %v546 = vsel %vm157, %v521, 0
  %548 = vmatpush.msra.mxu0 0.0
  %549 = vmatpush.msra.mxu0 0.0
  %550 = vmatpush.msra.mxu0 0.0
  %551 = vmatpush.msra.mxu0 0.0
  %552 = vmatpush.msra.mxu0 0.0
  %553 = vmatpush.msra.mxu0 0.0
  %554 = vmatpush.msra.mxu0 0.0
  %555 = vmatpush.msra.mxu0 0.0
  %556 = vmatpush.msra.mxu0 0.0
  %557 = vmatpush.msra.mxu0 0.0
  %558 = vmatpush.msra.mxu0 0.0
  %559 = vmatpush.msra.mxu0 0.0
  %560 = vmatpush.msra.mxu0 0.0
  %561 = vmatpush.msra.mxu0 0.0
  %562 = vmatpush.msra.mxu0 %v524
  %563 = vmatpush.msra.mxu0 %v523
  %564 = vmatmul.f32.gmra.mxu0 %v531
  %v565 = vpop.f32.mrf.mxu0
  %v566 = vadd.f32 %v528, %v565
  %567 = vmatmul.f32.gmra.mxu0 %v534
  %v568 = vpop.f32.mrf.mxu0
  %v569 = vadd.f32 %v528, %v568
  %570 = vmatmul.f32.gmra.mxu0 %v537
  %v571 = vpop.f32.mrf.mxu0
  %v572 = vadd.f32 %v528, %v571
  %573 = vmatmul.f32.gmra.mxu0 %v540
  %v574 = vpop.f32.mrf.mxu0
  %v575 = vadd.f32 %v528, %v574
  %576 = vmatmul.f32.gmra.mxu0 %v543
  %v577 = vpop.f32.mrf.mxu0
  %v578 = vadd.f32 %v528, %v577
  %579 = vmatmul.f32.gmra.mxu0 %v546
  %v580 = vpop.f32.mrf.mxu0
  %v581 = vadd.f32 %v528, %v580
  %582 = vdwg.mxu0
  %v583 = vld [vmem:[%s10] sm:$0xff]
  %v584 = vld [vmem:[%s10 + $0x8] sm:$0xff]
  %v585 = vld [vmem:[%s10 + $0x10] sm:$0xff]
  %v586 = vld [vmem:[%s10 + $0x18] sm:$0xff]
  %v587 = vld [vmem:[%s10 + $0x20] sm:$0xff]
  %v588 = vld [vmem:[%s10 + $0x28] sm:$0xff]
  %v589 = vld [vmem:[%s10 + $0x30] sm:$0xff]
  %v590 = vld [vmem:[%s10 + $0x38] sm:$0xff]
  %s591 = scalar_lea.vmem %s10, 64
  %v592 = vld [vmem:[%s591] sm:$0xff]
  %v593 = vld [vmem:[%s591 + $0x8] sm:$0xff]
  %v594 = vld [vmem:[%s591 + $0x10] sm:$0xff]
  %v595 = vld [vmem:[%s591 + $0x18] sm:$0xff]
  %v596 = vld [vmem:[%s591 + $0x20] sm:$0xff]
  %v597 = vld [vmem:[%s591 + $0x28] sm:$0xff]
  %v598 = vld [vmem:[%s591 + $0x30] sm:$0xff]
  %v599 = vld [vmem:[%s591 + $0x38] sm:$0xff]
  %s600 = scalar_lea.vmem %s10, 128
  %v601 = vld [vmem:[%s600] sm:$0xff]
  %v602 = vld [vmem:[%s600 + $0x8] sm:$0xff]
  %v603 = vld [vmem:[%s600 + $0x10] sm:$0xff]
  %v604 = vld [vmem:[%s600 + $0x18] sm:$0xff]
  %v605 = vld [vmem:[%s600 + $0x20] sm:$0xff]
  %v606 = vld [vmem:[%s600 + $0x28] sm:$0xff]
  %v607 = vld [vmem:[%s600 + $0x30] sm:$0xff]
  %v608 = vld [vmem:[%s600 + $0x38] sm:$0xff]
  %s609 = scalar_lea.vmem %s10, 192
  %v610 = vld [vmem:[%s609] sm:$0xff]
  %v611 = vld [vmem:[%s609 + $0x8] sm:$0xff]
  %v612 = vld [vmem:[%s609 + $0x10] sm:$0xff]
  %v613 = vld [vmem:[%s609 + $0x18] sm:$0xff]
  %v614 = vld [vmem:[%s609 + $0x20] sm:$0xff]
  %v615 = vld [vmem:[%s609 + $0x28] sm:$0xff]
  %v616 = vld [vmem:[%s609 + $0x30] sm:$0xff]
  %v617 = vld [vmem:[%s609 + $0x38] sm:$0xff]
  %v618 = vld [vmem:[%s11] sm:$0x1]
  %s619 = scalar_lea.vmem %s11, 1
  %v620 = vld [vmem:[%s619] sm:$0x1]
  %s621 = scalar_lea.vmem %s11, 2
  %v622 = vld [vmem:[%s621] sm:$0x1]
  %s623 = scalar_lea.vmem %s11, 3
  %v624 = vld [vmem:[%s623] sm:$0x1]
  %v625 = vld [vmem:[%s12] sm:$0x1]
  %s626 = scalar_lea.vmem %s12, 1
  %v627 = vld [vmem:[%s626] sm:$0x1]
  %v628 = vld [vmem:[%s13] sm:$0x1]
  %s629 = scalar_lea.vmem %s13, 1
  %v630 = vld [vmem:[%s629] sm:$0x1]
  %v631 = vmul.f32 %v65, -1e+09
  %633 = vset.pattern.permute.xlu0 0
  %634 = vperm.xlu0 %633, %v631
  %v635 = vpop.permute.xlu0 %634
  %v637 = vadd.f32 %v194, %v635
  %vm638 = vcmask 15360
  %v639 = vsel %vm638, %v637, -inf
  %v640 = vrot.slane %v639, 4
  %v641 = vmax.f32 %v639, %v640
  %v642 = vrot.slane %v641, 2
  %v643 = vmax.f32 %v641, %v642
  %v644 = vrot.slane %v643, 1
  %v645 = vmax.f32 %v643, %v644
  %v646 = vsub.f32 %v637, %v645
  %v647 = vmul.f32 %v646, 1.442695
  %v648 = vpow.pop %v647
  %v649 = vsel %vm638, %v648, 0.0
  %v650 = vrot.slane %v649, 4
  %v651 = vadd.f32 %v649, %v650
  %v652 = vrot.slane %v651, 2
  %v653 = vadd.f32 %v651, %v652
  %v654 = vrot.slane %v653, 1
  %v655 = vadd.f32 %v653, %v654
  %v656 = vrcp.pop %v655
  %v657 = vmul.f32 %v655, %v656
  %v658 = vsub.f32 1.0, %v657
  %v659 = vmul.f32 %v656, %v658
  %v660 = vadd.f32 %v656, %v659
  %vm661 = vweird.f32 %v655
  %vm662 = vweird.f32 %v656
  %vm663 = vmor %vm661, %vm662
  %v664 = vsel %vm663, %v656, %v660
  %v665 = vand.u32 2147483647, %v655
  %vm666 = vcmp.eq.f32.partialorder %v665, 8.507059e+37
  %v667 = vand.u32 %v655, 2147483648
  %v668 = vor.u32 1.1754944e-38, %v667
  %v669 = vsel %vm666, %v668, %v664
  %v670 = vmul.f32 %v648, %v669
  %672 = vset.pattern.permute.xlu0 0
  %673 = vperm.xlu0 %672, %v670
  %v674 = vpop.permute.xlu0 %673
  %v676 = vmul.f32 %v674, %v47
  %v677 = vsel %vm91, %v676, 0.0
  %v678 = vrot.slane %v677, 4
  %v679 = vadd.f32 %v677, %v678
  %v680 = vrot.slane %v679, 2
  %v681 = vadd.f32 %v679, %v680
  %v682 = vrot.slane %v681, 1
  %v683 = vadd.f32 %v681, %v682
  %v685 = vsel %vm91, %v683, 0
  %687 = vmatpush.msra.mxu0 0.0
  %688 = vmatpush.msra.mxu0 0.0
  %689 = vmatpush.msra.mxu0 0.0
  %690 = vmatpush.msra.mxu0 0.0
  %691 = vmatpush.msra.mxu0 0.0
  %692 = vmatpush.msra.mxu0 0.0
  %693 = vmatpush.msra.mxu0 0.0
  %694 = vmatpush.msra.mxu0 0.0
  %695 = vmatpush.msra.mxu0 0.0
  %696 = vmatpush.msra.mxu0 0.0
  %697 = vmatpush.msra.mxu0 0.0
  %698 = vmatpush.msra.mxu0 0.0
  %699 = vmatpush.msra.mxu0 %v586
  %700 = vmatpush.msra.mxu0 %v585
  %701 = vmatpush.msra.mxu0 %v584
  %702 = vmatpush.msra.mxu0 %v583
  %703 = vmatmul.f32.gmra.mxu0 %v685
  %v704 = vpop.f32.mrf.mxu0
  %v705 = vadd.f32 0.0, %v704
  %706 = vdwg.mxu0
  %v707 = vadd.f32 %v618, %v705
  %708 = vset.pattern.permute.xlu0 1
  %709 = vperm.xlu0 %708, %v670
  %v710 = vpop.permute.xlu0 %709
  %v712 = vmul.f32 %v710, %v47
  %v713 = vsel %vm91, %v712, 0.0
  %v714 = vrot.slane %v713, 4
  %v715 = vadd.f32 %v713, %v714
  %v716 = vrot.slane %v715, 2
  %v717 = vadd.f32 %v715, %v716
  %v718 = vrot.slane %v717, 1
  %v719 = vadd.f32 %v717, %v718
  %v721 = vsel %vm91, %v719, 0
  %723 = vmatpush.msra.mxu0 0.0
  %724 = vmatpush.msra.mxu0 0.0
  %725 = vmatpush.msra.mxu0 0.0
  %726 = vmatpush.msra.mxu0 0.0
  %727 = vmatpush.msra.mxu0 0.0
  %728 = vmatpush.msra.mxu0 0.0
  %729 = vmatpush.msra.mxu0 0.0
  %730 = vmatpush.msra.mxu0 0.0
  %731 = vmatpush.msra.mxu0 0.0
  %732 = vmatpush.msra.mxu0 0.0
  %733 = vmatpush.msra.mxu0 0.0
  %734 = vmatpush.msra.mxu0 0.0
  %735 = vmatpush.msra.mxu0 %v590
  %736 = vmatpush.msra.mxu0 %v589
  %737 = vmatpush.msra.mxu0 %v588
  %738 = vmatpush.msra.mxu0 %v587
  %739 = vmatmul.f32.gmra.mxu0 %v721
  %v740 = vpop.f32.mrf.mxu0
  %v741 = vadd.f32 0.0, %v740
  %742 = vdwg.mxu0
  %v743 = vadd.f32 %v707, %v741
  %v744 = vmul.f32 %v77, -1e+09
  %746 = vset.pattern.permute.xlu0 0
  %747 = vperm.xlu0 %746, %v744
  %v748 = vpop.permute.xlu0 %747
  %v750 = vadd.f32 %v324, %v748
  %v751 = vsel %vm638, %v750, -inf
  %v752 = vrot.slane %v751, 4
  %v753 = vmax.f32 %v751, %v752
  %v754 = vrot.slane %v753, 2
  %v755 = vmax.f32 %v753, %v754
  %v756 = vrot.slane %v755, 1
  %v757 = vmax.f32 %v755, %v756
  %v758 = vsub.f32 %v750, %v757
  %v759 = vmul.f32 %v758, 1.442695
  %v760 = vpow.pop %v759
  %v761 = vsel %vm638, %v760, 0.0
  %v762 = vrot.slane %v761, 4
  %v763 = vadd.f32 %v761, %v762
  %v764 = vrot.slane %v763, 2
  %v765 = vadd.f32 %v763, %v764
  %v766 = vrot.slane %v765, 1
  %v767 = vadd.f32 %v765, %v766
  %v768 = vrcp.pop %v767
  %v769 = vmul.f32 %v767, %v768
  %v770 = vsub.f32 1.0, %v769
  %v771 = vmul.f32 %v768, %v770
  %v772 = vadd.f32 %v768, %v771
  %vm773 = vweird.f32 %v767
  %vm774 = vweird.f32 %v768
  %vm775 = vmor %vm773, %vm774
  %v776 = vsel %vm775, %v768, %v772
  %v777 = vand.u32 2147483647, %v767
  %vm778 = vcmp.eq.f32.partialorder %v777, 8.507059e+37
  %v779 = vand.u32 %v767, 2147483648
  %v780 = vor.u32 1.1754944e-38, %v779
  %v781 = vsel %vm778, %v780, %v776
  %v782 = vmul.f32 %v760, %v781
  %784 = vset.pattern.permute.xlu0 0
  %785 = vperm.xlu0 %784, %v782
  %v786 = vpop.permute.xlu0 %785
  %v788 = vmul.f32 %v786, %v59
  %v789 = vsel %vm91, %v788, 0.0
  %v790 = vrot.slane %v789, 4
  %v791 = vadd.f32 %v789, %v790
  %v792 = vrot.slane %v791, 2
  %v793 = vadd.f32 %v791, %v792
  %v794 = vrot.slane %v793, 1
  %v795 = vadd.f32 %v793, %v794
  %v797 = vsel %vm91, %v795, 0
  %799 = vmatpush.msra.mxu0 0.0
  %800 = vmatpush.msra.mxu0 0.0
  %801 = vmatpush.msra.mxu0 0.0
  %802 = vmatpush.msra.mxu0 0.0
  %803 = vmatpush.msra.mxu0 0.0
  %804 = vmatpush.msra.mxu0 0.0
  %805 = vmatpush.msra.mxu0 0.0
  %806 = vmatpush.msra.mxu0 0.0
  %807 = vmatpush.msra.mxu0 0.0
  %808 = vmatpush.msra.mxu0 0.0
  %809 = vmatpush.msra.mxu0 0.0
  %810 = vmatpush.msra.mxu0 0.0
  %811 = vmatpush.msra.mxu0 %v595
  %812 = vmatpush.msra.mxu0 %v594
  %813 = vmatpush.msra.mxu0 %v593
  %814 = vmatpush.msra.mxu0 %v592
  %815 = vmatmul.f32.gmra.mxu0 %v797
  %v816 = vpop.f32.mrf.mxu0
  %v817 = vadd.f32 0.0, %v816
  %818 = vdwg.mxu0
  %v819 = vadd.f32 %v620, %v817
  %820 = vset.pattern.permute.xlu0 1
  %821 = vperm.xlu0 %820, %v782
  %v822 = vpop.permute.xlu0 %821
  %v824 = vmul.f32 %v822, %v59
  %v825 = vsel %vm91, %v824, 0.0
  %v826 = vrot.slane %v825, 4
  %v827 = vadd.f32 %v825, %v826
  %v828 = vrot.slane %v827, 2
  %v829 = vadd.f32 %v827, %v828
  %v830 = vrot.slane %v829, 1
  %v831 = vadd.f32 %v829, %v830
  %v833 = vsel %vm91, %v831, 0
  %835 = vmatpush.msra.mxu0 0.0
  %836 = vmatpush.msra.mxu0 0.0
  %837 = vmatpush.msra.mxu0 0.0
  %838 = vmatpush.msra.mxu0 0.0
  %839 = vmatpush.msra.mxu0 0.0
  %840 = vmatpush.msra.mxu0 0.0
  %841 = vmatpush.msra.mxu0 0.0
  %842 = vmatpush.msra.mxu0 0.0
  %843 = vmatpush.msra.mxu0 0.0
  %844 = vmatpush.msra.mxu0 0.0
  %845 = vmatpush.msra.mxu0 0.0
  %846 = vmatpush.msra.mxu0 0.0
  %847 = vmatpush.msra.mxu0 %v599
  %848 = vmatpush.msra.mxu0 %v598
  %849 = vmatpush.msra.mxu0 %v597
  %850 = vmatpush.msra.mxu0 %v596
  %851 = vmatmul.f32.gmra.mxu0 %v833
  %v852 = vpop.f32.mrf.mxu0
  %v853 = vadd.f32 0.0, %v852
  %854 = vdwg.mxu0
  %v855 = vadd.f32 %v819, %v853
  %v856 = vadd.f32 %v743, %v855
  %v857 = vmul.f32 %v71, -1e+09
  %859 = vset.pattern.permute.xlu0 0
  %860 = vperm.xlu0 %859, %v857
  %v861 = vpop.permute.xlu0 %860
  %v863 = vadd.f32 %v454, %v861
  %v864 = vsel %vm638, %v863, -inf
  %v865 = vrot.slane %v864, 4
  %v866 = vmax.f32 %v864, %v865
  %v867 = vrot.slane %v866, 2
  %v868 = vmax.f32 %v866, %v867
  %v869 = vrot.slane %v868, 1
  %v870 = vmax.f32 %v868, %v869
  %v871 = vsub.f32 %v863, %v870
  %v872 = vmul.f32 %v871, 1.442695
  %v873 = vpow.pop %v872
  %v874 = vsel %vm638, %v873, 0.0
  %v875 = vrot.slane %v874, 4
  %v876 = vadd.f32 %v874, %v875
  %v877 = vrot.slane %v876, 2
  %v878 = vadd.f32 %v876, %v877
  %v879 = vrot.slane %v878, 1
  %v880 = vadd.f32 %v878, %v879
  %v881 = vrcp.pop %v880
  %v882 = vmul.f32 %v880, %v881
  %v883 = vsub.f32 1.0, %v882
  %v884 = vmul.f32 %v881, %v883
  %v885 = vadd.f32 %v881, %v884
  %vm886 = vweird.f32 %v880
  %vm887 = vweird.f32 %v881
  %vm888 = vmor %vm886, %vm887
  %v889 = vsel %vm888, %v881, %v885
  %v890 = vand.u32 2147483647, %v880
  %vm891 = vcmp.eq.f32.partialorder %v890, 8.507059e+37
  %v892 = vand.u32 %v880, 2147483648
  %v893 = vor.u32 1.1754944e-38, %v892
  %v894 = vsel %vm891, %v893, %v889
  %v895 = vmul.f32 %v873, %v894
  %897 = vset.pattern.permute.xlu0 0
  %898 = vperm.xlu0 %897, %v895
  %v899 = vpop.permute.xlu0 %898
  %v901 = vmul.f32 %v899, %v53
  %v902 = vsel %vm91, %v901, 0.0
  %v903 = vrot.slane %v902, 4
  %v904 = vadd.f32 %v902, %v903
  %v905 = vrot.slane %v904, 2
  %v906 = vadd.f32 %v904, %v905
  %v907 = vrot.slane %v906, 1
  %v908 = vadd.f32 %v906, %v907
  %v910 = vsel %vm91, %v908, 0
  %912 = vmatpush.msra.mxu0 0.0
  %913 = vmatpush.msra.mxu0 0.0
  %914 = vmatpush.msra.mxu0 0.0
  %915 = vmatpush.msra.mxu0 0.0
  %916 = vmatpush.msra.mxu0 0.0
  %917 = vmatpush.msra.mxu0 0.0
  %918 = vmatpush.msra.mxu0 0.0
  %919 = vmatpush.msra.mxu0 0.0
  %920 = vmatpush.msra.mxu0 0.0
  %921 = vmatpush.msra.mxu0 0.0
  %922 = vmatpush.msra.mxu0 0.0
  %923 = vmatpush.msra.mxu0 0.0
  %924 = vmatpush.msra.mxu0 %v604
  %925 = vmatpush.msra.mxu0 %v603
  %926 = vmatpush.msra.mxu0 %v602
  %927 = vmatpush.msra.mxu0 %v601
  %928 = vmatmul.f32.gmra.mxu0 %v910
  %v929 = vpop.f32.mrf.mxu0
  %v930 = vadd.f32 0.0, %v929
  %931 = vdwg.mxu0
  %v932 = vadd.f32 %v622, %v930
  %933 = vset.pattern.permute.xlu0 1
  %934 = vperm.xlu0 %933, %v895
  %v935 = vpop.permute.xlu0 %934
  %v937 = vmul.f32 %v935, %v53
  %v938 = vsel %vm91, %v937, 0.0
  %v939 = vrot.slane %v938, 4
  %v940 = vadd.f32 %v938, %v939
  %v941 = vrot.slane %v940, 2
  %v942 = vadd.f32 %v940, %v941
  %v943 = vrot.slane %v942, 1
  %v944 = vadd.f32 %v942, %v943
  %v946 = vsel %vm91, %v944, 0
  %948 = vmatpush.msra.mxu0 0.0
  %949 = vmatpush.msra.mxu0 0.0
  %950 = vmatpush.msra.mxu0 0.0
  %951 = vmatpush.msra.mxu0 0.0
  %952 = vmatpush.msra.mxu0 0.0
  %953 = vmatpush.msra.mxu0 0.0
  %954 = vmatpush.msra.mxu0 0.0
  %955 = vmatpush.msra.mxu0 0.0
  %956 = vmatpush.msra.mxu0 0.0
  %957 = vmatpush.msra.mxu0 0.0
  %958 = vmatpush.msra.mxu0 0.0
  %959 = vmatpush.msra.mxu0 0.0
  %960 = vmatpush.msra.mxu0 %v608
  %961 = vmatpush.msra.mxu0 %v607
  %962 = vmatpush.msra.mxu0 %v606
  %963 = vmatpush.msra.mxu0 %v605
  %964 = vmatmul.f32.gmra.mxu0 %v946
  %v965 = vpop.f32.mrf.mxu0
  %v966 = vadd.f32 0.0, %v965
  %967 = vdwg.mxu0
  %v968 = vadd.f32 %v932, %v966
  %v969 = vadd.f32 %v566, %v748
  %v970 = vsel %vm638, %v969, -inf
  %v971 = vrot.slane %v970, 4
  %v972 = vmax.f32 %v970, %v971
  %v973 = vrot.slane %v972, 2
  %v974 = vmax.f32 %v972, %v973
  %v975 = vrot.slane %v974, 1
  %v976 = vmax.f32 %v974, %v975
  %v977 = vsub.f32 %v969, %v976
  %v978 = vmul.f32 %v977, 1.442695
  %v979 = vpow.pop %v978
  %v980 = vsel %vm638, %v979, 0.0
  %v981 = vrot.slane %v980, 4
  %v982 = vadd.f32 %v980, %v981
  %v983 = vrot.slane %v982, 2
  %v984 = vadd.f32 %v982, %v983
  %v985 = vrot.slane %v984, 1
  %v986 = vadd.f32 %v984, %v985
  %v987 = vrcp.pop %v986
  %v988 = vmul.f32 %v986, %v987
  %v989 = vsub.f32 1.0, %v988
  %v990 = vmul.f32 %v987, %v989
  %v991 = vadd.f32 %v987, %v990
  %vm992 = vweird.f32 %v986
  %vm993 = vweird.f32 %v987
  %vm994 = vmor %vm992, %vm993
  %v995 = vsel %vm994, %v987, %v991
  %v996 = vand.u32 2147483647, %v986
  %vm997 = vcmp.eq.f32.partialorder %v996, 8.507059e+37
  %v998 = vand.u32 %v986, 2147483648
  %v999 = vor.u32 1.1754944e-38, %v998
  %v1000 = vsel %vm997, %v999, %v995
  %v1001 = vmul.f32 %v979, %v1000
  %1003 = vset.pattern.permute.xlu0 0
  %1004 = vperm.xlu0 %1003, %v1001
  %v1005 = vpop.permute.xlu0 %1004
  %v1007 = vmul.f32 %v1005, %v59
  %v1008 = vsel %vm91, %v1007, 0.0
  %v1009 = vrot.slane %v1008, 4
  %v1010 = vadd.f32 %v1008, %v1009
  %v1011 = vrot.slane %v1010, 2
  %v1012 = vadd.f32 %v1010, %v1011
  %v1013 = vrot.slane %v1012, 1
  %v1014 = vadd.f32 %v1012, %v1013
  %v1016 = vsel %vm91, %v1014, 0
  %1018 = vmatpush.msra.mxu0 0.0
  %1019 = vmatpush.msra.mxu0 0.0
  %1020 = vmatpush.msra.mxu0 0.0
  %1021 = vmatpush.msra.mxu0 0.0
  %1022 = vmatpush.msra.mxu0 0.0
  %1023 = vmatpush.msra.mxu0 0.0
  %1024 = vmatpush.msra.mxu0 0.0
  %1025 = vmatpush.msra.mxu0 0.0
  %1026 = vmatpush.msra.mxu0 0.0
  %1027 = vmatpush.msra.mxu0 0.0
  %1028 = vmatpush.msra.mxu0 0.0
  %1029 = vmatpush.msra.mxu0 0.0
  %1030 = vmatpush.msra.mxu0 %v613
  %1031 = vmatpush.msra.mxu0 %v612
  %1032 = vmatpush.msra.mxu0 %v611
  %1033 = vmatpush.msra.mxu0 %v610
  %1034 = vmatmul.f32.gmra.mxu0 %v1016
  %v1035 = vpop.f32.mrf.mxu0
  %v1036 = vadd.f32 0.0, %v1035
  %1037 = vdwg.mxu0
  %v1038 = vadd.f32 %v624, %v1036
  %1039 = vset.pattern.permute.xlu0 1
  %1040 = vperm.xlu0 %1039, %v1001
  %v1041 = vpop.permute.xlu0 %1040
  %v1043 = vmul.f32 %v1041, %v59
  %v1044 = vsel %vm91, %v1043, 0.0
  %v1045 = vrot.slane %v1044, 4
  %v1046 = vadd.f32 %v1044, %v1045
  %v1047 = vrot.slane %v1046, 2
  %v1048 = vadd.f32 %v1046, %v1047
  %v1049 = vrot.slane %v1048, 1
  %v1050 = vadd.f32 %v1048, %v1049
  %v1052 = vsel %vm91, %v1050, 0
  %1054 = vmatpush.msra.mxu0 0.0
  %1055 = vmatpush.msra.mxu0 0.0
  %1056 = vmatpush.msra.mxu0 0.0
  %1057 = vmatpush.msra.mxu0 0.0
  %1058 = vmatpush.msra.mxu0 0.0
  %1059 = vmatpush.msra.mxu0 0.0
  %1060 = vmatpush.msra.mxu0 0.0
  %1061 = vmatpush.msra.mxu0 0.0
  %1062 = vmatpush.msra.mxu0 0.0
  %1063 = vmatpush.msra.mxu0 0.0
  %1064 = vmatpush.msra.mxu0 0.0
  %1065 = vmatpush.msra.mxu0 0.0
  %1066 = vmatpush.msra.mxu0 %v617
  %1067 = vmatpush.msra.mxu0 %v616
  %1068 = vmatpush.msra.mxu0 %v615
  %1069 = vmatpush.msra.mxu0 %v614
  %1070 = vmatmul.f32.gmra.mxu0 %v1052
  %v1071 = vpop.f32.mrf.mxu0
  %v1072 = vadd.f32 0.0, %v1071
  %1073 = vdwg.mxu0
  %v1074 = vadd.f32 %v1038, %v1072
  %v1075 = vadd.f32 %v968, %v1074
  %vm1076 = vcmask 253952
  %v1077 = vsel %vm1076, %v856, 0.0
  %1078 = vadd.xlane.f32.xlu0 %v1077
  %v1079 = vpop.xlane.xlu0 %1078
  %v1080 = vrcp.pop 32.0
  %v1081 = vmul.f32 32.0, %v1080
  %v1082 = vsub.f32 1.0, %v1081
  %v1083 = vmul.f32 %v1080, %v1082
  %v1084 = vadd.f32 %v1080, %v1083
  %vm1085 = vweird.f32 %v1080
  %v1086 = vsel %vm1085, %v1080, %v1084
  %v1087 = vmul.f32 %v1079, %v1086
  %v1088 = vsub.f32 %v856, %v1087
  %v1089 = vmul.f32 %v1088, %v1088
  %v1090 = vsel %vm1076, %v1089, 0.0
  %1091 = vadd.xlane.f32.xlu0 %v1090
  %v1092 = vpop.xlane.xlu0 %1091
  %v1093 = vmul.f32 %v1092, %v1086
  %v1094 = vadd.f32 %v1093, 1e-05
  %v1095 = vrsqrt.pop %v1094
  %v1096 = vmul.f32 %v1095, %v1094
  %v1097 = vmul.f32 %v1096, %v1095
  %v1098 = vmul.f32 0.5, %v1097
  %v1099 = vsub.f32 1.5, %v1098
  %v1100 = vmul.f32 %v1095, %v1099
  %vm1101 = vweird.f32 %v1094
  %vm1102 = vweird.f32 %v1095
  %vm1103 = vmor %vm1101, %vm1102
  %v1104 = vsel %vm1103, %v1095, %v1100
  %v1105 = vmul.f32 %v1088, %v1104
  %v1106 = vmul.f32 %v1105, %v625
  %v1107 = vadd.f32 %v1106, %v628
  %1108 = vst.msk [vmem:[%s14] sm:$0x1] %vm1076, %v1107
  %v1109 = vsel %vm1076, %v1075, 0.0
  %1110 = vadd.xlane.f32.xlu0 %v1109
  %v1111 = vpop.xlane.xlu0 %1110
  %v1112 = vmul.f32 %v1111, %v1086
  %v1113 = vsub.f32 %v1075, %v1112
  %v1114 = vmul.f32 %v1113, %v1113
  %v1115 = vsel %vm1076, %v1114, 0.0
  %1116 = vadd.xlane.f32.xlu0 %v1115
  %v1117 = vpop.xlane.xlu0 %1116
  %v1118 = vmul.f32 %v1117, %v1086
  %v1119 = vadd.f32 %v1118, 1e-05
  %v1120 = vrsqrt.pop %v1119
  %v1121 = vmul.f32 %v1120, %v1119
  %v1122 = vmul.f32 %v1121, %v1120
  %v1123 = vmul.f32 0.5, %v1122
  %v1124 = vsub.f32 1.5, %v1123
  %v1125 = vmul.f32 %v1120, %v1124
  %vm1126 = vweird.f32 %v1119
  %vm1127 = vweird.f32 %v1120
  %vm1128 = vmor %vm1126, %vm1127
  %v1129 = vsel %vm1128, %v1120, %v1125
  %v1130 = vmul.f32 %v1113, %v1129
  %v1131 = vmul.f32 %v1130, %v627
  %v1132 = vadd.f32 %v1131, %v630
  %v1134 = vperm.slane %v1132, 0
  %1135 = vrot.lane.b32.xlu0 %v1134, 32
  %v1136 = vpop.permute.xlu0 %1135
  %vm1138 = vcmask 516352
  %1139 = vst.msk [vmem:[%s14] sm:$0x1] %vm1138, %v1136
  %v1140 = vmul.f32 %v66, -1e+09
  %1142 = vset.pattern.permute.xlu0 0
  %1143 = vperm.xlu0 %1142, %v1140
  %v1144 = vpop.permute.xlu0 %1143
  %v1146 = vadd.f32 %v197, %v1144
  %v1147 = vsel %vm638, %v1146, -inf
  %v1148 = vrot.slane %v1147, 4
  %v1149 = vmax.f32 %v1147, %v1148
  %v1150 = vrot.slane %v1149, 2
  %v1151 = vmax.f32 %v1149, %v1150
  %v1152 = vrot.slane %v1151, 1
  %v1153 = vmax.f32 %v1151, %v1152
  %v1154 = vsub.f32 %v1146, %v1153
  %v1155 = vmul.f32 %v1154, 1.442695
  %v1156 = vpow.pop %v1155
  %v1157 = vsel %vm638, %v1156, 0.0
  %v1158 = vrot.slane %v1157, 4
  %v1159 = vadd.f32 %v1157, %v1158
  %v1160 = vrot.slane %v1159, 2
  %v1161 = vadd.f32 %v1159, %v1160
  %v1162 = vrot.slane %v1161, 1
  %v1163 = vadd.f32 %v1161, %v1162
  %v1164 = vrcp.pop %v1163
  %v1165 = vmul.f32 %v1163, %v1164
  %v1166 = vsub.f32 1.0, %v1165
  %v1167 = vmul.f32 %v1164, %v1166
  %v1168 = vadd.f32 %v1164, %v1167
  %vm1169 = vweird.f32 %v1163
  %vm1170 = vweird.f32 %v1164
  %vm1171 = vmor %vm1169, %vm1170
  %v1172 = vsel %vm1171, %v1164, %v1168
  %v1173 = vand.u32 2147483647, %v1163
  %vm1174 = vcmp.eq.f32.partialorder %v1173, 8.507059e+37
  %v1175 = vand.u32 %v1163, 2147483648
  %v1176 = vor.u32 1.1754944e-38, %v1175
  %v1177 = vsel %vm1174, %v1176, %v1172
  %v1178 = vmul.f32 %v1156, %v1177
  %1180 = vset.pattern.permute.xlu0 0
  %1181 = vperm.xlu0 %1180, %v1178
  %v1182 = vpop.permute.xlu0 %1181
  %v1184 = vmul.f32 %v1182, %v48
  %v1185 = vsel %vm91, %v1184, 0.0
  %v1186 = vrot.slane %v1185, 4
  %v1187 = vadd.f32 %v1185, %v1186
  %v1188 = vrot.slane %v1187, 2
  %v1189 = vadd.f32 %v1187, %v1188
  %v1190 = vrot.slane %v1189, 1
  %v1191 = vadd.f32 %v1189, %v1190
  %v1193 = vsel %vm91, %v1191, 0
  %1195 = vmatpush.msra.mxu0 0.0
  %1196 = vmatpush.msra.mxu0 0.0
  %1197 = vmatpush.msra.mxu0 0.0
  %1198 = vmatpush.msra.mxu0 0.0
  %1199 = vmatpush.msra.mxu0 0.0
  %1200 = vmatpush.msra.mxu0 0.0
  %1201 = vmatpush.msra.mxu0 0.0
  %1202 = vmatpush.msra.mxu0 0.0
  %1203 = vmatpush.msra.mxu0 0.0
  %1204 = vmatpush.msra.mxu0 0.0
  %1205 = vmatpush.msra.mxu0 0.0
  %1206 = vmatpush.msra.mxu0 0.0
  %1207 = vmatpush.msra.mxu0 %v586
  %1208 = vmatpush.msra.mxu0 %v585
  %1209 = vmatpush.msra.mxu0 %v584
  %1210 = vmatpush.msra.mxu0 %v583
  %1211 = vmatmul.f32.gmra.mxu0 %v1193
  %v1212 = vpop.f32.mrf.mxu0
  %v1213 = vadd.f32 0.0, %v1212
  %1214 = vdwg.mxu0
  %v1215 = vadd.f32 %v618, %v1213
  %1216 = vset.pattern.permute.xlu0 1
  %1217 = vperm.xlu0 %1216, %v1178
  %v1218 = vpop.permute.xlu0 %1217
  %v1220 = vmul.f32 %v1218, %v48
  %v1221 = vsel %vm91, %v1220, 0.0
  %v1222 = vrot.slane %v1221, 4
  %v1223 = vadd.f32 %v1221, %v1222
  %v1224 = vrot.slane %v1223, 2
  %v1225 = vadd.f32 %v1223, %v1224
  %v1226 = vrot.slane %v1225, 1
  %v1227 = vadd.f32 %v1225, %v1226
  %v1229 = vsel %vm91, %v1227, 0
  %1231 = vmatpush.msra.mxu0 0.0
  %1232 = vmatpush.msra.mxu0 0.0
  %1233 = vmatpush.msra.mxu0 0.0
  %1234 = vmatpush.msra.mxu0 0.0
  %1235 = vmatpush.msra.mxu0 0.0
  %1236 = vmatpush.msra.mxu0 0.0
  %1237 = vmatpush.msra.mxu0 0.0
  %1238 = vmatpush.msra.mxu0 0.0
  %1239 = vmatpush.msra.mxu0 0.0
  %1240 = vmatpush.msra.mxu0 0.0
  %1241 = vmatpush.msra.mxu0 0.0
  %1242 = vmatpush.msra.mxu0 0.0
  %1243 = vmatpush.msra.mxu0 %v590
  %1244 = vmatpush.msra.mxu0 %v589
  %1245 = vmatpush.msra.mxu0 %v588
  %1246 = vmatpush.msra.mxu0 %v587
  %1247 = vmatmul.f32.gmra.mxu0 %v1229
  %v1248 = vpop.f32.mrf.mxu0
  %v1249 = vadd.f32 0.0, %v1248
  %1250 = vdwg.mxu0
  %v1251 = vadd.f32 %v1215, %v1249
  %v1252 = vmul.f32 %v78, -1e+09
  %1254 = vset.pattern.permute.xlu0 0
  %1255 = vperm.xlu0 %1254, %v1252
  %v1256 = vpop.permute.xlu0 %1255
  %v1258 = vadd.f32 %v327, %v1256
  %v1259 = vsel %vm638, %v1258, -inf
  %v1260 = vrot.slane %v1259, 4
  %v1261 = vmax.f32 %v1259, %v1260
  %v1262 = vrot.slane %v1261, 2
  %v1263 = vmax.f32 %v1261, %v1262
  %v1264 = vrot.slane %v1263, 1
  %v1265 = vmax.f32 %v1263, %v1264
  %v1266 = vsub.f32 %v1258, %v1265
  %v1267 = vmul.f32 %v1266, 1.442695
  %v1268 = vpow.pop %v1267
  %v1269 = vsel %vm638, %v1268, 0.0
  %v1270 = vrot.slane %v1269, 4
  %v1271 = vadd.f32 %v1269, %v1270
  %v1272 = vrot.slane %v1271, 2
  %v1273 = vadd.f32 %v1271, %v1272
  %v1274 = vrot.slane %v1273, 1
  %v1275 = vadd.f32 %v1273, %v1274
  %v1276 = vrcp.pop %v1275
  %v1277 = vmul.f32 %v1275, %v1276
  %v1278 = vsub.f32 1.0, %v1277
  %v1279 = vmul.f32 %v1276, %v1278
  %v1280 = vadd.f32 %v1276, %v1279
  %vm1281 = vweird.f32 %v1275
  %vm1282 = vweird.f32 %v1276
  %vm1283 = vmor %vm1281, %vm1282
  %v1284 = vsel %vm1283, %v1276, %v1280
  %v1285 = vand.u32 2147483647, %v1275
  %vm1286 = vcmp.eq.f32.partialorder %v1285, 8.507059e+37
  %v1287 = vand.u32 %v1275, 2147483648
  %v1288 = vor.u32 1.1754944e-38, %v1287
  %v1289 = vsel %vm1286, %v1288, %v1284
  %v1290 = vmul.f32 %v1268, %v1289
  %1292 = vset.pattern.permute.xlu0 0
  %1293 = vperm.xlu0 %1292, %v1290
  %v1294 = vpop.permute.xlu0 %1293
  %v1296 = vmul.f32 %v1294, %v60
  %v1297 = vsel %vm91, %v1296, 0.0
  %v1298 = vrot.slane %v1297, 4
  %v1299 = vadd.f32 %v1297, %v1298
  %v1300 = vrot.slane %v1299, 2
  %v1301 = vadd.f32 %v1299, %v1300
  %v1302 = vrot.slane %v1301, 1
  %v1303 = vadd.f32 %v1301, %v1302
  %v1305 = vsel %vm91, %v1303, 0
  %1307 = vmatpush.msra.mxu0 0.0
  %1308 = vmatpush.msra.mxu0 0.0
  %1309 = vmatpush.msra.mxu0 0.0
  %1310 = vmatpush.msra.mxu0 0.0
  %1311 = vmatpush.msra.mxu0 0.0
  %1312 = vmatpush.msra.mxu0 0.0
  %1313 = vmatpush.msra.mxu0 0.0
  %1314 = vmatpush.msra.mxu0 0.0
  %1315 = vmatpush.msra.mxu0 0.0
  %1316 = vmatpush.msra.mxu0 0.0
  %1317 = vmatpush.msra.mxu0 0.0
  %1318 = vmatpush.msra.mxu0 0.0
  %1319 = vmatpush.msra.mxu0 %v595
  %1320 = vmatpush.msra.mxu0 %v594
  %1321 = vmatpush.msra.mxu0 %v593
  %1322 = vmatpush.msra.mxu0 %v592
  %1323 = vmatmul.f32.gmra.mxu0 %v1305
  %v1324 = vpop.f32.mrf.mxu0
  %v1325 = vadd.f32 0.0, %v1324
  %1326 = vdwg.mxu0
  %v1327 = vadd.f32 %v620, %v1325
  %1328 = vset.pattern.permute.xlu0 1
  %1329 = vperm.xlu0 %1328, %v1290
  %v1330 = vpop.permute.xlu0 %1329
  %v1332 = vmul.f32 %v1330, %v60
  %v1333 = vsel %vm91, %v1332, 0.0
  %v1334 = vrot.slane %v1333, 4
  %v1335 = vadd.f32 %v1333, %v1334
  %v1336 = vrot.slane %v1335, 2
  %v1337 = vadd.f32 %v1335, %v1336
  %v1338 = vrot.slane %v1337, 1
  %v1339 = vadd.f32 %v1337, %v1338
  %v1341 = vsel %vm91, %v1339, 0
  %1343 = vmatpush.msra.mxu0 0.0
  %1344 = vmatpush.msra.mxu0 0.0
  %1345 = vmatpush.msra.mxu0 0.0
  %1346 = vmatpush.msra.mxu0 0.0
  %1347 = vmatpush.msra.mxu0 0.0
  %1348 = vmatpush.msra.mxu0 0.0
  %1349 = vmatpush.msra.mxu0 0.0
  %1350 = vmatpush.msra.mxu0 0.0
  %1351 = vmatpush.msra.mxu0 0.0
  %1352 = vmatpush.msra.mxu0 0.0
  %1353 = vmatpush.msra.mxu0 0.0
  %1354 = vmatpush.msra.mxu0 0.0
  %1355 = vmatpush.msra.mxu0 %v599
  %1356 = vmatpush.msra.mxu0 %v598
  %1357 = vmatpush.msra.mxu0 %v597
  %1358 = vmatpush.msra.mxu0 %v596
  %1359 = vmatmul.f32.gmra.mxu0 %v1341
  %v1360 = vpop.f32.mrf.mxu0
  %v1361 = vadd.f32 0.0, %v1360
  %1362 = vdwg.mxu0
  %v1363 = vadd.f32 %v1327, %v1361
  %v1364 = vadd.f32 %v1251, %v1363
  %v1365 = vmul.f32 %v72, -1e+09
  %1367 = vset.pattern.permute.xlu0 0
  %1368 = vperm.xlu0 %1367, %v1365
  %v1369 = vpop.permute.xlu0 %1368
  %v1371 = vadd.f32 %v457, %v1369
  %v1372 = vsel %vm638, %v1371, -inf
  %v1373 = vrot.slane %v1372, 4
  %v1374 = vmax.f32 %v1372, %v1373
  %v1375 = vrot.slane %v1374, 2
  %v1376 = vmax.f32 %v1374, %v1375
  %v1377 = vrot.slane %v1376, 1
  %v1378 = vmax.f32 %v1376, %v1377
  %v1379 = vsub.f32 %v1371, %v1378
  %v1380 = vmul.f32 %v1379, 1.442695
  %v1381 = vpow.pop %v1380
  %v1382 = vsel %vm638, %v1381, 0.0
  %v1383 = vrot.slane %v1382, 4
  %v1384 = vadd.f32 %v1382, %v1383
  %v1385 = vrot.slane %v1384, 2
  %v1386 = vadd.f32 %v1384, %v1385
  %v1387 = vrot.slane %v1386, 1
  %v1388 = vadd.f32 %v1386, %v1387
  %v1389 = vrcp.pop %v1388
  %v1390 = vmul.f32 %v1388, %v1389
  %v1391 = vsub.f32 1.0, %v1390
  %v1392 = vmul.f32 %v1389, %v1391
  %v1393 = vadd.f32 %v1389, %v1392
  %vm1394 = vweird.f32 %v1388
  %vm1395 = vweird.f32 %v1389
  %vm1396 = vmor %vm1394, %vm1395
  %v1397 = vsel %vm1396, %v1389, %v1393
  %v1398 = vand.u32 2147483647, %v1388
  %vm1399 = vcmp.eq.f32.partialorder %v1398, 8.507059e+37
  %v1400 = vand.u32 %v1388, 2147483648
  %v1401 = vor.u32 1.1754944e-38, %v1400
  %v1402 = vsel %vm1399, %v1401, %v1397
  %v1403 = vmul.f32 %v1381, %v1402
  %1405 = vset.pattern.permute.xlu0 0
  %1406 = vperm.xlu0 %1405, %v1403
  %v1407 = vpop.permute.xlu0 %1406
  %v1409 = vmul.f32 %v1407, %v54
  %v1410 = vsel %vm91, %v1409, 0.0
  %v1411 = vrot.slane %v1410, 4
  %v1412 = vadd.f32 %v1410, %v1411
  %v1413 = vrot.slane %v1412, 2
  %v1414 = vadd.f32 %v1412, %v1413
  %v1415 = vrot.slane %v1414, 1
  %v1416 = vadd.f32 %v1414, %v1415
  %v1418 = vsel %vm91, %v1416, 0
  %1420 = vmatpush.msra.mxu0 0.0
  %1421 = vmatpush.msra.mxu0 0.0
  %1422 = vmatpush.msra.mxu0 0.0
  %1423 = vmatpush.msra.mxu0 0.0
  %1424 = vmatpush.msra.mxu0 0.0
  %1425 = vmatpush.msra.mxu0 0.0
  %1426 = vmatpush.msra.mxu0 0.0
  %1427 = vmatpush.msra.mxu0 0.0
  %1428 = vmatpush.msra.mxu0 0.0
  %1429 = vmatpush.msra.mxu0 0.0
  %1430 = vmatpush.msra.mxu0 0.0
  %1431 = vmatpush.msra.mxu0 0.0
  %1432 = vmatpush.msra.mxu0 %v604
  %1433 = vmatpush.msra.mxu0 %v603
  %1434 = vmatpush.msra.mxu0 %v602
  %1435 = vmatpush.msra.mxu0 %v601
  %1436 = vmatmul.f32.gmra.mxu0 %v1418
  %v1437 = vpop.f32.mrf.mxu0
  %v1438 = vadd.f32 0.0, %v1437
  %1439 = vdwg.mxu0
  %v1440 = vadd.f32 %v622, %v1438
  %1441 = vset.pattern.permute.xlu0 1
  %1442 = vperm.xlu0 %1441, %v1403
  %v1443 = vpop.permute.xlu0 %1442
  %v1445 = vmul.f32 %v1443, %v54
  %v1446 = vsel %vm91, %v1445, 0.0
  %v1447 = vrot.slane %v1446, 4
  %v1448 = vadd.f32 %v1446, %v1447
  %v1449 = vrot.slane %v1448, 2
  %v1450 = vadd.f32 %v1448, %v1449
  %v1451 = vrot.slane %v1450, 1
  %v1452 = vadd.f32 %v1450, %v1451
  %v1454 = vsel %vm91, %v1452, 0
  %1456 = vmatpush.msra.mxu0 0.0
  %1457 = vmatpush.msra.mxu0 0.0
  %1458 = vmatpush.msra.mxu0 0.0
  %1459 = vmatpush.msra.mxu0 0.0
  %1460 = vmatpush.msra.mxu0 0.0
  %1461 = vmatpush.msra.mxu0 0.0
  %1462 = vmatpush.msra.mxu0 0.0
  %1463 = vmatpush.msra.mxu0 0.0
  %1464 = vmatpush.msra.mxu0 0.0
  %1465 = vmatpush.msra.mxu0 0.0
  %1466 = vmatpush.msra.mxu0 0.0
  %1467 = vmatpush.msra.mxu0 0.0
  %1468 = vmatpush.msra.mxu0 %v608
  %1469 = vmatpush.msra.mxu0 %v607
  %1470 = vmatpush.msra.mxu0 %v606
  %1471 = vmatpush.msra.mxu0 %v605
  %1472 = vmatmul.f32.gmra.mxu0 %v1454
  %v1473 = vpop.f32.mrf.mxu0
  %v1474 = vadd.f32 0.0, %v1473
  %1475 = vdwg.mxu0
  %v1476 = vadd.f32 %v1440, %v1474
  %v1477 = vadd.f32 %v569, %v1256
  %v1478 = vsel %vm638, %v1477, -inf
  %v1479 = vrot.slane %v1478, 4
  %v1480 = vmax.f32 %v1478, %v1479
  %v1481 = vrot.slane %v1480, 2
  %v1482 = vmax.f32 %v1480, %v1481
  %v1483 = vrot.slane %v1482, 1
  %v1484 = vmax.f32 %v1482, %v1483
  %v1485 = vsub.f32 %v1477, %v1484
  %v1486 = vmul.f32 %v1485, 1.442695
  %v1487 = vpow.pop %v1486
  %v1488 = vsel %vm638, %v1487, 0.0
  %v1489 = vrot.slane %v1488, 4
  %v1490 = vadd.f32 %v1488, %v1489
  %v1491 = vrot.slane %v1490, 2
  %v1492 = vadd.f32 %v1490, %v1491
  %v1493 = vrot.slane %v1492, 1
  %v1494 = vadd.f32 %v1492, %v1493
  %v1495 = vrcp.pop %v1494
  %v1496 = vmul.f32 %v1494, %v1495
  %v1497 = vsub.f32 1.0, %v1496
  %v1498 = vmul.f32 %v1495, %v1497
  %v1499 = vadd.f32 %v1495, %v1498
  %vm1500 = vweird.f32 %v1494
  %vm1501 = vweird.f32 %v1495
  %vm1502 = vmor %vm1500, %vm1501
  %v1503 = vsel %vm1502, %v1495, %v1499
  %v1504 = vand.u32 2147483647, %v1494
  %vm1505 = vcmp.eq.f32.partialorder %v1504, 8.507059e+37
  %v1506 = vand.u32 %v1494, 2147483648
  %v1507 = vor.u32 1.1754944e-38, %v1506
  %v1508 = vsel %vm1505, %v1507, %v1503
  %v1509 = vmul.f32 %v1487, %v1508
  %1511 = vset.pattern.permute.xlu0 0
  %1512 = vperm.xlu0 %1511, %v1509
  %v1513 = vpop.permute.xlu0 %1512
  %v1515 = vmul.f32 %v1513, %v60
  %v1516 = vsel %vm91, %v1515, 0.0
  %v1517 = vrot.slane %v1516, 4
  %v1518 = vadd.f32 %v1516, %v1517
  %v1519 = vrot.slane %v1518, 2
  %v1520 = vadd.f32 %v1518, %v1519
  %v1521 = vrot.slane %v1520, 1
  %v1522 = vadd.f32 %v1520, %v1521
  %v1524 = vsel %vm91, %v1522, 0
  %1526 = vmatpush.msra.mxu0 0.0
  %1527 = vmatpush.msra.mxu0 0.0
  %1528 = vmatpush.msra.mxu0 0.0
  %1529 = vmatpush.msra.mxu0 0.0
  %1530 = vmatpush.msra.mxu0 0.0
  %1531 = vmatpush.msra.mxu0 0.0
  %1532 = vmatpush.msra.mxu0 0.0
  %1533 = vmatpush.msra.mxu0 0.0
  %1534 = vmatpush.msra.mxu0 0.0
  %1535 = vmatpush.msra.mxu0 0.0
  %1536 = vmatpush.msra.mxu0 0.0
  %1537 = vmatpush.msra.mxu0 0.0
  %1538 = vmatpush.msra.mxu0 %v613
  %1539 = vmatpush.msra.mxu0 %v612
  %1540 = vmatpush.msra.mxu0 %v611
  %1541 = vmatpush.msra.mxu0 %v610
  %1542 = vmatmul.f32.gmra.mxu0 %v1524
  %v1543 = vpop.f32.mrf.mxu0
  %v1544 = vadd.f32 0.0, %v1543
  %1545 = vdwg.mxu0
  %v1546 = vadd.f32 %v624, %v1544
  %1547 = vset.pattern.permute.xlu0 1
  %1548 = vperm.xlu0 %1547, %v1509
  %v1549 = vpop.permute.xlu0 %1548
  %v1551 = vmul.f32 %v1549, %v60
  %v1552 = vsel %vm91, %v1551, 0.0
  %v1553 = vrot.slane %v1552, 4
  %v1554 = vadd.f32 %v1552, %v1553
  %v1555 = vrot.slane %v1554, 2
  %v1556 = vadd.f32 %v1554, %v1555
  %v1557 = vrot.slane %v1556, 1
  %v1558 = vadd.f32 %v1556, %v1557
  %v1560 = vsel %vm91, %v1558, 0
  %1562 = vmatpush.msra.mxu0 0.0
  %1563 = vmatpush.msra.mxu0 0.0
  %1564 = vmatpush.msra.mxu0 0.0
  %1565 = vmatpush.msra.mxu0 0.0
  %1566 = vmatpush.msra.mxu0 0.0
  %1567 = vmatpush.msra.mxu0 0.0
  %1568 = vmatpush.msra.mxu0 0.0
  %1569 = vmatpush.msra.mxu0 0.0
  %1570 = vmatpush.msra.mxu0 0.0
  %1571 = vmatpush.msra.mxu0 0.0
  %1572 = vmatpush.msra.mxu0 0.0
  %1573 = vmatpush.msra.mxu0 0.0
  %1574 = vmatpush.msra.mxu0 %v617
  %1575 = vmatpush.msra.mxu0 %v616
  %1576 = vmatpush.msra.mxu0 %v615
  %1577 = vmatpush.msra.mxu0 %v614
  %1578 = vmatmul.f32.gmra.mxu0 %v1560
  %v1579 = vpop.f32.mrf.mxu0
  %v1580 = vadd.f32 0.0, %v1579
  %1581 = vdwg.mxu0
  %v1582 = vadd.f32 %v1546, %v1580
  %v1583 = vadd.f32 %v1476, %v1582
  %v1584 = vsel %vm1076, %v1364, 0.0
  %1585 = vadd.xlane.f32.xlu0 %v1584
  %v1586 = vpop.xlane.xlu0 %1585
  %v1587 = vmul.f32 %v1586, %v1086
  %v1588 = vsub.f32 %v1364, %v1587
  %v1589 = vmul.f32 %v1588, %v1588
  %v1590 = vsel %vm1076, %v1589, 0.0
  %1591 = vadd.xlane.f32.xlu0 %v1590
  %v1592 = vpop.xlane.xlu0 %1591
  %v1593 = vmul.f32 %v1592, %v1086
  %v1594 = vadd.f32 %v1593, 1e-05
  %v1595 = vrsqrt.pop %v1594
  %v1596 = vmul.f32 %v1595, %v1594
  %v1597 = vmul.f32 %v1596, %v1595
  %v1598 = vmul.f32 0.5, %v1597
  %v1599 = vsub.f32 1.5, %v1598
  %v1600 = vmul.f32 %v1595, %v1599
  %vm1601 = vweird.f32 %v1594
  %vm1602 = vweird.f32 %v1595
  %vm1603 = vmor %vm1601, %vm1602
  %v1604 = vsel %vm1603, %v1595, %v1600
  %v1605 = vmul.f32 %v1588, %v1604
  %v1606 = vmul.f32 %v1605, %v625
  %v1607 = vadd.f32 %v1606, %v628
  %1608 = vst.msk [vmem:[%s14 + $0x1] sm:$0x1] %vm1076, %v1607
  %v1609 = vsel %vm1076, %v1583, 0.0
  %1610 = vadd.xlane.f32.xlu0 %v1609
  %v1611 = vpop.xlane.xlu0 %1610
  %v1612 = vmul.f32 %v1611, %v1086
  %v1613 = vsub.f32 %v1583, %v1612
  %v1614 = vmul.f32 %v1613, %v1613
  %v1615 = vsel %vm1076, %v1614, 0.0
  %1616 = vadd.xlane.f32.xlu0 %v1615
  %v1617 = vpop.xlane.xlu0 %1616
  %v1618 = vmul.f32 %v1617, %v1086
  %v1619 = vadd.f32 %v1618, 1e-05
  %v1620 = vrsqrt.pop %v1619
  %v1621 = vmul.f32 %v1620, %v1619
  %v1622 = vmul.f32 %v1621, %v1620
  %v1623 = vmul.f32 0.5, %v1622
  %v1624 = vsub.f32 1.5, %v1623
  %v1625 = vmul.f32 %v1620, %v1624
  %vm1626 = vweird.f32 %v1619
  %vm1627 = vweird.f32 %v1620
  %vm1628 = vmor %vm1626, %vm1627
  %v1629 = vsel %vm1628, %v1620, %v1625
  %v1630 = vmul.f32 %v1613, %v1629
  %v1631 = vmul.f32 %v1630, %v627
  %v1632 = vadd.f32 %v1631, %v630
  %v1634 = vperm.slane %v1632, 0
  %1635 = vrot.lane.b32.xlu0 %v1634, 32
  %v1636 = vpop.permute.xlu0 %1635
  %1638 = vst.msk [vmem:[%s14 + $0x1] sm:$0x1] %vm1138, %v1636
  %v1639 = vmul.f32 %v67, -1e+09
  %1641 = vset.pattern.permute.xlu0 0
  %1642 = vperm.xlu0 %1641, %v1639
  %v1643 = vpop.permute.xlu0 %1642
  %v1645 = vadd.f32 %v200, %v1643
  %v1646 = vsel %vm638, %v1645, -inf
  %v1647 = vrot.slane %v1646, 4
  %v1648 = vmax.f32 %v1646, %v1647
  %v1649 = vrot.slane %v1648, 2
  %v1650 = vmax.f32 %v1648, %v1649
  %v1651 = vrot.slane %v1650, 1
  %v1652 = vmax.f32 %v1650, %v1651
  %v1653 = vsub.f32 %v1645, %v1652
  %v1654 = vmul.f32 %v1653, 1.442695
  %v1655 = vpow.pop %v1654
  %v1656 = vsel %vm638, %v1655, 0.0
  %v1657 = vrot.slane %v1656, 4
  %v1658 = vadd.f32 %v1656, %v1657
  %v1659 = vrot.slane %v1658, 2
  %v1660 = vadd.f32 %v1658, %v1659
  %v1661 = vrot.slane %v1660, 1
  %v1662 = vadd.f32 %v1660, %v1661
  %v1663 = vrcp.pop %v1662
  %v1664 = vmul.f32 %v1662, %v1663
  %v1665 = vsub.f32 1.0, %v1664
  %v1666 = vmul.f32 %v1663, %v1665
  %v1667 = vadd.f32 %v1663, %v1666
  %vm1668 = vweird.f32 %v1662
  %vm1669 = vweird.f32 %v1663
  %vm1670 = vmor %vm1668, %vm1669
  %v1671 = vsel %vm1670, %v1663, %v1667
  %v1672 = vand.u32 2147483647, %v1662
  %vm1673 = vcmp.eq.f32.partialorder %v1672, 8.507059e+37
  %v1674 = vand.u32 %v1662, 2147483648
  %v1675 = vor.u32 1.1754944e-38, %v1674
  %v1676 = vsel %vm1673, %v1675, %v1671
  %v1677 = vmul.f32 %v1655, %v1676
  %1679 = vset.pattern.permute.xlu0 0
  %1680 = vperm.xlu0 %1679, %v1677
  %v1681 = vpop.permute.xlu0 %1680
  %v1683 = vmul.f32 %v1681, %v49
  %v1684 = vsel %vm91, %v1683, 0.0
  %v1685 = vrot.slane %v1684, 4
  %v1686 = vadd.f32 %v1684, %v1685
  %v1687 = vrot.slane %v1686, 2
  %v1688 = vadd.f32 %v1686, %v1687
  %v1689 = vrot.slane %v1688, 1
  %v1690 = vadd.f32 %v1688, %v1689
  %v1692 = vsel %vm91, %v1690, 0
  %1694 = vmatpush.msra.mxu0 0.0
  %1695 = vmatpush.msra.mxu0 0.0
  %1696 = vmatpush.msra.mxu0 0.0
  %1697 = vmatpush.msra.mxu0 0.0
  %1698 = vmatpush.msra.mxu0 0.0
  %1699 = vmatpush.msra.mxu0 0.0
  %1700 = vmatpush.msra.mxu0 0.0
  %1701 = vmatpush.msra.mxu0 0.0
  %1702 = vmatpush.msra.mxu0 0.0
  %1703 = vmatpush.msra.mxu0 0.0
  %1704 = vmatpush.msra.mxu0 0.0
  %1705 = vmatpush.msra.mxu0 0.0
  %1706 = vmatpush.msra.mxu0 %v586
  %1707 = vmatpush.msra.mxu0 %v585
  %1708 = vmatpush.msra.mxu0 %v584
  %1709 = vmatpush.msra.mxu0 %v583
  %1710 = vmatmul.f32.gmra.mxu0 %v1692
  %v1711 = vpop.f32.mrf.mxu0
  %v1712 = vadd.f32 0.0, %v1711
  %1713 = vdwg.mxu0
  %v1714 = vadd.f32 %v618, %v1712
  %1715 = vset.pattern.permute.xlu0 1
  %1716 = vperm.xlu0 %1715, %v1677
  %v1717 = vpop.permute.xlu0 %1716
  %v1719 = vmul.f32 %v1717, %v49
  %v1720 = vsel %vm91, %v1719, 0.0
  %v1721 = vrot.slane %v1720, 4
  %v1722 = vadd.f32 %v1720, %v1721
  %v1723 = vrot.slane %v1722, 2
  %v1724 = vadd.f32 %v1722, %v1723
  %v1725 = vrot.slane %v1724, 1
  %v1726 = vadd.f32 %v1724, %v1725
  %v1728 = vsel %vm91, %v1726, 0
  %1730 = vmatpush.msra.mxu0 0.0
  %1731 = vmatpush.msra.mxu0 0.0
  %1732 = vmatpush.msra.mxu0 0.0
  %1733 = vmatpush.msra.mxu0 0.0
  %1734 = vmatpush.msra.mxu0 0.0
  %1735 = vmatpush.msra.mxu0 0.0
  %1736 = vmatpush.msra.mxu0 0.0
  %1737 = vmatpush.msra.mxu0 0.0
  %1738 = vmatpush.msra.mxu0 0.0
  %1739 = vmatpush.msra.mxu0 0.0
  %1740 = vmatpush.msra.mxu0 0.0
  %1741 = vmatpush.msra.mxu0 0.0
  %1742 = vmatpush.msra.mxu0 %v590
  %1743 = vmatpush.msra.mxu0 %v589
  %1744 = vmatpush.msra.mxu0 %v588
  %1745 = vmatpush.msra.mxu0 %v587
  %1746 = vmatmul.f32.gmra.mxu0 %v1728
  %v1747 = vpop.f32.mrf.mxu0
  %v1748 = vadd.f32 0.0, %v1747
  %1749 = vdwg.mxu0
  %v1750 = vadd.f32 %v1714, %v1748
  %v1751 = vmul.f32 %v79, -1e+09
  %1753 = vset.pattern.permute.xlu0 0
  %1754 = vperm.xlu0 %1753, %v1751
  %v1755 = vpop.permute.xlu0 %1754
  %v1757 = vadd.f32 %v330, %v1755
  %v1758 = vsel %vm638, %v1757, -inf
  %v1759 = vrot.slane %v1758, 4
  %v1760 = vmax.f32 %v1758, %v1759
  %v1761 = vrot.slane %v1760, 2
  %v1762 = vmax.f32 %v1760, %v1761
  %v1763 = vrot.slane %v1762, 1
  %v1764 = vmax.f32 %v1762, %v1763
  %v1765 = vsub.f32 %v1757, %v1764
  %v1766 = vmul.f32 %v1765, 1.442695
  %v1767 = vpow.pop %v1766
  %v1768 = vsel %vm638, %v1767, 0.0
  %v1769 = vrot.slane %v1768, 4
  %v1770 = vadd.f32 %v1768, %v1769
  %v1771 = vrot.slane %v1770, 2
  %v1772 = vadd.f32 %v1770, %v1771
  %v1773 = vrot.slane %v1772, 1
  %v1774 = vadd.f32 %v1772, %v1773
  %v1775 = vrcp.pop %v1774
  %v1776 = vmul.f32 %v1774, %v1775
  %v1777 = vsub.f32 1.0, %v1776
  %v1778 = vmul.f32 %v1775, %v1777
  %v1779 = vadd.f32 %v1775, %v1778
  %vm1780 = vweird.f32 %v1774
  %vm1781 = vweird.f32 %v1775
  %vm1782 = vmor %vm1780, %vm1781
  %v1783 = vsel %vm1782, %v1775, %v1779
  %v1784 = vand.u32 2147483647, %v1774
  %vm1785 = vcmp.eq.f32.partialorder %v1784, 8.507059e+37
  %v1786 = vand.u32 %v1774, 2147483648
  %v1787 = vor.u32 1.1754944e-38, %v1786
  %v1788 = vsel %vm1785, %v1787, %v1783
  %v1789 = vmul.f32 %v1767, %v1788
  %1791 = vset.pattern.permute.xlu0 0
  %1792 = vperm.xlu0 %1791, %v1789
  %v1793 = vpop.permute.xlu0 %1792
  %v1795 = vmul.f32 %v1793, %v61
  %v1796 = vsel %vm91, %v1795, 0.0
  %v1797 = vrot.slane %v1796, 4
  %v1798 = vadd.f32 %v1796, %v1797
  %v1799 = vrot.slane %v1798, 2
  %v1800 = vadd.f32 %v1798, %v1799
  %v1801 = vrot.slane %v1800, 1
  %v1802 = vadd.f32 %v1800, %v1801
  %v1804 = vsel %vm91, %v1802, 0
  %1806 = vmatpush.msra.mxu0 0.0
  %1807 = vmatpush.msra.mxu0 0.0
  %1808 = vmatpush.msra.mxu0 0.0
  %1809 = vmatpush.msra.mxu0 0.0
  %1810 = vmatpush.msra.mxu0 0.0
  %1811 = vmatpush.msra.mxu0 0.0
  %1812 = vmatpush.msra.mxu0 0.0
  %1813 = vmatpush.msra.mxu0 0.0
  %1814 = vmatpush.msra.mxu0 0.0
  %1815 = vmatpush.msra.mxu0 0.0
  %1816 = vmatpush.msra.mxu0 0.0
  %1817 = vmatpush.msra.mxu0 0.0
  %1818 = vmatpush.msra.mxu0 %v595
  %1819 = vmatpush.msra.mxu0 %v594
  %1820 = vmatpush.msra.mxu0 %v593
  %1821 = vmatpush.msra.mxu0 %v592
  %1822 = vmatmul.f32.gmra.mxu0 %v1804
  %v1823 = vpop.f32.mrf.mxu0
  %v1824 = vadd.f32 0.0, %v1823
  %1825 = vdwg.mxu0
  %v1826 = vadd.f32 %v620, %v1824
  %1827 = vset.pattern.permute.xlu0 1
  %1828 = vperm.xlu0 %1827, %v1789
  %v1829 = vpop.permute.xlu0 %1828
  %v1831 = vmul.f32 %v1829, %v61
  %v1832 = vsel %vm91, %v1831, 0.0
  %v1833 = vrot.slane %v1832, 4
  %v1834 = vadd.f32 %v1832, %v1833
  %v1835 = vrot.slane %v1834, 2
  %v1836 = vadd.f32 %v1834, %v1835
  %v1837 = vrot.slane %v1836, 1
  %v1838 = vadd.f32 %v1836, %v1837
  %v1840 = vsel %vm91, %v1838, 0
  %1842 = vmatpush.msra.mxu0 0.0
  %1843 = vmatpush.msra.mxu0 0.0
  %1844 = vmatpush.msra.mxu0 0.0
  %1845 = vmatpush.msra.mxu0 0.0
  %1846 = vmatpush.msra.mxu0 0.0
  %1847 = vmatpush.msra.mxu0 0.0
  %1848 = vmatpush.msra.mxu0 0.0
  %1849 = vmatpush.msra.mxu0 0.0
  %1850 = vmatpush.msra.mxu0 0.0
  %1851 = vmatpush.msra.mxu0 0.0
  %1852 = vmatpush.msra.mxu0 0.0
  %1853 = vmatpush.msra.mxu0 0.0
  %1854 = vmatpush.msra.mxu0 %v599
  %1855 = vmatpush.msra.mxu0 %v598
  %1856 = vmatpush.msra.mxu0 %v597
  %1857 = vmatpush.msra.mxu0 %v596
  %1858 = vmatmul.f32.gmra.mxu0 %v1840
  %v1859 = vpop.f32.mrf.mxu0
  %v1860 = vadd.f32 0.0, %v1859
  %1861 = vdwg.mxu0
  %v1862 = vadd.f32 %v1826, %v1860
  %v1863 = vadd.f32 %v1750, %v1862
  %v1864 = vmul.f32 %v73, -1e+09
  %1866 = vset.pattern.permute.xlu0 0
  %1867 = vperm.xlu0 %1866, %v1864
  %v1868 = vpop.permute.xlu0 %1867
  %v1870 = vadd.f32 %v460, %v1868
  %v1871 = vsel %vm638, %v1870, -inf
  %v1872 = vrot.slane %v1871, 4
  %v1873 = vmax.f32 %v1871, %v1872
  %v1874 = vrot.slane %v1873, 2
  %v1875 = vmax.f32 %v1873, %v1874
  %v1876 = vrot.slane %v1875, 1
  %v1877 = vmax.f32 %v1875, %v1876
  %v1878 = vsub.f32 %v1870, %v1877
  %v1879 = vmul.f32 %v1878, 1.442695
  %v1880 = vpow.pop %v1879
  %v1881 = vsel %vm638, %v1880, 0.0
  %v1882 = vrot.slane %v1881, 4
  %v1883 = vadd.f32 %v1881, %v1882
  %v1884 = vrot.slane %v1883, 2
  %v1885 = vadd.f32 %v1883, %v1884
  %v1886 = vrot.slane %v1885, 1
  %v1887 = vadd.f32 %v1885, %v1886
  %v1888 = vrcp.pop %v1887
  %v1889 = vmul.f32 %v1887, %v1888
  %v1890 = vsub.f32 1.0, %v1889
  %v1891 = vmul.f32 %v1888, %v1890
  %v1892 = vadd.f32 %v1888, %v1891
  %vm1893 = vweird.f32 %v1887
  %vm1894 = vweird.f32 %v1888
  %vm1895 = vmor %vm1893, %vm1894
  %v1896 = vsel %vm1895, %v1888, %v1892
  %v1897 = vand.u32 2147483647, %v1887
  %vm1898 = vcmp.eq.f32.partialorder %v1897, 8.507059e+37
  %v1899 = vand.u32 %v1887, 2147483648
  %v1900 = vor.u32 1.1754944e-38, %v1899
  %v1901 = vsel %vm1898, %v1900, %v1896
  %v1902 = vmul.f32 %v1880, %v1901
  %1904 = vset.pattern.permute.xlu0 0
  %1905 = vperm.xlu0 %1904, %v1902
  %v1906 = vpop.permute.xlu0 %1905
  %v1908 = vmul.f32 %v1906, %v55
  %v1909 = vsel %vm91, %v1908, 0.0
  %v1910 = vrot.slane %v1909, 4
  %v1911 = vadd.f32 %v1909, %v1910
  %v1912 = vrot.slane %v1911, 2
  %v1913 = vadd.f32 %v1911, %v1912
  %v1914 = vrot.slane %v1913, 1
  %v1915 = vadd.f32 %v1913, %v1914
  %v1917 = vsel %vm91, %v1915, 0
  %1919 = vmatpush.msra.mxu0 0.0
  %1920 = vmatpush.msra.mxu0 0.0
  %1921 = vmatpush.msra.mxu0 0.0
  %1922 = vmatpush.msra.mxu0 0.0
  %1923 = vmatpush.msra.mxu0 0.0
  %1924 = vmatpush.msra.mxu0 0.0
  %1925 = vmatpush.msra.mxu0 0.0
  %1926 = vmatpush.msra.mxu0 0.0
  %1927 = vmatpush.msra.mxu0 0.0
  %1928 = vmatpush.msra.mxu0 0.0
  %1929 = vmatpush.msra.mxu0 0.0
  %1930 = vmatpush.msra.mxu0 0.0
  %1931 = vmatpush.msra.mxu0 %v604
  %1932 = vmatpush.msra.mxu0 %v603
  %1933 = vmatpush.msra.mxu0 %v602
  %1934 = vmatpush.msra.mxu0 %v601
  %1935 = vmatmul.f32.gmra.mxu0 %v1917
  %v1936 = vpop.f32.mrf.mxu0
  %v1937 = vadd.f32 0.0, %v1936
  %1938 = vdwg.mxu0
  %v1939 = vadd.f32 %v622, %v1937
  %1940 = vset.pattern.permute.xlu0 1
  %1941 = vperm.xlu0 %1940, %v1902
  %v1942 = vpop.permute.xlu0 %1941
  %v1944 = vmul.f32 %v1942, %v55
  %v1945 = vsel %vm91, %v1944, 0.0
  %v1946 = vrot.slane %v1945, 4
  %v1947 = vadd.f32 %v1945, %v1946
  %v1948 = vrot.slane %v1947, 2
  %v1949 = vadd.f32 %v1947, %v1948
  %v1950 = vrot.slane %v1949, 1
  %v1951 = vadd.f32 %v1949, %v1950
  %v1953 = vsel %vm91, %v1951, 0
  %1955 = vmatpush.msra.mxu0 0.0
  %1956 = vmatpush.msra.mxu0 0.0
  %1957 = vmatpush.msra.mxu0 0.0
  %1958 = vmatpush.msra.mxu0 0.0
  %1959 = vmatpush.msra.mxu0 0.0
  %1960 = vmatpush.msra.mxu0 0.0
  %1961 = vmatpush.msra.mxu0 0.0
  %1962 = vmatpush.msra.mxu0 0.0
  %1963 = vmatpush.msra.mxu0 0.0
  %1964 = vmatpush.msra.mxu0 0.0
  %1965 = vmatpush.msra.mxu0 0.0
  %1966 = vmatpush.msra.mxu0 0.0
  %1967 = vmatpush.msra.mxu0 %v608
  %1968 = vmatpush.msra.mxu0 %v607
  %1969 = vmatpush.msra.mxu0 %v606
  %1970 = vmatpush.msra.mxu0 %v605
  %1971 = vmatmul.f32.gmra.mxu0 %v1953
  %v1972 = vpop.f32.mrf.mxu0
  %v1973 = vadd.f32 0.0, %v1972
  %1974 = vdwg.mxu0
  %v1975 = vadd.f32 %v1939, %v1973
  %v1976 = vadd.f32 %v572, %v1755
  %v1977 = vsel %vm638, %v1976, -inf
  %v1978 = vrot.slane %v1977, 4
  %v1979 = vmax.f32 %v1977, %v1978
  %v1980 = vrot.slane %v1979, 2
  %v1981 = vmax.f32 %v1979, %v1980
  %v1982 = vrot.slane %v1981, 1
  %v1983 = vmax.f32 %v1981, %v1982
  %v1984 = vsub.f32 %v1976, %v1983
  %v1985 = vmul.f32 %v1984, 1.442695
  %v1986 = vpow.pop %v1985
  %v1987 = vsel %vm638, %v1986, 0.0
  %v1988 = vrot.slane %v1987, 4
  %v1989 = vadd.f32 %v1987, %v1988
  %v1990 = vrot.slane %v1989, 2
  %v1991 = vadd.f32 %v1989, %v1990
  %v1992 = vrot.slane %v1991, 1
  %v1993 = vadd.f32 %v1991, %v1992
  %v1994 = vrcp.pop %v1993
  %v1995 = vmul.f32 %v1993, %v1994
  %v1996 = vsub.f32 1.0, %v1995
  %v1997 = vmul.f32 %v1994, %v1996
  %v1998 = vadd.f32 %v1994, %v1997
  %vm1999 = vweird.f32 %v1993
  %vm2000 = vweird.f32 %v1994
  %vm2001 = vmor %vm1999, %vm2000
  %v2002 = vsel %vm2001, %v1994, %v1998
  %v2003 = vand.u32 2147483647, %v1993
  %vm2004 = vcmp.eq.f32.partialorder %v2003, 8.507059e+37
  %v2005 = vand.u32 %v1993, 2147483648
  %v2006 = vor.u32 1.1754944e-38, %v2005
  %v2007 = vsel %vm2004, %v2006, %v2002
  %v2008 = vmul.f32 %v1986, %v2007
  %2010 = vset.pattern.permute.xlu0 0
  %2011 = vperm.xlu0 %2010, %v2008
  %v2012 = vpop.permute.xlu0 %2011
  %v2014 = vmul.f32 %v2012, %v61
  %v2015 = vsel %vm91, %v2014, 0.0
  %v2016 = vrot.slane %v2015, 4
  %v2017 = vadd.f32 %v2015, %v2016
  %v2018 = vrot.slane %v2017, 2
  %v2019 = vadd.f32 %v2017, %v2018
  %v2020 = vrot.slane %v2019, 1
  %v2021 = vadd.f32 %v2019, %v2020
  %v2023 = vsel %vm91, %v2021, 0
  %2025 = vmatpush.msra.mxu0 0.0
  %2026 = vmatpush.msra.mxu0 0.0
  %2027 = vmatpush.msra.mxu0 0.0
  %2028 = vmatpush.msra.mxu0 0.0
  %2029 = vmatpush.msra.mxu0 0.0
  %2030 = vmatpush.msra.mxu0 0.0
  %2031 = vmatpush.msra.mxu0 0.0
  %2032 = vmatpush.msra.mxu0 0.0
  %2033 = vmatpush.msra.mxu0 0.0
  %2034 = vmatpush.msra.mxu0 0.0
  %2035 = vmatpush.msra.mxu0 0.0
  %2036 = vmatpush.msra.mxu0 0.0
  %2037 = vmatpush.msra.mxu0 %v613
  %2038 = vmatpush.msra.mxu0 %v612
  %2039 = vmatpush.msra.mxu0 %v611
  %2040 = vmatpush.msra.mxu0 %v610
  %2041 = vmatmul.f32.gmra.mxu0 %v2023
  %v2042 = vpop.f32.mrf.mxu0
  %v2043 = vadd.f32 0.0, %v2042
  %2044 = vdwg.mxu0
  %v2045 = vadd.f32 %v624, %v2043
  %2046 = vset.pattern.permute.xlu0 1
  %2047 = vperm.xlu0 %2046, %v2008
  %v2048 = vpop.permute.xlu0 %2047
  %v2050 = vmul.f32 %v2048, %v61
  %v2051 = vsel %vm91, %v2050, 0.0
  %v2052 = vrot.slane %v2051, 4
  %v2053 = vadd.f32 %v2051, %v2052
  %v2054 = vrot.slane %v2053, 2
  %v2055 = vadd.f32 %v2053, %v2054
  %v2056 = vrot.slane %v2055, 1
  %v2057 = vadd.f32 %v2055, %v2056
  %v2059 = vsel %vm91, %v2057, 0
  %2061 = vmatpush.msra.mxu0 0.0
  %2062 = vmatpush.msra.mxu0 0.0
  %2063 = vmatpush.msra.mxu0 0.0
  %2064 = vmatpush.msra.mxu0 0.0
  %2065 = vmatpush.msra.mxu0 0.0
  %2066 = vmatpush.msra.mxu0 0.0
  %2067 = vmatpush.msra.mxu0 0.0
  %2068 = vmatpush.msra.mxu0 0.0
  %2069 = vmatpush.msra.mxu0 0.0
  %2070 = vmatpush.msra.mxu0 0.0
  %2071 = vmatpush.msra.mxu0 0.0
  %2072 = vmatpush.msra.mxu0 0.0
  %2073 = vmatpush.msra.mxu0 %v617
  %2074 = vmatpush.msra.mxu0 %v616
  %2075 = vmatpush.msra.mxu0 %v615
  %2076 = vmatpush.msra.mxu0 %v614
  %2077 = vmatmul.f32.gmra.mxu0 %v2059
  %v2078 = vpop.f32.mrf.mxu0
  %v2079 = vadd.f32 0.0, %v2078
  %2080 = vdwg.mxu0
  %v2081 = vadd.f32 %v2045, %v2079
  %v2082 = vadd.f32 %v1975, %v2081
  %v2083 = vsel %vm1076, %v1863, 0.0
  %2084 = vadd.xlane.f32.xlu0 %v2083
  %v2085 = vpop.xlane.xlu0 %2084
  %v2086 = vmul.f32 %v2085, %v1086
  %v2087 = vsub.f32 %v1863, %v2086
  %v2088 = vmul.f32 %v2087, %v2087
  %v2089 = vsel %vm1076, %v2088, 0.0
  %2090 = vadd.xlane.f32.xlu0 %v2089
  %v2091 = vpop.xlane.xlu0 %2090
  %v2092 = vmul.f32 %v2091, %v1086
  %v2093 = vadd.f32 %v2092, 1e-05
  %v2094 = vrsqrt.pop %v2093
  %v2095 = vmul.f32 %v2094, %v2093
  %v2096 = vmul.f32 %v2095, %v2094
  %v2097 = vmul.f32 0.5, %v2096
  %v2098 = vsub.f32 1.5, %v2097
  %v2099 = vmul.f32 %v2094, %v2098
  %vm2100 = vweird.f32 %v2093
  %vm2101 = vweird.f32 %v2094
  %vm2102 = vmor %vm2100, %vm2101
  %v2103 = vsel %vm2102, %v2094, %v2099
  %v2104 = vmul.f32 %v2087, %v2103
  %v2105 = vmul.f32 %v2104, %v625
  %v2106 = vadd.f32 %v2105, %v628
  %2107 = vst.msk [vmem:[%s14 + $0x2] sm:$0x1] %vm1076, %v2106
  %v2108 = vsel %vm1076, %v2082, 0.0
  %2109 = vadd.xlane.f32.xlu0 %v2108
  %v2110 = vpop.xlane.xlu0 %2109
  %v2111 = vmul.f32 %v2110, %v1086
  %v2112 = vsub.f32 %v2082, %v2111
  %v2113 = vmul.f32 %v2112, %v2112
  %v2114 = vsel %vm1076, %v2113, 0.0
  %2115 = vadd.xlane.f32.xlu0 %v2114
  %v2116 = vpop.xlane.xlu0 %2115
  %v2117 = vmul.f32 %v2116, %v1086
  %v2118 = vadd.f32 %v2117, 1e-05
  %v2119 = vrsqrt.pop %v2118
  %v2120 = vmul.f32 %v2119, %v2118
  %v2121 = vmul.f32 %v2120, %v2119
  %v2122 = vmul.f32 0.5, %v2121
  %v2123 = vsub.f32 1.5, %v2122
  %v2124 = vmul.f32 %v2119, %v2123
  %vm2125 = vweird.f32 %v2118
  %vm2126 = vweird.f32 %v2119
  %vm2127 = vmor %vm2125, %vm2126
  %v2128 = vsel %vm2127, %v2119, %v2124
  %v2129 = vmul.f32 %v2112, %v2128
  %v2130 = vmul.f32 %v2129, %v627
  %v2131 = vadd.f32 %v2130, %v630
  %v2133 = vperm.slane %v2131, 0
  %2134 = vrot.lane.b32.xlu0 %v2133, 32
  %v2135 = vpop.permute.xlu0 %2134
  %2137 = vst.msk [vmem:[%s14 + $0x2] sm:$0x1] %vm1138, %v2135
  %v2138 = vmul.f32 %v68, -1e+09
  %2140 = vset.pattern.permute.xlu0 0
  %2141 = vperm.xlu0 %2140, %v2138
  %v2142 = vpop.permute.xlu0 %2141
  %v2144 = vadd.f32 %v203, %v2142
  %v2145 = vsel %vm638, %v2144, -inf
  %v2146 = vrot.slane %v2145, 4
  %v2147 = vmax.f32 %v2145, %v2146
  %v2148 = vrot.slane %v2147, 2
  %v2149 = vmax.f32 %v2147, %v2148
  %v2150 = vrot.slane %v2149, 1
  %v2151 = vmax.f32 %v2149, %v2150
  %v2152 = vsub.f32 %v2144, %v2151
  %v2153 = vmul.f32 %v2152, 1.442695
  %v2154 = vpow.pop %v2153
  %v2155 = vsel %vm638, %v2154, 0.0
  %v2156 = vrot.slane %v2155, 4
  %v2157 = vadd.f32 %v2155, %v2156
  %v2158 = vrot.slane %v2157, 2
  %v2159 = vadd.f32 %v2157, %v2158
  %v2160 = vrot.slane %v2159, 1
  %v2161 = vadd.f32 %v2159, %v2160
  %v2162 = vrcp.pop %v2161
  %v2163 = vmul.f32 %v2161, %v2162
  %v2164 = vsub.f32 1.0, %v2163
  %v2165 = vmul.f32 %v2162, %v2164
  %v2166 = vadd.f32 %v2162, %v2165
  %vm2167 = vweird.f32 %v2161
  %vm2168 = vweird.f32 %v2162
  %vm2169 = vmor %vm2167, %vm2168
  %v2170 = vsel %vm2169, %v2162, %v2166
  %v2171 = vand.u32 2147483647, %v2161
  %vm2172 = vcmp.eq.f32.partialorder %v2171, 8.507059e+37
  %v2173 = vand.u32 %v2161, 2147483648
  %v2174 = vor.u32 1.1754944e-38, %v2173
  %v2175 = vsel %vm2172, %v2174, %v2170
  %v2176 = vmul.f32 %v2154, %v2175
  %2178 = vset.pattern.permute.xlu0 0
  %2179 = vperm.xlu0 %2178, %v2176
  %v2180 = vpop.permute.xlu0 %2179
  %v2182 = vmul.f32 %v2180, %v50
  %v2183 = vsel %vm91, %v2182, 0.0
  %v2184 = vrot.slane %v2183, 4
  %v2185 = vadd.f32 %v2183, %v2184
  %v2186 = vrot.slane %v2185, 2
  %v2187 = vadd.f32 %v2185, %v2186
  %v2188 = vrot.slane %v2187, 1
  %v2189 = vadd.f32 %v2187, %v2188
  %v2191 = vsel %vm91, %v2189, 0
  %2193 = vmatpush.msra.mxu0 0.0
  %2194 = vmatpush.msra.mxu0 0.0
  %2195 = vmatpush.msra.mxu0 0.0
  %2196 = vmatpush.msra.mxu0 0.0
  %2197 = vmatpush.msra.mxu0 0.0
  %2198 = vmatpush.msra.mxu0 0.0
  %2199 = vmatpush.msra.mxu0 0.0
  %2200 = vmatpush.msra.mxu0 0.0
  %2201 = vmatpush.msra.mxu0 0.0
  %2202 = vmatpush.msra.mxu0 0.0
  %2203 = vmatpush.msra.mxu0 0.0
  %2204 = vmatpush.msra.mxu0 0.0
  %2205 = vmatpush.msra.mxu0 %v586
  %2206 = vmatpush.msra.mxu0 %v585
  %2207 = vmatpush.msra.mxu0 %v584
  %2208 = vmatpush.msra.mxu0 %v583
  %2209 = vmatmul.f32.gmra.mxu0 %v2191
  %v2210 = vpop.f32.mrf.mxu0
  %v2211 = vadd.f32 0.0, %v2210
  %2212 = vdwg.mxu0
  %v2213 = vadd.f32 %v618, %v2211
  %2214 = vset.pattern.permute.xlu0 1
  %2215 = vperm.xlu0 %2214, %v2176
  %v2216 = vpop.permute.xlu0 %2215
  %v2218 = vmul.f32 %v2216, %v50
  %v2219 = vsel %vm91, %v2218, 0.0
  %v2220 = vrot.slane %v2219, 4
  %v2221 = vadd.f32 %v2219, %v2220
  %v2222 = vrot.slane %v2221, 2
  %v2223 = vadd.f32 %v2221, %v2222
  %v2224 = vrot.slane %v2223, 1
  %v2225 = vadd.f32 %v2223, %v2224
  %v2227 = vsel %vm91, %v2225, 0
  %2229 = vmatpush.msra.mxu0 0.0
  %2230 = vmatpush.msra.mxu0 0.0
  %2231 = vmatpush.msra.mxu0 0.0
  %2232 = vmatpush.msra.mxu0 0.0
  %2233 = vmatpush.msra.mxu0 0.0
  %2234 = vmatpush.msra.mxu0 0.0
  %2235 = vmatpush.msra.mxu0 0.0
  %2236 = vmatpush.msra.mxu0 0.0
  %2237 = vmatpush.msra.mxu0 0.0
  %2238 = vmatpush.msra.mxu0 0.0
  %2239 = vmatpush.msra.mxu0 0.0
  %2240 = vmatpush.msra.mxu0 0.0
  %2241 = vmatpush.msra.mxu0 %v590
  %2242 = vmatpush.msra.mxu0 %v589
  %2243 = vmatpush.msra.mxu0 %v588
  %2244 = vmatpush.msra.mxu0 %v587
  %2245 = vmatmul.f32.gmra.mxu0 %v2227
  %v2246 = vpop.f32.mrf.mxu0
  %v2247 = vadd.f32 0.0, %v2246
  %2248 = vdwg.mxu0
  %v2249 = vadd.f32 %v2213, %v2247
  %v2250 = vmul.f32 %v80, -1e+09
  %2252 = vset.pattern.permute.xlu0 0
  %2253 = vperm.xlu0 %2252, %v2250
  %v2254 = vpop.permute.xlu0 %2253
  %v2256 = vadd.f32 %v333, %v2254
  %v2257 = vsel %vm638, %v2256, -inf
  %v2258 = vrot.slane %v2257, 4
  %v2259 = vmax.f32 %v2257, %v2258
  %v2260 = vrot.slane %v2259, 2
  %v2261 = vmax.f32 %v2259, %v2260
  %v2262 = vrot.slane %v2261, 1
  %v2263 = vmax.f32 %v2261, %v2262
  %v2264 = vsub.f32 %v2256, %v2263
  %v2265 = vmul.f32 %v2264, 1.442695
  %v2266 = vpow.pop %v2265
  %v2267 = vsel %vm638, %v2266, 0.0
  %v2268 = vrot.slane %v2267, 4
  %v2269 = vadd.f32 %v2267, %v2268
  %v2270 = vrot.slane %v2269, 2
  %v2271 = vadd.f32 %v2269, %v2270
  %v2272 = vrot.slane %v2271, 1
  %v2273 = vadd.f32 %v2271, %v2272
  %v2274 = vrcp.pop %v2273
  %v2275 = vmul.f32 %v2273, %v2274
  %v2276 = vsub.f32 1.0, %v2275
  %v2277 = vmul.f32 %v2274, %v2276
  %v2278 = vadd.f32 %v2274, %v2277
  %vm2279 = vweird.f32 %v2273
  %vm2280 = vweird.f32 %v2274
  %vm2281 = vmor %vm2279, %vm2280
  %v2282 = vsel %vm2281, %v2274, %v2278
  %v2283 = vand.u32 2147483647, %v2273
  %vm2284 = vcmp.eq.f32.partialorder %v2283, 8.507059e+37
  %v2285 = vand.u32 %v2273, 2147483648
  %v2286 = vor.u32 1.1754944e-38, %v2285
  %v2287 = vsel %vm2284, %v2286, %v2282
  %v2288 = vmul.f32 %v2266, %v2287
  %2290 = vset.pattern.permute.xlu0 0
  %2291 = vperm.xlu0 %2290, %v2288
  %v2292 = vpop.permute.xlu0 %2291
  %v2294 = vmul.f32 %v2292, %v62
  %v2295 = vsel %vm91, %v2294, 0.0
  %v2296 = vrot.slane %v2295, 4
  %v2297 = vadd.f32 %v2295, %v2296
  %v2298 = vrot.slane %v2297, 2
  %v2299 = vadd.f32 %v2297, %v2298
  %v2300 = vrot.slane %v2299, 1
  %v2301 = vadd.f32 %v2299, %v2300
  %v2303 = vsel %vm91, %v2301, 0
  %2305 = vmatpush.msra.mxu0 0.0
  %2306 = vmatpush.msra.mxu0 0.0
  %2307 = vmatpush.msra.mxu0 0.0
  %2308 = vmatpush.msra.mxu0 0.0
  %2309 = vmatpush.msra.mxu0 0.0
  %2310 = vmatpush.msra.mxu0 0.0
  %2311 = vmatpush.msra.mxu0 0.0
  %2312 = vmatpush.msra.mxu0 0.0
  %2313 = vmatpush.msra.mxu0 0.0
  %2314 = vmatpush.msra.mxu0 0.0
  %2315 = vmatpush.msra.mxu0 0.0
  %2316 = vmatpush.msra.mxu0 0.0
  %2317 = vmatpush.msra.mxu0 %v595
  %2318 = vmatpush.msra.mxu0 %v594
  %2319 = vmatpush.msra.mxu0 %v593
  %2320 = vmatpush.msra.mxu0 %v592
  %2321 = vmatmul.f32.gmra.mxu0 %v2303
  %v2322 = vpop.f32.mrf.mxu0
  %v2323 = vadd.f32 0.0, %v2322
  %2324 = vdwg.mxu0
  %v2325 = vadd.f32 %v620, %v2323
  %2326 = vset.pattern.permute.xlu0 1
  %2327 = vperm.xlu0 %2326, %v2288
  %v2328 = vpop.permute.xlu0 %2327
  %v2330 = vmul.f32 %v2328, %v62
  %v2331 = vsel %vm91, %v2330, 0.0
  %v2332 = vrot.slane %v2331, 4
  %v2333 = vadd.f32 %v2331, %v2332
  %v2334 = vrot.slane %v2333, 2
  %v2335 = vadd.f32 %v2333, %v2334
  %v2336 = vrot.slane %v2335, 1
  %v2337 = vadd.f32 %v2335, %v2336
  %v2339 = vsel %vm91, %v2337, 0
  %2341 = vmatpush.msra.mxu0 0.0
  %2342 = vmatpush.msra.mxu0 0.0
  %2343 = vmatpush.msra.mxu0 0.0
  %2344 = vmatpush.msra.mxu0 0.0
  %2345 = vmatpush.msra.mxu0 0.0
  %2346 = vmatpush.msra.mxu0 0.0
  %2347 = vmatpush.msra.mxu0 0.0
  %2348 = vmatpush.msra.mxu0 0.0
  %2349 = vmatpush.msra.mxu0 0.0
  %2350 = vmatpush.msra.mxu0 0.0
  %2351 = vmatpush.msra.mxu0 0.0
  %2352 = vmatpush.msra.mxu0 0.0
  %2353 = vmatpush.msra.mxu0 %v599
  %2354 = vmatpush.msra.mxu0 %v598
  %2355 = vmatpush.msra.mxu0 %v597
  %2356 = vmatpush.msra.mxu0 %v596
  %2357 = vmatmul.f32.gmra.mxu0 %v2339
  %v2358 = vpop.f32.mrf.mxu0
  %v2359 = vadd.f32 0.0, %v2358
  %2360 = vdwg.mxu0
  %v2361 = vadd.f32 %v2325, %v2359
  %v2362 = vadd.f32 %v2249, %v2361
  %v2363 = vmul.f32 %v74, -1e+09
  %2365 = vset.pattern.permute.xlu0 0
  %2366 = vperm.xlu0 %2365, %v2363
  %v2367 = vpop.permute.xlu0 %2366
  %v2369 = vadd.f32 %v463, %v2367
  %v2370 = vsel %vm638, %v2369, -inf
  %v2371 = vrot.slane %v2370, 4
  %v2372 = vmax.f32 %v2370, %v2371
  %v2373 = vrot.slane %v2372, 2
  %v2374 = vmax.f32 %v2372, %v2373
  %v2375 = vrot.slane %v2374, 1
  %v2376 = vmax.f32 %v2374, %v2375
  %v2377 = vsub.f32 %v2369, %v2376
  %v2378 = vmul.f32 %v2377, 1.442695
  %v2379 = vpow.pop %v2378
  %v2380 = vsel %vm638, %v2379, 0.0
  %v2381 = vrot.slane %v2380, 4
  %v2382 = vadd.f32 %v2380, %v2381
  %v2383 = vrot.slane %v2382, 2
  %v2384 = vadd.f32 %v2382, %v2383
  %v2385 = vrot.slane %v2384, 1
  %v2386 = vadd.f32 %v2384, %v2385
  %v2387 = vrcp.pop %v2386
  %v2388 = vmul.f32 %v2386, %v2387
  %v2389 = vsub.f32 1.0, %v2388
  %v2390 = vmul.f32 %v2387, %v2389
  %v2391 = vadd.f32 %v2387, %v2390
  %vm2392 = vweird.f32 %v2386
  %vm2393 = vweird.f32 %v2387
  %vm2394 = vmor %vm2392, %vm2393
  %v2395 = vsel %vm2394, %v2387, %v2391
  %v2396 = vand.u32 2147483647, %v2386
  %vm2397 = vcmp.eq.f32.partialorder %v2396, 8.507059e+37
  %v2398 = vand.u32 %v2386, 2147483648
  %v2399 = vor.u32 1.1754944e-38, %v2398
  %v2400 = vsel %vm2397, %v2399, %v2395
  %v2401 = vmul.f32 %v2379, %v2400
  %2403 = vset.pattern.permute.xlu0 0
  %2404 = vperm.xlu0 %2403, %v2401
  %v2405 = vpop.permute.xlu0 %2404
  %v2407 = vmul.f32 %v2405, %v56
  %v2408 = vsel %vm91, %v2407, 0.0
  %v2409 = vrot.slane %v2408, 4
  %v2410 = vadd.f32 %v2408, %v2409
  %v2411 = vrot.slane %v2410, 2
  %v2412 = vadd.f32 %v2410, %v2411
  %v2413 = vrot.slane %v2412, 1
  %v2414 = vadd.f32 %v2412, %v2413
  %v2416 = vsel %vm91, %v2414, 0
  %2418 = vmatpush.msra.mxu0 0.0
  %2419 = vmatpush.msra.mxu0 0.0
  %2420 = vmatpush.msra.mxu0 0.0
  %2421 = vmatpush.msra.mxu0 0.0
  %2422 = vmatpush.msra.mxu0 0.0
  %2423 = vmatpush.msra.mxu0 0.0
  %2424 = vmatpush.msra.mxu0 0.0
  %2425 = vmatpush.msra.mxu0 0.0
  %2426 = vmatpush.msra.mxu0 0.0
  %2427 = vmatpush.msra.mxu0 0.0
  %2428 = vmatpush.msra.mxu0 0.0
  %2429 = vmatpush.msra.mxu0 0.0
  %2430 = vmatpush.msra.mxu0 %v604
  %2431 = vmatpush.msra.mxu0 %v603
  %2432 = vmatpush.msra.mxu0 %v602
  %2433 = vmatpush.msra.mxu0 %v601
  %2434 = vmatmul.f32.gmra.mxu0 %v2416
  %v2435 = vpop.f32.mrf.mxu0
  %v2436 = vadd.f32 0.0, %v2435
  %2437 = vdwg.mxu0
  %v2438 = vadd.f32 %v622, %v2436
  %2439 = vset.pattern.permute.xlu0 1
  %2440 = vperm.xlu0 %2439, %v2401
  %v2441 = vpop.permute.xlu0 %2440
  %v2443 = vmul.f32 %v2441, %v56
  %v2444 = vsel %vm91, %v2443, 0.0
  %v2445 = vrot.slane %v2444, 4
  %v2446 = vadd.f32 %v2444, %v2445
  %v2447 = vrot.slane %v2446, 2
  %v2448 = vadd.f32 %v2446, %v2447
  %v2449 = vrot.slane %v2448, 1
  %v2450 = vadd.f32 %v2448, %v2449
  %v2452 = vsel %vm91, %v2450, 0
  %2454 = vmatpush.msra.mxu0 0.0
  %2455 = vmatpush.msra.mxu0 0.0
  %2456 = vmatpush.msra.mxu0 0.0
  %2457 = vmatpush.msra.mxu0 0.0
  %2458 = vmatpush.msra.mxu0 0.0
  %2459 = vmatpush.msra.mxu0 0.0
  %2460 = vmatpush.msra.mxu0 0.0
  %2461 = vmatpush.msra.mxu0 0.0
  %2462 = vmatpush.msra.mxu0 0.0
  %2463 = vmatpush.msra.mxu0 0.0
  %2464 = vmatpush.msra.mxu0 0.0
  %2465 = vmatpush.msra.mxu0 0.0
  %2466 = vmatpush.msra.mxu0 %v608
  %2467 = vmatpush.msra.mxu0 %v607
  %2468 = vmatpush.msra.mxu0 %v606
  %2469 = vmatpush.msra.mxu0 %v605
  %2470 = vmatmul.f32.gmra.mxu0 %v2452
  %v2471 = vpop.f32.mrf.mxu0
  %v2472 = vadd.f32 0.0, %v2471
  %2473 = vdwg.mxu0
  %v2474 = vadd.f32 %v2438, %v2472
  %v2475 = vadd.f32 %v575, %v2254
  %v2476 = vsel %vm638, %v2475, -inf
  %v2477 = vrot.slane %v2476, 4
  %v2478 = vmax.f32 %v2476, %v2477
  %v2479 = vrot.slane %v2478, 2
  %v2480 = vmax.f32 %v2478, %v2479
  %v2481 = vrot.slane %v2480, 1
  %v2482 = vmax.f32 %v2480, %v2481
  %v2483 = vsub.f32 %v2475, %v2482
  %v2484 = vmul.f32 %v2483, 1.442695
  %v2485 = vpow.pop %v2484
  %v2486 = vsel %vm638, %v2485, 0.0
  %v2487 = vrot.slane %v2486, 4
  %v2488 = vadd.f32 %v2486, %v2487
  %v2489 = vrot.slane %v2488, 2
  %v2490 = vadd.f32 %v2488, %v2489
  %v2491 = vrot.slane %v2490, 1
  %v2492 = vadd.f32 %v2490, %v2491
  %v2493 = vrcp.pop %v2492
  %v2494 = vmul.f32 %v2492, %v2493
  %v2495 = vsub.f32 1.0, %v2494
  %v2496 = vmul.f32 %v2493, %v2495
  %v2497 = vadd.f32 %v2493, %v2496
  %vm2498 = vweird.f32 %v2492
  %vm2499 = vweird.f32 %v2493
  %vm2500 = vmor %vm2498, %vm2499
  %v2501 = vsel %vm2500, %v2493, %v2497
  %v2502 = vand.u32 2147483647, %v2492
  %vm2503 = vcmp.eq.f32.partialorder %v2502, 8.507059e+37
  %v2504 = vand.u32 %v2492, 2147483648
  %v2505 = vor.u32 1.1754944e-38, %v2504
  %v2506 = vsel %vm2503, %v2505, %v2501
  %v2507 = vmul.f32 %v2485, %v2506
  %2509 = vset.pattern.permute.xlu0 0
  %2510 = vperm.xlu0 %2509, %v2507
  %v2511 = vpop.permute.xlu0 %2510
  %v2513 = vmul.f32 %v2511, %v62
  %v2514 = vsel %vm91, %v2513, 0.0
  %v2515 = vrot.slane %v2514, 4
  %v2516 = vadd.f32 %v2514, %v2515
  %v2517 = vrot.slane %v2516, 2
  %v2518 = vadd.f32 %v2516, %v2517
  %v2519 = vrot.slane %v2518, 1
  %v2520 = vadd.f32 %v2518, %v2519
  %v2522 = vsel %vm91, %v2520, 0
  %2524 = vmatpush.msra.mxu0 0.0
  %2525 = vmatpush.msra.mxu0 0.0
  %2526 = vmatpush.msra.mxu0 0.0
  %2527 = vmatpush.msra.mxu0 0.0
  %2528 = vmatpush.msra.mxu0 0.0
  %2529 = vmatpush.msra.mxu0 0.0
  %2530 = vmatpush.msra.mxu0 0.0
  %2531 = vmatpush.msra.mxu0 0.0
  %2532 = vmatpush.msra.mxu0 0.0
  %2533 = vmatpush.msra.mxu0 0.0
  %2534 = vmatpush.msra.mxu0 0.0
  %2535 = vmatpush.msra.mxu0 0.0
  %2536 = vmatpush.msra.mxu0 %v613
  %2537 = vmatpush.msra.mxu0 %v612
  %2538 = vmatpush.msra.mxu0 %v611
  %2539 = vmatpush.msra.mxu0 %v610
  %2540 = vmatmul.f32.gmra.mxu0 %v2522
  %v2541 = vpop.f32.mrf.mxu0
  %v2542 = vadd.f32 0.0, %v2541
  %2543 = vdwg.mxu0
  %v2544 = vadd.f32 %v624, %v2542
  %2545 = vset.pattern.permute.xlu0 1
  %2546 = vperm.xlu0 %2545, %v2507
  %v2547 = vpop.permute.xlu0 %2546
  %v2549 = vmul.f32 %v2547, %v62
  %v2550 = vsel %vm91, %v2549, 0.0
  %v2551 = vrot.slane %v2550, 4
  %v2552 = vadd.f32 %v2550, %v2551
  %v2553 = vrot.slane %v2552, 2
  %v2554 = vadd.f32 %v2552, %v2553
  %v2555 = vrot.slane %v2554, 1
  %v2556 = vadd.f32 %v2554, %v2555
  %v2558 = vsel %vm91, %v2556, 0
  %2560 = vmatpush.msra.mxu0 0.0
  %2561 = vmatpush.msra.mxu0 0.0
  %2562 = vmatpush.msra.mxu0 0.0
  %2563 = vmatpush.msra.mxu0 0.0
  %2564 = vmatpush.msra.mxu0 0.0
  %2565 = vmatpush.msra.mxu0 0.0
  %2566 = vmatpush.msra.mxu0 0.0
  %2567 = vmatpush.msra.mxu0 0.0
  %2568 = vmatpush.msra.mxu0 0.0
  %2569 = vmatpush.msra.mxu0 0.0
  %2570 = vmatpush.msra.mxu0 0.0
  %2571 = vmatpush.msra.mxu0 0.0
  %2572 = vmatpush.msra.mxu0 %v617
  %2573 = vmatpush.msra.mxu0 %v616
  %2574 = vmatpush.msra.mxu0 %v615
  %2575 = vmatpush.msra.mxu0 %v614
  %2576 = vmatmul.f32.gmra.mxu0 %v2558
  %v2577 = vpop.f32.mrf.mxu0
  %v2578 = vadd.f32 0.0, %v2577
  %2579 = vdwg.mxu0
  %v2580 = vadd.f32 %v2544, %v2578
  %v2581 = vadd.f32 %v2474, %v2580
  %v2582 = vsel %vm1076, %v2362, 0.0
  %2583 = vadd.xlane.f32.xlu0 %v2582
  %v2584 = vpop.xlane.xlu0 %2583
  %v2585 = vmul.f32 %v2584, %v1086
  %v2586 = vsub.f32 %v2362, %v2585
  %v2587 = vmul.f32 %v2586, %v2586
  %v2588 = vsel %vm1076, %v2587, 0.0
  %2589 = vadd.xlane.f32.xlu0 %v2588
  %v2590 = vpop.xlane.xlu0 %2589
  %v2591 = vmul.f32 %v2590, %v1086
  %v2592 = vadd.f32 %v2591, 1e-05
  %v2593 = vrsqrt.pop %v2592
  %v2594 = vmul.f32 %v2593, %v2592
  %v2595 = vmul.f32 %v2594, %v2593
  %v2596 = vmul.f32 0.5, %v2595
  %v2597 = vsub.f32 1.5, %v2596
  %v2598 = vmul.f32 %v2593, %v2597
  %vm2599 = vweird.f32 %v2592
  %vm2600 = vweird.f32 %v2593
  %vm2601 = vmor %vm2599, %vm2600
  %v2602 = vsel %vm2601, %v2593, %v2598
  %v2603 = vmul.f32 %v2586, %v2602
  %v2604 = vmul.f32 %v2603, %v625
  %v2605 = vadd.f32 %v2604, %v628
  %2606 = vst.msk [vmem:[%s14 + $0x3] sm:$0x1] %vm1076, %v2605
  %v2607 = vsel %vm1076, %v2581, 0.0
  %2608 = vadd.xlane.f32.xlu0 %v2607
  %v2609 = vpop.xlane.xlu0 %2608
  %v2610 = vmul.f32 %v2609, %v1086
  %v2611 = vsub.f32 %v2581, %v2610
  %v2612 = vmul.f32 %v2611, %v2611
  %v2613 = vsel %vm1076, %v2612, 0.0
  %2614 = vadd.xlane.f32.xlu0 %v2613
  %v2615 = vpop.xlane.xlu0 %2614
  %v2616 = vmul.f32 %v2615, %v1086
  %v2617 = vadd.f32 %v2616, 1e-05
  %v2618 = vrsqrt.pop %v2617
  %v2619 = vmul.f32 %v2618, %v2617
  %v2620 = vmul.f32 %v2619, %v2618
  %v2621 = vmul.f32 0.5, %v2620
  %v2622 = vsub.f32 1.5, %v2621
  %v2623 = vmul.f32 %v2618, %v2622
  %vm2624 = vweird.f32 %v2617
  %vm2625 = vweird.f32 %v2618
  %vm2626 = vmor %vm2624, %vm2625
  %v2627 = vsel %vm2626, %v2618, %v2623
  %v2628 = vmul.f32 %v2611, %v2627
  %v2629 = vmul.f32 %v2628, %v627
  %v2630 = vadd.f32 %v2629, %v630
  %v2632 = vperm.slane %v2630, 0
  %2633 = vrot.lane.b32.xlu0 %v2632, 32
  %v2634 = vpop.permute.xlu0 %2633
  %2636 = vst.msk [vmem:[%s14 + $0x3] sm:$0x1] %vm1138, %v2634
  %v2637 = vmul.f32 %v69, -1e+09
  %2639 = vset.pattern.permute.xlu0 0
  %2640 = vperm.xlu0 %2639, %v2637
  %v2641 = vpop.permute.xlu0 %2640
  %v2643 = vadd.f32 %v206, %v2641
  %v2644 = vsel %vm638, %v2643, -inf
  %v2645 = vrot.slane %v2644, 4
  %v2646 = vmax.f32 %v2644, %v2645
  %v2647 = vrot.slane %v2646, 2
  %v2648 = vmax.f32 %v2646, %v2647
  %v2649 = vrot.slane %v2648, 1
  %v2650 = vmax.f32 %v2648, %v2649
  %v2651 = vsub.f32 %v2643, %v2650
  %v2652 = vmul.f32 %v2651, 1.442695
  %v2653 = vpow.pop %v2652
  %v2654 = vsel %vm638, %v2653, 0.0
  %v2655 = vrot.slane %v2654, 4
  %v2656 = vadd.f32 %v2654, %v2655
  %v2657 = vrot.slane %v2656, 2
  %v2658 = vadd.f32 %v2656, %v2657
  %v2659 = vrot.slane %v2658, 1
  %v2660 = vadd.f32 %v2658, %v2659
  %v2661 = vrcp.pop %v2660
  %v2662 = vmul.f32 %v2660, %v2661
  %v2663 = vsub.f32 1.0, %v2662
  %v2664 = vmul.f32 %v2661, %v2663
  %v2665 = vadd.f32 %v2661, %v2664
  %vm2666 = vweird.f32 %v2660
  %vm2667 = vweird.f32 %v2661
  %vm2668 = vmor %vm2666, %vm2667
  %v2669 = vsel %vm2668, %v2661, %v2665
  %v2670 = vand.u32 2147483647, %v2660
  %vm2671 = vcmp.eq.f32.partialorder %v2670, 8.507059e+37
  %v2672 = vand.u32 %v2660, 2147483648
  %v2673 = vor.u32 1.1754944e-38, %v2672
  %v2674 = vsel %vm2671, %v2673, %v2669
  %v2675 = vmul.f32 %v2653, %v2674
  %2677 = vset.pattern.permute.xlu0 0
  %2678 = vperm.xlu0 %2677, %v2675
  %v2679 = vpop.permute.xlu0 %2678
  %v2681 = vmul.f32 %v2679, %v51
  %v2682 = vsel %vm91, %v2681, 0.0
  %v2683 = vrot.slane %v2682, 4
  %v2684 = vadd.f32 %v2682, %v2683
  %v2685 = vrot.slane %v2684, 2
  %v2686 = vadd.f32 %v2684, %v2685
  %v2687 = vrot.slane %v2686, 1
  %v2688 = vadd.f32 %v2686, %v2687
  %v2690 = vsel %vm91, %v2688, 0
  %2692 = vmatpush.msra.mxu0 0.0
  %2693 = vmatpush.msra.mxu0 0.0
  %2694 = vmatpush.msra.mxu0 0.0
  %2695 = vmatpush.msra.mxu0 0.0
  %2696 = vmatpush.msra.mxu0 0.0
  %2697 = vmatpush.msra.mxu0 0.0
  %2698 = vmatpush.msra.mxu0 0.0
  %2699 = vmatpush.msra.mxu0 0.0
  %2700 = vmatpush.msra.mxu0 0.0
  %2701 = vmatpush.msra.mxu0 0.0
  %2702 = vmatpush.msra.mxu0 0.0
  %2703 = vmatpush.msra.mxu0 0.0
  %2704 = vmatpush.msra.mxu0 %v586
  %2705 = vmatpush.msra.mxu0 %v585
  %2706 = vmatpush.msra.mxu0 %v584
  %2707 = vmatpush.msra.mxu0 %v583
  %2708 = vmatmul.f32.gmra.mxu0 %v2690
  %v2709 = vpop.f32.mrf.mxu0
  %v2710 = vadd.f32 0.0, %v2709
  %2711 = vdwg.mxu0
  %v2712 = vadd.f32 %v618, %v2710
  %2713 = vset.pattern.permute.xlu0 1
  %2714 = vperm.xlu0 %2713, %v2675
  %v2715 = vpop.permute.xlu0 %2714
  %v2717 = vmul.f32 %v2715, %v51
  %v2718 = vsel %vm91, %v2717, 0.0
  %v2719 = vrot.slane %v2718, 4
  %v2720 = vadd.f32 %v2718, %v2719
  %v2721 = vrot.slane %v2720, 2
  %v2722 = vadd.f32 %v2720, %v2721
  %v2723 = vrot.slane %v2722, 1
  %v2724 = vadd.f32 %v2722, %v2723
  %v2726 = vsel %vm91, %v2724, 0
  %2728 = vmatpush.msra.mxu0 0.0
  %2729 = vmatpush.msra.mxu0 0.0
  %2730 = vmatpush.msra.mxu0 0.0
  %2731 = vmatpush.msra.mxu0 0.0
  %2732 = vmatpush.msra.mxu0 0.0
  %2733 = vmatpush.msra.mxu0 0.0
  %2734 = vmatpush.msra.mxu0 0.0
  %2735 = vmatpush.msra.mxu0 0.0
  %2736 = vmatpush.msra.mxu0 0.0
  %2737 = vmatpush.msra.mxu0 0.0
  %2738 = vmatpush.msra.mxu0 0.0
  %2739 = vmatpush.msra.mxu0 0.0
  %2740 = vmatpush.msra.mxu0 %v590
  %2741 = vmatpush.msra.mxu0 %v589
  %2742 = vmatpush.msra.mxu0 %v588
  %2743 = vmatpush.msra.mxu0 %v587
  %2744 = vmatmul.f32.gmra.mxu0 %v2726
  %v2745 = vpop.f32.mrf.mxu0
  %v2746 = vadd.f32 0.0, %v2745
  %2747 = vdwg.mxu0
  %v2748 = vadd.f32 %v2712, %v2746
  %v2749 = vmul.f32 %v81, -1e+09
  %2751 = vset.pattern.permute.xlu0 0
  %2752 = vperm.xlu0 %2751, %v2749
  %v2753 = vpop.permute.xlu0 %2752
  %v2755 = vadd.f32 %v336, %v2753
  %v2756 = vsel %vm638, %v2755, -inf
  %v2757 = vrot.slane %v2756, 4
  %v2758 = vmax.f32 %v2756, %v2757
  %v2759 = vrot.slane %v2758, 2
  %v2760 = vmax.f32 %v2758, %v2759
  %v2761 = vrot.slane %v2760, 1
  %v2762 = vmax.f32 %v2760, %v2761
  %v2763 = vsub.f32 %v2755, %v2762
  %v2764 = vmul.f32 %v2763, 1.442695
  %v2765 = vpow.pop %v2764
  %v2766 = vsel %vm638, %v2765, 0.0
  %v2767 = vrot.slane %v2766, 4
  %v2768 = vadd.f32 %v2766, %v2767
  %v2769 = vrot.slane %v2768, 2
  %v2770 = vadd.f32 %v2768, %v2769
  %v2771 = vrot.slane %v2770, 1
  %v2772 = vadd.f32 %v2770, %v2771
  %v2773 = vrcp.pop %v2772
  %v2774 = vmul.f32 %v2772, %v2773
  %v2775 = vsub.f32 1.0, %v2774
  %v2776 = vmul.f32 %v2773, %v2775
  %v2777 = vadd.f32 %v2773, %v2776
  %vm2778 = vweird.f32 %v2772
  %vm2779 = vweird.f32 %v2773
  %vm2780 = vmor %vm2778, %vm2779
  %v2781 = vsel %vm2780, %v2773, %v2777
  %v2782 = vand.u32 2147483647, %v2772
  %vm2783 = vcmp.eq.f32.partialorder %v2782, 8.507059e+37
  %v2784 = vand.u32 %v2772, 2147483648
  %v2785 = vor.u32 1.1754944e-38, %v2784
  %v2786 = vsel %vm2783, %v2785, %v2781
  %v2787 = vmul.f32 %v2765, %v2786
  %2789 = vset.pattern.permute.xlu0 0
  %2790 = vperm.xlu0 %2789, %v2787
  %v2791 = vpop.permute.xlu0 %2790
  %v2793 = vmul.f32 %v2791, %v63
  %v2794 = vsel %vm91, %v2793, 0.0
  %v2795 = vrot.slane %v2794, 4
  %v2796 = vadd.f32 %v2794, %v2795
  %v2797 = vrot.slane %v2796, 2
  %v2798 = vadd.f32 %v2796, %v2797
  %v2799 = vrot.slane %v2798, 1
  %v2800 = vadd.f32 %v2798, %v2799
  %v2802 = vsel %vm91, %v2800, 0
  %2804 = vmatpush.msra.mxu0 0.0
  %2805 = vmatpush.msra.mxu0 0.0
  %2806 = vmatpush.msra.mxu0 0.0
  %2807 = vmatpush.msra.mxu0 0.0
  %2808 = vmatpush.msra.mxu0 0.0
  %2809 = vmatpush.msra.mxu0 0.0
  %2810 = vmatpush.msra.mxu0 0.0
  %2811 = vmatpush.msra.mxu0 0.0
  %2812 = vmatpush.msra.mxu0 0.0
  %2813 = vmatpush.msra.mxu0 0.0
  %2814 = vmatpush.msra.mxu0 0.0
  %2815 = vmatpush.msra.mxu0 0.0
  %2816 = vmatpush.msra.mxu0 %v595
  %2817 = vmatpush.msra.mxu0 %v594
  %2818 = vmatpush.msra.mxu0 %v593
  %2819 = vmatpush.msra.mxu0 %v592
  %2820 = vmatmul.f32.gmra.mxu0 %v2802
  %v2821 = vpop.f32.mrf.mxu0
  %v2822 = vadd.f32 0.0, %v2821
  %2823 = vdwg.mxu0
  %v2824 = vadd.f32 %v620, %v2822
  %2825 = vset.pattern.permute.xlu0 1
  %2826 = vperm.xlu0 %2825, %v2787
  %v2827 = vpop.permute.xlu0 %2826
  %v2829 = vmul.f32 %v2827, %v63
  %v2830 = vsel %vm91, %v2829, 0.0
  %v2831 = vrot.slane %v2830, 4
  %v2832 = vadd.f32 %v2830, %v2831
  %v2833 = vrot.slane %v2832, 2
  %v2834 = vadd.f32 %v2832, %v2833
  %v2835 = vrot.slane %v2834, 1
  %v2836 = vadd.f32 %v2834, %v2835
  %v2838 = vsel %vm91, %v2836, 0
  %2840 = vmatpush.msra.mxu0 0.0
  %2841 = vmatpush.msra.mxu0 0.0
  %2842 = vmatpush.msra.mxu0 0.0
  %2843 = vmatpush.msra.mxu0 0.0
  %2844 = vmatpush.msra.mxu0 0.0
  %2845 = vmatpush.msra.mxu0 0.0
  %2846 = vmatpush.msra.mxu0 0.0
  %2847 = vmatpush.msra.mxu0 0.0
  %2848 = vmatpush.msra.mxu0 0.0
  %2849 = vmatpush.msra.mxu0 0.0
  %2850 = vmatpush.msra.mxu0 0.0
  %2851 = vmatpush.msra.mxu0 0.0
  %2852 = vmatpush.msra.mxu0 %v599
  %2853 = vmatpush.msra.mxu0 %v598
  %2854 = vmatpush.msra.mxu0 %v597
  %2855 = vmatpush.msra.mxu0 %v596
  %2856 = vmatmul.f32.gmra.mxu0 %v2838
  %v2857 = vpop.f32.mrf.mxu0
  %v2858 = vadd.f32 0.0, %v2857
  %2859 = vdwg.mxu0
  %v2860 = vadd.f32 %v2824, %v2858
  %v2861 = vadd.f32 %v2748, %v2860
  %v2862 = vmul.f32 %v75, -1e+09
  %2864 = vset.pattern.permute.xlu0 0
  %2865 = vperm.xlu0 %2864, %v2862
  %v2866 = vpop.permute.xlu0 %2865
  %v2868 = vadd.f32 %v466, %v2866
  %v2869 = vsel %vm638, %v2868, -inf
  %v2870 = vrot.slane %v2869, 4
  %v2871 = vmax.f32 %v2869, %v2870
  %v2872 = vrot.slane %v2871, 2
  %v2873 = vmax.f32 %v2871, %v2872
  %v2874 = vrot.slane %v2873, 1
  %v2875 = vmax.f32 %v2873, %v2874
  %v2876 = vsub.f32 %v2868, %v2875
  %v2877 = vmul.f32 %v2876, 1.442695
  %v2878 = vpow.pop %v2877
  %v2879 = vsel %vm638, %v2878, 0.0
  %v2880 = vrot.slane %v2879, 4
  %v2881 = vadd.f32 %v2879, %v2880
  %v2882 = vrot.slane %v2881, 2
  %v2883 = vadd.f32 %v2881, %v2882
  %v2884 = vrot.slane %v2883, 1
  %v2885 = vadd.f32 %v2883, %v2884
  %v2886 = vrcp.pop %v2885
  %v2887 = vmul.f32 %v2885, %v2886
  %v2888 = vsub.f32 1.0, %v2887
  %v2889 = vmul.f32 %v2886, %v2888
  %v2890 = vadd.f32 %v2886, %v2889
  %vm2891 = vweird.f32 %v2885
  %vm2892 = vweird.f32 %v2886
  %vm2893 = vmor %vm2891, %vm2892
  %v2894 = vsel %vm2893, %v2886, %v2890
  %v2895 = vand.u32 2147483647, %v2885
  %vm2896 = vcmp.eq.f32.partialorder %v2895, 8.507059e+37
  %v2897 = vand.u32 %v2885, 2147483648
  %v2898 = vor.u32 1.1754944e-38, %v2897
  %v2899 = vsel %vm2896, %v2898, %v2894
  %v2900 = vmul.f32 %v2878, %v2899
  %2902 = vset.pattern.permute.xlu0 0
  %2903 = vperm.xlu0 %2902, %v2900
  %v2904 = vpop.permute.xlu0 %2903
  %v2906 = vmul.f32 %v2904, %v57
  %v2907 = vsel %vm91, %v2906, 0.0
  %v2908 = vrot.slane %v2907, 4
  %v2909 = vadd.f32 %v2907, %v2908
  %v2910 = vrot.slane %v2909, 2
  %v2911 = vadd.f32 %v2909, %v2910
  %v2912 = vrot.slane %v2911, 1
  %v2913 = vadd.f32 %v2911, %v2912
  %v2915 = vsel %vm91, %v2913, 0
  %2917 = vmatpush.msra.mxu0 0.0
  %2918 = vmatpush.msra.mxu0 0.0
  %2919 = vmatpush.msra.mxu0 0.0
  %2920 = vmatpush.msra.mxu0 0.0
  %2921 = vmatpush.msra.mxu0 0.0
  %2922 = vmatpush.msra.mxu0 0.0
  %2923 = vmatpush.msra.mxu0 0.0
  %2924 = vmatpush.msra.mxu0 0.0
  %2925 = vmatpush.msra.mxu0 0.0
  %2926 = vmatpush.msra.mxu0 0.0
  %2927 = vmatpush.msra.mxu0 0.0
  %2928 = vmatpush.msra.mxu0 0.0
  %2929 = vmatpush.msra.mxu0 %v604
  %2930 = vmatpush.msra.mxu0 %v603
  %2931 = vmatpush.msra.mxu0 %v602
  %2932 = vmatpush.msra.mxu0 %v601
  %2933 = vmatmul.f32.gmra.mxu0 %v2915
  %v2934 = vpop.f32.mrf.mxu0
  %v2935 = vadd.f32 0.0, %v2934
  %2936 = vdwg.mxu0
  %v2937 = vadd.f32 %v622, %v2935
  %2938 = vset.pattern.permute.xlu0 1
  %2939 = vperm.xlu0 %2938, %v2900
  %v2940 = vpop.permute.xlu0 %2939
  %v2942 = vmul.f32 %v2940, %v57
  %v2943 = vsel %vm91, %v2942, 0.0
  %v2944 = vrot.slane %v2943, 4
  %v2945 = vadd.f32 %v2943, %v2944
  %v2946 = vrot.slane %v2945, 2
  %v2947 = vadd.f32 %v2945, %v2946
  %v2948 = vrot.slane %v2947, 1
  %v2949 = vadd.f32 %v2947, %v2948
  %v2951 = vsel %vm91, %v2949, 0
  %2953 = vmatpush.msra.mxu0 0.0
  %2954 = vmatpush.msra.mxu0 0.0
  %2955 = vmatpush.msra.mxu0 0.0
  %2956 = vmatpush.msra.mxu0 0.0
  %2957 = vmatpush.msra.mxu0 0.0
  %2958 = vmatpush.msra.mxu0 0.0
  %2959 = vmatpush.msra.mxu0 0.0
  %2960 = vmatpush.msra.mxu0 0.0
  %2961 = vmatpush.msra.mxu0 0.0
  %2962 = vmatpush.msra.mxu0 0.0
  %2963 = vmatpush.msra.mxu0 0.0
  %2964 = vmatpush.msra.mxu0 0.0
  %2965 = vmatpush.msra.mxu0 %v608
  %2966 = vmatpush.msra.mxu0 %v607
  %2967 = vmatpush.msra.mxu0 %v606
  %2968 = vmatpush.msra.mxu0 %v605
  %2969 = vmatmul.f32.gmra.mxu0 %v2951
  %v2970 = vpop.f32.mrf.mxu0
  %v2971 = vadd.f32 0.0, %v2970
  %2972 = vdwg.mxu0
  %v2973 = vadd.f32 %v2937, %v2971
  %v2974 = vadd.f32 %v578, %v2753
  %v2975 = vsel %vm638, %v2974, -inf
  %v2976 = vrot.slane %v2975, 4
  %v2977 = vmax.f32 %v2975, %v2976
  %v2978 = vrot.slane %v2977, 2
  %v2979 = vmax.f32 %v2977, %v2978
  %v2980 = vrot.slane %v2979, 1
  %v2981 = vmax.f32 %v2979, %v2980
  %v2982 = vsub.f32 %v2974, %v2981
  %v2983 = vmul.f32 %v2982, 1.442695
  %v2984 = vpow.pop %v2983
  %v2985 = vsel %vm638, %v2984, 0.0
  %v2986 = vrot.slane %v2985, 4
  %v2987 = vadd.f32 %v2985, %v2986
  %v2988 = vrot.slane %v2987, 2
  %v2989 = vadd.f32 %v2987, %v2988
  %v2990 = vrot.slane %v2989, 1
  %v2991 = vadd.f32 %v2989, %v2990
  %v2992 = vrcp.pop %v2991
  %v2993 = vmul.f32 %v2991, %v2992
  %v2994 = vsub.f32 1.0, %v2993
  %v2995 = vmul.f32 %v2992, %v2994
  %v2996 = vadd.f32 %v2992, %v2995
  %vm2997 = vweird.f32 %v2991
  %vm2998 = vweird.f32 %v2992
  %vm2999 = vmor %vm2997, %vm2998
  %v3000 = vsel %vm2999, %v2992, %v2996
  %v3001 = vand.u32 2147483647, %v2991
  %vm3002 = vcmp.eq.f32.partialorder %v3001, 8.507059e+37
  %v3003 = vand.u32 %v2991, 2147483648
  %v3004 = vor.u32 1.1754944e-38, %v3003
  %v3005 = vsel %vm3002, %v3004, %v3000
  %v3006 = vmul.f32 %v2984, %v3005
  %3008 = vset.pattern.permute.xlu0 0
  %3009 = vperm.xlu0 %3008, %v3006
  %v3010 = vpop.permute.xlu0 %3009
  %v3012 = vmul.f32 %v3010, %v63
  %v3013 = vsel %vm91, %v3012, 0.0
  %v3014 = vrot.slane %v3013, 4
  %v3015 = vadd.f32 %v3013, %v3014
  %v3016 = vrot.slane %v3015, 2
  %v3017 = vadd.f32 %v3015, %v3016
  %v3018 = vrot.slane %v3017, 1
  %v3019 = vadd.f32 %v3017, %v3018
  %v3021 = vsel %vm91, %v3019, 0
  %3023 = vmatpush.msra.mxu0 0.0
  %3024 = vmatpush.msra.mxu0 0.0
  %3025 = vmatpush.msra.mxu0 0.0
  %3026 = vmatpush.msra.mxu0 0.0
  %3027 = vmatpush.msra.mxu0 0.0
  %3028 = vmatpush.msra.mxu0 0.0
  %3029 = vmatpush.msra.mxu0 0.0
  %3030 = vmatpush.msra.mxu0 0.0
  %3031 = vmatpush.msra.mxu0 0.0
  %3032 = vmatpush.msra.mxu0 0.0
  %3033 = vmatpush.msra.mxu0 0.0
  %3034 = vmatpush.msra.mxu0 0.0
  %3035 = vmatpush.msra.mxu0 %v613
  %3036 = vmatpush.msra.mxu0 %v612
  %3037 = vmatpush.msra.mxu0 %v611
  %3038 = vmatpush.msra.mxu0 %v610
  %3039 = vmatmul.f32.gmra.mxu0 %v3021
  %v3040 = vpop.f32.mrf.mxu0
  %v3041 = vadd.f32 0.0, %v3040
  %3042 = vdwg.mxu0
  %v3043 = vadd.f32 %v624, %v3041
  %3044 = vset.pattern.permute.xlu0 1
  %3045 = vperm.xlu0 %3044, %v3006
  %v3046 = vpop.permute.xlu0 %3045
  %v3048 = vmul.f32 %v3046, %v63
  %v3049 = vsel %vm91, %v3048, 0.0
  %v3050 = vrot.slane %v3049, 4
  %v3051 = vadd.f32 %v3049, %v3050
  %v3052 = vrot.slane %v3051, 2
  %v3053 = vadd.f32 %v3051, %v3052
  %v3054 = vrot.slane %v3053, 1
  %v3055 = vadd.f32 %v3053, %v3054
  %v3057 = vsel %vm91, %v3055, 0
  %3059 = vmatpush.msra.mxu0 0.0
  %3060 = vmatpush.msra.mxu0 0.0
  %3061 = vmatpush.msra.mxu0 0.0
  %3062 = vmatpush.msra.mxu0 0.0
  %3063 = vmatpush.msra.mxu0 0.0
  %3064 = vmatpush.msra.mxu0 0.0
  %3065 = vmatpush.msra.mxu0 0.0
  %3066 = vmatpush.msra.mxu0 0.0
  %3067 = vmatpush.msra.mxu0 0.0
  %3068 = vmatpush.msra.mxu0 0.0
  %3069 = vmatpush.msra.mxu0 0.0
  %3070 = vmatpush.msra.mxu0 0.0
  %3071 = vmatpush.msra.mxu0 %v617
  %3072 = vmatpush.msra.mxu0 %v616
  %3073 = vmatpush.msra.mxu0 %v615
  %3074 = vmatpush.msra.mxu0 %v614
  %3075 = vmatmul.f32.gmra.mxu0 %v3057
  %v3076 = vpop.f32.mrf.mxu0
  %v3077 = vadd.f32 0.0, %v3076
  %3078 = vdwg.mxu0
  %v3079 = vadd.f32 %v3043, %v3077
  %v3080 = vadd.f32 %v2973, %v3079
  %v3081 = vsel %vm1076, %v2861, 0.0
  %3082 = vadd.xlane.f32.xlu0 %v3081
  %v3083 = vpop.xlane.xlu0 %3082
  %v3084 = vmul.f32 %v3083, %v1086
  %v3085 = vsub.f32 %v2861, %v3084
  %v3086 = vmul.f32 %v3085, %v3085
  %v3087 = vsel %vm1076, %v3086, 0.0
  %3088 = vadd.xlane.f32.xlu0 %v3087
  %v3089 = vpop.xlane.xlu0 %3088
  %v3090 = vmul.f32 %v3089, %v1086
  %v3091 = vadd.f32 %v3090, 1e-05
  %v3092 = vrsqrt.pop %v3091
  %v3093 = vmul.f32 %v3092, %v3091
  %v3094 = vmul.f32 %v3093, %v3092
  %v3095 = vmul.f32 0.5, %v3094
  %v3096 = vsub.f32 1.5, %v3095
  %v3097 = vmul.f32 %v3092, %v3096
  %vm3098 = vweird.f32 %v3091
  %vm3099 = vweird.f32 %v3092
  %vm3100 = vmor %vm3098, %vm3099
  %v3101 = vsel %vm3100, %v3092, %v3097
  %v3102 = vmul.f32 %v3085, %v3101
  %v3103 = vmul.f32 %v3102, %v625
  %v3104 = vadd.f32 %v3103, %v628
  %3105 = vst.msk [vmem:[%s14 + $0x4] sm:$0x1] %vm1076, %v3104
  %v3106 = vsel %vm1076, %v3080, 0.0
  %3107 = vadd.xlane.f32.xlu0 %v3106
  %v3108 = vpop.xlane.xlu0 %3107
  %v3109 = vmul.f32 %v3108, %v1086
  %v3110 = vsub.f32 %v3080, %v3109
  %v3111 = vmul.f32 %v3110, %v3110
  %v3112 = vsel %vm1076, %v3111, 0.0
  %3113 = vadd.xlane.f32.xlu0 %v3112
  %v3114 = vpop.xlane.xlu0 %3113
  %v3115 = vmul.f32 %v3114, %v1086
  %v3116 = vadd.f32 %v3115, 1e-05
  %v3117 = vrsqrt.pop %v3116
  %v3118 = vmul.f32 %v3117, %v3116
  %v3119 = vmul.f32 %v3118, %v3117
  %v3120 = vmul.f32 0.5, %v3119
  %v3121 = vsub.f32 1.5, %v3120
  %v3122 = vmul.f32 %v3117, %v3121
  %vm3123 = vweird.f32 %v3116
  %vm3124 = vweird.f32 %v3117
  %vm3125 = vmor %vm3123, %vm3124
  %v3126 = vsel %vm3125, %v3117, %v3122
  %v3127 = vmul.f32 %v3110, %v3126
  %v3128 = vmul.f32 %v3127, %v627
  %v3129 = vadd.f32 %v3128, %v630
  %v3131 = vperm.slane %v3129, 0
  %3132 = vrot.lane.b32.xlu0 %v3131, 32
  %v3133 = vpop.permute.xlu0 %3132
  %3135 = vst.msk [vmem:[%s14 + $0x4] sm:$0x1] %vm1138, %v3133
  %v3136 = vmul.f32 %v70, -1e+09
  %3138 = vset.pattern.permute.xlu0 0
  %3139 = vperm.xlu0 %3138, %v3136
  %v3140 = vpop.permute.xlu0 %3139
  %v3142 = vadd.f32 %v209, %v3140
  %v3143 = vsel %vm638, %v3142, -inf
  %v3144 = vrot.slane %v3143, 4
  %v3145 = vmax.f32 %v3143, %v3144
  %v3146 = vrot.slane %v3145, 2
  %v3147 = vmax.f32 %v3145, %v3146
  %v3148 = vrot.slane %v3147, 1
  %v3149 = vmax.f32 %v3147, %v3148
  %v3150 = vsub.f32 %v3142, %v3149
  %v3151 = vmul.f32 %v3150, 1.442695
  %v3152 = vpow.pop %v3151
  %v3153 = vsel %vm638, %v3152, 0.0
  %v3154 = vrot.slane %v3153, 4
  %v3155 = vadd.f32 %v3153, %v3154
  %v3156 = vrot.slane %v3155, 2
  %v3157 = vadd.f32 %v3155, %v3156
  %v3158 = vrot.slane %v3157, 1
  %v3159 = vadd.f32 %v3157, %v3158
  %v3160 = vrcp.pop %v3159
  %v3161 = vmul.f32 %v3159, %v3160
  %v3162 = vsub.f32 1.0, %v3161
  %v3163 = vmul.f32 %v3160, %v3162
  %v3164 = vadd.f32 %v3160, %v3163
  %vm3165 = vweird.f32 %v3159
  %vm3166 = vweird.f32 %v3160
  %vm3167 = vmor %vm3165, %vm3166
  %v3168 = vsel %vm3167, %v3160, %v3164
  %v3169 = vand.u32 2147483647, %v3159
  %vm3170 = vcmp.eq.f32.partialorder %v3169, 8.507059e+37
  %v3171 = vand.u32 %v3159, 2147483648
  %v3172 = vor.u32 1.1754944e-38, %v3171
  %v3173 = vsel %vm3170, %v3172, %v3168
  %v3174 = vmul.f32 %v3152, %v3173
  %3176 = vset.pattern.permute.xlu0 0
  %3177 = vperm.xlu0 %3176, %v3174
  %v3178 = vpop.permute.xlu0 %3177
  %v3180 = vmul.f32 %v3178, %v52
  %v3181 = vsel %vm91, %v3180, 0.0
  %v3182 = vrot.slane %v3181, 4
  %v3183 = vadd.f32 %v3181, %v3182
  %v3184 = vrot.slane %v3183, 2
  %v3185 = vadd.f32 %v3183, %v3184
  %v3186 = vrot.slane %v3185, 1
  %v3187 = vadd.f32 %v3185, %v3186
  %v3189 = vsel %vm91, %v3187, 0
  %3191 = vmatpush.msra.mxu0 0.0
  %3192 = vmatpush.msra.mxu0 0.0
  %3193 = vmatpush.msra.mxu0 0.0
  %3194 = vmatpush.msra.mxu0 0.0
  %3195 = vmatpush.msra.mxu0 0.0
  %3196 = vmatpush.msra.mxu0 0.0
  %3197 = vmatpush.msra.mxu0 0.0
  %3198 = vmatpush.msra.mxu0 0.0
  %3199 = vmatpush.msra.mxu0 0.0
  %3200 = vmatpush.msra.mxu0 0.0
  %3201 = vmatpush.msra.mxu0 0.0
  %3202 = vmatpush.msra.mxu0 0.0
  %3203 = vmatpush.msra.mxu0 %v586
  %3204 = vmatpush.msra.mxu0 %v585
  %3205 = vmatpush.msra.mxu0 %v584
  %3206 = vmatpush.msra.mxu0 %v583
  %3207 = vmatmul.f32.gmra.mxu0 %v3189
  %v3208 = vpop.f32.mrf.mxu0
  %v3209 = vadd.f32 0.0, %v3208
  %3210 = vdwg.mxu0
  %v3211 = vadd.f32 %v618, %v3209
  %3212 = vset.pattern.permute.xlu0 1
  %3213 = vperm.xlu0 %3212, %v3174
  %v3214 = vpop.permute.xlu0 %3213
  %v3216 = vmul.f32 %v3214, %v52
  %v3217 = vsel %vm91, %v3216, 0.0
  %v3218 = vrot.slane %v3217, 4
  %v3219 = vadd.f32 %v3217, %v3218
  %v3220 = vrot.slane %v3219, 2
  %v3221 = vadd.f32 %v3219, %v3220
  %v3222 = vrot.slane %v3221, 1
  %v3223 = vadd.f32 %v3221, %v3222
  %v3225 = vsel %vm91, %v3223, 0
  %3227 = vmatpush.msra.mxu0 0.0
  %3228 = vmatpush.msra.mxu0 0.0
  %3229 = vmatpush.msra.mxu0 0.0
  %3230 = vmatpush.msra.mxu0 0.0
  %3231 = vmatpush.msra.mxu0 0.0
  %3232 = vmatpush.msra.mxu0 0.0
  %3233 = vmatpush.msra.mxu0 0.0
  %3234 = vmatpush.msra.mxu0 0.0
  %3235 = vmatpush.msra.mxu0 0.0
  %3236 = vmatpush.msra.mxu0 0.0
  %3237 = vmatpush.msra.mxu0 0.0
  %3238 = vmatpush.msra.mxu0 0.0
  %3239 = vmatpush.msra.mxu0 %v590
  %3240 = vmatpush.msra.mxu0 %v589
  %3241 = vmatpush.msra.mxu0 %v588
  %3242 = vmatpush.msra.mxu0 %v587
  %3243 = vmatmul.f32.gmra.mxu0 %v3225
  %v3244 = vpop.f32.mrf.mxu0
  %v3245 = vadd.f32 0.0, %v3244
  %3246 = vdwg.mxu0
  %v3247 = vadd.f32 %v3211, %v3245
  %v3248 = vmul.f32 %v82, -1e+09
  %3250 = vset.pattern.permute.xlu0 0
  %3251 = vperm.xlu0 %3250, %v3248
  %v3252 = vpop.permute.xlu0 %3251
  %v3254 = vadd.f32 %v339, %v3252
  %v3255 = vsel %vm638, %v3254, -inf
  %v3256 = vrot.slane %v3255, 4
  %v3257 = vmax.f32 %v3255, %v3256
  %v3258 = vrot.slane %v3257, 2
  %v3259 = vmax.f32 %v3257, %v3258
  %v3260 = vrot.slane %v3259, 1
  %v3261 = vmax.f32 %v3259, %v3260
  %v3262 = vsub.f32 %v3254, %v3261
  %v3263 = vmul.f32 %v3262, 1.442695
  %v3264 = vpow.pop %v3263
  %v3265 = vsel %vm638, %v3264, 0.0
  %v3266 = vrot.slane %v3265, 4
  %v3267 = vadd.f32 %v3265, %v3266
  %v3268 = vrot.slane %v3267, 2
  %v3269 = vadd.f32 %v3267, %v3268
  %v3270 = vrot.slane %v3269, 1
  %v3271 = vadd.f32 %v3269, %v3270
  %v3272 = vrcp.pop %v3271
  %v3273 = vmul.f32 %v3271, %v3272
  %v3274 = vsub.f32 1.0, %v3273
  %v3275 = vmul.f32 %v3272, %v3274
  %v3276 = vadd.f32 %v3272, %v3275
  %vm3277 = vweird.f32 %v3271
  %vm3278 = vweird.f32 %v3272
  %vm3279 = vmor %vm3277, %vm3278
  %v3280 = vsel %vm3279, %v3272, %v3276
  %v3281 = vand.u32 2147483647, %v3271
  %vm3282 = vcmp.eq.f32.partialorder %v3281, 8.507059e+37
  %v3283 = vand.u32 %v3271, 2147483648
  %v3284 = vor.u32 1.1754944e-38, %v3283
  %v3285 = vsel %vm3282, %v3284, %v3280
  %v3286 = vmul.f32 %v3264, %v3285
  %3288 = vset.pattern.permute.xlu0 0
  %3289 = vperm.xlu0 %3288, %v3286
  %v3290 = vpop.permute.xlu0 %3289
  %v3292 = vmul.f32 %v3290, %v64
  %v3293 = vsel %vm91, %v3292, 0.0
  %v3294 = vrot.slane %v3293, 4
  %v3295 = vadd.f32 %v3293, %v3294
  %v3296 = vrot.slane %v3295, 2
  %v3297 = vadd.f32 %v3295, %v3296
  %v3298 = vrot.slane %v3297, 1
  %v3299 = vadd.f32 %v3297, %v3298
  %v3301 = vsel %vm91, %v3299, 0
  %3303 = vmatpush.msra.mxu0 0.0
  %3304 = vmatpush.msra.mxu0 0.0
  %3305 = vmatpush.msra.mxu0 0.0
  %3306 = vmatpush.msra.mxu0 0.0
  %3307 = vmatpush.msra.mxu0 0.0
  %3308 = vmatpush.msra.mxu0 0.0
  %3309 = vmatpush.msra.mxu0 0.0
  %3310 = vmatpush.msra.mxu0 0.0
  %3311 = vmatpush.msra.mxu0 0.0
  %3312 = vmatpush.msra.mxu0 0.0
  %3313 = vmatpush.msra.mxu0 0.0
  %3314 = vmatpush.msra.mxu0 0.0
  %3315 = vmatpush.msra.mxu0 %v595
  %3316 = vmatpush.msra.mxu0 %v594
  %3317 = vmatpush.msra.mxu0 %v593
  %3318 = vmatpush.msra.mxu0 %v592
  %3319 = vmatmul.f32.gmra.mxu0 %v3301
  %v3320 = vpop.f32.mrf.mxu0
  %v3321 = vadd.f32 0.0, %v3320
  %3322 = vdwg.mxu0
  %v3323 = vadd.f32 %v620, %v3321
  %3324 = vset.pattern.permute.xlu0 1
  %3325 = vperm.xlu0 %3324, %v3286
  %v3326 = vpop.permute.xlu0 %3325
  %v3328 = vmul.f32 %v3326, %v64
  %v3329 = vsel %vm91, %v3328, 0.0
  %v3330 = vrot.slane %v3329, 4
  %v3331 = vadd.f32 %v3329, %v3330
  %v3332 = vrot.slane %v3331, 2
  %v3333 = vadd.f32 %v3331, %v3332
  %v3334 = vrot.slane %v3333, 1
  %v3335 = vadd.f32 %v3333, %v3334
  %v3337 = vsel %vm91, %v3335, 0
  %3339 = vmatpush.msra.mxu0 0.0
  %3340 = vmatpush.msra.mxu0 0.0
  %3341 = vmatpush.msra.mxu0 0.0
  %3342 = vmatpush.msra.mxu0 0.0
  %3343 = vmatpush.msra.mxu0 0.0
  %3344 = vmatpush.msra.mxu0 0.0
  %3345 = vmatpush.msra.mxu0 0.0
  %3346 = vmatpush.msra.mxu0 0.0
  %3347 = vmatpush.msra.mxu0 0.0
  %3348 = vmatpush.msra.mxu0 0.0
  %3349 = vmatpush.msra.mxu0 0.0
  %3350 = vmatpush.msra.mxu0 0.0
  %3351 = vmatpush.msra.mxu0 %v599
  %3352 = vmatpush.msra.mxu0 %v598
  %3353 = vmatpush.msra.mxu0 %v597
  %3354 = vmatpush.msra.mxu0 %v596
  %3355 = vmatmul.f32.gmra.mxu0 %v3337
  %v3356 = vpop.f32.mrf.mxu0
  %v3357 = vadd.f32 0.0, %v3356
  %3358 = vdwg.mxu0
  %v3359 = vadd.f32 %v3323, %v3357
  %v3360 = vadd.f32 %v3247, %v3359
  %v3361 = vmul.f32 %v76, -1e+09
  %3363 = vset.pattern.permute.xlu0 0
  %3364 = vperm.xlu0 %3363, %v3361
  %v3365 = vpop.permute.xlu0 %3364
  %v3367 = vadd.f32 %v469, %v3365
  %v3368 = vsel %vm638, %v3367, -inf
  %v3369 = vrot.slane %v3368, 4
  %v3370 = vmax.f32 %v3368, %v3369
  %v3371 = vrot.slane %v3370, 2
  %v3372 = vmax.f32 %v3370, %v3371
  %v3373 = vrot.slane %v3372, 1
  %v3374 = vmax.f32 %v3372, %v3373
  %v3375 = vsub.f32 %v3367, %v3374
  %v3376 = vmul.f32 %v3375, 1.442695
  %v3377 = vpow.pop %v3376
  %v3378 = vsel %vm638, %v3377, 0.0
  %v3379 = vrot.slane %v3378, 4
  %v3380 = vadd.f32 %v3378, %v3379
  %v3381 = vrot.slane %v3380, 2
  %v3382 = vadd.f32 %v3380, %v3381
  %v3383 = vrot.slane %v3382, 1
  %v3384 = vadd.f32 %v3382, %v3383
  %v3385 = vrcp.pop %v3384
  %v3386 = vmul.f32 %v3384, %v3385
  %v3387 = vsub.f32 1.0, %v3386
  %v3388 = vmul.f32 %v3385, %v3387
  %v3389 = vadd.f32 %v3385, %v3388
  %vm3390 = vweird.f32 %v3384
  %vm3391 = vweird.f32 %v3385
  %vm3392 = vmor %vm3390, %vm3391
  %v3393 = vsel %vm3392, %v3385, %v3389
  %v3394 = vand.u32 2147483647, %v3384
  %vm3395 = vcmp.eq.f32.partialorder %v3394, 8.507059e+37
  %v3396 = vand.u32 %v3384, 2147483648
  %v3397 = vor.u32 1.1754944e-38, %v3396
  %v3398 = vsel %vm3395, %v3397, %v3393
  %v3399 = vmul.f32 %v3377, %v3398
  %3401 = vset.pattern.permute.xlu0 0
  %3402 = vperm.xlu0 %3401, %v3399
  %v3403 = vpop.permute.xlu0 %3402
  %v3405 = vmul.f32 %v3403, %v58
  %v3406 = vsel %vm91, %v3405, 0.0
  %v3407 = vrot.slane %v3406, 4
  %v3408 = vadd.f32 %v3406, %v3407
  %v3409 = vrot.slane %v3408, 2
  %v3410 = vadd.f32 %v3408, %v3409
  %v3411 = vrot.slane %v3410, 1
  %v3412 = vadd.f32 %v3410, %v3411
  %v3414 = vsel %vm91, %v3412, 0
  %3416 = vmatpush.msra.mxu0 0.0
  %3417 = vmatpush.msra.mxu0 0.0
  %3418 = vmatpush.msra.mxu0 0.0
  %3419 = vmatpush.msra.mxu0 0.0
  %3420 = vmatpush.msra.mxu0 0.0
  %3421 = vmatpush.msra.mxu0 0.0
  %3422 = vmatpush.msra.mxu0 0.0
  %3423 = vmatpush.msra.mxu0 0.0
  %3424 = vmatpush.msra.mxu0 0.0
  %3425 = vmatpush.msra.mxu0 0.0
  %3426 = vmatpush.msra.mxu0 0.0
  %3427 = vmatpush.msra.mxu0 0.0
  %3428 = vmatpush.msra.mxu0 %v604
  %3429 = vmatpush.msra.mxu0 %v603
  %3430 = vmatpush.msra.mxu0 %v602
  %3431 = vmatpush.msra.mxu0 %v601
  %3432 = vmatmul.f32.gmra.mxu0 %v3414
  %v3433 = vpop.f32.mrf.mxu0
  %v3434 = vadd.f32 0.0, %v3433
  %3435 = vdwg.mxu0
  %v3436 = vadd.f32 %v622, %v3434
  %3437 = vset.pattern.permute.xlu0 1
  %3438 = vperm.xlu0 %3437, %v3399
  %v3439 = vpop.permute.xlu0 %3438
  %v3441 = vmul.f32 %v3439, %v58
  %v3442 = vsel %vm91, %v3441, 0.0
  %v3443 = vrot.slane %v3442, 4
  %v3444 = vadd.f32 %v3442, %v3443
  %v3445 = vrot.slane %v3444, 2
  %v3446 = vadd.f32 %v3444, %v3445
  %v3447 = vrot.slane %v3446, 1
  %v3448 = vadd.f32 %v3446, %v3447
  %v3450 = vsel %vm91, %v3448, 0
  %3452 = vmatpush.msra.mxu0 0.0
  %3453 = vmatpush.msra.mxu0 0.0
  %3454 = vmatpush.msra.mxu0 0.0
  %3455 = vmatpush.msra.mxu0 0.0
  %3456 = vmatpush.msra.mxu0 0.0
  %3457 = vmatpush.msra.mxu0 0.0
  %3458 = vmatpush.msra.mxu0 0.0
  %3459 = vmatpush.msra.mxu0 0.0
  %3460 = vmatpush.msra.mxu0 0.0
  %3461 = vmatpush.msra.mxu0 0.0
  %3462 = vmatpush.msra.mxu0 0.0
  %3463 = vmatpush.msra.mxu0 0.0
  %3464 = vmatpush.msra.mxu0 %v608
  %3465 = vmatpush.msra.mxu0 %v607
  %3466 = vmatpush.msra.mxu0 %v606
  %3467 = vmatpush.msra.mxu0 %v605
  %3468 = vmatmul.f32.gmra.mxu0 %v3450
  %v3469 = vpop.f32.mrf.mxu0
  %v3470 = vadd.f32 0.0, %v3469
  %3471 = vdwg.mxu0
  %v3472 = vadd.f32 %v3436, %v3470
  %v3473 = vadd.f32 %v581, %v3252
  %v3474 = vsel %vm638, %v3473, -inf
  %v3475 = vrot.slane %v3474, 4
  %v3476 = vmax.f32 %v3474, %v3475
  %v3477 = vrot.slane %v3476, 2
  %v3478 = vmax.f32 %v3476, %v3477
  %v3479 = vrot.slane %v3478, 1
  %v3480 = vmax.f32 %v3478, %v3479
  %v3481 = vsub.f32 %v3473, %v3480
  %v3482 = vmul.f32 %v3481, 1.442695
  %v3483 = vpow.pop %v3482
  %v3484 = vsel %vm638, %v3483, 0.0
  %v3485 = vrot.slane %v3484, 4
  %v3486 = vadd.f32 %v3484, %v3485
  %v3487 = vrot.slane %v3486, 2
  %v3488 = vadd.f32 %v3486, %v3487
  %v3489 = vrot.slane %v3488, 1
  %v3490 = vadd.f32 %v3488, %v3489
  %v3491 = vrcp.pop %v3490
  %v3492 = vmul.f32 %v3490, %v3491
  %v3493 = vsub.f32 1.0, %v3492
  %v3494 = vmul.f32 %v3491, %v3493
  %v3495 = vadd.f32 %v3491, %v3494
  %vm3496 = vweird.f32 %v3490
  %vm3497 = vweird.f32 %v3491
  %vm3498 = vmor %vm3496, %vm3497
  %v3499 = vsel %vm3498, %v3491, %v3495
  %v3500 = vand.u32 2147483647, %v3490
  %vm3501 = vcmp.eq.f32.partialorder %v3500, 8.507059e+37
  %v3502 = vand.u32 %v3490, 2147483648
  %v3503 = vor.u32 1.1754944e-38, %v3502
  %v3504 = vsel %vm3501, %v3503, %v3499
  %v3505 = vmul.f32 %v3483, %v3504
  %3507 = vset.pattern.permute.xlu0 0
  %3508 = vperm.xlu0 %3507, %v3505
  %v3509 = vpop.permute.xlu0 %3508
  %v3511 = vmul.f32 %v3509, %v64
  %v3512 = vsel %vm91, %v3511, 0.0
  %v3513 = vrot.slane %v3512, 4
  %v3514 = vadd.f32 %v3512, %v3513
  %v3515 = vrot.slane %v3514, 2
  %v3516 = vadd.f32 %v3514, %v3515
  %v3517 = vrot.slane %v3516, 1
  %v3518 = vadd.f32 %v3516, %v3517
  %v3520 = vsel %vm91, %v3518, 0
  %3522 = vmatpush.msra.mxu0 0.0
  %3523 = vmatpush.msra.mxu0 0.0
  %3524 = vmatpush.msra.mxu0 0.0
  %3525 = vmatpush.msra.mxu0 0.0
  %3526 = vmatpush.msra.mxu0 0.0
  %3527 = vmatpush.msra.mxu0 0.0
  %3528 = vmatpush.msra.mxu0 0.0
  %3529 = vmatpush.msra.mxu0 0.0
  %3530 = vmatpush.msra.mxu0 0.0
  %3531 = vmatpush.msra.mxu0 0.0
  %3532 = vmatpush.msra.mxu0 0.0
  %3533 = vmatpush.msra.mxu0 0.0
  %3534 = vmatpush.msra.mxu0 %v613
  %3535 = vmatpush.msra.mxu0 %v612
  %3536 = vmatpush.msra.mxu0 %v611
  %3537 = vmatpush.msra.mxu0 %v610
  %3538 = vmatmul.f32.gmra.mxu0 %v3520
  %v3539 = vpop.f32.mrf.mxu0
  %v3540 = vadd.f32 0.0, %v3539
  %3541 = vdwg.mxu0
  %v3542 = vadd.f32 %v624, %v3540
  %3543 = vset.pattern.permute.xlu0 1
  %3544 = vperm.xlu0 %3543, %v3505
  %v3545 = vpop.permute.xlu0 %3544
  %v3547 = vmul.f32 %v3545, %v64
  %v3548 = vsel %vm91, %v3547, 0.0
  %v3549 = vrot.slane %v3548, 4
  %v3550 = vadd.f32 %v3548, %v3549
  %v3551 = vrot.slane %v3550, 2
  %v3552 = vadd.f32 %v3550, %v3551
  %v3553 = vrot.slane %v3552, 1
  %v3554 = vadd.f32 %v3552, %v3553
  %v3556 = vsel %vm91, %v3554, 0
  %3558 = vmatpush.msra.mxu0 0.0
  %3559 = vmatpush.msra.mxu0 0.0
  %3560 = vmatpush.msra.mxu0 0.0
  %3561 = vmatpush.msra.mxu0 0.0
  %3562 = vmatpush.msra.mxu0 0.0
  %3563 = vmatpush.msra.mxu0 0.0
  %3564 = vmatpush.msra.mxu0 0.0
  %3565 = vmatpush.msra.mxu0 0.0
  %3566 = vmatpush.msra.mxu0 0.0
  %3567 = vmatpush.msra.mxu0 0.0
  %3568 = vmatpush.msra.mxu0 0.0
  %3569 = vmatpush.msra.mxu0 0.0
  %3570 = vmatpush.msra.mxu0 %v617
  %3571 = vmatpush.msra.mxu0 %v616
  %3572 = vmatpush.msra.mxu0 %v615
  %3573 = vmatpush.msra.mxu0 %v614
  %3574 = vmatmul.f32.gmra.mxu0 %v3556
  %v3575 = vpop.f32.mrf.mxu0
  %v3576 = vadd.f32 0.0, %v3575
  %3577 = vdwg.mxu0
  %v3578 = vadd.f32 %v3542, %v3576
  %v3579 = vadd.f32 %v3472, %v3578
  %v3580 = vsel %vm1076, %v3360, 0.0
  %3581 = vadd.xlane.f32.xlu0 %v3580
  %v3582 = vpop.xlane.xlu0 %3581
  %v3583 = vmul.f32 %v3582, %v1086
  %v3584 = vsub.f32 %v3360, %v3583
  %v3585 = vmul.f32 %v3584, %v3584
  %v3586 = vsel %vm1076, %v3585, 0.0
  %3587 = vadd.xlane.f32.xlu0 %v3586
  %v3588 = vpop.xlane.xlu0 %3587
  %v3589 = vmul.f32 %v3588, %v1086
  %v3590 = vadd.f32 %v3589, 1e-05
  %v3591 = vrsqrt.pop %v3590
  %v3592 = vmul.f32 %v3591, %v3590
  %v3593 = vmul.f32 %v3592, %v3591
  %v3594 = vmul.f32 0.5, %v3593
  %v3595 = vsub.f32 1.5, %v3594
  %v3596 = vmul.f32 %v3591, %v3595
  %vm3597 = vweird.f32 %v3590
  %vm3598 = vweird.f32 %v3591
  %vm3599 = vmor %vm3597, %vm3598
  %v3600 = vsel %vm3599, %v3591, %v3596
  %v3601 = vmul.f32 %v3584, %v3600
  %v3602 = vmul.f32 %v3601, %v625
  %v3603 = vadd.f32 %v3602, %v628
  %3604 = vst.msk [vmem:[%s14 + $0x5] sm:$0x1] %vm1076, %v3603
  %v3605 = vsel %vm1076, %v3579, 0.0
  %3606 = vadd.xlane.f32.xlu0 %v3605
  %v3607 = vpop.xlane.xlu0 %3606
  %v3608 = vmul.f32 %v3607, %v1086
  %v3609 = vsub.f32 %v3579, %v3608
  %v3610 = vmul.f32 %v3609, %v3609
  %v3611 = vsel %vm1076, %v3610, 0.0
  %3612 = vadd.xlane.f32.xlu0 %v3611
  %v3613 = vpop.xlane.xlu0 %3612
  %v3614 = vmul.f32 %v3613, %v1086
  %v3615 = vadd.f32 %v3614, 1e-05
  %v3616 = vrsqrt.pop %v3615
  %v3617 = vmul.f32 %v3616, %v3615
  %v3618 = vmul.f32 %v3617, %v3616
  %v3619 = vmul.f32 0.5, %v3618
  %v3620 = vsub.f32 1.5, %v3619
  %v3621 = vmul.f32 %v3616, %v3620
  %vm3622 = vweird.f32 %v3615
  %vm3623 = vweird.f32 %v3616
  %vm3624 = vmor %vm3622, %vm3623
  %v3625 = vsel %vm3624, %v3616, %v3621
  %v3626 = vmul.f32 %v3609, %v3625
  %v3627 = vmul.f32 %v3626, %v627
  %v3628 = vadd.f32 %v3627, %v630
  %v3630 = vperm.slane %v3628, 0
  %3631 = vrot.lane.b32.xlu0 %v3630, 32
  %v3632 = vpop.permute.xlu0 %3631
  %3634 = vst.msk [vmem:[%s14 + $0x5] sm:$0x1] %vm1138, %v3632
  // Predicated region
  $region58: #{sgln_forward.8} parent=0 // pred_check
    _
  $region59: #{sgln_forward.8} parent=0 // pred_check_branch
    %3636 = sbr.rel (0) target = $region61
  $region60: #{sgln_forward.8} parent=0 // pred_region
    _
  $region61: #{sgln_forward.8} parent=0 // pred_fallthru
    _
  // Predicated region
  $region62: #{sgln_forward.8} parent=0 // pred_check
    _
  $region63: #{sgln_forward.8} parent=0 // pred_check_branch
    %3638 = sbr.rel (0) target = $region65
  $region64: #{sgln_forward.8} parent=0 // pred_region
    _
  $region65: #{sgln_forward.8} parent=0 // pred_fallthru
    _

</llo_original>
